<compile_context>
chip_gen: v5e
topology: v5e:2x2
jax: 0.10.0
libtpu: 0.0.40
codegen_flags: <defaults>
</compile_context>

<pallas_src>
import functools

import numpy as np
import jax
import jax.numpy as jnp
from jax import lax
from jax.experimental import pallas as pl
from jax.experimental.pallas import tpu as pltpu


# ---------------------------------------------------------------------------
# Fused kernel: conv1 -> conv2 -> conv3 -> fc_common -> merged actor/critic.
# ---------------------------------------------------------------------------
def _policy_kernel(x_ref, w1_ref, b1_ref, w2_ref, b2_ref, w3_ref, b3_ref,
                   wc_ref, bc_ref, wac_ref, bac_ref, whd_ref, bhd_ref,
                   out_ref, s1_ref, s2_ref, *, B, H, W, C1, C2, C3, A):
    f32 = jnp.float32
    bf16 = jnp.bfloat16

    def banded_conv(lhs_of_dy, w_ref, b_ref):
        # 3x3 SAME conv == sum over the 3 kernel rows (dy) of one MXU matmul
        # each; the dx taps + x zero padding live inside the banded weights.
        acc = jnp.dot(lhs_of_dy(0), w_ref[0], preferred_element_type=f32)
        acc = acc + jnp.dot(lhs_of_dy(1), w_ref[1], preferred_element_type=f32)
        acc = acc + jnp.dot(lhs_of_dy(2), w_ref[2], preferred_element_type=f32)
        return jnp.maximum(acc + b_ref[...], 0.0)           # (H*B, W*Cout) f32

    # ---- conv1 (Cin = 1): LHS_dy = padded board rows dy..dy+H-1 -------------
    xb = x_ref[...].astype(bf16)                            # (H+2, B, W)
    h1 = banded_conv(lambda dy: xb[dy:dy + H].reshape(H * B, W), w1_ref, b1_ref)

    # Stash conv1 output into the row-padded scratch; halo rows are re-zeroed
    # every grid step (no reliance on cross-iteration scratch state).
    zero1 = jnp.zeros((1, B, W * C1), bf16)
    s1_ref[0:1] = zero1
    s1_ref[H + 1:H + 2] = zero1
    s1_ref[1:H + 1] = h1.reshape(H, B, W * C1).astype(bf16)

    # ---- conv2 --------------------------------------------------------------
    h2 = banded_conv(lambda dy: s1_ref[dy:dy + H].reshape(H * B, W * C1),
                     w2_ref, b2_ref)
    zero2 = jnp.zeros((1, B, W * C2), bf16)
    s2_ref[0:1] = zero2
    s2_ref[H + 1:H + 2] = zero2
    s2_ref[1:H + 1] = h2.reshape(H, B, W * C2).astype(bf16)

    # ---- conv3 (stays a VMEM value; never written to HBM) -------------------
    h3 = banded_conv(lambda dy: s2_ref[dy:dy + H].reshape(H * B, W * C2),
                     w3_ref, b3_ref)
    h3 = h3.reshape(H, B, W * C3).astype(bf16)              # (H, B, W*C3)

    # ---- fc_common: torch's NCHW flatten is folded into wc's row ordering;
    # the y axis is contracted as a sum of H small matmuls (no relayout).
    com = jnp.dot(h3[0], wc_ref[0], preferred_element_type=f32)
    for y in range(1, H):
        com = com + jnp.dot(h3[y], wc_ref[y], preferred_element_type=f32)
    com = jnp.maximum(com + bc_ref[...], 0.0)               # (B, hidden) f32

    # ---- merged actor/critic hidden + merged (block-diagonal) heads, f32 ----
    ac = jnp.dot(com, wac_ref[...], preferred_element_type=f32) + bac_ref[...]
    ac = jnp.maximum(ac, 0.0)                               # [actor | critic]
    hd = jnp.dot(ac, whd_ref[...], preferred_element_type=f32) + bhd_ref[...]

    logits = hd[:, :A]
    logits = logits - jnp.max(logits, axis=-1, keepdims=True)
    e = jnp.exp(logits)
    out_ref[:, :A] = e / jnp.sum(e, axis=-1, keepdims=True)  # action probs
    out_ref[:, A:A + 1] = hd[:, A:A + 1]                     # state value


def _fused_forward(xT, p, *, H, W, B, A):
    Hp, Np, _ = xT.shape
    C1 = p["w1"].shape[2] // W
    C2 = p["w2"].shape[2] // W
    C3 = p["w3"].shape[2] // W
    kernel = functools.partial(_policy_kernel, B=B, H=H, W=W,
                               C1=C1, C2=C2, C3=C3, A=A)

    def const(arr):
        nd = arr.ndim
        return pl.BlockSpec(tuple(arr.shape), lambda n: (0,) * nd)

    return pl.pallas_call(
        kernel,
        out_shape=jax.ShapeDtypeStruct((Np, A + 1), jnp.float32),
        grid=(Np // B,),
        in_specs=[
            pl.BlockSpec((Hp, B, W), lambda n: (0, n, 0)),  # row-padded board
            const(p["w1"]), const(p["b1"]),
            const(p["w2"]), const(p["b2"]),
            const(p["w3"]), const(p["b3"]),
            const(p["wc"]), const(p["bc"]),
            const(p["wac"]), const(p["bac"]),
            const(p["whd"]), const(p["bhd"]),
        ],
        out_specs=pl.BlockSpec((B, A + 1), lambda n: (n, 0)),
        scratch_shapes=[
            pltpu.VMEM((H + 2, B, W * C1), jnp.bfloat16),   # padded conv1 out
            pltpu.VMEM((H + 2, B, W * C2), jnp.bfloat16),   # padded conv2 out
        ],
        compiler_params=pltpu.CompilerParams(
            dimension_semantics=("parallel",),
            vmem_limit_bytes=48 * 1024 * 1024),
    )(xT, p["w1"], p["b1"], p["w2"], p["b2"], p["w3"], p["b3"],
      p["wc"], p["bc"], p["wac"], p["bac"], p["whd"], p["bhd"])


# ---------------------------------------------------------------------------
# Public forward (== CNNPolicy.forward): returns (action_probs, state_value).
# ---------------------------------------------------------------------------
def cnn_policy_forward(params, x, *, batch_tile=None):
    N, H, W = x.shape                      # torch unsqueezes channel -> Cin=1
    A = params["whd"].shape[1] - 1
    if batch_tile is None:
        # 64 is v7x-safe; raise to 128+ on v6e/v5e (and keep Np//B >= 2 on v7x
        # so both TensorCores get work).  Tiny batches just use one small tile.
        batch_tile = min(64, -(-N // 8) * 8)
    assert batch_tile % 8 == 0, "batch_tile must be a multiple of 8 (sublane)"
    B = batch_tile
    Np = -(-N // B) * B
    if Np != N:
        x = jnp.pad(x, ((0, Np - N), (0, 0), (0, 0)))
    # (N, H, W) -> (H+2, Np, W): padded rows lead so the kernel's dy shifts are
    # free leading-dim slices; the 1-px y halo is pre-zeroed here.
    xT = jnp.pad(jnp.transpose(x, (1, 0, 2)), ((1, 1), (0, 0), (0, 0)))
    out = _fused_forward(xT, params, H=H, W=W, B=B, A=A)
    return out[:N, :A], out[:N, A:A + 1]
    # TODO(synk): get_action()'s Categorical sampling / argmax / .item() is
    # host-side policy logic outside forward(), so it is intentionally omitted.


# ---------------------------------------------------------------------------
# Parameter init (torch layouts, mirroring CNNPolicy._initialize_weights).
# ---------------------------------------------------------------------------
def init_params(key, input_shape=(8, 8), action_size=4, hidden_size=32):
    H, W = input_shape
    ks = jax.random.split(key, 8)

    def conv_w(k, cin, cout):
        # kaiming_normal_(mode='fan_out', relu): std = sqrt(2 / (cout*3*3))
        std = (2.0 / (cout * 9)) ** 0.5
        return jax.random.normal(k, (cout, cin, 3, 3), jnp.float32) * std

    def lin_w(k, fin, fout):
        # nn.init.normal_(weight, 0, 0.1); torch Linear stores (fout, fin)
        return jax.random.normal(k, (fout, fin), jnp.float32) * 0.1

    z = lambda n: jnp.zeros((n,), jnp.float32)
    return {
        "conv1_w": conv_w(ks[0], 1, 32),  "conv1_b": z(32),
        "conv2_w": conv_w(ks[1], 32, 64), "conv2_b": z(64),
        "conv3_w": conv_w(ks[2], 64, 64), "conv3_b": z(64),
        "fc_common_w": lin_w(ks[3], H * W * 64, hidden_size),
        "fc_common_b": z(hidden_size),
        "fc_actor_w": lin_w(ks[4], hidden_size, hidden_size // 2),
        "fc_actor_b": z(hidden_size // 2),
        "action_head_w": lin_w(ks[5], hidden_size // 2, action_size),
        "action_head_b": z(action_size),
        "fc_critic_w": lin_w(ks[6], hidden_size, hidden_size // 2),
        "fc_critic_b": z(hidden_size // 2),
        "value_head_w": lin_w(ks[7], hidden_size // 2, 1),
        "value_head_b": z(1),
    }


def pack_params(raw, input_shape=(8, 8)):
    """Torch-layout params -> fused-kernel layouts (banded convs, folded FCs)."""
    H, W = input_shape

    def band(w_t):
        # (Cout, Cin, 3, 3) -> (3, W*Cin, W*Cout) block-banded matrices:
        # band[dy, j*Cin+ci, x*Cout+co] = w_t[co, ci, dy, j-x+1], zero elsewhere
        # (missing j == zero x-padding).
        w = np.asarray(w_t, np.float32)
        cout, cin = w.shape[0], w.shape[1]
        b = np.zeros((3, W * cin, W * cout), np.float32)
        for dy in range(3):
            for x in range(W):
                for dx in range(3):
                    j = x + dx - 1
                    if 0 <= j < W:
                        b[dy, j * cin:(j + 1) * cin,
                          x * cout:(x + 1) * cout] = w[:, :, dy, dx].T
        return jnp.asarray(b, jnp.bfloat16)

    def xbias(b_t):
        # bias for output column index x*Cout + co.
        b = np.asarray(b_t, np.float32)
        return jnp.asarray(np.tile(b[None, :], (1, W)), jnp.float32)

    C3 = raw["conv3_w"].shape[0]
    hid = raw["fc_common_w"].shape[0]
    half = hid // 2
    A = raw["action_head_w"].shape[0]

    # fc_common: fold torch's NCHW flatten (f = c*H*W + y*W + x) into a
    # (H, W*C3, hidden) weight indexed [y, x*C3 + c, h].
    wc = np.asarray(raw["fc_common_w"], np.float32).reshape(hid, C3, H, W)
    wc = np.transpose(wc, (2, 3, 1, 0)).reshape(H, W * C3, hid)

    # Merged actor/critic hidden layer and block-diagonal merged heads.
    wac = np.concatenate([np.asarray(raw["fc_actor_w"], np.float32).T,
                          np.asarray(raw["fc_critic_w"], np.float32).T], axis=1)
    bac = np.concatenate([np.asarray(raw["fc_actor_b"], np.float32),
                          np.asarray(raw["fc_critic_b"], np.float32)])[None, :]
    whd = np.zeros((2 * half, A + 1), np.float32)
    whd[:half, :A] = np.asarray(raw["action_head_w"], np.float32).T
    whd[half:, A:A + 1] = np.asarray(raw["value_head_w"], np.float32).T
    bhd = np.concatenate([np.asarray(raw["action_head_b"], np.float32),
                          np.asarray(raw["value_head_b"], np.float32)])[None, :]

    return {
        "w1": band(raw["conv1_w"]), "b1": xbias(raw["conv1_b"]),
        "w2": band(raw["conv2_w"]), "b2": xbias(raw["conv2_b"]),
        "w3": band(raw["conv3_w"]), "b3": xbias(raw["conv3_b"]),
        "wc": jnp.asarray(wc, jnp.bfloat16),
        "bc": jnp.asarray(np.asarray(raw["fc_common_b"], np.float32)[None, :]),
        "wac": jnp.asarray(wac), "bac": jnp.asarray(bac),
        "whd": jnp.asarray(whd), "bhd": jnp.asarray(bhd),
    }


# ---------------------------------------------------------------------------
# Pure-JAX f32 reference of the same math (self-check only).
# ---------------------------------------------------------------------------
def _ref_forward(raw, x):
    dn = ("NCHW", "OIHW", "NCHW")

    def conv(h, w, b):
        o = lax.conv_general_dilated(h, w, (1, 1), "SAME", dimension_numbers=dn,
                                     precision=lax.Precision.HIGHEST)
        return jnp.maximum(o + b[None, :, None, None], 0.0)

    def lin(a, w, b):
        return jnp.dot(a, w.T, precision=lax.Precision.HIGHEST) + b

    h = x[:, None, :, :]
    h = conv(h, raw["conv1_w"], raw["conv1_b"])
    h = conv(h, raw["conv2_w"], raw["conv2_b"])
    h = conv(h, raw["conv3_w"], raw["conv3_b"])
    flat = h.reshape(h.shape[0], -1)
    common = jnp.maximum(lin(flat, raw["fc_common_w"], raw["fc_common_b"]), 0.0)
    actor = jnp.maximum(lin(common, raw["fc_actor_w"], raw["fc_actor_b"]), 0.0)
    probs = jax.nn.softmax(lin(actor, raw["action_head_w"], raw["action_head_b"]), -1)
    critic = jnp.maximum(lin(common, raw["fc_critic_w"], raw["fc_critic_b"]), 0.0)
    value = lin(critic, raw["value_head_w"], raw["value_head_b"])
    return probs, value


if __name__ == "__main__":
    key = jax.random.PRNGKey(0)
    pkey, xkey = jax.random.split(key)
    input_shape = (8, 8)                                  # Sokoban board
    raw = init_params(pkey, input_shape=input_shape, action_size=4, hidden_size=32)
    params = pack_params(raw, input_shape=input_shape)

    x = jax.random.uniform(xkey, (2, *input_shape), dtype=jnp.float32)

    fwd = jax.jit(functools.partial(cnn_policy_forward, params))
    action_probs, state_value = fwd(x)
    jax.block_until_ready((action_probs, state_value))

    assert action_probs.shape == (2, 4) and action_probs.dtype == jnp.float32
    assert state_value.shape == (2, 1) and state_value.dtype == jnp.float32
    # Softmax rows must sum to 1.
    assert bool(jnp.all(jnp.abs(jnp.sum(action_probs, axis=-1) - 1.0) < 1e-5))

    # Self-check against a pure-JAX f32 reference (bf16 MXU operands -> loose tol).
    ref_probs, ref_value = _ref_forward(raw, x)
    assert bool(jnp.max(jnp.abs(action_probs - ref_probs)) < 2.5e-2)
    assert bool(jnp.max(jnp.abs(state_value - ref_value)) < 2.5e-2)

    print("KERNEL_OK")
</pallas_src>

<mosaic_0001>
module attributes {stable_mosaic.version = 11 : i64} {
  func.func @_policy_kernel(%arg0: i32, %arg1: memref<10x8x8xf32, #tpu.memory_space<vmem>>, %arg2: memref<3x8x256xbf16, #tpu.memory_space<vmem>>, %arg3: memref<1x256xf32, #tpu.memory_space<vmem>>, %arg4: memref<3x256x512xbf16, #tpu.memory_space<vmem>>, %arg5: memref<1x512xf32, #tpu.memory_space<vmem>>, %arg6: memref<3x512x512xbf16, #tpu.memory_space<vmem>>, %arg7: memref<1x512xf32, #tpu.memory_space<vmem>>, %arg8: memref<8x512x32xbf16, #tpu.memory_space<vmem>>, %arg9: memref<1x32xf32, #tpu.memory_space<vmem>>, %arg10: memref<32x32xf32, #tpu.memory_space<vmem>>, %arg11: memref<1x32xf32, #tpu.memory_space<vmem>>, %arg12: memref<32x5xf32, #tpu.memory_space<vmem>>, %arg13: memref<1x5xf32, #tpu.memory_space<vmem>>, %arg14: memref<8x5xf32, #tpu.memory_space<vmem>>, %arg15: memref<10x8x256xbf16, #tpu.memory_space<vmem>>, %arg16: memref<10x8x512xbf16, #tpu.memory_space<vmem>>) attributes {dimension_semantics = [#tpu.dimension_semantics<parallel>], iteration_bounds = array<i64: 1>, scalar_prefetch = 0 : i64, scratch_operands = 2 : i64, tpu.core_type = #tpu.core_type<tc>, window_params = [{transform_indices = @transform_0, window_bounds = array<i64: 10, 8, 8>}, {pipeline_mode = #tpu.pipeline_mode<synchronous>, transform_indices = @transform_1, window_bounds = array<i64: 3, 8, 256>}, {pipeline_mode = #tpu.pipeline_mode<synchronous>, transform_indices = @transform_2, window_bounds = array<i64: 1, 256>}, {pipeline_mode = #tpu.pipeline_mode<synchronous>, transform_indices = @transform_3, window_bounds = array<i64: 3, 256, 512>}, {pipeline_mode = #tpu.pipeline_mode<synchronous>, transform_indices = @transform_4, window_bounds = array<i64: 1, 512>}, {pipeline_mode = #tpu.pipeline_mode<synchronous>, transform_indices = @transform_5, window_bounds = array<i64: 3, 512, 512>}, {pipeline_mode = #tpu.pipeline_mode<synchronous>, transform_indices = @transform_6, window_bounds = array<i64: 1, 512>}, {pipeline_mode = #tpu.pipeline_mode<synchronous>, transform_indices = @transform_7, window_bounds = array<i64: 8, 512, 32>}, {pipeline_mode = #tpu.pipeline_mode<synchronous>, transform_indices = @transform_8, window_bounds = array<i64: 1, 32>}, {pipeline_mode = #tpu.pipeline_mode<synchronous>, transform_indices = @transform_9, window_bounds = array<i64: 32, 32>}, {pipeline_mode = #tpu.pipeline_mode<synchronous>, transform_indices = @transform_10, window_bounds = array<i64: 1, 32>}, {pipeline_mode = #tpu.pipeline_mode<synchronous>, transform_indices = @transform_11, window_bounds = array<i64: 32, 5>}, {pipeline_mode = #tpu.pipeline_mode<synchronous>, transform_indices = @transform_12, window_bounds = array<i64: 1, 5>}, {transform_indices = @transform_13, window_bounds = array<i64: 8, 5>}]} {
    %c0 = arith.constant 0 : index
    %c0_0 = arith.constant 0 : index
    %c0_1 = arith.constant 0 : index
    %0 = vector.load %arg1[%c0, %c0_0, %c0_1] : memref<10x8x8xf32, #tpu.memory_space<vmem>>, vector<10x8x8xf32>
    %1 = arith.truncf %0 : vector<10x8x8xf32> to vector<10x8x8xbf16>
    %2 = vector.extract_strided_slice %1 {offsets = [0, 0, 0], sizes = [8, 8, 8], strides = [1, 1, 1]} : vector<10x8x8xbf16> to vector<8x8x8xbf16>
    %3 = vector.shape_cast %2 : vector<8x8x8xbf16> to vector<64x8xbf16>
    %c0_2 = arith.constant 0 : index
    %c0_3 = arith.constant 0 : index
    %c0_4 = arith.constant 0 : index
    %4 = vector.load %arg2[%c0_2, %c0_3, %c0_4] : memref<3x8x256xbf16, #tpu.memory_space<vmem>>, vector<1x8x256xbf16>
    %5 = vector.shape_cast %4 : vector<1x8x256xbf16> to vector<8x256xbf16>
    %cst = arith.constant dense<0.000000e+00> : vector<64x256xf32>
    %6 = tpu.matmul %3, %5, %cst {dimension_numbers = #tpu.dot_dimension_numbers<[1], [0], [0], [1], [0, 0, 1, 1], [], []>} : vector<64x8xbf16>, vector<8x256xbf16>, vector<64x256xf32> -> vector<64x256xf32>
    %7 = vector.extract_strided_slice %1 {offsets = [1, 0, 0], sizes = [8, 8, 8], strides = [1, 1, 1]} : vector<10x8x8xbf16> to vector<8x8x8xbf16>
    %8 = vector.shape_cast %7 : vector<8x8x8xbf16> to vector<64x8xbf16>
    %c1 = arith.constant 1 : index
    %c0_5 = arith.constant 0 : index
    %c0_6 = arith.constant 0 : index
    %9 = vector.load %arg2[%c1, %c0_5, %c0_6] : memref<3x8x256xbf16, #tpu.memory_space<vmem>>, vector<1x8x256xbf16>
    %10 = vector.shape_cast %9 : vector<1x8x256xbf16> to vector<8x256xbf16>
    %cst_7 = arith.constant dense<0.000000e+00> : vector<64x256xf32>
    %11 = tpu.matmul %8, %10, %cst_7 {dimension_numbers = #tpu.dot_dimension_numbers<[1], [0], [0], [1], [0, 0, 1, 1], [], []>} : vector<64x8xbf16>, vector<8x256xbf16>, vector<64x256xf32> -> vector<64x256xf32>
    %12 = arith.addf %6, %11 : vector<64x256xf32>
    %13 = vector.extract_strided_slice %1 {offsets = [2, 0, 0], sizes = [8, 8, 8], strides = [1, 1, 1]} : vector<10x8x8xbf16> to vector<8x8x8xbf16>
    %14 = vector.shape_cast %13 : vector<8x8x8xbf16> to vector<64x8xbf16>
    %c2 = arith.constant 2 : index
    %c0_8 = arith.constant 0 : index
    %c0_9 = arith.constant 0 : index
    %15 = vector.load %arg2[%c2, %c0_8, %c0_9] : memref<3x8x256xbf16, #tpu.memory_space<vmem>>, vector<1x8x256xbf16>
    %16 = vector.shape_cast %15 : vector<1x8x256xbf16> to vector<8x256xbf16>
    %cst_10 = arith.constant dense<0.000000e+00> : vector<64x256xf32>
    %17 = tpu.matmul %14, %16, %cst_10 {dimension_numbers = #tpu.dot_dimension_numbers<[1], [0], [0], [1], [0, 0, 1, 1], [], []>} : vector<64x8xbf16>, vector<8x256xbf16>, vector<64x256xf32> -> vector<64x256xf32>
    %18 = arith.addf %12, %17 : vector<64x256xf32>
    %c0_11 = arith.constant 0 : index
    %c0_12 = arith.constant 0 : index
    %19 = vector.load %arg3[%c0_11, %c0_12] : memref<1x256xf32, #tpu.memory_space<vmem>>, vector<1x256xf32>
    %20 = vector.broadcast %19 : vector<1x256xf32> to vector<64x256xf32>
    %21 = arith.addf %18, %20 : vector<64x256xf32>
    %cst_13 = arith.constant 0.000000e+00 : f32
    %22 = vector.broadcast %cst_13 : f32 to vector<64x256xf32>
    %23 = arith.maximumf %21, %22 : vector<64x256xf32>
    %cst_14 = arith.constant 0.000000e+00 : bf16
    %24 = vector.broadcast %cst_14 : bf16 to vector<1x8x256xbf16>
    %c0_15 = arith.constant 0 : index
    %c0_16 = arith.constant 0 : index
    %c0_17 = arith.constant 0 : index
    %25 = vector.load %arg15[%c0_15, %c0_16, %c0_17] : memref<10x8x256xbf16, #tpu.memory_space<vmem>>, vector<1x8x256xbf16>
    tpu.vector_store %arg15[%c0_15, %c0_16, %c0_17], %24 {strides = array<i32>} : memref<10x8x256xbf16, #tpu.memory_space<vmem>>, vector<1x8x256xbf16>,
    %c9 = arith.constant 9 : index
    %c0_18 = arith.constant 0 : index
    %c0_19 = arith.constant 0 : index
    %26 = vector.load %arg15[%c9, %c0_18, %c0_19] : memref<10x8x256xbf16, #tpu.memory_space<vmem>>, vector<1x8x256xbf16>
    tpu.vector_store %arg15[%c9, %c0_18, %c0_19], %24 {strides = array<i32>} : memref<10x8x256xbf16, #tpu.memory_space<vmem>>, vector<1x8x256xbf16>,
    %27 = vector.shape_cast %23 : vector<64x256xf32> to vector<8x8x256xf32>
    %28 = arith.truncf %27 : vector<8x8x256xf32> to vector<8x8x256xbf16>
    %c1_20 = arith.constant 1 : index
    %c0_21 = arith.constant 0 : index
    %c0_22 = arith.constant 0 : index
    %29 = vector.load %arg15[%c1_20, %c0_21, %c0_22] : memref<10x8x256xbf16, #tpu.memory_space<vmem>>, vector<8x8x256xbf16>
    tpu.vector_store %arg15[%c1_20, %c0_21, %c0_22], %28 {strides = array<i32>} : memref<10x8x256xbf16, #tpu.memory_space<vmem>>, vector<8x8x256xbf16>,
    %c0_23 = arith.constant 0 : index
    %c0_24 = arith.constant 0 : index
    %c0_25 = arith.constant 0 : index
    %30 = vector.load %arg15[%c0_23, %c0_24, %c0_25] : memref<10x8x256xbf16, #tpu.memory_space<vmem>>, vector<8x8x256xbf16>
    %31 = vector.shape_cast %30 : vector<8x8x256xbf16> to vector<64x256xbf16>
    %c0_26 = arith.constant 0 : index
    %c0_27 = arith.constant 0 : index
    %c0_28 = arith.constant 0 : index
    %32 = vector.load %arg4[%c0_26, %c0_27, %c0_28] : memref<3x256x512xbf16, #tpu.memory_space<vmem>>, vector<1x256x512xbf16>
    %33 = vector.shape_cast %32 : vector<1x256x512xbf16> to vector<256x512xbf16>
    %cst_29 = arith.constant dense<0.000000e+00> : vector<64x512xf32>
    %34 = tpu.matmul %31, %33, %cst_29 {dimension_numbers = #tpu.dot_dimension_numbers<[1], [0], [0], [1], [0, 0, 1, 1], [], []>} : vector<64x256xbf16>, vector<256x512xbf16>, vector<64x512xf32> -> vector<64x512xf32>
    %c1_30 = arith.constant 1 : index
    %c0_31 = arith.constant 0 : index
    %c0_32 = arith.constant 0 : index
    %35 = vector.load %arg15[%c1_30, %c0_31, %c0_32] : memref<10x8x256xbf16, #tpu.memory_space<vmem>>, vector<8x8x256xbf16>
    %36 = vector.shape_cast %35 : vector<8x8x256xbf16> to vector<64x256xbf16>
    %c1_33 = arith.constant 1 : index
    %c0_34 = arith.constant 0 : index
    %c0_35 = arith.constant 0 : index
    %37 = vector.load %arg4[%c1_33, %c0_34, %c0_35] : memref<3x256x512xbf16, #tpu.memory_space<vmem>>, vector<1x256x512xbf16>
    %38 = vector.shape_cast %37 : vector<1x256x512xbf16> to vector<256x512xbf16>
    %cst_36 = arith.constant dense<0.000000e+00> : vector<64x512xf32>
    %39 = tpu.matmul %36, %38, %cst_36 {dimension_numbers = #tpu.dot_dimension_numbers<[1], [0], [0], [1], [0, 0, 1, 1], [], []>} : vector<64x256xbf16>, vector<256x512xbf16>, vector<64x512xf32> -> vector<64x512xf32>
    %40 = arith.addf %34, %39 : vector<64x512xf32>
    %c2_37 = arith.constant 2 : index
    %c0_38 = arith.constant 0 : index
    %c0_39 = arith.constant 0 : index
    %41 = vector.load %arg15[%c2_37, %c0_38, %c0_39] : memref<10x8x256xbf16, #tpu.memory_space<vmem>>, vector<8x8x256xbf16>
    %42 = vector.shape_cast %41 : vector<8x8x256xbf16> to vector<64x256xbf16>
    %c2_40 = arith.constant 2 : index
    %c0_41 = arith.constant 0 : index
    %c0_42 = arith.constant 0 : index
    %43 = vector.load %arg4[%c2_40, %c0_41, %c0_42] : memref<3x256x512xbf16, #tpu.memory_space<vmem>>, vector<1x256x512xbf16>
    %44 = vector.shape_cast %43 : vector<1x256x512xbf16> to vector<256x512xbf16>
    %cst_43 = arith.constant dense<0.000000e+00> : vector<64x512xf32>
    %45 = tpu.matmul %42, %44, %cst_43 {dimension_numbers = #tpu.dot_dimension_numbers<[1], [0], [0], [1], [0, 0, 1, 1], [], []>} : vector<64x256xbf16>, vector<256x512xbf16>, vector<64x512xf32> -> vector<64x512xf32>
    %46 = arith.addf %40, %45 : vector<64x512xf32>
    %c0_44 = arith.constant 0 : index
    %c0_45 = arith.constant 0 : index
    %47 = vector.load %arg5[%c0_44, %c0_45] : memref<1x512xf32, #tpu.memory_space<vmem>>, vector<1x512xf32>
    %48 = vector.broadcast %47 : vector<1x512xf32> to vector<64x512xf32>
    %49 = arith.addf %46, %48 : vector<64x512xf32>
    %cst_46 = arith.constant 0.000000e+00 : f32
    %50 = vector.broadcast %cst_46 : f32 to vector<64x512xf32>
    %51 = arith.maximumf %49, %50 : vector<64x512xf32>
    %cst_47 = arith.constant 0.000000e+00 : bf16
    %52 = vector.broadcast %cst_47 : bf16 to vector<1x8x512xbf16>
    %c0_48 = arith.constant 0 : index
    %c0_49 = arith.constant 0 : index
    %c0_50 = arith.constant 0 : index
    %53 = vector.load %arg16[%c0_48, %c0_49, %c0_50] : memref<10x8x512xbf16, #tpu.memory_space<vmem>>, vector<1x8x512xbf16>
    tpu.vector_store %arg16[%c0_48, %c0_49, %c0_50], %52 {strides = array<i32>} : memref<10x8x512xbf16, #tpu.memory_space<vmem>>, vector<1x8x512xbf16>,
    %c9_51 = arith.constant 9 : index
    %c0_52 = arith.constant 0 : index
    %c0_53 = arith.constant 0 : index
    %54 = vector.load %arg16[%c9_51, %c0_52, %c0_53] : memref<10x8x512xbf16, #tpu.memory_space<vmem>>, vector<1x8x512xbf16>
    tpu.vector_store %arg16[%c9_51, %c0_52, %c0_53], %52 {strides = array<i32>} : memref<10x8x512xbf16, #tpu.memory_space<vmem>>, vector<1x8x512xbf16>,
    %55 = vector.shape_cast %51 : vector<64x512xf32> to vector<8x8x512xf32>
    %56 = arith.truncf %55 : vector<8x8x512xf32> to vector<8x8x512xbf16>
    %c1_54 = arith.constant 1 : index
    %c0_55 = arith.constant 0 : index
    %c0_56 = arith.constant 0 : index
    %57 = vector.load %arg16[%c1_54, %c0_55, %c0_56] : memref<10x8x512xbf16, #tpu.memory_space<vmem>>, vector<8x8x512xbf16>
    tpu.vector_store %arg16[%c1_54, %c0_55, %c0_56], %56 {strides = array<i32>} : memref<10x8x512xbf16, #tpu.memory_space<vmem>>, vector<8x8x512xbf16>,
    %c0_57 = arith.constant 0 : index
    %c0_58 = arith.constant 0 : index
    %c0_59 = arith.constant 0 : index
    %58 = vector.load %arg16[%c0_57, %c0_58, %c0_59] : memref<10x8x512xbf16, #tpu.memory_space<vmem>>, vector<8x8x512xbf16>
    %59 = vector.shape_cast %58 : vector<8x8x512xbf16> to vector<64x512xbf16>
    %c0_60 = arith.constant 0 : index
    %c0_61 = arith.constant 0 : index
    %c0_62 = arith.constant 0 : index
    %60 = vector.load %arg6[%c0_60, %c0_61, %c0_62] : memref<3x512x512xbf16, #tpu.memory_space<vmem>>, vector<1x512x512xbf16>
    %61 = vector.shape_cast %60 : vector<1x512x512xbf16> to vector<512x512xbf16>
    %cst_63 = arith.constant dense<0.000000e+00> : vector<64x512xf32>
    %62 = tpu.matmul %59, %61, %cst_63 {dimension_numbers = #tpu.dot_dimension_numbers<[1], [0], [0], [1], [0, 0, 1, 1], [], []>} : vector<64x512xbf16>, vector<512x512xbf16>, vector<64x512xf32> -> vector<64x512xf32>
    %c1_64 = arith.constant 1 : index
    %c0_65 = arith.constant 0 : index
    %c0_66 = arith.constant 0 : index
    %63 = vector.load %arg16[%c1_64, %c0_65, %c0_66] : memref<10x8x512xbf16, #tpu.memory_space<vmem>>, vector<8x8x512xbf16>
    %64 = vector.shape_cast %63 : vector<8x8x512xbf16> to vector<64x512xbf16>
    %c1_67 = arith.constant 1 : index
    %c0_68 = arith.constant 0 : index
    %c0_69 = arith.constant 0 : index
    %65 = vector.load %arg6[%c1_67, %c0_68, %c0_69] : memref<3x512x512xbf16, #tpu.memory_space<vmem>>, vector<1x512x512xbf16>
    %66 = vector.shape_cast %65 : vector<1x512x512xbf16> to vector<512x512xbf16>
    %cst_70 = arith.constant dense<0.000000e+00> : vector<64x512xf32>
    %67 = tpu.matmul %64, %66, %cst_70 {dimension_numbers = #tpu.dot_dimension_numbers<[1], [0], [0], [1], [0, 0, 1, 1], [], []>} : vector<64x512xbf16>, vector<512x512xbf16>, vector<64x512xf32> -> vector<64x512xf32>
    %68 = arith.addf %62, %67 : vector<64x512xf32>
    %c2_71 = arith.constant 2 : index
    %c0_72 = arith.constant 0 : index
    %c0_73 = arith.constant 0 : index
    %69 = vector.load %arg16[%c2_71, %c0_72, %c0_73] : memref<10x8x512xbf16, #tpu.memory_space<vmem>>, vector<8x8x512xbf16>
    %70 = vector.shape_cast %69 : vector<8x8x512xbf16> to vector<64x512xbf16>
    %c2_74 = arith.constant 2 : index
    %c0_75 = arith.constant 0 : index
    %c0_76 = arith.constant 0 : index
    %71 = vector.load %arg6[%c2_74, %c0_75, %c0_76] : memref<3x512x512xbf16, #tpu.memory_space<vmem>>, vector<1x512x512xbf16>
    %72 = vector.shape_cast %71 : vector<1x512x512xbf16> to vector<512x512xbf16>
    %cst_77 = arith.constant dense<0.000000e+00> : vector<64x512xf32>
    %73 = tpu.matmul %70, %72, %cst_77 {dimension_numbers = #tpu.dot_dimension_numbers<[1], [0], [0], [1], [0, 0, 1, 1], [], []>} : vector<64x512xbf16>, vector<512x512xbf16>, vector<64x512xf32> -> vector<64x512xf32>
    %74 = arith.addf %68, %73 : vector<64x512xf32>
    %c0_78 = arith.constant 0 : index
    %c0_79 = arith.constant 0 : index
    %75 = vector.load %arg7[%c0_78, %c0_79] : memref<1x512xf32, #tpu.memory_space<vmem>>, vector<1x512xf32>
    %76 = vector.broadcast %75 : vector<1x512xf32> to vector<64x512xf32>
    %77 = arith.addf %74, %76 : vector<64x512xf32>
    %cst_80 = arith.constant 0.000000e+00 : f32
    %78 = vector.broadcast %cst_80 : f32 to vector<64x512xf32>
    %79 = arith.maximumf %77, %78 : vector<64x512xf32>
    %80 = vector.shape_cast %79 : vector<64x512xf32> to vector<8x8x512xf32>
    %81 = arith.truncf %80 : vector<8x8x512xf32> to vector<8x8x512xbf16>
    %82 = vector.extract_strided_slice %81 {offsets = [0, 0, 0], sizes = [1, 8, 512], strides = [1, 1, 1]} : vector<8x8x512xbf16> to vector<1x8x512xbf16>
    %83 = vector.shape_cast %82 : vector<1x8x512xbf16> to vector<8x512xbf16>
    %c0_81 = arith.constant 0 : index
    %c0_82 = arith.constant 0 : index
    %c0_83 = arith.constant 0 : index
    %84 = vector.load %arg8[%c0_81, %c0_82, %c0_83] : memref<8x512x32xbf16, #tpu.memory_space<vmem>>, vector<1x512x32xbf16>
    %85 = vector.shape_cast %84 : vector<1x512x32xbf16> to vector<512x32xbf16>
    %cst_84 = arith.constant dense<0.000000e+00> : vector<8x32xf32>
    %86 = tpu.matmul %83, %85, %cst_84 {dimension_numbers = #tpu.dot_dimension_numbers<[1], [0], [0], [1], [0, 0, 1, 1], [], []>} : vector<8x512xbf16>, vector<512x32xbf16>, vector<8x32xf32> -> vector<8x32xf32>
    %87 = vector.extract_strided_slice %81 {offsets = [1, 0, 0], sizes = [1, 8, 512], strides = [1, 1, 1]} : vector<8x8x512xbf16> to vector<1x8x512xbf16>
    %88 = vector.shape_cast %87 : vector<1x8x512xbf16> to vector<8x512xbf16>
    %c1_85 = arith.constant 1 : index
    %c0_86 = arith.constant 0 : index
    %c0_87 = arith.constant 0 : index
    %89 = vector.load %arg8[%c1_85, %c0_86, %c0_87] : memref<8x512x32xbf16, #tpu.memory_space<vmem>>, vector<1x512x32xbf16>
    %90 = vector.shape_cast %89 : vector<1x512x32xbf16> to vector<512x32xbf16>
    %cst_88 = arith.constant dense<0.000000e+00> : vector<8x32xf32>
    %91 = tpu.matmul %88, %90, %cst_88 {dimension_numbers = #tpu.dot_dimension_numbers<[1], [0], [0], [1], [0, 0, 1, 1], [], []>} : vector<8x512xbf16>, vector<512x32xbf16>, vector<8x32xf32> -> vector<8x32xf32>
    %92 = arith.addf %86, %91 : vector<8x32xf32>
    %93 = vector.extract_strided_slice %81 {offsets = [2, 0, 0], sizes = [1, 8, 512], strides = [1, 1, 1]} : vector<8x8x512xbf16> to vector<1x8x512xbf16>
    %94 = vector.shape_cast %93 : vector<1x8x512xbf16> to vector<8x512xbf16>
    %c2_89 = arith.constant 2 : index
    %c0_90 = arith.constant 0 : index
    %c0_91 = arith.constant 0 : index
    %95 = vector.load %arg8[%c2_89, %c0_90, %c0_91] : memref<8x512x32xbf16, #tpu.memory_space<vmem>>, vector<1x512x32xbf16>
    %96 = vector.shape_cast %95 : vector<1x512x32xbf16> to vector<512x32xbf16>
    %cst_92 = arith.constant dense<0.000000e+00> : vector<8x32xf32>
    %97 = tpu.matmul %94, %96, %cst_92 {dimension_numbers = #tpu.dot_dimension_numbers<[1], [0], [0], [1], [0, 0, 1, 1], [], []>} : vector<8x512xbf16>, vector<512x32xbf16>, vector<8x32xf32> -> vector<8x32xf32>
    %98 = arith.addf %92, %97 : vector<8x32xf32>
    %99 = vector.extract_strided_slice %81 {offsets = [3, 0, 0], sizes = [1, 8, 512], strides = [1, 1, 1]} : vector<8x8x512xbf16> to vector<1x8x512xbf16>
    %100 = vector.shape_cast %99 : vector<1x8x512xbf16> to vector<8x512xbf16>
    %c3 = arith.constant 3 : index
    %c0_93 = arith.constant 0 : index
    %c0_94 = arith.constant 0 : index
    %101 = vector.load %arg8[%c3, %c0_93, %c0_94] : memref<8x512x32xbf16, #tpu.memory_space<vmem>>, vector<1x512x32xbf16>
    %102 = vector.shape_cast %101 : vector<1x512x32xbf16> to vector<512x32xbf16>
    %cst_95 = arith.constant dense<0.000000e+00> : vector<8x32xf32>
    %103 = tpu.matmul %100, %102, %cst_95 {dimension_numbers = #tpu.dot_dimension_numbers<[1], [0], [0], [1], [0, 0, 1, 1], [], []>} : vector<8x512xbf16>, vector<512x32xbf16>, vector<8x32xf32> -> vector<8x32xf32>
    %104 = arith.addf %98, %103 : vector<8x32xf32>
    %105 = vector.extract_strided_slice %81 {offsets = [4, 0, 0], sizes = [1, 8, 512], strides = [1, 1, 1]} : vector<8x8x512xbf16> to vector<1x8x512xbf16>
    %106 = vector.shape_cast %105 : vector<1x8x512xbf16> to vector<8x512xbf16>
    %c4 = arith.constant 4 : index
    %c0_96 = arith.constant 0 : index
    %c0_97 = arith.constant 0 : index
    %107 = vector.load %arg8[%c4, %c0_96, %c0_97] : memref<8x512x32xbf16, #tpu.memory_space<vmem>>, vector<1x512x32xbf16>
    %108 = vector.shape_cast %107 : vector<1x512x32xbf16> to vector<512x32xbf16>
    %cst_98 = arith.constant dense<0.000000e+00> : vector<8x32xf32>
    %109 = tpu.matmul %106, %108, %cst_98 {dimension_numbers = #tpu.dot_dimension_numbers<[1], [0], [0], [1], [0, 0, 1, 1], [], []>} : vector<8x512xbf16>, vector<512x32xbf16>, vector<8x32xf32> -> vector<8x32xf32>
    %110 = arith.addf %104, %109 : vector<8x32xf32>
    %111 = vector.extract_strided_slice %81 {offsets = [5, 0, 0], sizes = [1, 8, 512], strides = [1, 1, 1]} : vector<8x8x512xbf16> to vector<1x8x512xbf16>
    %112 = vector.shape_cast %111 : vector<1x8x512xbf16> to vector<8x512xbf16>
    %c5 = arith.constant 5 : index
    %c0_99 = arith.constant 0 : index
    %c0_100 = arith.constant 0 : index
    %113 = vector.load %arg8[%c5, %c0_99, %c0_100] : memref<8x512x32xbf16, #tpu.memory_space<vmem>>, vector<1x512x32xbf16>
    %114 = vector.shape_cast %113 : vector<1x512x32xbf16> to vector<512x32xbf16>
    %cst_101 = arith.constant dense<0.000000e+00> : vector<8x32xf32>
    %115 = tpu.matmul %112, %114, %cst_101 {dimension_numbers = #tpu.dot_dimension_numbers<[1], [0], [0], [1], [0, 0, 1, 1], [], []>} : vector<8x512xbf16>, vector<512x32xbf16>, vector<8x32xf32> -> vector<8x32xf32>
    %116 = arith.addf %110, %115 : vector<8x32xf32>
    %117 = vector.extract_strided_slice %81 {offsets = [6, 0, 0], sizes = [1, 8, 512], strides = [1, 1, 1]} : vector<8x8x512xbf16> to vector<1x8x512xbf16>
    %118 = vector.shape_cast %117 : vector<1x8x512xbf16> to vector<8x512xbf16>
    %c6 = arith.constant 6 : index
    %c0_102 = arith.constant 0 : index
    %c0_103 = arith.constant 0 : index
    %119 = vector.load %arg8[%c6, %c0_102, %c0_103] : memref<8x512x32xbf16, #tpu.memory_space<vmem>>, vector<1x512x32xbf16>
    %120 = vector.shape_cast %119 : vector<1x512x32xbf16> to vector<512x32xbf16>
    %cst_104 = arith.constant dense<0.000000e+00> : vector<8x32xf32>
    %121 = tpu.matmul %118, %120, %cst_104 {dimension_numbers = #tpu.dot_dimension_numbers<[1], [0], [0], [1], [0, 0, 1, 1], [], []>} : vector<8x512xbf16>, vector<512x32xbf16>, vector<8x32xf32> -> vector<8x32xf32>
    %122 = arith.addf %116, %121 : vector<8x32xf32>
    %123 = vector.extract_strided_slice %81 {offsets = [7, 0, 0], sizes = [1, 8, 512], strides = [1, 1, 1]} : vector<8x8x512xbf16> to vector<1x8x512xbf16>
    %124 = vector.shape_cast %123 : vector<1x8x512xbf16> to vector<8x512xbf16>
    %c7 = arith.constant 7 : index
    %c0_105 = arith.constant 0 : index
    %c0_106 = arith.constant 0 : index
    %125 = vector.load %arg8[%c7, %c0_105, %c0_106] : memref<8x512x32xbf16, #tpu.memory_space<vmem>>, vector<1x512x32xbf16>
    %126 = vector.shape_cast %125 : vector<1x512x32xbf16> to vector<512x32xbf16>
    %cst_107 = arith.constant dense<0.000000e+00> : vector<8x32xf32>
    %127 = tpu.matmul %124, %126, %cst_107 {dimension_numbers = #tpu.dot_dimension_numbers<[1], [0], [0], [1], [0, 0, 1, 1], [], []>} : vector<8x512xbf16>, vector<512x32xbf16>, vector<8x32xf32> -> vector<8x32xf32>
    %128 = arith.addf %122, %127 : vector<8x32xf32>
    %c0_108 = arith.constant 0 : index
    %c0_109 = arith.constant 0 : index
    %129 = vector.load %arg9[%c0_108, %c0_109] : memref<1x32xf32, #tpu.memory_space<vmem>>, vector<1x32xf32>
    %130 = vector.broadcast %129 : vector<1x32xf32> to vector<8x32xf32>
    %131 = arith.addf %128, %130 : vector<8x32xf32>
    %cst_110 = arith.constant 0.000000e+00 : f32
    %132 = vector.broadcast %cst_110 : f32 to vector<8x32xf32>
    %133 = arith.maximumf %131, %132 : vector<8x32xf32>
    %c0_111 = arith.constant 0 : index
    %c0_112 = arith.constant 0 : index
    %134 = vector.load %arg10[%c0_111, %c0_112] : memref<32x32xf32, #tpu.memory_space<vmem>>, vector<32x32xf32>
    %cst_113 = arith.constant dense<0.000000e+00> : vector<8x32xf32>
    %135 = tpu.matmul %133, %134, %cst_113 {dimension_numbers = #tpu.dot_dimension_numbers<[1], [0], [0], [1], [0, 0, 1, 1], [], []>} : vector<8x32xf32>, vector<32x32xf32>, vector<8x32xf32> -> vector<8x32xf32>
    %c0_114 = arith.constant 0 : index
    %c0_115 = arith.constant 0 : index
    %136 = vector.load %arg11[%c0_114, %c0_115] : memref<1x32xf32, #tpu.memory_space<vmem>>, vector<1x32xf32>
    %137 = vector.broadcast %136 : vector<1x32xf32> to vector<8x32xf32>
    %138 = arith.addf %135, %137 : vector<8x32xf32>
    %cst_116 = arith.constant 0.000000e+00 : f32
    %139 = vector.broadcast %cst_116 : f32 to vector<8x32xf32>
    %140 = arith.maximumf %138, %139 : vector<8x32xf32>
    %c0_117 = arith.constant 0 : index
    %c0_118 = arith.constant 0 : index
    %141 = vector.load %arg12[%c0_117, %c0_118] : memref<32x5xf32, #tpu.memory_space<vmem>>, vector<32x5xf32>
    %cst_119 = arith.constant dense<0.000000e+00> : vector<8x5xf32>
    %142 = tpu.matmul %140, %141, %cst_119 {dimension_numbers = #tpu.dot_dimension_numbers<[1], [0], [0], [1], [0, 0, 1, 1], [], []>} : vector<8x32xf32>, vector<32x5xf32>, vector<8x5xf32> -> vector<8x5xf32>
    %c0_120 = arith.constant 0 : index
    %c0_121 = arith.constant 0 : index
    %143 = vector.load %arg13[%c0_120, %c0_121] : memref<1x5xf32, #tpu.memory_space<vmem>>, vector<1x5xf32>
    %144 = vector.broadcast %143 : vector<1x5xf32> to vector<8x5xf32>
    %145 = arith.addf %142, %144 : vector<8x5xf32>
    %146 = vector.extract_strided_slice %145 {offsets = [0, 0], sizes = [8, 4], strides = [1, 1]} : vector<8x5xf32> to vector<8x4xf32>
    %cst_122 = arith.constant dense<0xFF800000> : vector<8xf32>
    %147 = vector.multi_reduction <maximumf>, %146, %cst_122 [1] : vector<8x4xf32> to vector<8xf32>
    %148 = vector.shape_cast %147 : vector<8xf32> to vector<8x1xf32>
    %149 = vector.broadcast %148 : vector<8x1xf32> to vector<8x4xf32>
    %150 = arith.subf %146, %149 : vector<8x4xf32>
    %151 = math.exp %150 : vector<8x4xf32>
    %cst_123 = arith.constant dense<0.000000e+00> : vector<8xf32>
    %152 = vector.multi_reduction <add>, %151, %cst_123 [1] : vector<8x4xf32> to vector<8xf32>
    %153 = vector.shape_cast %152 : vector<8xf32> to vector<8x1xf32>
    %154 = vector.broadcast %153 : vector<8x1xf32> to vector<8x4xf32>
    %155 = arith.divf %151, %154 : vector<8x4xf32>
    %c0_124 = arith.constant 0 : index
    %c0_125 = arith.constant 0 : index
    %156 = vector.load %arg14[%c0_124, %c0_125] : memref<8x5xf32, #tpu.memory_space<vmem>>, vector<8x4xf32>
    tpu.vector_store %arg14[%c0_124, %c0_125], %155 {strides = array<i32>} : memref<8x5xf32, #tpu.memory_space<vmem>>, vector<8x4xf32>,
    %157 = vector.extract_strided_slice %145 {offsets = [0, 4], sizes = [8, 1], strides = [1, 1]} : vector<8x5xf32> to vector<8x1xf32>
    %c0_126 = arith.constant 0 : index
    %c4_127 = arith.constant 4 : index
    %158 = vector.load %arg14[%c0_126, %c4_127] : memref<8x5xf32, #tpu.memory_space<vmem>>, vector<8x1xf32>
    tpu.vector_store %arg14[%c0_126, %c4_127], %157 {strides = array<i32>} : memref<8x5xf32, #tpu.memory_space<vmem>>, vector<8x1xf32>,
    return
  }
  func.func @transform_0(%arg0: i32) -> (i32, i32, i32) {
    %c0_i32 = arith.constant 0 : i32
    %c0_i32_0 = arith.constant 0 : i32
    %c0_i32_1 = arith.constant 0 : i32
    return %c0_i32, %arg0, %c0_i32_0 : i32, i32, i32
  }
  func.func @transform_1(%arg0: i32) -> (i32, i32, i32) {
    %c0_i32 = arith.constant 0 : i32
    %c0_i32_0 = arith.constant 0 : i32
    %c0_i32_1 = arith.constant 0 : i32
    %c0_i32_2 = arith.constant 0 : i32
    return %c0_i32, %c0_i32_0, %c0_i32_1 : i32, i32, i32
  }
  func.func @transform_2(%arg0: i32) -> (i32, i32) {
    %c0_i32 = arith.constant 0 : i32
    %c0_i32_0 = arith.constant 0 : i32
    %c0_i32_1 = arith.constant 0 : i32
    return %c0_i32, %c0_i32_0 : i32, i32
  }
  func.func @transform_3(%arg0: i32) -> (i32, i32, i32) {
    %c0_i32 = arith.constant 0 : i32
    %c0_i32_0 = arith.constant 0 : i32
    %c0_i32_1 = arith.constant 0 : i32
    %c0_i32_2 = arith.constant 0 : i32
    return %c0_i32, %c0_i32_0, %c0_i32_1 : i32, i32, i32
  }
  func.func @transform_4(%arg0: i32) -> (i32, i32) {
    %c0_i32 = arith.constant 0 : i32
    %c0_i32_0 = arith.constant 0 : i32
    %c0_i32_1 = arith.constant 0 : i32
    return %c0_i32, %c0_i32_0 : i32, i32
  }
  func.func @transform_5(%arg0: i32) -> (i32, i32, i32) {
    %c0_i32 = arith.constant 0 : i32
    %c0_i32_0 = arith.constant 0 : i32
    %c0_i32_1 = arith.constant 0 : i32
    %c0_i32_2 = arith.constant 0 : i32
    return %c0_i32, %c0_i32_0, %c0_i32_1 : i32, i32, i32
  }
  func.func @transform_6(%arg0: i32) -> (i32, i32) {
    %c0_i32 = arith.constant 0 : i32
    %c0_i32_0 = arith.constant 0 : i32
    %c0_i32_1 = arith.constant 0 : i32
    return %c0_i32, %c0_i32_0 : i32, i32
  }
  func.func @transform_7(%arg0: i32) -> (i32, i32, i32) {
    %c0_i32 = arith.constant 0 : i32
    %c0_i32_0 = arith.constant 0 : i32
    %c0_i32_1 = arith.constant 0 : i32
    %c0_i32_2 = arith.constant 0 : i32
    return %c0_i32, %c0_i32_0, %c0_i32_1 : i32, i32, i32
  }
  func.func @transform_8(%arg0: i32) -> (i32, i32) {
    %c0_i32 = arith.constant 0 : i32
    %c0_i32_0 = arith.constant 0 : i32
    %c0_i32_1 = arith.constant 0 : i32
    return %c0_i32, %c0_i32_0 : i32, i32
  }
  func.func @transform_9(%arg0: i32) -> (i32, i32) {
    %c0_i32 = arith.constant 0 : i32
    %c0_i32_0 = arith.constant 0 : i32
    %c0_i32_1 = arith.constant 0 : i32
    return %c0_i32, %c0_i32_0 : i32, i32
  }
  func.func @transform_10(%arg0: i32) -> (i32, i32) {
    %c0_i32 = arith.constant 0 : i32
    %c0_i32_0 = arith.constant 0 : i32
    %c0_i32_1 = arith.constant 0 : i32
    return %c0_i32, %c0_i32_0 : i32, i32
  }
  func.func @transform_11(%arg0: i32) -> (i32, i32) {
    %c0_i32 = arith.constant 0 : i32
    %c0_i32_0 = arith.constant 0 : i32
    %c0_i32_1 = arith.constant 0 : i32
    return %c0_i32, %c0_i32_0 : i32, i32
  }
  func.func @transform_12(%arg0: i32) -> (i32, i32) {
    %c0_i32 = arith.constant 0 : i32
    %c0_i32_0 = arith.constant 0 : i32
    %c0_i32_1 = arith.constant 0 : i32
    return %c0_i32, %c0_i32_0 : i32, i32
  }
  func.func @transform_13(%arg0: i32) -> (i32, i32) {
    %c0_i32 = arith.constant 0 : i32
    %c0_i32_0 = arith.constant 0 : i32
    return %arg0, %c0_i32 : i32, i32
  }
}

</mosaic_0001>

<llo_original>
// kernel: cnn_policy_forward.1
$region0: #{cnn_policy_forward.1}
  #allocation0 [shape = 'u32[]', space=smem, size = 0x4, offset = 0x4, fixed_abs, tag = 'smem constant byte address 0x4 - core index']
  #allocation1 [shape = 'u32[72,128]{1,0:T(1,128)}', space=vmem, size = 0x9000, scoped, tag = 'internal scratch']
  #allocation2 [shape = 'bf16[10,8,256]{2,1,0:T(8,128)(2,1)}', space=vmem, size = 0xa000, scoped, tag = 'scratch operand']
  #allocation3 [shape = 'bf16[10,8,512]{2,1,0:T(8,128)(2,1)}', space=vmem, size = 0x14000, scoped, tag = 'scratch operand']
  %s0 = inlined_call_operand.vmem [shape: f32[10,8,8], index: 0, kind: input, shape index: {}]
  %s1 = inlined_call_operand.hbm [shape: bf16[3,8,256], index: 1, kind: input, shape index: {}]
  %s2 = inlined_call_operand.vmem [shape: f32[1,256], index: 2, kind: input, shape index: {}]
  %s3 = inlined_call_operand.hbm [shape: bf16[3,256,512], index: 3, kind: input, shape index: {}]
  %s4 = inlined_call_operand.vmem [shape: f32[1,512], index: 4, kind: input, shape index: {}, may-alias: {4,6}]
  %s5 = inlined_call_operand.hbm [shape: bf16[3,512,512], index: 5, kind: input, shape index: {}]
  %s6 = inlined_call_operand.vmem [shape: f32[1,512], index: 6, kind: input, shape index: {}, may-alias: {4,6}]
  %s7 = inlined_call_operand.hbm [shape: bf16[8,512,32], index: 7, kind: input, shape index: {}]
  %s8 = inlined_call_operand.vmem [shape: f32[1,32], index: 8, kind: input, shape index: {}, may-alias: {8,10}]
  %s9 = inlined_call_operand.hbm [shape: f32[32,32], index: 9, kind: input, shape index: {}]
  %s10 = inlined_call_operand.vmem [shape: f32[1,32], index: 10, kind: input, shape index: {}, may-alias: {8,10}]
  %s11 = inlined_call_operand.hbm [shape: f32[32,5], index: 11, kind: input, shape index: {}]
  %s12 = inlined_call_operand.vmem [shape: f32[1,5], index: 12, kind: input, shape index: {}]
  %s13 = inlined_call_operand.vmem [shape: f32[8,5], index: 13, kind: output, shape index: {}]
  %s14 = sld [smem:[#allocation0]]
  $region86: #{cnn_policy_forward.1} parent=0
    _
  %s16 = ssub.s32 1, %s14
  %s17 = scalar_select 0, %s16, %s14
  $region1: #{cnn_policy_forward.1} parent=0
    #allocation4 [shape = 'u8[12288]{0}', space=vmem, size = 0x3000, scoped, tag = 'input window, operand 1, single buffered']
    #allocation5 [shape = 's32[1]{0}', space=sflag, size = 0x4, scoped, tag = 'scoped memory for cnn_policy_forward.1']
    #allocation6 [shape = 'u8[786432]{0}', space=vmem, size = 0xc0000, scoped, tag = 'input window, operand 3, single buffered']
    #allocation7 [shape = 's32[1]{0}', space=sflag, size = 0x4, scoped, tag = 'scoped memory for cnn_policy_forward.1']
    #allocation8 [shape = 'u8[1572864]{0}', space=vmem, size = 0x180000, scoped, tag = 'input window, operand 5, single buffered']
    #allocation9 [shape = 'u8[1048576]{0}', space=vmem, size = 0x100000, scoped, tag = 'input window, operand 7, single buffered']
    #allocation10 [shape = 's32[1]{0}', space=sflag, size = 0x4, scoped, tag = 'scoped memory for cnn_policy_forward.1']
    #allocation11 [shape = 'u8[16384]{0}', space=vmem, size = 0x4000, scoped, tag = 'input window, operand 9, single buffered']
    #allocation12 [shape = 'u8[16384]{0}', space=vmem, size = 0x4000, scoped, tag = 'input window, operand 11, single buffered']
    #allocation13 [shape = 's32[1]{0}', space=sflag, size = 0x4, scoped, tag = 'scoped memory for cnn_policy_forward.1']
    %18 = vsyncpa [#allocation5], 0
    %19 = vsyncpa [#allocation7], 0
    %20 = vsyncpa [#allocation10], 0
    %21 = vsyncpa [#allocation13], 0
    // Predicated region
    $region2: #{cnn_policy_forward.1} parent=1 // pred_check
      _
    $region3: #{cnn_policy_forward.1} parent=1 // pred_check_branch
      %23 = sbr.rel (0) target = $region5
    $region4: #{cnn_policy_forward.1} parent=1 // pred_region
      _
    $region5: #{cnn_policy_forward.1} parent=1 // pred_fallthru
      _
    // Predicated region
    $region6: #{cnn_policy_forward.1} parent=1 // pred_check
      _
    $region7: #{cnn_policy_forward.1} parent=1 // pred_check_branch
      %25 = sbr.rel (0) target = $region9
    $region8: #{cnn_policy_forward.1} parent=1 // pred_region
      %27 = vsyncadd [#allocation5], 0
      %s28 = sshll.u32 %s1, 4
      %s29 = int_to_ptr.hbm [resolvable:$true] %s28
      %s30 = sshll.u32 [#allocation4], 4
      %s31 = int_to_ptr.vmem [resolvable:$true] %s30
      %36 = dma.hbm_to_vmem [thread:$0]  %s29, 384, %s31, [#allocation5], 128, 128, 8
    $region9: #{cnn_policy_forward.1} parent=1 // pred_fallthru
      _
    // Predicated region
    $region10: #{cnn_policy_forward.1} parent=1 // pred_check
      _
    $region11: #{cnn_policy_forward.1} parent=1 // pred_check_branch
      %38 = sbr.rel (0) target = $region13
    $region12: #{cnn_policy_forward.1} parent=1 // pred_region
      _
    $region13: #{cnn_policy_forward.1} parent=1 // pred_fallthru
      _
    // Predicated region
    $region14: #{cnn_policy_forward.1} parent=1 // pred_check
      _
    $region15: #{cnn_policy_forward.1} parent=1 // pred_check_branch
      %40 = sbr.rel (0) target = $region17
    $region16: #{cnn_policy_forward.1} parent=1 // pred_region
      %42 = vsyncadd [#allocation7], 0
      %s43 = sshll.u32 %s3, 4
      %s44 = int_to_ptr.hbm [resolvable:$true] %s43
      %s45 = sshll.u32 [#allocation6], 4
      %s46 = int_to_ptr.vmem [resolvable:$true] %s45
      %51 = dma.hbm_to_vmem [thread:$0]  %s44, 24576, %s46, [#allocation7], 256, 256, 16
    $region17: #{cnn_policy_forward.1} parent=1 // pred_fallthru
      _
    // Predicated region
    $region18: #{cnn_policy_forward.1} parent=1 // pred_check
      _
    $region19: #{cnn_policy_forward.1} parent=1 // pred_check_branch
      %53 = sbr.rel (0) target = $region21
    $region20: #{cnn_policy_forward.1} parent=1 // pred_region
      _
    $region21: #{cnn_policy_forward.1} parent=1 // pred_fallthru
      _
    // Predicated region
    $region22: #{cnn_policy_forward.1} parent=1 // pred_check
      _
    $region23: #{cnn_policy_forward.1} parent=1 // pred_check_branch
      %55 = sbr.rel (0) target = $region25
    $region24: #{cnn_policy_forward.1} parent=1 // pred_region
      %57 = vsyncadd [#allocation7], 0
      %s58 = sshll.u32 %s5, 4
      %s59 = int_to_ptr.hbm [resolvable:$true] %s58
      %s60 = sshll.u32 [#allocation8], 4
      %s61 = int_to_ptr.vmem [resolvable:$true] %s60
      %66 = dma.hbm_to_vmem [thread:$0]  %s59, 49152, %s61, [#allocation7], 256, 256, 16
    $region25: #{cnn_policy_forward.1} parent=1 // pred_fallthru
      _
    // Predicated region
    $region26: #{cnn_policy_forward.1} parent=1 // pred_check
      _
    $region27: #{cnn_policy_forward.1} parent=1 // pred_check_branch
      %68 = sbr.rel (0) target = $region29
    $region28: #{cnn_policy_forward.1} parent=1 // pred_region
      _
    $region29: #{cnn_policy_forward.1} parent=1 // pred_fallthru
      _
    // Predicated region
    $region30: #{cnn_policy_forward.1} parent=1 // pred_check
      _
    $region31: #{cnn_policy_forward.1} parent=1 // pred_check_branch
      %70 = sbr.rel (0) target = $region33
    $region32: #{cnn_policy_forward.1} parent=1 // pred_region
      %72 = vsyncadd [#allocation10], 0
      %s73 = sshll.u32 %s7, 4
      %s74 = int_to_ptr.hbm [resolvable:$true] %s73
      %s75 = sshll.u32 [#allocation9], 4
      %s76 = int_to_ptr.vmem [resolvable:$true] %s75
      %81 = dma.hbm_to_vmem [thread:$0]  %s74, 32768, %s76, [#allocation10], 64, 64, 4
    $region33: #{cnn_policy_forward.1} parent=1 // pred_fallthru
      _
    // Predicated region
    $region34: #{cnn_policy_forward.1} parent=1 // pred_check
      _
    $region35: #{cnn_policy_forward.1} parent=1 // pred_check_branch
      %83 = sbr.rel (0) target = $region37
    $region36: #{cnn_policy_forward.1} parent=1 // pred_region
      _
    $region37: #{cnn_policy_forward.1} parent=1 // pred_fallthru
      _
    // Predicated region
    $region38: #{cnn_policy_forward.1} parent=1 // pred_check
      _
    $region39: #{cnn_policy_forward.1} parent=1 // pred_check_branch
      %85 = sbr.rel (0) target = $region41
    $region40: #{cnn_policy_forward.1} parent=1 // pred_region
      %87 = vsyncadd [#allocation10], 0
      %s88 = sshll.u32 %s9, 4
      %s89 = int_to_ptr.hbm [resolvable:$true] %s88
      %s90 = sshll.u32 [#allocation11], 4
      %s91 = int_to_ptr.vmem [resolvable:$true] %s90
      %96 = dma.hbm_to_vmem [thread:$0]  %s89, 512, %s91, [#allocation10], 128, 128, 8
    $region41: #{cnn_policy_forward.1} parent=1 // pred_fallthru
      _
    // Predicated region
    $region42: #{cnn_policy_forward.1} parent=1 // pred_check
      _
    $region43: #{cnn_policy_forward.1} parent=1 // pred_check_branch
      %98 = sbr.rel (0) target = $region45
    $region44: #{cnn_policy_forward.1} parent=1 // pred_region
      _
    $region45: #{cnn_policy_forward.1} parent=1 // pred_fallthru
      _
    // Predicated region
    $region46: #{cnn_policy_forward.1} parent=1 // pred_check
      _
    $region47: #{cnn_policy_forward.1} parent=1 // pred_check_branch
      %100 = sbr.rel (0) target = $region49
    $region48: #{cnn_policy_forward.1} parent=1 // pred_region
      %102 = vsyncadd [#allocation13], 0
      %s103 = sshll.u32 %s11, 4
      %s104 = int_to_ptr.hbm [resolvable:$true] %s103
      %s105 = sshll.u32 [#allocation12], 4
      %s106 = int_to_ptr.vmem [resolvable:$true] %s105
      %111 = dma.hbm_to_vmem [thread:$0]  %s104, 512, %s106, [#allocation13], 128, 128, 8
    $region49: #{cnn_policy_forward.1} parent=1 // pred_fallthru
      _
    // Predicated region
    $region50: #{cnn_policy_forward.1} parent=1 // pred_check
      _
    $region51: #{cnn_policy_forward.1} parent=1 // pred_check_branch
      %113 = sbr.rel (0) target = $region53
    $region52: #{cnn_policy_forward.1} parent=1 // pred_region
      _
    $region53: #{cnn_policy_forward.1} parent=1 // pred_fallthru
      _
    // Predicated region
    $region54: #{cnn_policy_forward.1} parent=1 // pred_check
      _
    $region55: #{cnn_policy_forward.1} parent=1 // pred_check_branch
      %115 = sbr.rel (0) target = $region57
    $region56: #{cnn_policy_forward.1} parent=1 // pred_region
      %117 = dma.done [#allocation5], 384
    $region57: #{cnn_policy_forward.1} parent=1 // pred_fallthru
      _
    // Predicated region
    $region58: #{cnn_policy_forward.1} parent=1 // pred_check
      _
    $region59: #{cnn_policy_forward.1} parent=1 // pred_check_branch
      %119 = sbr.rel (0) target = $region61
    $region60: #{cnn_policy_forward.1} parent=1 // pred_region
      %121 = dma.done [#allocation7], 24576
    $region61: #{cnn_policy_forward.1} parent=1 // pred_fallthru
      _
    // Predicated region
    $region62: #{cnn_policy_forward.1} parent=1 // pred_check
      _
    $region63: #{cnn_policy_forward.1} parent=1 // pred_check_branch
      %123 = sbr.rel (0) target = $region65
    $region64: #{cnn_policy_forward.1} parent=1 // pred_region
      %125 = dma.done [#allocation7], 49152
    $region65: #{cnn_policy_forward.1} parent=1 // pred_fallthru
      _
    // Predicated region
    $region66: #{cnn_policy_forward.1} parent=1 // pred_check
      _
    $region67: #{cnn_policy_forward.1} parent=1 // pred_check_branch
      %127 = sbr.rel (0) target = $region69
    $region68: #{cnn_policy_forward.1} parent=1 // pred_region
      %129 = dma.done [#allocation10], 32768
    $region69: #{cnn_policy_forward.1} parent=1 // pred_fallthru
      _
    // Predicated region
    $region70: #{cnn_policy_forward.1} parent=1 // pred_check
      _
    $region71: #{cnn_policy_forward.1} parent=1 // pred_check_branch
      %131 = sbr.rel (0) target = $region73
    $region72: #{cnn_policy_forward.1} parent=1 // pred_region
      %133 = dma.done [#allocation10], 512
    $region73: #{cnn_policy_forward.1} parent=1 // pred_fallthru
      _
    // Predicated region
    $region74: #{cnn_policy_forward.1} parent=1 // pred_check
      _
    $region75: #{cnn_policy_forward.1} parent=1 // pred_check_branch
      %135 = sbr.rel (0) target = $region77
    $region76: #{cnn_policy_forward.1} parent=1 // pred_region
      %137 = dma.done [#allocation13], 512
    $region77: #{cnn_policy_forward.1} parent=1 // pred_fallthru
      _
    %v139 = vld [vmem:[%s0] sm:$0xff]
    %v140 = vld [vmem:[%s0 + $0x8] sm:$0xff]
    %v141 = vld [vmem:[%s0 + $0x10] sm:$0xff]
    %v142 = vld [vmem:[%s0 + $0x18] sm:$0xff]
    %v143 = vld [vmem:[%s0 + $0x20] sm:$0xff]
    %v144 = vld [vmem:[%s0 + $0x28] sm:$0xff]
    %v145 = vld [vmem:[%s0 + $0x30] sm:$0xff]
    %v146 = vld [vmem:[%s0 + $0x38] sm:$0xff]
    %v147 = vld [vmem:[%s0 + $0x40] sm:$0xff]
    %v148 = vld [vmem:[%s0 + $0x48] sm:$0xff]
    %v149 = vpack.c.bf16 %v139, %v139
    %v150 = vpack.c.bf16 %v140, %v140
    %v151 = vpack.c.bf16 %v141, %v141
    %v152 = vpack.c.bf16 %v142, %v142
    %v153 = vpack.c.bf16 %v143, %v143
    %v154 = vpack.c.bf16 %v144, %v144
    %v155 = vpack.c.bf16 %v145, %v145
    %v156 = vpack.c.bf16 %v146, %v146
    %v157 = vpack.c.bf16 %v147, %v147
    %v158 = vpack.c.bf16 %v148, %v148
    %v159 = vld [vmem:[#allocation4] sm:$0xff]
    %s160 = scalar_lea.vmem [#allocation4], 8
    %v161 = vld [vmem:[%s160] sm:$0xff]
    %v170 = vunpack.c.l.b16 %v150
    %v171 = vunpack.c.l.b16 %v151
    %v172 = vunpack.c.l.b16 %v152
    %v173 = vunpack.c.l.b16 %v153
    %v174 = vunpack.c.l.b16 %v154
    %v175 = vunpack.c.l.b16 %v155
    %v176 = vunpack.c.l.b16 %v156
    %v177 = vunpack.c.l.b16 %v157
    %v178 = vpack.c.b16 %v171, %v170
    %v179 = vpack.c.b16 %v173, %v172
    %v180 = vpack.c.b16 %v175, %v174
    %v181 = vpack.c.b16 %v177, %v176
    %v183 = vunpack.c.l.b16 %v161
    %v184 = vunpack.c.h.b16 %v161
    %v185 = vpack.c.b16 %v183, %v183
    %v186 = vpack.c.b16 %v184, %v184
    %vm187 = vcmask 64512
    %v189 = vsel %vm187, %v178, 0
    %v192 = vsel %vm187, %v179, 0
    %v195 = vsel %vm187, %v180, 0
    %v198 = vsel %vm187, %v181, 0
    %vm200 = vcmask 1043456
    %v202 = vsel %vm200, %v185, 0
    %v205 = vsel %vm200, %v186, 0
    %207 = vmatpush.bf16.msra.mxu0 0
    %208 = vmatpush.bf16.msra.mxu0 0
    %209 = vmatpush.bf16.msra.mxu0 0
    %210 = vmatpush.bf16.msra.mxu0 0
    %211 = vmatpush.bf16.msra.mxu0 0
    %212 = vmatpush.bf16.msra.mxu0 0
    %213 = vmatpush.bf16.msra.mxu0 0
    %214 = vmatpush.bf16.msra.mxu0 %v202
    %215 = vmatmul.bf16.gmra.mxu0 %v189
    %v216 = vpop.f32.mrf.mxu0
    %v217 = vadd.f32 0.0, %v216
    %v218 = vpop.f32.mrf.mxu0
    %v219 = vadd.f32 0.0, %v218
    %220 = vmatmul.bf16.gmra.mxu0 %v192
    %v221 = vpop.f32.mrf.mxu0
    %v222 = vadd.f32 0.0, %v221
    %v223 = vpop.f32.mrf.mxu0
    %v224 = vadd.f32 0.0, %v223
    %225 = vmatmul.bf16.gmra.mxu0 %v195
    %v226 = vpop.f32.mrf.mxu0
    %v227 = vadd.f32 0.0, %v226
    %v228 = vpop.f32.mrf.mxu0
    %v229 = vadd.f32 0.0, %v228
    %230 = vmatmul.bf16.gmra.mxu0 %v198
    %v231 = vpop.f32.mrf.mxu0
    %v232 = vadd.f32 0.0, %v231
    %v233 = vpop.f32.mrf.mxu0
    %v234 = vadd.f32 0.0, %v233
    %235 = vdwg.mxu0
    %236 = vmatpush.bf16.msra.mxu0 0
    %237 = vmatpush.bf16.msra.mxu0 0
    %238 = vmatpush.bf16.msra.mxu0 0
    %239 = vmatpush.bf16.msra.mxu0 0
    %240 = vmatpush.bf16.msra.mxu0 0
    %241 = vmatpush.bf16.msra.mxu0 0
    %242 = vmatpush.bf16.msra.mxu0 0
    %243 = vmatpush.bf16.msra.mxu0 %v205
    %244 = vmatmul.bf16.gmra.mxu0 %v189
    %v245 = vpop.f32.mrf.mxu0
    %v246 = vadd.f32 0.0, %v245
    %v247 = vpop.f32.mrf.mxu0
    %v248 = vadd.f32 0.0, %v247
    %249 = vmatmul.bf16.gmra.mxu0 %v192
    %v250 = vpop.f32.mrf.mxu0
    %v251 = vadd.f32 0.0, %v250
    %v252 = vpop.f32.mrf.mxu0
    %v253 = vadd.f32 0.0, %v252
    %254 = vmatmul.bf16.gmra.mxu0 %v195
    %v255 = vpop.f32.mrf.mxu0
    %v256 = vadd.f32 0.0, %v255
    %v257 = vpop.f32.mrf.mxu0
    %v258 = vadd.f32 0.0, %v257
    %259 = vmatmul.bf16.gmra.mxu0 %v198
    %v260 = vpop.f32.mrf.mxu0
    %v261 = vadd.f32 0.0, %v260
    %v262 = vpop.f32.mrf.mxu0
    %v263 = vadd.f32 0.0, %v262
    %264 = vdwg.mxu0
    %v266 = vunpack.c.l.b16 %v149
    %v267 = vpack.c.b16 %v170, %v266
    %v268 = vpack.c.b16 %v172, %v171
    %v269 = vpack.c.b16 %v174, %v173
    %v270 = vpack.c.b16 %v176, %v175
    %v272 = vunpack.c.l.b16 %v159
    %v273 = vunpack.c.h.b16 %v159
    %v274 = vpack.c.b16 %v272, %v272
    %v275 = vpack.c.b16 %v273, %v273
    %v277 = vsel %vm187, %v267, 0
    %v280 = vsel %vm187, %v268, 0
    %v283 = vsel %vm187, %v269, 0
    %v286 = vsel %vm187, %v270, 0
    %v289 = vsel %vm200, %v274, 0
    %v292 = vsel %vm200, %v275, 0
    %294 = vmatpush.bf16.msra.mxu0 0
    %295 = vmatpush.bf16.msra.mxu0 0
    %296 = vmatpush.bf16.msra.mxu0 0
    %297 = vmatpush.bf16.msra.mxu0 0
    %298 = vmatpush.bf16.msra.mxu0 0
    %299 = vmatpush.bf16.msra.mxu0 0
    %300 = vmatpush.bf16.msra.mxu0 0
    %301 = vmatpush.bf16.msra.mxu0 %v289
    %302 = vmatmul.bf16.gmra.mxu0 %v277
    %v303 = vpop.f32.mrf.mxu0
    %v304 = vadd.f32 %v217, %v303
    %v305 = vpop.f32.mrf.mxu0
    %v306 = vadd.f32 %v219, %v305
    %307 = vmatmul.bf16.gmra.mxu0 %v280
    %v308 = vpop.f32.mrf.mxu0
    %v309 = vadd.f32 %v222, %v308
    %v310 = vpop.f32.mrf.mxu0
    %v311 = vadd.f32 %v224, %v310
    %312 = vmatmul.bf16.gmra.mxu0 %v283
    %v313 = vpop.f32.mrf.mxu0
    %v314 = vadd.f32 %v227, %v313
    %v315 = vpop.f32.mrf.mxu0
    %v316 = vadd.f32 %v229, %v315
    %317 = vmatmul.bf16.gmra.mxu0 %v286
    %v318 = vpop.f32.mrf.mxu0
    %v319 = vadd.f32 %v232, %v318
    %v320 = vpop.f32.mrf.mxu0
    %v321 = vadd.f32 %v234, %v320
    %322 = vdwg.mxu0
    %323 = vmatpush.bf16.msra.mxu0 0
    %324 = vmatpush.bf16.msra.mxu0 0
    %325 = vmatpush.bf16.msra.mxu0 0
    %326 = vmatpush.bf16.msra.mxu0 0
    %327 = vmatpush.bf16.msra.mxu0 0
    %328 = vmatpush.bf16.msra.mxu0 0
    %329 = vmatpush.bf16.msra.mxu0 0
    %330 = vmatpush.bf16.msra.mxu0 %v292
    %331 = vmatmul.bf16.gmra.mxu0 %v277
    %v332 = vpop.f32.mrf.mxu0
    %v333 = vadd.f32 %v246, %v332
    %v334 = vpop.f32.mrf.mxu0
    %v335 = vadd.f32 %v248, %v334
    %336 = vmatmul.bf16.gmra.mxu0 %v280
    %v337 = vpop.f32.mrf.mxu0
    %v338 = vadd.f32 %v251, %v337
    %v339 = vpop.f32.mrf.mxu0
    %v340 = vadd.f32 %v253, %v339
    %341 = vmatmul.bf16.gmra.mxu0 %v283
    %v342 = vpop.f32.mrf.mxu0
    %v343 = vadd.f32 %v256, %v342
    %v344 = vpop.f32.mrf.mxu0
    %v345 = vadd.f32 %v258, %v344
    %346 = vmatmul.bf16.gmra.mxu0 %v286
    %v347 = vpop.f32.mrf.mxu0
    %v348 = vadd.f32 %v261, %v347
    %v349 = vpop.f32.mrf.mxu0
    %v350 = vadd.f32 %v263, %v349
    %351 = vdwg.mxu0
    %s352 = scalar_lea.vmem [#allocation4], 16
    %v353 = vld [vmem:[%s352] sm:$0xff]
    %v355 = vunpack.c.l.b16 %v158
    %v356 = vpack.c.b16 %v355, %v177
    %v358 = vunpack.c.l.b16 %v353
    %v359 = vunpack.c.h.b16 %v353
    %v360 = vpack.c.b16 %v358, %v358
    %v361 = vpack.c.b16 %v359, %v359
    %v363 = vsel %vm187, %v356, 0
    %v366 = vsel %vm200, %v360, 0
    %v369 = vsel %vm200, %v361, 0
    %371 = vmatpush.bf16.msra.mxu0 0
    %372 = vmatpush.bf16.msra.mxu0 0
    %373 = vmatpush.bf16.msra.mxu0 0
    %374 = vmatpush.bf16.msra.mxu0 0
    %375 = vmatpush.bf16.msra.mxu0 0
    %376 = vmatpush.bf16.msra.mxu0 0
    %377 = vmatpush.bf16.msra.mxu0 0
    %378 = vmatpush.bf16.msra.mxu0 %v366
    %379 = vmatmul.bf16.gmra.mxu0 %v280
    %v380 = vpop.f32.mrf.mxu0
    %v381 = vadd.f32 0.0, %v380
    %v382 = vpop.f32.mrf.mxu0
    %v383 = vadd.f32 0.0, %v382
    %384 = vmatmul.bf16.gmra.mxu0 %v283
    %v385 = vpop.f32.mrf.mxu0
    %v386 = vadd.f32 0.0, %v385
    %v387 = vpop.f32.mrf.mxu0
    %v388 = vadd.f32 0.0, %v387
    %389 = vmatmul.bf16.gmra.mxu0 %v286
    %v390 = vpop.f32.mrf.mxu0
    %v391 = vadd.f32 0.0, %v390
    %v392 = vpop.f32.mrf.mxu0
    %v393 = vadd.f32 0.0, %v392
    %394 = vmatmul.bf16.gmra.mxu0 %v363
    %v395 = vpop.f32.mrf.mxu0
    %v396 = vadd.f32 0.0, %v395
    %v397 = vpop.f32.mrf.mxu0
    %v398 = vadd.f32 0.0, %v397
    %399 = vdwg.mxu0
    %400 = vmatpush.bf16.msra.mxu0 0
    %401 = vmatpush.bf16.msra.mxu0 0
    %402 = vmatpush.bf16.msra.mxu0 0
    %403 = vmatpush.bf16.msra.mxu0 0
    %404 = vmatpush.bf16.msra.mxu0 0
    %405 = vmatpush.bf16.msra.mxu0 0
    %406 = vmatpush.bf16.msra.mxu0 0
    %407 = vmatpush.bf16.msra.mxu0 %v369
    %408 = vmatmul.bf16.gmra.mxu0 %v280
    %v409 = vpop.f32.mrf.mxu0
    %v410 = vadd.f32 0.0, %v409
    %v411 = vpop.f32.mrf.mxu0
    %v412 = vadd.f32 0.0, %v411
    %413 = vmatmul.bf16.gmra.mxu0 %v283
    %v414 = vpop.f32.mrf.mxu0
    %v415 = vadd.f32 0.0, %v414
    %v416 = vpop.f32.mrf.mxu0
    %v417 = vadd.f32 0.0, %v416
    %418 = vmatmul.bf16.gmra.mxu0 %v286
    %v419 = vpop.f32.mrf.mxu0
    %v420 = vadd.f32 0.0, %v419
    %v421 = vpop.f32.mrf.mxu0
    %v422 = vadd.f32 0.0, %v421
    %423 = vmatmul.bf16.gmra.mxu0 %v363
    %v424 = vpop.f32.mrf.mxu0
    %v425 = vadd.f32 0.0, %v424
    %v426 = vpop.f32.mrf.mxu0
    %v427 = vadd.f32 0.0, %v426
    %428 = vdwg.mxu0
    %v429 = vadd.f32 %v304, %v381
    %v430 = vadd.f32 %v333, %v410
    %v431 = vadd.f32 %v306, %v383
    %v432 = vadd.f32 %v335, %v412
    %v433 = vadd.f32 %v309, %v386
    %v434 = vadd.f32 %v338, %v415
    %v435 = vadd.f32 %v311, %v388
    %v436 = vadd.f32 %v340, %v417
    %v437 = vadd.f32 %v314, %v391
    %v438 = vadd.f32 %v343, %v420
    %v439 = vadd.f32 %v316, %v393
    %v440 = vadd.f32 %v345, %v422
    %v441 = vadd.f32 %v319, %v396
    %v442 = vadd.f32 %v348, %v425
    %v443 = vadd.f32 %v321, %v398
    %v444 = vadd.f32 %v350, %v427
    %v445 = vld [vmem:[%s2] sm:$0x3]
    %v447 = vperm.slane %v445, 0
    %v448 = vperm.slane %v445, 1
    %v451 = vadd.f32 %v429, %v447
    %v452 = vadd.f32 %v430, %v448
    %v453 = vadd.f32 %v431, %v447
    %v454 = vadd.f32 %v432, %v448
    %v455 = vadd.f32 %v433, %v447
    %v456 = vadd.f32 %v434, %v448
    %v457 = vadd.f32 %v435, %v447
    %v458 = vadd.f32 %v436, %v448
    %v459 = vadd.f32 %v437, %v447
    %v460 = vadd.f32 %v438, %v448
    %v461 = vadd.f32 %v439, %v447
    %v462 = vadd.f32 %v440, %v448
    %v463 = vadd.f32 %v441, %v447
    %v464 = vadd.f32 %v442, %v448
    %v465 = vadd.f32 %v443, %v447
    %v466 = vadd.f32 %v444, %v448
    %v467 = vmax.f32 %v451, 0.0
    %v468 = vmax.f32 %v452, 0.0
    %v469 = vmax.f32 %v453, 0.0
    %v470 = vmax.f32 %v454, 0.0
    %v471 = vmax.f32 %v455, 0.0
    %v472 = vmax.f32 %v456, 0.0
    %v473 = vmax.f32 %v457, 0.0
    %v474 = vmax.f32 %v458, 0.0
    %v475 = vmax.f32 %v459, 0.0
    %v476 = vmax.f32 %v460, 0.0
    %v477 = vmax.f32 %v461, 0.0
    %v478 = vmax.f32 %v462, 0.0
    %v479 = vmax.f32 %v463, 0.0
    %v480 = vmax.f32 %v464, 0.0
    %v481 = vmax.f32 %v465, 0.0
    %v482 = vmax.f32 %v466, 0.0
    %483 = vst [vmem:[#allocation2] sm:$0xff] 0
    %s484 = scalar_lea.vmem [#allocation2], 72
    %485 = vst [vmem:[%s484] sm:$0xff] 0
    %v486 = vpack.c.bf16 %v468, %v467
    %v487 = vpack.c.bf16 %v470, %v469
    %v488 = vpack.c.bf16 %v472, %v471
    %v489 = vpack.c.bf16 %v474, %v473
    %v490 = vpack.c.bf16 %v476, %v475
    %v491 = vpack.c.bf16 %v478, %v477
    %v492 = vpack.c.bf16 %v480, %v479
    %v493 = vpack.c.bf16 %v482, %v481
    %s494 = scalar_lea.vmem [#allocation2], 8
    %495 = vst [vmem:[%s494] sm:$0xff] %v486
    %496 = vst [vmem:[%s494 + $0x8] sm:$0xff] %v487
    %497 = vst [vmem:[%s494 + $0x10] sm:$0xff] %v488
    %498 = vst [vmem:[%s494 + $0x18] sm:$0xff] %v489
    %499 = vst [vmem:[%s494 + $0x20] sm:$0xff] %v490
    %500 = vst [vmem:[%s494 + $0x28] sm:$0xff] %v491
    %501 = vst [vmem:[%s494 + $0x30] sm:$0xff] %v492
    %502 = vst [vmem:[%s494 + $0x38] sm:$0xff] %v493
    %v503 = vld [vmem:[#allocation2] sm:$0xff]
    %v504 = vld [vmem:[#allocation2 + $0x8] sm:$0xff]
    %v505 = vld [vmem:[#allocation2 + $0x10] sm:$0xff]
    %v506 = vld [vmem:[#allocation2 + $0x18] sm:$0xff]
    %v507 = vld [vmem:[#allocation2 + $0x20] sm:$0xff]
    %v508 = vld [vmem:[#allocation2 + $0x28] sm:$0xff]
    %v509 = vld [vmem:[#allocation2 + $0x30] sm:$0xff]
    %v510 = vld [vmem:[#allocation2 + $0x38] sm:$0xff]
    %v511 = vld [vmem:[#allocation6] sm:$0xff]
    %v512 = vld [vmem:[#allocation6 + $0x8] sm:$0xff]
    %v513 = vld [vmem:[#allocation6 + $0x10] sm:$0xff]
    %v514 = vld [vmem:[#allocation6 + $0x18] sm:$0xff]
    %v515 = vld [vmem:[#allocation6 + $0x20] sm:$0xff]
    %v516 = vld [vmem:[#allocation6 + $0x28] sm:$0xff]
    %v517 = vld [vmem:[#allocation6 + $0x30] sm:$0xff]
    %v518 = vld [vmem:[#allocation6 + $0x38] sm:$0xff]
    %v519 = vld [vmem:[#allocation6 + $0x40] sm:$0xff]
    %v520 = vld [vmem:[#allocation6 + $0x48] sm:$0xff]
    %v521 = vld [vmem:[#allocation6 + $0x50] sm:$0xff]
    %v522 = vld [vmem:[#allocation6 + $0x58] sm:$0xff]
    %v523 = vld [vmem:[#allocation6 + $0x60] sm:$0xff]
    %v524 = vld [vmem:[#allocation6 + $0x68] sm:$0xff]
    %v525 = vld [vmem:[#allocation6 + $0x70] sm:$0xff]
    %v526 = vld [vmem:[#allocation6 + $0x78] sm:$0xff]
    %v527 = vld [vmem:[#allocation6 + $0x80] sm:$0xff]
    %v528 = vld [vmem:[#allocation6 + $0x88] sm:$0xff]
    %v529 = vld [vmem:[#allocation6 + $0x90] sm:$0xff]
    %v530 = vld [vmem:[#allocation6 + $0x98] sm:$0xff]
    %v531 = vld [vmem:[#allocation6 + $0xa0] sm:$0xff]
    %v532 = vld [vmem:[#allocation6 + $0xa8] sm:$0xff]
    %v533 = vld [vmem:[#allocation6 + $0xb0] sm:$0xff]
    %v534 = vld [vmem:[#allocation6 + $0xb8] sm:$0xff]
    %v535 = vld [vmem:[#allocation6 + $0xc0] sm:$0xff]
    %v536 = vld [vmem:[#allocation6 + $0xc8] sm:$0xff]
    %v537 = vld [vmem:[#allocation6 + $0xd0] sm:$0xff]
    %v538 = vld [vmem:[#allocation6 + $0xd8] sm:$0xff]
    %v539 = vld [vmem:[#allocation6 + $0xe0] sm:$0xff]
    %v540 = vld [vmem:[#allocation6 + $0xe8] sm:$0xff]
    %v541 = vld [vmem:[#allocation6 + $0xf0] sm:$0xff]
    %v542 = vld [vmem:[#allocation6 + $0xf8] sm:$0xff]
    %v543 = vld [vmem:[#allocation6 + $0x100] sm:$0xff]
    %v544 = vld [vmem:[#allocation6 + $0x108] sm:$0xff]
    %v545 = vld [vmem:[#allocation6 + $0x110] sm:$0xff]
    %v546 = vld [vmem:[#allocation6 + $0x118] sm:$0xff]
    %v547 = vld [vmem:[#allocation6 + $0x120] sm:$0xff]
    %v548 = vld [vmem:[#allocation6 + $0x128] sm:$0xff]
    %v549 = vld [vmem:[#allocation6 + $0x130] sm:$0xff]
    %v550 = vld [vmem:[#allocation6 + $0x138] sm:$0xff]
    %v551 = vld [vmem:[#allocation6 + $0x140] sm:$0xff]
    %v552 = vld [vmem:[#allocation6 + $0x148] sm:$0xff]
    %v553 = vld [vmem:[#allocation6 + $0x150] sm:$0xff]
    %v554 = vld [vmem:[#allocation6 + $0x158] sm:$0xff]
    %v555 = vld [vmem:[#allocation6 + $0x160] sm:$0xff]
    %v556 = vld [vmem:[#allocation6 + $0x168] sm:$0xff]
    %v557 = vld [vmem:[#allocation6 + $0x170] sm:$0xff]
    %v558 = vld [vmem:[#allocation6 + $0x178] sm:$0xff]
    %v559 = vld [vmem:[#allocation6 + $0x180] sm:$0xff]
    %v560 = vld [vmem:[#allocation6 + $0x188] sm:$0xff]
    %v561 = vld [vmem:[#allocation6 + $0x190] sm:$0xff]
    %v562 = vld [vmem:[#allocation6 + $0x198] sm:$0xff]
    %v563 = vld [vmem:[#allocation6 + $0x1a0] sm:$0xff]
    %v564 = vld [vmem:[#allocation6 + $0x1a8] sm:$0xff]
    %v565 = vld [vmem:[#allocation6 + $0x1b0] sm:$0xff]
    %v566 = vld [vmem:[#allocation6 + $0x1b8] sm:$0xff]
    %v567 = vld [vmem:[#allocation6 + $0x1c0] sm:$0xff]
    %v568 = vld [vmem:[#allocation6 + $0x1c8] sm:$0xff]
    %v569 = vld [vmem:[#allocation6 + $0x1d0] sm:$0xff]
    %v570 = vld [vmem:[#allocation6 + $0x1d8] sm:$0xff]
    %v571 = vld [vmem:[#allocation6 + $0x1e0] sm:$0xff]
    %v572 = vld [vmem:[#allocation6 + $0x1e8] sm:$0xff]
    %v573 = vld [vmem:[#allocation6 + $0x1f0] sm:$0xff]
    %v574 = vld [vmem:[#allocation6 + $0x1f8] sm:$0xff]
    %v575 = vld [vmem:[%s494] sm:$0xff]
    %v576 = vld [vmem:[%s494 + $0x8] sm:$0xff]
    %v577 = vld [vmem:[%s494 + $0x10] sm:$0xff]
    %v578 = vld [vmem:[%s494 + $0x18] sm:$0xff]
    %v579 = vld [vmem:[%s494 + $0x20] sm:$0xff]
    %v580 = vld [vmem:[%s494 + $0x28] sm:$0xff]
    %v581 = vld [vmem:[%s494 + $0x30] sm:$0xff]
    %v582 = vld [vmem:[%s494 + $0x38] sm:$0xff]
    %s583 = scalar_lea.vmem [#allocation6], 512
    %v584 = vld [vmem:[%s583] sm:$0xff]
    %v585 = vld [vmem:[%s583 + $0x8] sm:$0xff]
    %v586 = vld [vmem:[%s583 + $0x10] sm:$0xff]
    %v587 = vld [vmem:[%s583 + $0x18] sm:$0xff]
    %v588 = vld [vmem:[%s583 + $0x20] sm:$0xff]
    %v589 = vld [vmem:[%s583 + $0x28] sm:$0xff]
    %v590 = vld [vmem:[%s583 + $0x30] sm:$0xff]
    %v591 = vld [vmem:[%s583 + $0x38] sm:$0xff]
    %v592 = vld [vmem:[%s583 + $0x40] sm:$0xff]
    %v593 = vld [vmem:[%s583 + $0x48] sm:$0xff]
    %v594 = vld [vmem:[%s583 + $0x50] sm:$0xff]
    %v595 = vld [vmem:[%s583 + $0x58] sm:$0xff]
    %v596 = vld [vmem:[%s583 + $0x60] sm:$0xff]
    %v597 = vld [vmem:[%s583 + $0x68] sm:$0xff]
    %v598 = vld [vmem:[%s583 + $0x70] sm:$0xff]
    %v599 = vld [vmem:[%s583 + $0x78] sm:$0xff]
    %v600 = vld [vmem:[%s583 + $0x80] sm:$0xff]
    %v601 = vld [vmem:[%s583 + $0x88] sm:$0xff]
    %v602 = vld [vmem:[%s583 + $0x90] sm:$0xff]
    %v603 = vld [vmem:[%s583 + $0x98] sm:$0xff]
    %v604 = vld [vmem:[%s583 + $0xa0] sm:$0xff]
    %v605 = vld [vmem:[%s583 + $0xa8] sm:$0xff]
    %v606 = vld [vmem:[%s583 + $0xb0] sm:$0xff]
    %v607 = vld [vmem:[%s583 + $0xb8] sm:$0xff]
    %v608 = vld [vmem:[%s583 + $0xc0] sm:$0xff]
    %v609 = vld [vmem:[%s583 + $0xc8] sm:$0xff]
    %v610 = vld [vmem:[%s583 + $0xd0] sm:$0xff]
    %v611 = vld [vmem:[%s583 + $0xd8] sm:$0xff]
    %v612 = vld [vmem:[%s583 + $0xe0] sm:$0xff]
    %v613 = vld [vmem:[%s583 + $0xe8] sm:$0xff]
    %v614 = vld [vmem:[%s583 + $0xf0] sm:$0xff]
    %v615 = vld [vmem:[%s583 + $0xf8] sm:$0xff]
    %v616 = vld [vmem:[%s583 + $0x100] sm:$0xff]
    %v617 = vld [vmem:[%s583 + $0x108] sm:$0xff]
    %v618 = vld [vmem:[%s583 + $0x110] sm:$0xff]
    %v619 = vld [vmem:[%s583 + $0x118] sm:$0xff]
    %v620 = vld [vmem:[%s583 + $0x120] sm:$0xff]
    %v621 = vld [vmem:[%s583 + $0x128] sm:$0xff]
    %v622 = vld [vmem:[%s583 + $0x130] sm:$0xff]
    %v623 = vld [vmem:[%s583 + $0x138] sm:$0xff]
    %v624 = vld [vmem:[%s583 + $0x140] sm:$0xff]
    %v625 = vld [vmem:[%s583 + $0x148] sm:$0xff]
    %v626 = vld [vmem:[%s583 + $0x150] sm:$0xff]
    %v627 = vld [vmem:[%s583 + $0x158] sm:$0xff]
    %v628 = vld [vmem:[%s583 + $0x160] sm:$0xff]
    %v629 = vld [vmem:[%s583 + $0x168] sm:$0xff]
    %v630 = vld [vmem:[%s583 + $0x170] sm:$0xff]
    %v631 = vld [vmem:[%s583 + $0x178] sm:$0xff]
    %v632 = vld [vmem:[%s583 + $0x180] sm:$0xff]
    %v633 = vld [vmem:[%s583 + $0x188] sm:$0xff]
    %v634 = vld [vmem:[%s583 + $0x190] sm:$0xff]
    %v635 = vld [vmem:[%s583 + $0x198] sm:$0xff]
    %v636 = vld [vmem:[%s583 + $0x1a0] sm:$0xff]
    %v637 = vld [vmem:[%s583 + $0x1a8] sm:$0xff]
    %v638 = vld [vmem:[%s583 + $0x1b0] sm:$0xff]
    %v639 = vld [vmem:[%s583 + $0x1b8] sm:$0xff]
    %v640 = vld [vmem:[%s583 + $0x1c0] sm:$0xff]
    %v641 = vld [vmem:[%s583 + $0x1c8] sm:$0xff]
    %v642 = vld [vmem:[%s583 + $0x1d0] sm:$0xff]
    %v643 = vld [vmem:[%s583 + $0x1d8] sm:$0xff]
    %v644 = vld [vmem:[%s583 + $0x1e0] sm:$0xff]
    %v645 = vld [vmem:[%s583 + $0x1e8] sm:$0xff]
    %v646 = vld [vmem:[%s583 + $0x1f0] sm:$0xff]
    %v647 = vld [vmem:[%s583 + $0x1f8] sm:$0xff]
    %v656 = vunpack.c.l.b16 %v575
    %v657 = vunpack.c.h.b16 %v575
    %v658 = vunpack.c.l.b16 %v576
    %v659 = vunpack.c.h.b16 %v576
    %v660 = vunpack.c.l.b16 %v577
    %v661 = vunpack.c.h.b16 %v577
    %v662 = vunpack.c.l.b16 %v578
    %v663 = vunpack.c.h.b16 %v578
    %v664 = vunpack.c.l.b16 %v579
    %v665 = vunpack.c.h.b16 %v579
    %v666 = vunpack.c.l.b16 %v580
    %v667 = vunpack.c.h.b16 %v580
    %v668 = vunpack.c.l.b16 %v581
    %v669 = vunpack.c.h.b16 %v581
    %v670 = vunpack.c.l.b16 %v582
    %v671 = vunpack.c.h.b16 %v582
    %v672 = vpack.c.b16 %v658, %v656
    %v673 = vpack.c.b16 %v659, %v657
    %v674 = vpack.c.b16 %v662, %v660
    %v675 = vpack.c.b16 %v663, %v661
    %v676 = vpack.c.b16 %v666, %v664
    %v677 = vpack.c.b16 %v667, %v665
    %v678 = vpack.c.b16 %v670, %v668
    %v679 = vpack.c.b16 %v671, %v669
    %v752 = vunpack.c.l.b16 %v584
    %v753 = vunpack.c.h.b16 %v584
    %v754 = vunpack.c.l.b16 %v585
    %v755 = vunpack.c.h.b16 %v585
    %v756 = vunpack.c.l.b16 %v586
    %v757 = vunpack.c.h.b16 %v586
    %v758 = vunpack.c.l.b16 %v587
    %v759 = vunpack.c.h.b16 %v587
    %v760 = vunpack.c.l.b16 %v588
    %v761 = vunpack.c.h.b16 %v588
    %v762 = vunpack.c.l.b16 %v589
    %v763 = vunpack.c.h.b16 %v589
    %v764 = vunpack.c.l.b16 %v590
    %v765 = vunpack.c.h.b16 %v590
    %v766 = vunpack.c.l.b16 %v591
    %v767 = vunpack.c.h.b16 %v591
    %v768 = vunpack.c.l.b16 %v592
    %v769 = vunpack.c.h.b16 %v592
    %v770 = vunpack.c.l.b16 %v593
    %v771 = vunpack.c.h.b16 %v593
    %v772 = vunpack.c.l.b16 %v594
    %v773 = vunpack.c.h.b16 %v594
    %v774 = vunpack.c.l.b16 %v595
    %v775 = vunpack.c.h.b16 %v595
    %v776 = vunpack.c.l.b16 %v596
    %v777 = vunpack.c.h.b16 %v596
    %v778 = vunpack.c.l.b16 %v597
    %v779 = vunpack.c.h.b16 %v597
    %v780 = vunpack.c.l.b16 %v598
    %v781 = vunpack.c.h.b16 %v598
    %v782 = vunpack.c.l.b16 %v599
    %v783 = vunpack.c.h.b16 %v599
    %v784 = vunpack.c.l.b16 %v600
    %v785 = vunpack.c.h.b16 %v600
    %v786 = vunpack.c.l.b16 %v601
    %v787 = vunpack.c.h.b16 %v601
    %v788 = vunpack.c.l.b16 %v602
    %v789 = vunpack.c.h.b16 %v602
    %v790 = vunpack.c.l.b16 %v603
    %v791 = vunpack.c.h.b16 %v603
    %v792 = vunpack.c.l.b16 %v604
    %v793 = vunpack.c.h.b16 %v604
    %v794 = vunpack.c.l.b16 %v605
    %v795 = vunpack.c.h.b16 %v605
    %v796 = vunpack.c.l.b16 %v606
    %v797 = vunpack.c.h.b16 %v606
    %v798 = vunpack.c.l.b16 %v607
    %v799 = vunpack.c.h.b16 %v607
    %v800 = vunpack.c.l.b16 %v608
    %v801 = vunpack.c.h.b16 %v608
    %v802 = vunpack.c.l.b16 %v609
    %v803 = vunpack.c.h.b16 %v609
    %v804 = vunpack.c.l.b16 %v610
    %v805 = vunpack.c.h.b16 %v610
    %v806 = vunpack.c.l.b16 %v611
    %v807 = vunpack.c.h.b16 %v611
    %v808 = vunpack.c.l.b16 %v612
    %v809 = vunpack.c.h.b16 %v612
    %v810 = vunpack.c.l.b16 %v613
    %v811 = vunpack.c.h.b16 %v613
    %v812 = vunpack.c.l.b16 %v614
    %v813 = vunpack.c.h.b16 %v614
    %v814 = vunpack.c.l.b16 %v615
    %v815 = vunpack.c.h.b16 %v615
    %v816 = vunpack.c.l.b16 %v616
    %v817 = vunpack.c.h.b16 %v616
    %v818 = vunpack.c.l.b16 %v617
    %v819 = vunpack.c.h.b16 %v617
    %v820 = vunpack.c.l.b16 %v618
    %v821 = vunpack.c.h.b16 %v618
    %v822 = vunpack.c.l.b16 %v619
    %v823 = vunpack.c.h.b16 %v619
    %v824 = vunpack.c.l.b16 %v620
    %v825 = vunpack.c.h.b16 %v620
    %v826 = vunpack.c.l.b16 %v621
    %v827 = vunpack.c.h.b16 %v621
    %v828 = vunpack.c.l.b16 %v622
    %v829 = vunpack.c.h.b16 %v622
    %v830 = vunpack.c.l.b16 %v623
    %v831 = vunpack.c.h.b16 %v623
    %v832 = vunpack.c.l.b16 %v624
    %v833 = vunpack.c.h.b16 %v624
    %v834 = vunpack.c.l.b16 %v625
    %v835 = vunpack.c.h.b16 %v625
    %v836 = vunpack.c.l.b16 %v626
    %v837 = vunpack.c.h.b16 %v626
    %v838 = vunpack.c.l.b16 %v627
    %v839 = vunpack.c.h.b16 %v627
    %v840 = vunpack.c.l.b16 %v628
    %v841 = vunpack.c.h.b16 %v628
    %v842 = vunpack.c.l.b16 %v629
    %v843 = vunpack.c.h.b16 %v629
    %v844 = vunpack.c.l.b16 %v630
    %v845 = vunpack.c.h.b16 %v630
    %v846 = vunpack.c.l.b16 %v631
    %v847 = vunpack.c.h.b16 %v631
    %v848 = vunpack.c.l.b16 %v632
    %v849 = vunpack.c.h.b16 %v632
    %v850 = vunpack.c.l.b16 %v633
    %v851 = vunpack.c.h.b16 %v633
    %v852 = vunpack.c.l.b16 %v634
    %v853 = vunpack.c.h.b16 %v634
    %v854 = vunpack.c.l.b16 %v635
    %v855 = vunpack.c.h.b16 %v635
    %v856 = vunpack.c.l.b16 %v636
    %v857 = vunpack.c.h.b16 %v636
    %v858 = vunpack.c.l.b16 %v637
    %v859 = vunpack.c.h.b16 %v637
    %v860 = vunpack.c.l.b16 %v638
    %v861 = vunpack.c.h.b16 %v638
    %v862 = vunpack.c.l.b16 %v639
    %v863 = vunpack.c.h.b16 %v639
    %v864 = vunpack.c.l.b16 %v640
    %v865 = vunpack.c.h.b16 %v640
    %v866 = vunpack.c.l.b16 %v641
    %v867 = vunpack.c.h.b16 %v641
    %v868 = vunpack.c.l.b16 %v642
    %v869 = vunpack.c.h.b16 %v642
    %v870 = vunpack.c.l.b16 %v643
    %v871 = vunpack.c.h.b16 %v643
    %v872 = vunpack.c.l.b16 %v644
    %v873 = vunpack.c.h.b16 %v644
    %v874 = vunpack.c.l.b16 %v645
    %v875 = vunpack.c.h.b16 %v645
    %v876 = vunpack.c.l.b16 %v646
    %v877 = vunpack.c.h.b16 %v646
    %v878 = vunpack.c.l.b16 %v647
    %v879 = vunpack.c.h.b16 %v647
    %v880 = vpack.c.b16 %v756, %v752
    %v881 = vpack.c.b16 %v757, %v753
    %v882 = vpack.c.b16 %v758, %v754
    %v883 = vpack.c.b16 %v759, %v755
    %v884 = vpack.c.b16 %v764, %v760
    %v885 = vpack.c.b16 %v765, %v761
    %v886 = vpack.c.b16 %v766, %v762
    %v887 = vpack.c.b16 %v767, %v763
    %v888 = vpack.c.b16 %v772, %v768
    %v889 = vpack.c.b16 %v773, %v769
    %v890 = vpack.c.b16 %v774, %v770
    %v891 = vpack.c.b16 %v775, %v771
    %v892 = vpack.c.b16 %v780, %v776
    %v893 = vpack.c.b16 %v781, %v777
    %v894 = vpack.c.b16 %v782, %v778
    %v895 = vpack.c.b16 %v783, %v779
    %v896 = vpack.c.b16 %v788, %v784
    %v897 = vpack.c.b16 %v789, %v785
    %v898 = vpack.c.b16 %v790, %v786
    %v899 = vpack.c.b16 %v791, %v787
    %v900 = vpack.c.b16 %v796, %v792
    %v901 = vpack.c.b16 %v797, %v793
    %v902 = vpack.c.b16 %v798, %v794
    %v903 = vpack.c.b16 %v799, %v795
    %v904 = vpack.c.b16 %v804, %v800
    %v905 = vpack.c.b16 %v805, %v801
    %v906 = vpack.c.b16 %v806, %v802
    %v907 = vpack.c.b16 %v807, %v803
    %v908 = vpack.c.b16 %v812, %v808
    %v909 = vpack.c.b16 %v813, %v809
    %v910 = vpack.c.b16 %v814, %v810
    %v911 = vpack.c.b16 %v815, %v811
    %v912 = vpack.c.b16 %v820, %v816
    %v913 = vpack.c.b16 %v821, %v817
    %v914 = vpack.c.b16 %v822, %v818
    %v915 = vpack.c.b16 %v823, %v819
    %v916 = vpack.c.b16 %v828, %v824
    %v917 = vpack.c.b16 %v829, %v825
    %v918 = vpack.c.b16 %v830, %v826
    %v919 = vpack.c.b16 %v831, %v827
    %v920 = vpack.c.b16 %v836, %v832
    %v921 = vpack.c.b16 %v837, %v833
    %v922 = vpack.c.b16 %v838, %v834
    %v923 = vpack.c.b16 %v839, %v835
    %v924 = vpack.c.b16 %v844, %v840
    %v925 = vpack.c.b16 %v845, %v841
    %v926 = vpack.c.b16 %v846, %v842
    %v927 = vpack.c.b16 %v847, %v843
    %v928 = vpack.c.b16 %v852, %v848
    %v929 = vpack.c.b16 %v853, %v849
    %v930 = vpack.c.b16 %v854, %v850
    %v931 = vpack.c.b16 %v855, %v851
    %v932 = vpack.c.b16 %v860, %v856
    %v933 = vpack.c.b16 %v861, %v857
    %v934 = vpack.c.b16 %v862, %v858
    %v935 = vpack.c.b16 %v863, %v859
    %v936 = vpack.c.b16 %v868, %v864
    %v937 = vpack.c.b16 %v869, %v865
    %v938 = vpack.c.b16 %v870, %v866
    %v939 = vpack.c.b16 %v871, %v867
    %v940 = vpack.c.b16 %v876, %v872
    %v941 = vpack.c.b16 %v877, %v873
    %v942 = vpack.c.b16 %v878, %v874
    %v943 = vpack.c.b16 %v879, %v875
    %1008 = vmatpush.bf16.msra.mxu0 %v908
    %1009 = vmatpush.bf16.msra.mxu0 %v904
    %1010 = vmatpush.bf16.msra.mxu0 %v900
    %1011 = vmatpush.bf16.msra.mxu0 %v896
    %1012 = vmatpush.bf16.msra.mxu0 %v892
    %1013 = vmatpush.bf16.msra.mxu0 %v888
    %1014 = vmatpush.bf16.msra.mxu0 %v884
    %1015 = vmatpush.bf16.msra.mxu0 %v880
    %1016 = vmatmul.bf16.gmra.mxu0 %v672
    %v1017 = vpop.f32.mrf.mxu0
    %v1018 = vadd.f32 0.0, %v1017
    %v1019 = vpop.f32.mrf.mxu0
    %v1020 = vadd.f32 0.0, %v1019
    %1021 = vmatmul.bf16.gmra.mxu0 %v674
    %v1022 = vpop.f32.mrf.mxu0
    %v1023 = vadd.f32 0.0, %v1022
    %v1024 = vpop.f32.mrf.mxu0
    %v1025 = vadd.f32 0.0, %v1024
    %1026 = vmatmul.bf16.gmra.mxu0 %v676
    %v1027 = vpop.f32.mrf.mxu0
    %v1028 = vadd.f32 0.0, %v1027
    %v1029 = vpop.f32.mrf.mxu0
    %v1030 = vadd.f32 0.0, %v1029
    %1031 = vmatmul.bf16.gmra.mxu0 %v678
    %v1032 = vpop.f32.mrf.mxu0
    %v1033 = vadd.f32 0.0, %v1032
    %v1034 = vpop.f32.mrf.mxu0
    %v1035 = vadd.f32 0.0, %v1034
    %1036 = vdwg.mxu0
    %1037 = vmatpush.bf16.msra.mxu0 %v940
    %1038 = vmatpush.bf16.msra.mxu0 %v936
    %1039 = vmatpush.bf16.msra.mxu0 %v932
    %1040 = vmatpush.bf16.msra.mxu0 %v928
    %1041 = vmatpush.bf16.msra.mxu0 %v924
    %1042 = vmatpush.bf16.msra.mxu0 %v920
    %1043 = vmatpush.bf16.msra.mxu0 %v916
    %1044 = vmatpush.bf16.msra.mxu0 %v912
    %1045 = vmatmul.bf16.gmra.mxu0 %v673
    %v1046 = vpop.f32.mrf.mxu0
    %v1047 = vadd.f32 %v1018, %v1046
    %v1048 = vpop.f32.mrf.mxu0
    %v1049 = vadd.f32 %v1020, %v1048
    %1050 = vmatmul.bf16.gmra.mxu0 %v675
    %v1051 = vpop.f32.mrf.mxu0
    %v1052 = vadd.f32 %v1023, %v1051
    %v1053 = vpop.f32.mrf.mxu0
    %v1054 = vadd.f32 %v1025, %v1053
    %1055 = vmatmul.bf16.gmra.mxu0 %v677
    %v1056 = vpop.f32.mrf.mxu0
    %v1057 = vadd.f32 %v1028, %v1056
    %v1058 = vpop.f32.mrf.mxu0
    %v1059 = vadd.f32 %v1030, %v1058
    %1060 = vmatmul.bf16.gmra.mxu0 %v679
    %v1061 = vpop.f32.mrf.mxu0
    %v1062 = vadd.f32 %v1033, %v1061
    %v1063 = vpop.f32.mrf.mxu0
    %v1064 = vadd.f32 %v1035, %v1063
    %1065 = vdwg.mxu0
    %1066 = vmatpush.bf16.msra.mxu0 %v909
    %1067 = vmatpush.bf16.msra.mxu0 %v905
    %1068 = vmatpush.bf16.msra.mxu0 %v901
    %1069 = vmatpush.bf16.msra.mxu0 %v897
    %1070 = vmatpush.bf16.msra.mxu0 %v893
    %1071 = vmatpush.bf16.msra.mxu0 %v889
    %1072 = vmatpush.bf16.msra.mxu0 %v885
    %1073 = vmatpush.bf16.msra.mxu0 %v881
    %1074 = vmatmul.bf16.gmra.mxu0 %v672
    %v1075 = vpop.f32.mrf.mxu0
    %v1076 = vadd.f32 0.0, %v1075
    %v1077 = vpop.f32.mrf.mxu0
    %v1078 = vadd.f32 0.0, %v1077
    %1079 = vmatmul.bf16.gmra.mxu0 %v674
    %v1080 = vpop.f32.mrf.mxu0
    %v1081 = vadd.f32 0.0, %v1080
    %v1082 = vpop.f32.mrf.mxu0
    %v1083 = vadd.f32 0.0, %v1082
    %1084 = vmatmul.bf16.gmra.mxu0 %v676
    %v1085 = vpop.f32.mrf.mxu0
    %v1086 = vadd.f32 0.0, %v1085
    %v1087 = vpop.f32.mrf.mxu0
    %v1088 = vadd.f32 0.0, %v1087
    %1089 = vmatmul.bf16.gmra.mxu0 %v678
    %v1090 = vpop.f32.mrf.mxu0
    %v1091 = vadd.f32 0.0, %v1090
    %v1092 = vpop.f32.mrf.mxu0
    %v1093 = vadd.f32 0.0, %v1092
    %1094 = vdwg.mxu0
    %1095 = vmatpush.bf16.msra.mxu0 %v941
    %1096 = vmatpush.bf16.msra.mxu0 %v937
    %1097 = vmatpush.bf16.msra.mxu0 %v933
    %1098 = vmatpush.bf16.msra.mxu0 %v929
    %1099 = vmatpush.bf16.msra.mxu0 %v925
    %1100 = vmatpush.bf16.msra.mxu0 %v921
    %1101 = vmatpush.bf16.msra.mxu0 %v917
    %1102 = vmatpush.bf16.msra.mxu0 %v913
    %1103 = vmatmul.bf16.gmra.mxu0 %v673
    %v1104 = vpop.f32.mrf.mxu0
    %v1105 = vadd.f32 %v1076, %v1104
    %v1106 = vpop.f32.mrf.mxu0
    %v1107 = vadd.f32 %v1078, %v1106
    %1108 = vmatmul.bf16.gmra.mxu0 %v675
    %v1109 = vpop.f32.mrf.mxu0
    %v1110 = vadd.f32 %v1081, %v1109
    %v1111 = vpop.f32.mrf.mxu0
    %v1112 = vadd.f32 %v1083, %v1111
    %1113 = vmatmul.bf16.gmra.mxu0 %v677
    %v1114 = vpop.f32.mrf.mxu0
    %v1115 = vadd.f32 %v1086, %v1114
    %v1116 = vpop.f32.mrf.mxu0
    %v1117 = vadd.f32 %v1088, %v1116
    %1118 = vmatmul.bf16.gmra.mxu0 %v679
    %v1119 = vpop.f32.mrf.mxu0
    %v1120 = vadd.f32 %v1091, %v1119
    %v1121 = vpop.f32.mrf.mxu0
    %v1122 = vadd.f32 %v1093, %v1121
    %1123 = vdwg.mxu0
    %1124 = vmatpush.bf16.msra.mxu0 %v910
    %1125 = vmatpush.bf16.msra.mxu0 %v906
    %1126 = vmatpush.bf16.msra.mxu0 %v902
    %1127 = vmatpush.bf16.msra.mxu0 %v898
    %1128 = vmatpush.bf16.msra.mxu0 %v894
    %1129 = vmatpush.bf16.msra.mxu0 %v890
    %1130 = vmatpush.bf16.msra.mxu0 %v886
    %1131 = vmatpush.bf16.msra.mxu0 %v882
    %1132 = vmatmul.bf16.gmra.mxu0 %v672
    %v1133 = vpop.f32.mrf.mxu0
    %v1134 = vadd.f32 0.0, %v1133
    %v1135 = vpop.f32.mrf.mxu0
    %v1136 = vadd.f32 0.0, %v1135
    %1137 = vmatmul.bf16.gmra.mxu0 %v674
    %v1138 = vpop.f32.mrf.mxu0
    %v1139 = vadd.f32 0.0, %v1138
    %v1140 = vpop.f32.mrf.mxu0
    %v1141 = vadd.f32 0.0, %v1140
    %1142 = vmatmul.bf16.gmra.mxu0 %v676
    %v1143 = vpop.f32.mrf.mxu0
    %v1144 = vadd.f32 0.0, %v1143
    %v1145 = vpop.f32.mrf.mxu0
    %v1146 = vadd.f32 0.0, %v1145
    %1147 = vmatmul.bf16.gmra.mxu0 %v678
    %v1148 = vpop.f32.mrf.mxu0
    %v1149 = vadd.f32 0.0, %v1148
    %v1150 = vpop.f32.mrf.mxu0
    %v1151 = vadd.f32 0.0, %v1150
    %1152 = vdwg.mxu0
    %1153 = vmatpush.bf16.msra.mxu0 %v942
    %1154 = vmatpush.bf16.msra.mxu0 %v938
    %1155 = vmatpush.bf16.msra.mxu0 %v934
    %1156 = vmatpush.bf16.msra.mxu0 %v930
    %1157 = vmatpush.bf16.msra.mxu0 %v926
    %1158 = vmatpush.bf16.msra.mxu0 %v922
    %1159 = vmatpush.bf16.msra.mxu0 %v918
    %1160 = vmatpush.bf16.msra.mxu0 %v914
    %1161 = vmatmul.bf16.gmra.mxu0 %v673
    %v1162 = vpop.f32.mrf.mxu0
    %v1163 = vadd.f32 %v1134, %v1162
    %v1164 = vpop.f32.mrf.mxu0
    %v1165 = vadd.f32 %v1136, %v1164
    %1166 = vmatmul.bf16.gmra.mxu0 %v675
    %v1167 = vpop.f32.mrf.mxu0
    %v1168 = vadd.f32 %v1139, %v1167
    %v1169 = vpop.f32.mrf.mxu0
    %v1170 = vadd.f32 %v1141, %v1169
    %1171 = vmatmul.bf16.gmra.mxu0 %v677
    %v1172 = vpop.f32.mrf.mxu0
    %v1173 = vadd.f32 %v1144, %v1172
    %v1174 = vpop.f32.mrf.mxu0
    %v1175 = vadd.f32 %v1146, %v1174
    %1176 = vmatmul.bf16.gmra.mxu0 %v679
    %v1177 = vpop.f32.mrf.mxu0
    %v1178 = vadd.f32 %v1149, %v1177
    %v1179 = vpop.f32.mrf.mxu0
    %v1180 = vadd.f32 %v1151, %v1179
    %1181 = vdwg.mxu0
    %1182 = vmatpush.bf16.msra.mxu0 %v911
    %1183 = vmatpush.bf16.msra.mxu0 %v907
    %1184 = vmatpush.bf16.msra.mxu0 %v903
    %1185 = vmatpush.bf16.msra.mxu0 %v899
    %1186 = vmatpush.bf16.msra.mxu0 %v895
    %1187 = vmatpush.bf16.msra.mxu0 %v891
    %1188 = vmatpush.bf16.msra.mxu0 %v887
    %1189 = vmatpush.bf16.msra.mxu0 %v883
    %1190 = vmatmul.bf16.gmra.mxu0 %v672
    %v1191 = vpop.f32.mrf.mxu0
    %v1192 = vadd.f32 0.0, %v1191
    %v1193 = vpop.f32.mrf.mxu0
    %v1194 = vadd.f32 0.0, %v1193
    %1195 = vmatmul.bf16.gmra.mxu0 %v674
    %v1196 = vpop.f32.mrf.mxu0
    %v1197 = vadd.f32 0.0, %v1196
    %v1198 = vpop.f32.mrf.mxu0
    %v1199 = vadd.f32 0.0, %v1198
    %1200 = vmatmul.bf16.gmra.mxu0 %v676
    %v1201 = vpop.f32.mrf.mxu0
    %v1202 = vadd.f32 0.0, %v1201
    %v1203 = vpop.f32.mrf.mxu0
    %v1204 = vadd.f32 0.0, %v1203
    %1205 = vmatmul.bf16.gmra.mxu0 %v678
    %v1206 = vpop.f32.mrf.mxu0
    %v1207 = vadd.f32 0.0, %v1206
    %v1208 = vpop.f32.mrf.mxu0
    %v1209 = vadd.f32 0.0, %v1208
    %1210 = vdwg.mxu0
    %1211 = vmatpush.bf16.msra.mxu0 %v943
    %1212 = vmatpush.bf16.msra.mxu0 %v939
    %1213 = vmatpush.bf16.msra.mxu0 %v935
    %1214 = vmatpush.bf16.msra.mxu0 %v931
    %1215 = vmatpush.bf16.msra.mxu0 %v927
    %1216 = vmatpush.bf16.msra.mxu0 %v923
    %1217 = vmatpush.bf16.msra.mxu0 %v919
    %1218 = vmatpush.bf16.msra.mxu0 %v915
    %1219 = vmatmul.bf16.gmra.mxu0 %v673
    %v1220 = vpop.f32.mrf.mxu0
    %v1221 = vadd.f32 %v1192, %v1220
    %v1222 = vpop.f32.mrf.mxu0
    %v1223 = vadd.f32 %v1194, %v1222
    %1224 = vmatmul.bf16.gmra.mxu0 %v675
    %v1225 = vpop.f32.mrf.mxu0
    %v1226 = vadd.f32 %v1197, %v1225
    %v1227 = vpop.f32.mrf.mxu0
    %v1228 = vadd.f32 %v1199, %v1227
    %1229 = vmatmul.bf16.gmra.mxu0 %v677
    %v1230 = vpop.f32.mrf.mxu0
    %v1231 = vadd.f32 %v1202, %v1230
    %v1232 = vpop.f32.mrf.mxu0
    %v1233 = vadd.f32 %v1204, %v1232
    %1234 = vmatmul.bf16.gmra.mxu0 %v679
    %v1235 = vpop.f32.mrf.mxu0
    %v1236 = vadd.f32 %v1207, %v1235
    %v1237 = vpop.f32.mrf.mxu0
    %v1238 = vadd.f32 %v1209, %v1237
    %1239 = vdwg.mxu0
    %v1248 = vunpack.c.l.b16 %v503
    %v1249 = vunpack.c.h.b16 %v503
    %v1250 = vunpack.c.l.b16 %v504
    %v1251 = vunpack.c.h.b16 %v504
    %v1252 = vunpack.c.l.b16 %v505
    %v1253 = vunpack.c.h.b16 %v505
    %v1254 = vunpack.c.l.b16 %v506
    %v1255 = vunpack.c.h.b16 %v506
    %v1256 = vunpack.c.l.b16 %v507
    %v1257 = vunpack.c.h.b16 %v507
    %v1258 = vunpack.c.l.b16 %v508
    %v1259 = vunpack.c.h.b16 %v508
    %v1260 = vunpack.c.l.b16 %v509
    %v1261 = vunpack.c.h.b16 %v509
    %v1262 = vunpack.c.l.b16 %v510
    %v1263 = vunpack.c.h.b16 %v510
    %v1264 = vpack.c.b16 %v1250, %v1248
    %v1265 = vpack.c.b16 %v1251, %v1249
    %v1266 = vpack.c.b16 %v1254, %v1252
    %v1267 = vpack.c.b16 %v1255, %v1253
    %v1268 = vpack.c.b16 %v1258, %v1256
    %v1269 = vpack.c.b16 %v1259, %v1257
    %v1270 = vpack.c.b16 %v1262, %v1260
    %v1271 = vpack.c.b16 %v1263, %v1261
    %v1344 = vunpack.c.l.b16 %v511
    %v1345 = vunpack.c.h.b16 %v511
    %v1346 = vunpack.c.l.b16 %v512
    %v1347 = vunpack.c.h.b16 %v512
    %v1348 = vunpack.c.l.b16 %v513
    %v1349 = vunpack.c.h.b16 %v513
    %v1350 = vunpack.c.l.b16 %v514
    %v1351 = vunpack.c.h.b16 %v514
    %v1352 = vunpack.c.l.b16 %v515
    %v1353 = vunpack.c.h.b16 %v515
    %v1354 = vunpack.c.l.b16 %v516
    %v1355 = vunpack.c.h.b16 %v516
    %v1356 = vunpack.c.l.b16 %v517
    %v1357 = vunpack.c.h.b16 %v517
    %v1358 = vunpack.c.l.b16 %v518
    %v1359 = vunpack.c.h.b16 %v518
    %v1360 = vunpack.c.l.b16 %v519
    %v1361 = vunpack.c.h.b16 %v519
    %v1362 = vunpack.c.l.b16 %v520
    %v1363 = vunpack.c.h.b16 %v520
    %v1364 = vunpack.c.l.b16 %v521
    %v1365 = vunpack.c.h.b16 %v521
    %v1366 = vunpack.c.l.b16 %v522
    %v1367 = vunpack.c.h.b16 %v522
    %v1368 = vunpack.c.l.b16 %v523
    %v1369 = vunpack.c.h.b16 %v523
    %v1370 = vunpack.c.l.b16 %v524
    %v1371 = vunpack.c.h.b16 %v524
    %v1372 = vunpack.c.l.b16 %v525
    %v1373 = vunpack.c.h.b16 %v525
    %v1374 = vunpack.c.l.b16 %v526
    %v1375 = vunpack.c.h.b16 %v526
    %v1376 = vunpack.c.l.b16 %v527
    %v1377 = vunpack.c.h.b16 %v527
    %v1378 = vunpack.c.l.b16 %v528
    %v1379 = vunpack.c.h.b16 %v528
    %v1380 = vunpack.c.l.b16 %v529
    %v1381 = vunpack.c.h.b16 %v529
    %v1382 = vunpack.c.l.b16 %v530
    %v1383 = vunpack.c.h.b16 %v530
    %v1384 = vunpack.c.l.b16 %v531
    %v1385 = vunpack.c.h.b16 %v531
    %v1386 = vunpack.c.l.b16 %v532
    %v1387 = vunpack.c.h.b16 %v532
    %v1388 = vunpack.c.l.b16 %v533
    %v1389 = vunpack.c.h.b16 %v533
    %v1390 = vunpack.c.l.b16 %v534
    %v1391 = vunpack.c.h.b16 %v534
    %v1392 = vunpack.c.l.b16 %v535
    %v1393 = vunpack.c.h.b16 %v535
    %v1394 = vunpack.c.l.b16 %v536
    %v1395 = vunpack.c.h.b16 %v536
    %v1396 = vunpack.c.l.b16 %v537
    %v1397 = vunpack.c.h.b16 %v537
    %v1398 = vunpack.c.l.b16 %v538
    %v1399 = vunpack.c.h.b16 %v538
    %v1400 = vunpack.c.l.b16 %v539
    %v1401 = vunpack.c.h.b16 %v539
    %v1402 = vunpack.c.l.b16 %v540
    %v1403 = vunpack.c.h.b16 %v540
    %v1404 = vunpack.c.l.b16 %v541
    %v1405 = vunpack.c.h.b16 %v541
    %v1406 = vunpack.c.l.b16 %v542
    %v1407 = vunpack.c.h.b16 %v542
    %v1408 = vunpack.c.l.b16 %v543
    %v1409 = vunpack.c.h.b16 %v543
    %v1410 = vunpack.c.l.b16 %v544
    %v1411 = vunpack.c.h.b16 %v544
    %v1412 = vunpack.c.l.b16 %v545
    %v1413 = vunpack.c.h.b16 %v545
    %v1414 = vunpack.c.l.b16 %v546
    %v1415 = vunpack.c.h.b16 %v546
    %v1416 = vunpack.c.l.b16 %v547
    %v1417 = vunpack.c.h.b16 %v547
    %v1418 = vunpack.c.l.b16 %v548
    %v1419 = vunpack.c.h.b16 %v548
    %v1420 = vunpack.c.l.b16 %v549
    %v1421 = vunpack.c.h.b16 %v549
    %v1422 = vunpack.c.l.b16 %v550
    %v1423 = vunpack.c.h.b16 %v550
    %v1424 = vunpack.c.l.b16 %v551
    %v1425 = vunpack.c.h.b16 %v551
    %v1426 = vunpack.c.l.b16 %v552
    %v1427 = vunpack.c.h.b16 %v552
    %v1428 = vunpack.c.l.b16 %v553
    %v1429 = vunpack.c.h.b16 %v553
    %v1430 = vunpack.c.l.b16 %v554
    %v1431 = vunpack.c.h.b16 %v554
    %v1432 = vunpack.c.l.b16 %v555
    %v1433 = vunpack.c.h.b16 %v555
    %v1434 = vunpack.c.l.b16 %v556
    %v1435 = vunpack.c.h.b16 %v556
    %v1436 = vunpack.c.l.b16 %v557
    %v1437 = vunpack.c.h.b16 %v557
    %v1438 = vunpack.c.l.b16 %v558
    %v1439 = vunpack.c.h.b16 %v558
    %v1440 = vunpack.c.l.b16 %v559
    %v1441 = vunpack.c.h.b16 %v559
    %v1442 = vunpack.c.l.b16 %v560
    %v1443 = vunpack.c.h.b16 %v560
    %v1444 = vunpack.c.l.b16 %v561
    %v1445 = vunpack.c.h.b16 %v561
    %v1446 = vunpack.c.l.b16 %v562
    %v1447 = vunpack.c.h.b16 %v562
    %v1448 = vunpack.c.l.b16 %v563
    %v1449 = vunpack.c.h.b16 %v563
    %v1450 = vunpack.c.l.b16 %v564
    %v1451 = vunpack.c.h.b16 %v564
    %v1452 = vunpack.c.l.b16 %v565
    %v1453 = vunpack.c.h.b16 %v565
    %v1454 = vunpack.c.l.b16 %v566
    %v1455 = vunpack.c.h.b16 %v566
    %v1456 = vunpack.c.l.b16 %v567
    %v1457 = vunpack.c.h.b16 %v567
    %v1458 = vunpack.c.l.b16 %v568
    %v1459 = vunpack.c.h.b16 %v568
    %v1460 = vunpack.c.l.b16 %v569
    %v1461 = vunpack.c.h.b16 %v569
    %v1462 = vunpack.c.l.b16 %v570
    %v1463 = vunpack.c.h.b16 %v570
    %v1464 = vunpack.c.l.b16 %v571
    %v1465 = vunpack.c.h.b16 %v571
    %v1466 = vunpack.c.l.b16 %v572
    %v1467 = vunpack.c.h.b16 %v572
    %v1468 = vunpack.c.l.b16 %v573
    %v1469 = vunpack.c.h.b16 %v573
    %v1470 = vunpack.c.l.b16 %v574
    %v1471 = vunpack.c.h.b16 %v574
    %v1472 = vpack.c.b16 %v1348, %v1344
    %v1473 = vpack.c.b16 %v1349, %v1345
    %v1474 = vpack.c.b16 %v1350, %v1346
    %v1475 = vpack.c.b16 %v1351, %v1347
    %v1476 = vpack.c.b16 %v1356, %v1352
    %v1477 = vpack.c.b16 %v1357, %v1353
    %v1478 = vpack.c.b16 %v1358, %v1354
    %v1479 = vpack.c.b16 %v1359, %v1355
    %v1480 = vpack.c.b16 %v1364, %v1360
    %v1481 = vpack.c.b16 %v1365, %v1361
    %v1482 = vpack.c.b16 %v1366, %v1362
    %v1483 = vpack.c.b16 %v1367, %v1363
    %v1484 = vpack.c.b16 %v1372, %v1368
    %v1485 = vpack.c.b16 %v1373, %v1369
    %v1486 = vpack.c.b16 %v1374, %v1370
    %v1487 = vpack.c.b16 %v1375, %v1371
    %v1488 = vpack.c.b16 %v1380, %v1376
    %v1489 = vpack.c.b16 %v1381, %v1377
    %v1490 = vpack.c.b16 %v1382, %v1378
    %v1491 = vpack.c.b16 %v1383, %v1379
    %v1492 = vpack.c.b16 %v1388, %v1384
    %v1493 = vpack.c.b16 %v1389, %v1385
    %v1494 = vpack.c.b16 %v1390, %v1386
    %v1495 = vpack.c.b16 %v1391, %v1387
    %v1496 = vpack.c.b16 %v1396, %v1392
    %v1497 = vpack.c.b16 %v1397, %v1393
    %v1498 = vpack.c.b16 %v1398, %v1394
    %v1499 = vpack.c.b16 %v1399, %v1395
    %v1500 = vpack.c.b16 %v1404, %v1400
    %v1501 = vpack.c.b16 %v1405, %v1401
    %v1502 = vpack.c.b16 %v1406, %v1402
    %v1503 = vpack.c.b16 %v1407, %v1403
    %v1504 = vpack.c.b16 %v1412, %v1408
    %v1505 = vpack.c.b16 %v1413, %v1409
    %v1506 = vpack.c.b16 %v1414, %v1410
    %v1507 = vpack.c.b16 %v1415, %v1411
    %v1508 = vpack.c.b16 %v1420, %v1416
    %v1509 = vpack.c.b16 %v1421, %v1417
    %v1510 = vpack.c.b16 %v1422, %v1418
    %v1511 = vpack.c.b16 %v1423, %v1419
    %v1512 = vpack.c.b16 %v1428, %v1424
    %v1513 = vpack.c.b16 %v1429, %v1425
    %v1514 = vpack.c.b16 %v1430, %v1426
    %v1515 = vpack.c.b16 %v1431, %v1427
    %v1516 = vpack.c.b16 %v1436, %v1432
    %v1517 = vpack.c.b16 %v1437, %v1433
    %v1518 = vpack.c.b16 %v1438, %v1434
    %v1519 = vpack.c.b16 %v1439, %v1435
    %v1520 = vpack.c.b16 %v1444, %v1440
    %v1521 = vpack.c.b16 %v1445, %v1441
    %v1522 = vpack.c.b16 %v1446, %v1442
    %v1523 = vpack.c.b16 %v1447, %v1443
    %v1524 = vpack.c.b16 %v1452, %v1448
    %v1525 = vpack.c.b16 %v1453, %v1449
    %v1526 = vpack.c.b16 %v1454, %v1450
    %v1527 = vpack.c.b16 %v1455, %v1451
    %v1528 = vpack.c.b16 %v1460, %v1456
    %v1529 = vpack.c.b16 %v1461, %v1457
    %v1530 = vpack.c.b16 %v1462, %v1458
    %v1531 = vpack.c.b16 %v1463, %v1459
    %v1532 = vpack.c.b16 %v1468, %v1464
    %v1533 = vpack.c.b16 %v1469, %v1465
    %v1534 = vpack.c.b16 %v1470, %v1466
    %v1535 = vpack.c.b16 %v1471, %v1467
    %1600 = vmatpush.bf16.msra.mxu0 %v1500
    %1601 = vmatpush.bf16.msra.mxu0 %v1496
    %1602 = vmatpush.bf16.msra.mxu0 %v1492
    %1603 = vmatpush.bf16.msra.mxu0 %v1488
    %1604 = vmatpush.bf16.msra.mxu0 %v1484
    %1605 = vmatpush.bf16.msra.mxu0 %v1480
    %1606 = vmatpush.bf16.msra.mxu0 %v1476
    %1607 = vmatpush.bf16.msra.mxu0 %v1472
    %1608 = vmatmul.bf16.gmra.mxu0 %v1264
    %v1609 = vpop.f32.mrf.mxu0
    %v1610 = vadd.f32 %v1047, %v1609
    %v1611 = vpop.f32.mrf.mxu0
    %v1612 = vadd.f32 %v1049, %v1611
    %1613 = vmatmul.bf16.gmra.mxu0 %v1266
    %v1614 = vpop.f32.mrf.mxu0
    %v1615 = vadd.f32 %v1052, %v1614
    %v1616 = vpop.f32.mrf.mxu0
    %v1617 = vadd.f32 %v1054, %v1616
    %1618 = vmatmul.bf16.gmra.mxu0 %v1268
    %v1619 = vpop.f32.mrf.mxu0
    %v1620 = vadd.f32 %v1057, %v1619
    %v1621 = vpop.f32.mrf.mxu0
    %v1622 = vadd.f32 %v1059, %v1621
    %1623 = vmatmul.bf16.gmra.mxu0 %v1270
    %v1624 = vpop.f32.mrf.mxu0
    %v1625 = vadd.f32 %v1062, %v1624
    %v1626 = vpop.f32.mrf.mxu0
    %v1627 = vadd.f32 %v1064, %v1626
    %1628 = vdwg.mxu0
    %1629 = vmatpush.bf16.msra.mxu0 %v1532
    %1630 = vmatpush.bf16.msra.mxu0 %v1528
    %1631 = vmatpush.bf16.msra.mxu0 %v1524
    %1632 = vmatpush.bf16.msra.mxu0 %v1520
    %1633 = vmatpush.bf16.msra.mxu0 %v1516
    %1634 = vmatpush.bf16.msra.mxu0 %v1512
    %1635 = vmatpush.bf16.msra.mxu0 %v1508
    %1636 = vmatpush.bf16.msra.mxu0 %v1504
    %1637 = vmatmul.bf16.gmra.mxu0 %v1265
    %v1638 = vpop.f32.mrf.mxu0
    %v1639 = vadd.f32 %v1610, %v1638
    %v1640 = vpop.f32.mrf.mxu0
    %v1641 = vadd.f32 %v1612, %v1640
    %1642 = vmatmul.bf16.gmra.mxu0 %v1267
    %v1643 = vpop.f32.mrf.mxu0
    %v1644 = vadd.f32 %v1615, %v1643
    %v1645 = vpop.f32.mrf.mxu0
    %v1646 = vadd.f32 %v1617, %v1645
    %1647 = vmatmul.bf16.gmra.mxu0 %v1269
    %v1648 = vpop.f32.mrf.mxu0
    %v1649 = vadd.f32 %v1620, %v1648
    %v1650 = vpop.f32.mrf.mxu0
    %v1651 = vadd.f32 %v1622, %v1650
    %1652 = vmatmul.bf16.gmra.mxu0 %v1271
    %v1653 = vpop.f32.mrf.mxu0
    %v1654 = vadd.f32 %v1625, %v1653
    %v1655 = vpop.f32.mrf.mxu0
    %v1656 = vadd.f32 %v1627, %v1655
    %1657 = vdwg.mxu0
    %1658 = vmatpush.bf16.msra.mxu0 %v1501
    %1659 = vmatpush.bf16.msra.mxu0 %v1497
    %1660 = vmatpush.bf16.msra.mxu0 %v1493
    %1661 = vmatpush.bf16.msra.mxu0 %v1489
    %1662 = vmatpush.bf16.msra.mxu0 %v1485
    %1663 = vmatpush.bf16.msra.mxu0 %v1481
    %1664 = vmatpush.bf16.msra.mxu0 %v1477
    %1665 = vmatpush.bf16.msra.mxu0 %v1473
    %1666 = vmatmul.bf16.gmra.mxu0 %v1264
    %v1667 = vpop.f32.mrf.mxu0
    %v1668 = vadd.f32 %v1105, %v1667
    %v1669 = vpop.f32.mrf.mxu0
    %v1670 = vadd.f32 %v1107, %v1669
    %1671 = vmatmul.bf16.gmra.mxu0 %v1266
    %v1672 = vpop.f32.mrf.mxu0
    %v1673 = vadd.f32 %v1110, %v1672
    %v1674 = vpop.f32.mrf.mxu0
    %v1675 = vadd.f32 %v1112, %v1674
    %1676 = vmatmul.bf16.gmra.mxu0 %v1268
    %v1677 = vpop.f32.mrf.mxu0
    %v1678 = vadd.f32 %v1115, %v1677
    %v1679 = vpop.f32.mrf.mxu0
    %v1680 = vadd.f32 %v1117, %v1679
    %1681 = vmatmul.bf16.gmra.mxu0 %v1270
    %v1682 = vpop.f32.mrf.mxu0
    %v1683 = vadd.f32 %v1120, %v1682
    %v1684 = vpop.f32.mrf.mxu0
    %v1685 = vadd.f32 %v1122, %v1684
    %1686 = vdwg.mxu0
    %1687 = vmatpush.bf16.msra.mxu0 %v1533
    %1688 = vmatpush.bf16.msra.mxu0 %v1529
    %1689 = vmatpush.bf16.msra.mxu0 %v1525
    %1690 = vmatpush.bf16.msra.mxu0 %v1521
    %1691 = vmatpush.bf16.msra.mxu0 %v1517
    %1692 = vmatpush.bf16.msra.mxu0 %v1513
    %1693 = vmatpush.bf16.msra.mxu0 %v1509
    %1694 = vmatpush.bf16.msra.mxu0 %v1505
    %1695 = vmatmul.bf16.gmra.mxu0 %v1265
    %v1696 = vpop.f32.mrf.mxu0
    %v1697 = vadd.f32 %v1668, %v1696
    %v1698 = vpop.f32.mrf.mxu0
    %v1699 = vadd.f32 %v1670, %v1698
    %1700 = vmatmul.bf16.gmra.mxu0 %v1267
    %v1701 = vpop.f32.mrf.mxu0
    %v1702 = vadd.f32 %v1673, %v1701
    %v1703 = vpop.f32.mrf.mxu0
    %v1704 = vadd.f32 %v1675, %v1703
    %1705 = vmatmul.bf16.gmra.mxu0 %v1269
    %v1706 = vpop.f32.mrf.mxu0
    %v1707 = vadd.f32 %v1678, %v1706
    %v1708 = vpop.f32.mrf.mxu0
    %v1709 = vadd.f32 %v1680, %v1708
    %1710 = vmatmul.bf16.gmra.mxu0 %v1271
    %v1711 = vpop.f32.mrf.mxu0
    %v1712 = vadd.f32 %v1683, %v1711
    %v1713 = vpop.f32.mrf.mxu0
    %v1714 = vadd.f32 %v1685, %v1713
    %1715 = vdwg.mxu0
    %1716 = vmatpush.bf16.msra.mxu0 %v1502
    %1717 = vmatpush.bf16.msra.mxu0 %v1498
    %1718 = vmatpush.bf16.msra.mxu0 %v1494
    %1719 = vmatpush.bf16.msra.mxu0 %v1490
    %1720 = vmatpush.bf16.msra.mxu0 %v1486
    %1721 = vmatpush.bf16.msra.mxu0 %v1482
    %1722 = vmatpush.bf16.msra.mxu0 %v1478
    %1723 = vmatpush.bf16.msra.mxu0 %v1474
    %1724 = vmatmul.bf16.gmra.mxu0 %v1264
    %v1725 = vpop.f32.mrf.mxu0
    %v1726 = vadd.f32 %v1163, %v1725
    %v1727 = vpop.f32.mrf.mxu0
    %v1728 = vadd.f32 %v1165, %v1727
    %1729 = vmatmul.bf16.gmra.mxu0 %v1266
    %v1730 = vpop.f32.mrf.mxu0
    %v1731 = vadd.f32 %v1168, %v1730
    %v1732 = vpop.f32.mrf.mxu0
    %v1733 = vadd.f32 %v1170, %v1732
    %1734 = vmatmul.bf16.gmra.mxu0 %v1268
    %v1735 = vpop.f32.mrf.mxu0
    %v1736 = vadd.f32 %v1173, %v1735
    %v1737 = vpop.f32.mrf.mxu0
    %v1738 = vadd.f32 %v1175, %v1737
    %1739 = vmatmul.bf16.gmra.mxu0 %v1270
    %v1740 = vpop.f32.mrf.mxu0
    %v1741 = vadd.f32 %v1178, %v1740
    %v1742 = vpop.f32.mrf.mxu0
    %v1743 = vadd.f32 %v1180, %v1742
    %1744 = vdwg.mxu0
    %1745 = vmatpush.bf16.msra.mxu0 %v1534
    %1746 = vmatpush.bf16.msra.mxu0 %v1530
    %1747 = vmatpush.bf16.msra.mxu0 %v1526
    %1748 = vmatpush.bf16.msra.mxu0 %v1522
    %1749 = vmatpush.bf16.msra.mxu0 %v1518
    %1750 = vmatpush.bf16.msra.mxu0 %v1514
    %1751 = vmatpush.bf16.msra.mxu0 %v1510
    %1752 = vmatpush.bf16.msra.mxu0 %v1506
    %1753 = vmatmul.bf16.gmra.mxu0 %v1265
    %v1754 = vpop.f32.mrf.mxu0
    %v1755 = vadd.f32 %v1726, %v1754
    %v1756 = vpop.f32.mrf.mxu0
    %v1757 = vadd.f32 %v1728, %v1756
    %1758 = vmatmul.bf16.gmra.mxu0 %v1267
    %v1759 = vpop.f32.mrf.mxu0
    %v1760 = vadd.f32 %v1731, %v1759
    %v1761 = vpop.f32.mrf.mxu0
    %v1762 = vadd.f32 %v1733, %v1761
    %1763 = vmatmul.bf16.gmra.mxu0 %v1269
    %v1764 = vpop.f32.mrf.mxu0
    %v1765 = vadd.f32 %v1736, %v1764
    %v1766 = vpop.f32.mrf.mxu0
    %v1767 = vadd.f32 %v1738, %v1766
    %1768 = vmatmul.bf16.gmra.mxu0 %v1271
    %v1769 = vpop.f32.mrf.mxu0
    %v1770 = vadd.f32 %v1741, %v1769
    %v1771 = vpop.f32.mrf.mxu0
    %v1772 = vadd.f32 %v1743, %v1771
    %1773 = vdwg.mxu0
    %1774 = vmatpush.bf16.msra.mxu0 %v1503
    %1775 = vmatpush.bf16.msra.mxu0 %v1499
    %1776 = vmatpush.bf16.msra.mxu0 %v1495
    %1777 = vmatpush.bf16.msra.mxu0 %v1491
    %1778 = vmatpush.bf16.msra.mxu0 %v1487
    %1779 = vmatpush.bf16.msra.mxu0 %v1483
    %1780 = vmatpush.bf16.msra.mxu0 %v1479
    %1781 = vmatpush.bf16.msra.mxu0 %v1475
    %1782 = vmatmul.bf16.gmra.mxu0 %v1264
    %v1783 = vpop.f32.mrf.mxu0
    %v1784 = vadd.f32 %v1221, %v1783
    %v1785 = vpop.f32.mrf.mxu0
    %v1786 = vadd.f32 %v1223, %v1785
    %1787 = vmatmul.bf16.gmra.mxu0 %v1266
    %v1788 = vpop.f32.mrf.mxu0
    %v1789 = vadd.f32 %v1226, %v1788
    %v1790 = vpop.f32.mrf.mxu0
    %v1791 = vadd.f32 %v1228, %v1790
    %1792 = vmatmul.bf16.gmra.mxu0 %v1268
    %v1793 = vpop.f32.mrf.mxu0
    %v1794 = vadd.f32 %v1231, %v1793
    %v1795 = vpop.f32.mrf.mxu0
    %v1796 = vadd.f32 %v1233, %v1795
    %1797 = vmatmul.bf16.gmra.mxu0 %v1270
    %v1798 = vpop.f32.mrf.mxu0
    %v1799 = vadd.f32 %v1236, %v1798
    %v1800 = vpop.f32.mrf.mxu0
    %v1801 = vadd.f32 %v1238, %v1800
    %1802 = vdwg.mxu0
    %1803 = vmatpush.bf16.msra.mxu0 %v1535
    %1804 = vmatpush.bf16.msra.mxu0 %v1531
    %1805 = vmatpush.bf16.msra.mxu0 %v1527
    %1806 = vmatpush.bf16.msra.mxu0 %v1523
    %1807 = vmatpush.bf16.msra.mxu0 %v1519
    %1808 = vmatpush.bf16.msra.mxu0 %v1515
    %1809 = vmatpush.bf16.msra.mxu0 %v1511
    %1810 = vmatpush.bf16.msra.mxu0 %v1507
    %1811 = vmatmul.bf16.gmra.mxu0 %v1265
    %v1812 = vpop.f32.mrf.mxu0
    %v1813 = vadd.f32 %v1784, %v1812
    %v1814 = vpop.f32.mrf.mxu0
    %v1815 = vadd.f32 %v1786, %v1814
    %1816 = vmatmul.bf16.gmra.mxu0 %v1267
    %v1817 = vpop.f32.mrf.mxu0
    %v1818 = vadd.f32 %v1789, %v1817
    %v1819 = vpop.f32.mrf.mxu0
    %v1820 = vadd.f32 %v1791, %v1819
    %1821 = vmatmul.bf16.gmra.mxu0 %v1269
    %v1822 = vpop.f32.mrf.mxu0
    %v1823 = vadd.f32 %v1794, %v1822
    %v1824 = vpop.f32.mrf.mxu0
    %v1825 = vadd.f32 %v1796, %v1824
    %1826 = vmatmul.bf16.gmra.mxu0 %v1271
    %v1827 = vpop.f32.mrf.mxu0
    %v1828 = vadd.f32 %v1799, %v1827
    %v1829 = vpop.f32.mrf.mxu0
    %v1830 = vadd.f32 %v1801, %v1829
    %1831 = vdwg.mxu0
    %s1832 = scalar_lea.vmem [#allocation2], 16
    %v1833 = vld [vmem:[%s1832] sm:$0xff]
    %v1834 = vld [vmem:[%s1832 + $0x8] sm:$0xff]
    %v1835 = vld [vmem:[%s1832 + $0x10] sm:$0xff]
    %v1836 = vld [vmem:[%s1832 + $0x18] sm:$0xff]
    %v1837 = vld [vmem:[%s1832 + $0x20] sm:$0xff]
    %v1838 = vld [vmem:[%s1832 + $0x28] sm:$0xff]
    %v1839 = vld [vmem:[%s1832 + $0x30] sm:$0xff]
    %v1840 = vld [vmem:[%s1832 + $0x38] sm:$0xff]
    %s1841 = scalar_lea.vmem [#allocation6], 1024
    %v1842 = vld [vmem:[%s1841] sm:$0xff]
    %v1843 = vld [vmem:[%s1841 + $0x8] sm:$0xff]
    %v1844 = vld [vmem:[%s1841 + $0x10] sm:$0xff]
    %v1845 = vld [vmem:[%s1841 + $0x18] sm:$0xff]
    %v1846 = vld [vmem:[%s1841 + $0x20] sm:$0xff]
    %v1847 = vld [vmem:[%s1841 + $0x28] sm:$0xff]
    %v1848 = vld [vmem:[%s1841 + $0x30] sm:$0xff]
    %v1849 = vld [vmem:[%s1841 + $0x38] sm:$0xff]
    %v1850 = vld [vmem:[%s1841 + $0x40] sm:$0xff]
    %v1851 = vld [vmem:[%s1841 + $0x48] sm:$0xff]
    %v1852 = vld [vmem:[%s1841 + $0x50] sm:$0xff]
    %v1853 = vld [vmem:[%s1841 + $0x58] sm:$0xff]
    %v1854 = vld [vmem:[%s1841 + $0x60] sm:$0xff]
    %v1855 = vld [vmem:[%s1841 + $0x68] sm:$0xff]
    %v1856 = vld [vmem:[%s1841 + $0x70] sm:$0xff]
    %v1857 = vld [vmem:[%s1841 + $0x78] sm:$0xff]
    %v1858 = vld [vmem:[%s1841 + $0x80] sm:$0xff]
    %v1859 = vld [vmem:[%s1841 + $0x88] sm:$0xff]
    %v1860 = vld [vmem:[%s1841 + $0x90] sm:$0xff]
    %v1861 = vld [vmem:[%s1841 + $0x98] sm:$0xff]
    %v1862 = vld [vmem:[%s1841 + $0xa0] sm:$0xff]
    %v1863 = vld [vmem:[%s1841 + $0xa8] sm:$0xff]
    %v1864 = vld [vmem:[%s1841 + $0xb0] sm:$0xff]
    %v1865 = vld [vmem:[%s1841 + $0xb8] sm:$0xff]
    %v1866 = vld [vmem:[%s1841 + $0xc0] sm:$0xff]
    %v1867 = vld [vmem:[%s1841 + $0xc8] sm:$0xff]
    %v1868 = vld [vmem:[%s1841 + $0xd0] sm:$0xff]
    %v1869 = vld [vmem:[%s1841 + $0xd8] sm:$0xff]
    %v1870 = vld [vmem:[%s1841 + $0xe0] sm:$0xff]
    %v1871 = vld [vmem:[%s1841 + $0xe8] sm:$0xff]
    %v1872 = vld [vmem:[%s1841 + $0xf0] sm:$0xff]
    %v1873 = vld [vmem:[%s1841 + $0xf8] sm:$0xff]
    %v1874 = vld [vmem:[%s1841 + $0x100] sm:$0xff]
    %v1875 = vld [vmem:[%s1841 + $0x108] sm:$0xff]
    %v1876 = vld [vmem:[%s1841 + $0x110] sm:$0xff]
    %v1877 = vld [vmem:[%s1841 + $0x118] sm:$0xff]
    %v1878 = vld [vmem:[%s1841 + $0x120] sm:$0xff]
    %v1879 = vld [vmem:[%s1841 + $0x128] sm:$0xff]
    %v1880 = vld [vmem:[%s1841 + $0x130] sm:$0xff]
    %v1881 = vld [vmem:[%s1841 + $0x138] sm:$0xff]
    %v1882 = vld [vmem:[%s1841 + $0x140] sm:$0xff]
    %v1883 = vld [vmem:[%s1841 + $0x148] sm:$0xff]
    %v1884 = vld [vmem:[%s1841 + $0x150] sm:$0xff]
    %v1885 = vld [vmem:[%s1841 + $0x158] sm:$0xff]
    %v1886 = vld [vmem:[%s1841 + $0x160] sm:$0xff]
    %v1887 = vld [vmem:[%s1841 + $0x168] sm:$0xff]
    %v1888 = vld [vmem:[%s1841 + $0x170] sm:$0xff]
    %v1889 = vld [vmem:[%s1841 + $0x178] sm:$0xff]
    %v1890 = vld [vmem:[%s1841 + $0x180] sm:$0xff]
    %v1891 = vld [vmem:[%s1841 + $0x188] sm:$0xff]
    %v1892 = vld [vmem:[%s1841 + $0x190] sm:$0xff]
    %v1893 = vld [vmem:[%s1841 + $0x198] sm:$0xff]
    %v1894 = vld [vmem:[%s1841 + $0x1a0] sm:$0xff]
    %v1895 = vld [vmem:[%s1841 + $0x1a8] sm:$0xff]
    %v1896 = vld [vmem:[%s1841 + $0x1b0] sm:$0xff]
    %v1897 = vld [vmem:[%s1841 + $0x1b8] sm:$0xff]
    %v1898 = vld [vmem:[%s1841 + $0x1c0] sm:$0xff]
    %v1899 = vld [vmem:[%s1841 + $0x1c8] sm:$0xff]
    %v1900 = vld [vmem:[%s1841 + $0x1d0] sm:$0xff]
    %v1901 = vld [vmem:[%s1841 + $0x1d8] sm:$0xff]
    %v1902 = vld [vmem:[%s1841 + $0x1e0] sm:$0xff]
    %v1903 = vld [vmem:[%s1841 + $0x1e8] sm:$0xff]
    %v1904 = vld [vmem:[%s1841 + $0x1f0] sm:$0xff]
    %v1905 = vld [vmem:[%s1841 + $0x1f8] sm:$0xff]
    %v1914 = vunpack.c.l.b16 %v1833
    %v1915 = vunpack.c.h.b16 %v1833
    %v1916 = vunpack.c.l.b16 %v1834
    %v1917 = vunpack.c.h.b16 %v1834
    %v1918 = vunpack.c.l.b16 %v1835
    %v1919 = vunpack.c.h.b16 %v1835
    %v1920 = vunpack.c.l.b16 %v1836
    %v1921 = vunpack.c.h.b16 %v1836
    %v1922 = vunpack.c.l.b16 %v1837
    %v1923 = vunpack.c.h.b16 %v1837
    %v1924 = vunpack.c.l.b16 %v1838
    %v1925 = vunpack.c.h.b16 %v1838
    %v1926 = vunpack.c.l.b16 %v1839
    %v1927 = vunpack.c.h.b16 %v1839
    %v1928 = vunpack.c.l.b16 %v1840
    %v1929 = vunpack.c.h.b16 %v1840
    %v1930 = vpack.c.b16 %v1916, %v1914
    %v1931 = vpack.c.b16 %v1917, %v1915
    %v1932 = vpack.c.b16 %v1920, %v1918
    %v1933 = vpack.c.b16 %v1921, %v1919
    %v1934 = vpack.c.b16 %v1924, %v1922
    %v1935 = vpack.c.b16 %v1925, %v1923
    %v1936 = vpack.c.b16 %v1928, %v1926
    %v1937 = vpack.c.b16 %v1929, %v1927
    %v2010 = vunpack.c.l.b16 %v1842
    %v2011 = vunpack.c.h.b16 %v1842
    %v2012 = vunpack.c.l.b16 %v1843
    %v2013 = vunpack.c.h.b16 %v1843
    %v2014 = vunpack.c.l.b16 %v1844
    %v2015 = vunpack.c.h.b16 %v1844
    %v2016 = vunpack.c.l.b16 %v1845
    %v2017 = vunpack.c.h.b16 %v1845
    %v2018 = vunpack.c.l.b16 %v1846
    %v2019 = vunpack.c.h.b16 %v1846
    %v2020 = vunpack.c.l.b16 %v1847
    %v2021 = vunpack.c.h.b16 %v1847
    %v2022 = vunpack.c.l.b16 %v1848
    %v2023 = vunpack.c.h.b16 %v1848
    %v2024 = vunpack.c.l.b16 %v1849
    %v2025 = vunpack.c.h.b16 %v1849
    %v2026 = vunpack.c.l.b16 %v1850
    %v2027 = vunpack.c.h.b16 %v1850
    %v2028 = vunpack.c.l.b16 %v1851
    %v2029 = vunpack.c.h.b16 %v1851
    %v2030 = vunpack.c.l.b16 %v1852
    %v2031 = vunpack.c.h.b16 %v1852
    %v2032 = vunpack.c.l.b16 %v1853
    %v2033 = vunpack.c.h.b16 %v1853
    %v2034 = vunpack.c.l.b16 %v1854
    %v2035 = vunpack.c.h.b16 %v1854
    %v2036 = vunpack.c.l.b16 %v1855
    %v2037 = vunpack.c.h.b16 %v1855
    %v2038 = vunpack.c.l.b16 %v1856
    %v2039 = vunpack.c.h.b16 %v1856
    %v2040 = vunpack.c.l.b16 %v1857
    %v2041 = vunpack.c.h.b16 %v1857
    %v2042 = vunpack.c.l.b16 %v1858
    %v2043 = vunpack.c.h.b16 %v1858
    %v2044 = vunpack.c.l.b16 %v1859
    %v2045 = vunpack.c.h.b16 %v1859
    %v2046 = vunpack.c.l.b16 %v1860
    %v2047 = vunpack.c.h.b16 %v1860
    %v2048 = vunpack.c.l.b16 %v1861
    %v2049 = vunpack.c.h.b16 %v1861
    %v2050 = vunpack.c.l.b16 %v1862
    %v2051 = vunpack.c.h.b16 %v1862
    %v2052 = vunpack.c.l.b16 %v1863
    %v2053 = vunpack.c.h.b16 %v1863
    %v2054 = vunpack.c.l.b16 %v1864
    %v2055 = vunpack.c.h.b16 %v1864
    %v2056 = vunpack.c.l.b16 %v1865
    %v2057 = vunpack.c.h.b16 %v1865
    %v2058 = vunpack.c.l.b16 %v1866
    %v2059 = vunpack.c.h.b16 %v1866
    %v2060 = vunpack.c.l.b16 %v1867
    %v2061 = vunpack.c.h.b16 %v1867
    %v2062 = vunpack.c.l.b16 %v1868
    %v2063 = vunpack.c.h.b16 %v1868
    %v2064 = vunpack.c.l.b16 %v1869
    %v2065 = vunpack.c.h.b16 %v1869
    %v2066 = vunpack.c.l.b16 %v1870
    %v2067 = vunpack.c.h.b16 %v1870
    %v2068 = vunpack.c.l.b16 %v1871
    %v2069 = vunpack.c.h.b16 %v1871
    %v2070 = vunpack.c.l.b16 %v1872
    %v2071 = vunpack.c.h.b16 %v1872
    %v2072 = vunpack.c.l.b16 %v1873
    %v2073 = vunpack.c.h.b16 %v1873
    %v2074 = vunpack.c.l.b16 %v1874
    %v2075 = vunpack.c.h.b16 %v1874
    %v2076 = vunpack.c.l.b16 %v1875
    %v2077 = vunpack.c.h.b16 %v1875
    %v2078 = vunpack.c.l.b16 %v1876
    %v2079 = vunpack.c.h.b16 %v1876
    %v2080 = vunpack.c.l.b16 %v1877
    %v2081 = vunpack.c.h.b16 %v1877
    %v2082 = vunpack.c.l.b16 %v1878
    %v2083 = vunpack.c.h.b16 %v1878
    %v2084 = vunpack.c.l.b16 %v1879
    %v2085 = vunpack.c.h.b16 %v1879
    %v2086 = vunpack.c.l.b16 %v1880
    %v2087 = vunpack.c.h.b16 %v1880
    %v2088 = vunpack.c.l.b16 %v1881
    %v2089 = vunpack.c.h.b16 %v1881
    %v2090 = vunpack.c.l.b16 %v1882
    %v2091 = vunpack.c.h.b16 %v1882
    %v2092 = vunpack.c.l.b16 %v1883
    %v2093 = vunpack.c.h.b16 %v1883
    %v2094 = vunpack.c.l.b16 %v1884
    %v2095 = vunpack.c.h.b16 %v1884
    %v2096 = vunpack.c.l.b16 %v1885
    %v2097 = vunpack.c.h.b16 %v1885
    %v2098 = vunpack.c.l.b16 %v1886
    %v2099 = vunpack.c.h.b16 %v1886
    %v2100 = vunpack.c.l.b16 %v1887
    %v2101 = vunpack.c.h.b16 %v1887
    %v2102 = vunpack.c.l.b16 %v1888
    %v2103 = vunpack.c.h.b16 %v1888
    %v2104 = vunpack.c.l.b16 %v1889
    %v2105 = vunpack.c.h.b16 %v1889
    %v2106 = vunpack.c.l.b16 %v1890
    %v2107 = vunpack.c.h.b16 %v1890
    %v2108 = vunpack.c.l.b16 %v1891
    %v2109 = vunpack.c.h.b16 %v1891
    %v2110 = vunpack.c.l.b16 %v1892
    %v2111 = vunpack.c.h.b16 %v1892
    %v2112 = vunpack.c.l.b16 %v1893
    %v2113 = vunpack.c.h.b16 %v1893
    %v2114 = vunpack.c.l.b16 %v1894
    %v2115 = vunpack.c.h.b16 %v1894
    %v2116 = vunpack.c.l.b16 %v1895
    %v2117 = vunpack.c.h.b16 %v1895
    %v2118 = vunpack.c.l.b16 %v1896
    %v2119 = vunpack.c.h.b16 %v1896
    %v2120 = vunpack.c.l.b16 %v1897
    %v2121 = vunpack.c.h.b16 %v1897
    %v2122 = vunpack.c.l.b16 %v1898
    %v2123 = vunpack.c.h.b16 %v1898
    %v2124 = vunpack.c.l.b16 %v1899
    %v2125 = vunpack.c.h.b16 %v1899
    %v2126 = vunpack.c.l.b16 %v1900
    %v2127 = vunpack.c.h.b16 %v1900
    %v2128 = vunpack.c.l.b16 %v1901
    %v2129 = vunpack.c.h.b16 %v1901
    %v2130 = vunpack.c.l.b16 %v1902
    %v2131 = vunpack.c.h.b16 %v1902
    %v2132 = vunpack.c.l.b16 %v1903
    %v2133 = vunpack.c.h.b16 %v1903
    %v2134 = vunpack.c.l.b16 %v1904
    %v2135 = vunpack.c.h.b16 %v1904
    %v2136 = vunpack.c.l.b16 %v1905
    %v2137 = vunpack.c.h.b16 %v1905
    %v2138 = vpack.c.b16 %v2014, %v2010
    %v2139 = vpack.c.b16 %v2015, %v2011
    %v2140 = vpack.c.b16 %v2016, %v2012
    %v2141 = vpack.c.b16 %v2017, %v2013
    %v2142 = vpack.c.b16 %v2022, %v2018
    %v2143 = vpack.c.b16 %v2023, %v2019
    %v2144 = vpack.c.b16 %v2024, %v2020
    %v2145 = vpack.c.b16 %v2025, %v2021
    %v2146 = vpack.c.b16 %v2030, %v2026
    %v2147 = vpack.c.b16 %v2031, %v2027
    %v2148 = vpack.c.b16 %v2032, %v2028
    %v2149 = vpack.c.b16 %v2033, %v2029
    %v2150 = vpack.c.b16 %v2038, %v2034
    %v2151 = vpack.c.b16 %v2039, %v2035
    %v2152 = vpack.c.b16 %v2040, %v2036
    %v2153 = vpack.c.b16 %v2041, %v2037
    %v2154 = vpack.c.b16 %v2046, %v2042
    %v2155 = vpack.c.b16 %v2047, %v2043
    %v2156 = vpack.c.b16 %v2048, %v2044
    %v2157 = vpack.c.b16 %v2049, %v2045
    %v2158 = vpack.c.b16 %v2054, %v2050
    %v2159 = vpack.c.b16 %v2055, %v2051
    %v2160 = vpack.c.b16 %v2056, %v2052
    %v2161 = vpack.c.b16 %v2057, %v2053
    %v2162 = vpack.c.b16 %v2062, %v2058
    %v2163 = vpack.c.b16 %v2063, %v2059
    %v2164 = vpack.c.b16 %v2064, %v2060
    %v2165 = vpack.c.b16 %v2065, %v2061
    %v2166 = vpack.c.b16 %v2070, %v2066
    %v2167 = vpack.c.b16 %v2071, %v2067
    %v2168 = vpack.c.b16 %v2072, %v2068
    %v2169 = vpack.c.b16 %v2073, %v2069
    %v2170 = vpack.c.b16 %v2078, %v2074
    %v2171 = vpack.c.b16 %v2079, %v2075
    %v2172 = vpack.c.b16 %v2080, %v2076
    %v2173 = vpack.c.b16 %v2081, %v2077
    %v2174 = vpack.c.b16 %v2086, %v2082
    %v2175 = vpack.c.b16 %v2087, %v2083
    %v2176 = vpack.c.b16 %v2088, %v2084
    %v2177 = vpack.c.b16 %v2089, %v2085
    %v2178 = vpack.c.b16 %v2094, %v2090
    %v2179 = vpack.c.b16 %v2095, %v2091
    %v2180 = vpack.c.b16 %v2096, %v2092
    %v2181 = vpack.c.b16 %v2097, %v2093
    %v2182 = vpack.c.b16 %v2102, %v2098
    %v2183 = vpack.c.b16 %v2103, %v2099
    %v2184 = vpack.c.b16 %v2104, %v2100
    %v2185 = vpack.c.b16 %v2105, %v2101
    %v2186 = vpack.c.b16 %v2110, %v2106
    %v2187 = vpack.c.b16 %v2111, %v2107
    %v2188 = vpack.c.b16 %v2112, %v2108
    %v2189 = vpack.c.b16 %v2113, %v2109
    %v2190 = vpack.c.b16 %v2118, %v2114
    %v2191 = vpack.c.b16 %v2119, %v2115
    %v2192 = vpack.c.b16 %v2120, %v2116
    %v2193 = vpack.c.b16 %v2121, %v2117
    %v2194 = vpack.c.b16 %v2126, %v2122
    %v2195 = vpack.c.b16 %v2127, %v2123
    %v2196 = vpack.c.b16 %v2128, %v2124
    %v2197 = vpack.c.b16 %v2129, %v2125
    %v2198 = vpack.c.b16 %v2134, %v2130
    %v2199 = vpack.c.b16 %v2135, %v2131
    %v2200 = vpack.c.b16 %v2136, %v2132
    %v2201 = vpack.c.b16 %v2137, %v2133
    %2266 = vmatpush.bf16.msra.mxu0 %v2166
    %2267 = vmatpush.bf16.msra.mxu0 %v2162
    %2268 = vmatpush.bf16.msra.mxu0 %v2158
    %2269 = vmatpush.bf16.msra.mxu0 %v2154
    %2270 = vmatpush.bf16.msra.mxu0 %v2150
    %2271 = vmatpush.bf16.msra.mxu0 %v2146
    %2272 = vmatpush.bf16.msra.mxu0 %v2142
    %2273 = vmatpush.bf16.msra.mxu0 %v2138
    %2274 = vmatmul.bf16.gmra.mxu0 %v1930
    %v2275 = vpop.f32.mrf.mxu0
    %v2276 = vadd.f32 0.0, %v2275
    %v2277 = vpop.f32.mrf.mxu0
    %v2278 = vadd.f32 0.0, %v2277
    %2279 = vmatmul.bf16.gmra.mxu0 %v1932
    %v2280 = vpop.f32.mrf.mxu0
    %v2281 = vadd.f32 0.0, %v2280
    %v2282 = vpop.f32.mrf.mxu0
    %v2283 = vadd.f32 0.0, %v2282
    %2284 = vmatmul.bf16.gmra.mxu0 %v1934
    %v2285 = vpop.f32.mrf.mxu0
    %v2286 = vadd.f32 0.0, %v2285
    %v2287 = vpop.f32.mrf.mxu0
    %v2288 = vadd.f32 0.0, %v2287
    %2289 = vmatmul.bf16.gmra.mxu0 %v1936
    %v2290 = vpop.f32.mrf.mxu0
    %v2291 = vadd.f32 0.0, %v2290
    %v2292 = vpop.f32.mrf.mxu0
    %v2293 = vadd.f32 0.0, %v2292
    %2294 = vdwg.mxu0
    %2295 = vmatpush.bf16.msra.mxu0 %v2198
    %2296 = vmatpush.bf16.msra.mxu0 %v2194
    %2297 = vmatpush.bf16.msra.mxu0 %v2190
    %2298 = vmatpush.bf16.msra.mxu0 %v2186
    %2299 = vmatpush.bf16.msra.mxu0 %v2182
    %2300 = vmatpush.bf16.msra.mxu0 %v2178
    %2301 = vmatpush.bf16.msra.mxu0 %v2174
    %2302 = vmatpush.bf16.msra.mxu0 %v2170
    %2303 = vmatmul.bf16.gmra.mxu0 %v1931
    %v2304 = vpop.f32.mrf.mxu0
    %v2305 = vadd.f32 %v2276, %v2304
    %v2306 = vpop.f32.mrf.mxu0
    %v2307 = vadd.f32 %v2278, %v2306
    %2308 = vmatmul.bf16.gmra.mxu0 %v1933
    %v2309 = vpop.f32.mrf.mxu0
    %v2310 = vadd.f32 %v2281, %v2309
    %v2311 = vpop.f32.mrf.mxu0
    %v2312 = vadd.f32 %v2283, %v2311
    %2313 = vmatmul.bf16.gmra.mxu0 %v1935
    %v2314 = vpop.f32.mrf.mxu0
    %v2315 = vadd.f32 %v2286, %v2314
    %v2316 = vpop.f32.mrf.mxu0
    %v2317 = vadd.f32 %v2288, %v2316
    %2318 = vmatmul.bf16.gmra.mxu0 %v1937
    %v2319 = vpop.f32.mrf.mxu0
    %v2320 = vadd.f32 %v2291, %v2319
    %v2321 = vpop.f32.mrf.mxu0
    %v2322 = vadd.f32 %v2293, %v2321
    %2323 = vdwg.mxu0
    %2324 = vmatpush.bf16.msra.mxu0 %v2167
    %2325 = vmatpush.bf16.msra.mxu0 %v2163
    %2326 = vmatpush.bf16.msra.mxu0 %v2159
    %2327 = vmatpush.bf16.msra.mxu0 %v2155
    %2328 = vmatpush.bf16.msra.mxu0 %v2151
    %2329 = vmatpush.bf16.msra.mxu0 %v2147
    %2330 = vmatpush.bf16.msra.mxu0 %v2143
    %2331 = vmatpush.bf16.msra.mxu0 %v2139
    %2332 = vmatmul.bf16.gmra.mxu0 %v1930
    %v2333 = vpop.f32.mrf.mxu0
    %v2334 = vadd.f32 0.0, %v2333
    %v2335 = vpop.f32.mrf.mxu0
    %v2336 = vadd.f32 0.0, %v2335
    %2337 = vmatmul.bf16.gmra.mxu0 %v1932
    %v2338 = vpop.f32.mrf.mxu0
    %v2339 = vadd.f32 0.0, %v2338
    %v2340 = vpop.f32.mrf.mxu0
    %v2341 = vadd.f32 0.0, %v2340
    %2342 = vmatmul.bf16.gmra.mxu0 %v1934
    %v2343 = vpop.f32.mrf.mxu0
    %v2344 = vadd.f32 0.0, %v2343
    %v2345 = vpop.f32.mrf.mxu0
    %v2346 = vadd.f32 0.0, %v2345
    %2347 = vmatmul.bf16.gmra.mxu0 %v1936
    %v2348 = vpop.f32.mrf.mxu0
    %v2349 = vadd.f32 0.0, %v2348
    %v2350 = vpop.f32.mrf.mxu0
    %v2351 = vadd.f32 0.0, %v2350
    %2352 = vdwg.mxu0
    %2353 = vmatpush.bf16.msra.mxu0 %v2199
    %2354 = vmatpush.bf16.msra.mxu0 %v2195
    %2355 = vmatpush.bf16.msra.mxu0 %v2191
    %2356 = vmatpush.bf16.msra.mxu0 %v2187
    %2357 = vmatpush.bf16.msra.mxu0 %v2183
    %2358 = vmatpush.bf16.msra.mxu0 %v2179
    %2359 = vmatpush.bf16.msra.mxu0 %v2175
    %2360 = vmatpush.bf16.msra.mxu0 %v2171
    %2361 = vmatmul.bf16.gmra.mxu0 %v1931
    %v2362 = vpop.f32.mrf.mxu0
    %v2363 = vadd.f32 %v2334, %v2362
    %v2364 = vpop.f32.mrf.mxu0
    %v2365 = vadd.f32 %v2336, %v2364
    %2366 = vmatmul.bf16.gmra.mxu0 %v1933
    %v2367 = vpop.f32.mrf.mxu0
    %v2368 = vadd.f32 %v2339, %v2367
    %v2369 = vpop.f32.mrf.mxu0
    %v2370 = vadd.f32 %v2341, %v2369
    %2371 = vmatmul.bf16.gmra.mxu0 %v1935
    %v2372 = vpop.f32.mrf.mxu0
    %v2373 = vadd.f32 %v2344, %v2372
    %v2374 = vpop.f32.mrf.mxu0
    %v2375 = vadd.f32 %v2346, %v2374
    %2376 = vmatmul.bf16.gmra.mxu0 %v1937
    %v2377 = vpop.f32.mrf.mxu0
    %v2378 = vadd.f32 %v2349, %v2377
    %v2379 = vpop.f32.mrf.mxu0
    %v2380 = vadd.f32 %v2351, %v2379
    %2381 = vdwg.mxu0
    %2382 = vmatpush.bf16.msra.mxu0 %v2168
    %2383 = vmatpush.bf16.msra.mxu0 %v2164
    %2384 = vmatpush.bf16.msra.mxu0 %v2160
    %2385 = vmatpush.bf16.msra.mxu0 %v2156
    %2386 = vmatpush.bf16.msra.mxu0 %v2152
    %2387 = vmatpush.bf16.msra.mxu0 %v2148
    %2388 = vmatpush.bf16.msra.mxu0 %v2144
    %2389 = vmatpush.bf16.msra.mxu0 %v2140
    %2390 = vmatmul.bf16.gmra.mxu0 %v1930
    %v2391 = vpop.f32.mrf.mxu0
    %v2392 = vadd.f32 0.0, %v2391
    %v2393 = vpop.f32.mrf.mxu0
    %v2394 = vadd.f32 0.0, %v2393
    %2395 = vmatmul.bf16.gmra.mxu0 %v1932
    %v2396 = vpop.f32.mrf.mxu0
    %v2397 = vadd.f32 0.0, %v2396
    %v2398 = vpop.f32.mrf.mxu0
    %v2399 = vadd.f32 0.0, %v2398
    %2400 = vmatmul.bf16.gmra.mxu0 %v1934
    %v2401 = vpop.f32.mrf.mxu0
    %v2402 = vadd.f32 0.0, %v2401
    %v2403 = vpop.f32.mrf.mxu0
    %v2404 = vadd.f32 0.0, %v2403
    %2405 = vmatmul.bf16.gmra.mxu0 %v1936
    %v2406 = vpop.f32.mrf.mxu0
    %v2407 = vadd.f32 0.0, %v2406
    %v2408 = vpop.f32.mrf.mxu0
    %v2409 = vadd.f32 0.0, %v2408
    %2410 = vdwg.mxu0
    %2411 = vmatpush.bf16.msra.mxu0 %v2200
    %2412 = vmatpush.bf16.msra.mxu0 %v2196
    %2413 = vmatpush.bf16.msra.mxu0 %v2192
    %2414 = vmatpush.bf16.msra.mxu0 %v2188
    %2415 = vmatpush.bf16.msra.mxu0 %v2184
    %2416 = vmatpush.bf16.msra.mxu0 %v2180
    %2417 = vmatpush.bf16.msra.mxu0 %v2176
    %2418 = vmatpush.bf16.msra.mxu0 %v2172
    %2419 = vmatmul.bf16.gmra.mxu0 %v1931
    %v2420 = vpop.f32.mrf.mxu0
    %v2421 = vadd.f32 %v2392, %v2420
    %v2422 = vpop.f32.mrf.mxu0
    %v2423 = vadd.f32 %v2394, %v2422
    %2424 = vmatmul.bf16.gmra.mxu0 %v1933
    %v2425 = vpop.f32.mrf.mxu0
    %v2426 = vadd.f32 %v2397, %v2425
    %v2427 = vpop.f32.mrf.mxu0
    %v2428 = vadd.f32 %v2399, %v2427
    %2429 = vmatmul.bf16.gmra.mxu0 %v1935
    %v2430 = vpop.f32.mrf.mxu0
    %v2431 = vadd.f32 %v2402, %v2430
    %v2432 = vpop.f32.mrf.mxu0
    %v2433 = vadd.f32 %v2404, %v2432
    %2434 = vmatmul.bf16.gmra.mxu0 %v1937
    %v2435 = vpop.f32.mrf.mxu0
    %v2436 = vadd.f32 %v2407, %v2435
    %v2437 = vpop.f32.mrf.mxu0
    %v2438 = vadd.f32 %v2409, %v2437
    %2439 = vdwg.mxu0
    %2440 = vmatpush.bf16.msra.mxu0 %v2169
    %2441 = vmatpush.bf16.msra.mxu0 %v2165
    %2442 = vmatpush.bf16.msra.mxu0 %v2161
    %2443 = vmatpush.bf16.msra.mxu0 %v2157
    %2444 = vmatpush.bf16.msra.mxu0 %v2153
    %2445 = vmatpush.bf16.msra.mxu0 %v2149
    %2446 = vmatpush.bf16.msra.mxu0 %v2145
    %2447 = vmatpush.bf16.msra.mxu0 %v2141
    %2448 = vmatmul.bf16.gmra.mxu0 %v1930
    %v2449 = vpop.f32.mrf.mxu0
    %v2450 = vadd.f32 0.0, %v2449
    %v2451 = vpop.f32.mrf.mxu0
    %v2452 = vadd.f32 0.0, %v2451
    %2453 = vmatmul.bf16.gmra.mxu0 %v1932
    %v2454 = vpop.f32.mrf.mxu0
    %v2455 = vadd.f32 0.0, %v2454
    %v2456 = vpop.f32.mrf.mxu0
    %v2457 = vadd.f32 0.0, %v2456
    %2458 = vmatmul.bf16.gmra.mxu0 %v1934
    %v2459 = vpop.f32.mrf.mxu0
    %v2460 = vadd.f32 0.0, %v2459
    %v2461 = vpop.f32.mrf.mxu0
    %v2462 = vadd.f32 0.0, %v2461
    %2463 = vmatmul.bf16.gmra.mxu0 %v1936
    %v2464 = vpop.f32.mrf.mxu0
    %v2465 = vadd.f32 0.0, %v2464
    %v2466 = vpop.f32.mrf.mxu0
    %v2467 = vadd.f32 0.0, %v2466
    %2468 = vdwg.mxu0
    %2469 = vmatpush.bf16.msra.mxu0 %v2201
    %2470 = vmatpush.bf16.msra.mxu0 %v2197
    %2471 = vmatpush.bf16.msra.mxu0 %v2193
    %2472 = vmatpush.bf16.msra.mxu0 %v2189
    %2473 = vmatpush.bf16.msra.mxu0 %v2185
    %2474 = vmatpush.bf16.msra.mxu0 %v2181
    %2475 = vmatpush.bf16.msra.mxu0 %v2177
    %2476 = vmatpush.bf16.msra.mxu0 %v2173
    %2477 = vmatmul.bf16.gmra.mxu0 %v1931
    %v2478 = vpop.f32.mrf.mxu0
    %v2479 = vadd.f32 %v2450, %v2478
    %v2480 = vpop.f32.mrf.mxu0
    %v2481 = vadd.f32 %v2452, %v2480
    %2482 = vmatmul.bf16.gmra.mxu0 %v1933
    %v2483 = vpop.f32.mrf.mxu0
    %v2484 = vadd.f32 %v2455, %v2483
    %v2485 = vpop.f32.mrf.mxu0
    %v2486 = vadd.f32 %v2457, %v2485
    %2487 = vmatmul.bf16.gmra.mxu0 %v1935
    %v2488 = vpop.f32.mrf.mxu0
    %v2489 = vadd.f32 %v2460, %v2488
    %v2490 = vpop.f32.mrf.mxu0
    %v2491 = vadd.f32 %v2462, %v2490
    %2492 = vmatmul.bf16.gmra.mxu0 %v1937
    %v2493 = vpop.f32.mrf.mxu0
    %v2494 = vadd.f32 %v2465, %v2493
    %v2495 = vpop.f32.mrf.mxu0
    %v2496 = vadd.f32 %v2467, %v2495
    %2497 = vdwg.mxu0
    %v2498 = vadd.f32 %v1639, %v2305
    %v2499 = vadd.f32 %v1697, %v2363
    %v2500 = vadd.f32 %v1755, %v2421
    %v2501 = vadd.f32 %v1813, %v2479
    %v2502 = vadd.f32 %v1641, %v2307
    %v2503 = vadd.f32 %v1699, %v2365
    %v2504 = vadd.f32 %v1757, %v2423
    %v2505 = vadd.f32 %v1815, %v2481
    %v2506 = vadd.f32 %v1644, %v2310
    %v2507 = vadd.f32 %v1702, %v2368
    %v2508 = vadd.f32 %v1760, %v2426
    %v2509 = vadd.f32 %v1818, %v2484
    %v2510 = vadd.f32 %v1646, %v2312
    %v2511 = vadd.f32 %v1704, %v2370
    %v2512 = vadd.f32 %v1762, %v2428
    %v2513 = vadd.f32 %v1820, %v2486
    %v2514 = vadd.f32 %v1649, %v2315
    %v2515 = vadd.f32 %v1707, %v2373
    %v2516 = vadd.f32 %v1765, %v2431
    %v2517 = vadd.f32 %v1823, %v2489
    %v2518 = vadd.f32 %v1651, %v2317
    %v2519 = vadd.f32 %v1709, %v2375
    %v2520 = vadd.f32 %v1767, %v2433
    %v2521 = vadd.f32 %v1825, %v2491
    %v2522 = vadd.f32 %v1654, %v2320
    %v2523 = vadd.f32 %v1712, %v2378
    %v2524 = vadd.f32 %v1770, %v2436
    %v2525 = vadd.f32 %v1828, %v2494
    %v2526 = vadd.f32 %v1656, %v2322
    %v2527 = vadd.f32 %v1714, %v2380
    %v2528 = vadd.f32 %v1772, %v2438
    %v2529 = vadd.f32 %v1830, %v2496
    %v2530 = vld [vmem:[%s4] sm:$0xf]
    %v2532 = vperm.slane %v2530, 0
    %v2533 = vperm.slane %v2530, 1
    %v2534 = vperm.slane %v2530, 2
    %v2535 = vperm.slane %v2530, 3
    %v2540 = vadd.f32 %v2498, %v2532
    %v2541 = vadd.f32 %v2499, %v2533
    %v2542 = vadd.f32 %v2500, %v2534
    %v2543 = vadd.f32 %v2501, %v2535
    %v2544 = vadd.f32 %v2502, %v2532
    %v2545 = vadd.f32 %v2503, %v2533
    %v2546 = vadd.f32 %v2504, %v2534
    %v2547 = vadd.f32 %v2505, %v2535
    %v2548 = vadd.f32 %v2506, %v2532
    %v2549 = vadd.f32 %v2507, %v2533
    %v2550 = vadd.f32 %v2508, %v2534
    %v2551 = vadd.f32 %v2509, %v2535
    %v2552 = vadd.f32 %v2510, %v2532
    %v2553 = vadd.f32 %v2511, %v2533
    %v2554 = vadd.f32 %v2512, %v2534
    %v2555 = vadd.f32 %v2513, %v2535
    %v2556 = vadd.f32 %v2514, %v2532
    %v2557 = vadd.f32 %v2515, %v2533
    %v2558 = vadd.f32 %v2516, %v2534
    %v2559 = vadd.f32 %v2517, %v2535
    %v2560 = vadd.f32 %v2518, %v2532
    %v2561 = vadd.f32 %v2519, %v2533
    %v2562 = vadd.f32 %v2520, %v2534
    %v2563 = vadd.f32 %v2521, %v2535
    %v2564 = vadd.f32 %v2522, %v2532
    %v2565 = vadd.f32 %v2523, %v2533
    %v2566 = vadd.f32 %v2524, %v2534
    %v2567 = vadd.f32 %v2525, %v2535
    %v2568 = vadd.f32 %v2526, %v2532
    %v2569 = vadd.f32 %v2527, %v2533
    %v2570 = vadd.f32 %v2528, %v2534
    %v2571 = vadd.f32 %v2529, %v2535
    %v2572 = vmax.f32 %v2540, 0.0
    %v2573 = vmax.f32 %v2541, 0.0
    %v2574 = vmax.f32 %v2542, 0.0
    %v2575 = vmax.f32 %v2543, 0.0
    %v2576 = vmax.f32 %v2544, 0.0
    %v2577 = vmax.f32 %v2545, 0.0
    %v2578 = vmax.f32 %v2546, 0.0
    %v2579 = vmax.f32 %v2547, 0.0
    %v2580 = vmax.f32 %v2548, 0.0
    %v2581 = vmax.f32 %v2549, 0.0
    %v2582 = vmax.f32 %v2550, 0.0
    %v2583 = vmax.f32 %v2551, 0.0
    %v2584 = vmax.f32 %v2552, 0.0
    %v2585 = vmax.f32 %v2553, 0.0
    %v2586 = vmax.f32 %v2554, 0.0
    %v2587 = vmax.f32 %v2555, 0.0
    %v2588 = vmax.f32 %v2556, 0.0
    %v2589 = vmax.f32 %v2557, 0.0
    %v2590 = vmax.f32 %v2558, 0.0
    %v2591 = vmax.f32 %v2559, 0.0
    %v2592 = vmax.f32 %v2560, 0.0
    %v2593 = vmax.f32 %v2561, 0.0
    %v2594 = vmax.f32 %v2562, 0.0
    %v2595 = vmax.f32 %v2563, 0.0
    %v2596 = vmax.f32 %v2564, 0.0
    %v2597 = vmax.f32 %v2565, 0.0
    %v2598 = vmax.f32 %v2566, 0.0
    %v2599 = vmax.f32 %v2567, 0.0
    %v2600 = vmax.f32 %v2568, 0.0
    %v2601 = vmax.f32 %v2569, 0.0
    %v2602 = vmax.f32 %v2570, 0.0
    %v2603 = vmax.f32 %v2571, 0.0
    %2604 = vst [vmem:[#allocation3] sm:$0xff] 0
    %2605 = vst [vmem:[#allocation3 + $0x8] sm:$0xff] 0
    %s2606 = scalar_lea.vmem [#allocation3], 144
    %2607 = vst [vmem:[%s2606] sm:$0xff] 0
    %2608 = vst [vmem:[%s2606 + $0x8] sm:$0xff] 0
    %v2609 = vpack.c.bf16 %v2573, %v2572
    %v2610 = vpack.c.bf16 %v2575, %v2574
    %v2611 = vpack.c.bf16 %v2577, %v2576
    %v2612 = vpack.c.bf16 %v2579, %v2578
    %v2613 = vpack.c.bf16 %v2581, %v2580
    %v2614 = vpack.c.bf16 %v2583, %v2582
    %v2615 = vpack.c.bf16 %v2585, %v2584
    %v2616 = vpack.c.bf16 %v2587, %v2586
    %v2617 = vpack.c.bf16 %v2589, %v2588
    %v2618 = vpack.c.bf16 %v2591, %v2590
    %v2619 = vpack.c.bf16 %v2593, %v2592
    %v2620 = vpack.c.bf16 %v2595, %v2594
    %v2621 = vpack.c.bf16 %v2597, %v2596
    %v2622 = vpack.c.bf16 %v2599, %v2598
    %v2623 = vpack.c.bf16 %v2601, %v2600
    %v2624 = vpack.c.bf16 %v2603, %v2602
    %s2625 = scalar_lea.vmem [#allocation3], 16
    %2626 = vst [vmem:[%s2625] sm:$0xff] %v2609
    %2627 = vst [vmem:[%s2625 + $0x8] sm:$0xff] %v2610
    %2628 = vst [vmem:[%s2625 + $0x10] sm:$0xff] %v2611
    %2629 = vst [vmem:[%s2625 + $0x18] sm:$0xff] %v2612
    %2630 = vst [vmem:[%s2625 + $0x20] sm:$0xff] %v2613
    %2631 = vst [vmem:[%s2625 + $0x28] sm:$0xff] %v2614
    %2632 = vst [vmem:[%s2625 + $0x30] sm:$0xff] %v2615
    %2633 = vst [vmem:[%s2625 + $0x38] sm:$0xff] %v2616
    %2634 = vst [vmem:[%s2625 + $0x40] sm:$0xff] %v2617
    %2635 = vst [vmem:[%s2625 + $0x48] sm:$0xff] %v2618
    %2636 = vst [vmem:[%s2625 + $0x50] sm:$0xff] %v2619
    %2637 = vst [vmem:[%s2625 + $0x58] sm:$0xff] %v2620
    %2638 = vst [vmem:[%s2625 + $0x60] sm:$0xff] %v2621
    %2639 = vst [vmem:[%s2625 + $0x68] sm:$0xff] %v2622
    %2640 = vst [vmem:[%s2625 + $0x70] sm:$0xff] %v2623
    %2641 = vst [vmem:[%s2625 + $0x78] sm:$0xff] %v2624
    %v2642 = vld [vmem:[#allocation3] sm:$0xff]
    %v2643 = vld [vmem:[#allocation3 + $0x8] sm:$0xff]
    %v2644 = vld [vmem:[#allocation3 + $0x10] sm:$0xff]
    %v2645 = vld [vmem:[#allocation3 + $0x18] sm:$0xff]
    %v2646 = vld [vmem:[#allocation3 + $0x20] sm:$0xff]
    %v2647 = vld [vmem:[#allocation3 + $0x28] sm:$0xff]
    %v2648 = vld [vmem:[#allocation3 + $0x30] sm:$0xff]
    %v2649 = vld [vmem:[#allocation3 + $0x38] sm:$0xff]
    %v2650 = vld [vmem:[#allocation3 + $0x40] sm:$0xff]
    %v2651 = vld [vmem:[#allocation3 + $0x48] sm:$0xff]
    %v2652 = vld [vmem:[#allocation3 + $0x50] sm:$0xff]
    %v2653 = vld [vmem:[#allocation3 + $0x58] sm:$0xff]
    %v2654 = vld [vmem:[#allocation3 + $0x60] sm:$0xff]
    %v2655 = vld [vmem:[#allocation3 + $0x68] sm:$0xff]
    %v2656 = vld [vmem:[#allocation3 + $0x70] sm:$0xff]
    %v2657 = vld [vmem:[#allocation3 + $0x78] sm:$0xff]
    %v2658 = vld [vmem:[#allocation8] sm:$0xff]
    %v2659 = vld [vmem:[#allocation8 + $0x8] sm:$0xff]
    %v2660 = vld [vmem:[#allocation8 + $0x10] sm:$0xff]
    %v2661 = vld [vmem:[#allocation8 + $0x18] sm:$0xff]
    %v2662 = vld [vmem:[#allocation8 + $0x20] sm:$0xff]
    %v2663 = vld [vmem:[#allocation8 + $0x28] sm:$0xff]
    %v2664 = vld [vmem:[#allocation8 + $0x30] sm:$0xff]
    %v2665 = vld [vmem:[#allocation8 + $0x38] sm:$0xff]
    %v2666 = vld [vmem:[#allocation8 + $0x40] sm:$0xff]
    %v2667 = vld [vmem:[#allocation8 + $0x48] sm:$0xff]
    %v2668 = vld [vmem:[#allocation8 + $0x50] sm:$0xff]
    %v2669 = vld [vmem:[#allocation8 + $0x58] sm:$0xff]
    %v2670 = vld [vmem:[#allocation8 + $0x60] sm:$0xff]
    %v2671 = vld [vmem:[#allocation8 + $0x68] sm:$0xff]
    %v2672 = vld [vmem:[#allocation8 + $0x70] sm:$0xff]
    %v2673 = vld [vmem:[#allocation8 + $0x78] sm:$0xff]
    %v2674 = vld [vmem:[#allocation8 + $0x80] sm:$0xff]
    %v2675 = vld [vmem:[#allocation8 + $0x88] sm:$0xff]
    %v2676 = vld [vmem:[#allocation8 + $0x90] sm:$0xff]
    %v2677 = vld [vmem:[#allocation8 + $0x98] sm:$0xff]
    %v2678 = vld [vmem:[#allocation8 + $0xa0] sm:$0xff]
    %v2679 = vld [vmem:[#allocation8 + $0xa8] sm:$0xff]
    %v2680 = vld [vmem:[#allocation8 + $0xb0] sm:$0xff]
    %v2681 = vld [vmem:[#allocation8 + $0xb8] sm:$0xff]
    %v2682 = vld [vmem:[#allocation8 + $0xc0] sm:$0xff]
    %v2683 = vld [vmem:[#allocation8 + $0xc8] sm:$0xff]
    %v2684 = vld [vmem:[#allocation8 + $0xd0] sm:$0xff]
    %v2685 = vld [vmem:[#allocation8 + $0xd8] sm:$0xff]
    %v2686 = vld [vmem:[#allocation8 + $0xe0] sm:$0xff]
    %v2687 = vld [vmem:[#allocation8 + $0xe8] sm:$0xff]
    %v2688 = vld [vmem:[#allocation8 + $0xf0] sm:$0xff]
    %v2689 = vld [vmem:[#allocation8 + $0xf8] sm:$0xff]
    %v2690 = vld [vmem:[#allocation8 + $0x100] sm:$0xff]
    %v2691 = vld [vmem:[#allocation8 + $0x108] sm:$0xff]
    %v2692 = vld [vmem:[#allocation8 + $0x110] sm:$0xff]
    %v2693 = vld [vmem:[#allocation8 + $0x118] sm:$0xff]
    %v2694 = vld [vmem:[#allocation8 + $0x120] sm:$0xff]
    %v2695 = vld [vmem:[#allocation8 + $0x128] sm:$0xff]
    %v2696 = vld [vmem:[#allocation8 + $0x130] sm:$0xff]
    %v2697 = vld [vmem:[#allocation8 + $0x138] sm:$0xff]
    %v2698 = vld [vmem:[#allocation8 + $0x140] sm:$0xff]
    %v2699 = vld [vmem:[#allocation8 + $0x148] sm:$0xff]
    %v2700 = vld [vmem:[#allocation8 + $0x150] sm:$0xff]
    %v2701 = vld [vmem:[#allocation8 + $0x158] sm:$0xff]
    %v2702 = vld [vmem:[#allocation8 + $0x160] sm:$0xff]
    %v2703 = vld [vmem:[#allocation8 + $0x168] sm:$0xff]
    %v2704 = vld [vmem:[#allocation8 + $0x170] sm:$0xff]
    %v2705 = vld [vmem:[#allocation8 + $0x178] sm:$0xff]
    %v2706 = vld [vmem:[#allocation8 + $0x180] sm:$0xff]
    %v2707 = vld [vmem:[#allocation8 + $0x188] sm:$0xff]
    %v2708 = vld [vmem:[#allocation8 + $0x190] sm:$0xff]
    %v2709 = vld [vmem:[#allocation8 + $0x198] sm:$0xff]
    %v2710 = vld [vmem:[#allocation8 + $0x1a0] sm:$0xff]
    %v2711 = vld [vmem:[#allocation8 + $0x1a8] sm:$0xff]
    %v2712 = vld [vmem:[#allocation8 + $0x1b0] sm:$0xff]
    %v2713 = vld [vmem:[#allocation8 + $0x1b8] sm:$0xff]
    %v2714 = vld [vmem:[#allocation8 + $0x1c0] sm:$0xff]
    %v2715 = vld [vmem:[#allocation8 + $0x1c8] sm:$0xff]
    %v2716 = vld [vmem:[#allocation8 + $0x1d0] sm:$0xff]
    %v2717 = vld [vmem:[#allocation8 + $0x1d8] sm:$0xff]
    %v2718 = vld [vmem:[#allocation8 + $0x1e0] sm:$0xff]
    %v2719 = vld [vmem:[#allocation8 + $0x1e8] sm:$0xff]
    %v2720 = vld [vmem:[#allocation8 + $0x1f0] sm:$0xff]
    %v2721 = vld [vmem:[#allocation8 + $0x1f8] sm:$0xff]
    %v2722 = vld [vmem:[#allocation8 + $0x200] sm:$0xff]
    %v2723 = vld [vmem:[#allocation8 + $0x208] sm:$0xff]
    %v2724 = vld [vmem:[#allocation8 + $0x210] sm:$0xff]
    %v2725 = vld [vmem:[#allocation8 + $0x218] sm:$0xff]
    %v2726 = vld [vmem:[#allocation8 + $0x220] sm:$0xff]
    %v2727 = vld [vmem:[#allocation8 + $0x228] sm:$0xff]
    %v2728 = vld [vmem:[#allocation8 + $0x230] sm:$0xff]
    %v2729 = vld [vmem:[#allocation8 + $0x238] sm:$0xff]
    %v2730 = vld [vmem:[#allocation8 + $0x240] sm:$0xff]
    %v2731 = vld [vmem:[#allocation8 + $0x248] sm:$0xff]
    %v2732 = vld [vmem:[#allocation8 + $0x250] sm:$0xff]
    %v2733 = vld [vmem:[#allocation8 + $0x258] sm:$0xff]
    %v2734 = vld [vmem:[#allocation8 + $0x260] sm:$0xff]
    %v2735 = vld [vmem:[#allocation8 + $0x268] sm:$0xff]
    %v2736 = vld [vmem:[#allocation8 + $0x270] sm:$0xff]
    %v2737 = vld [vmem:[#allocation8 + $0x278] sm:$0xff]
    %v2738 = vld [vmem:[#allocation8 + $0x280] sm:$0xff]
    %v2739 = vld [vmem:[#allocation8 + $0x288] sm:$0xff]
    %v2740 = vld [vmem:[#allocation8 + $0x290] sm:$0xff]
    %v2741 = vld [vmem:[#allocation8 + $0x298] sm:$0xff]
    %v2742 = vld [vmem:[#allocation8 + $0x2a0] sm:$0xff]
    %v2743 = vld [vmem:[#allocation8 + $0x2a8] sm:$0xff]
    %v2744 = vld [vmem:[#allocation8 + $0x2b0] sm:$0xff]
    %v2745 = vld [vmem:[#allocation8 + $0x2b8] sm:$0xff]
    %v2746 = vld [vmem:[#allocation8 + $0x2c0] sm:$0xff]
    %v2747 = vld [vmem:[#allocation8 + $0x2c8] sm:$0xff]
    %v2748 = vld [vmem:[#allocation8 + $0x2d0] sm:$0xff]
    %v2749 = vld [vmem:[#allocation8 + $0x2d8] sm:$0xff]
    %v2750 = vld [vmem:[#allocation8 + $0x2e0] sm:$0xff]
    %v2751 = vld [vmem:[#allocation8 + $0x2e8] sm:$0xff]
    %v2752 = vld [vmem:[#allocation8 + $0x2f0] sm:$0xff]
    %v2753 = vld [vmem:[#allocation8 + $0x2f8] sm:$0xff]
    %v2754 = vld [vmem:[#allocation8 + $0x300] sm:$0xff]
    %v2755 = vld [vmem:[#allocation8 + $0x308] sm:$0xff]
    %v2756 = vld [vmem:[#allocation8 + $0x310] sm:$0xff]
    %v2757 = vld [vmem:[#allocation8 + $0x318] sm:$0xff]
    %v2758 = vld [vmem:[#allocation8 + $0x320] sm:$0xff]
    %v2759 = vld [vmem:[#allocation8 + $0x328] sm:$0xff]
    %v2760 = vld [vmem:[#allocation8 + $0x330] sm:$0xff]
    %v2761 = vld [vmem:[#allocation8 + $0x338] sm:$0xff]
    %v2762 = vld [vmem:[#allocation8 + $0x340] sm:$0xff]
    %v2763 = vld [vmem:[#allocation8 + $0x348] sm:$0xff]
    %v2764 = vld [vmem:[#allocation8 + $0x350] sm:$0xff]
    %v2765 = vld [vmem:[#allocation8 + $0x358] sm:$0xff]
    %v2766 = vld [vmem:[#allocation8 + $0x360] sm:$0xff]
    %v2767 = vld [vmem:[#allocation8 + $0x368] sm:$0xff]
    %v2768 = vld [vmem:[#allocation8 + $0x370] sm:$0xff]
    %v2769 = vld [vmem:[#allocation8 + $0x378] sm:$0xff]
    %v2770 = vld [vmem:[#allocation8 + $0x380] sm:$0xff]
    %v2771 = vld [vmem:[#allocation8 + $0x388] sm:$0xff]
    %v2772 = vld [vmem:[#allocation8 + $0x390] sm:$0xff]
    %v2773 = vld [vmem:[#allocation8 + $0x398] sm:$0xff]
    %v2774 = vld [vmem:[#allocation8 + $0x3a0] sm:$0xff]
    %v2775 = vld [vmem:[#allocation8 + $0x3a8] sm:$0xff]
    %v2776 = vld [vmem:[#allocation8 + $0x3b0] sm:$0xff]
    %v2777 = vld [vmem:[#allocation8 + $0x3b8] sm:$0xff]
    %v2778 = vld [vmem:[#allocation8 + $0x3c0] sm:$0xff]
    %v2779 = vld [vmem:[#allocation8 + $0x3c8] sm:$0xff]
    %v2780 = vld [vmem:[#allocation8 + $0x3d0] sm:$0xff]
    %v2781 = vld [vmem:[#allocation8 + $0x3d8] sm:$0xff]
    %v2782 = vld [vmem:[#allocation8 + $0x3e0] sm:$0xff]
    %v2783 = vld [vmem:[#allocation8 + $0x3e8] sm:$0xff]
    %v2784 = vld [vmem:[#allocation8 + $0x3f0] sm:$0xff]
    %v2785 = vld [vmem:[#allocation8 + $0x3f8] sm:$0xff]
    %v2786 = vld [vmem:[%s2625] sm:$0xff]
    %v2787 = vld [vmem:[%s2625 + $0x8] sm:$0xff]
    %v2788 = vld [vmem:[%s2625 + $0x10] sm:$0xff]
    %v2789 = vld [vmem:[%s2625 + $0x18] sm:$0xff]
    %v2790 = vld [vmem:[%s2625 + $0x20] sm:$0xff]
    %v2791 = vld [vmem:[%s2625 + $0x28] sm:$0xff]
    %v2792 = vld [vmem:[%s2625 + $0x30] sm:$0xff]
    %v2793 = vld [vmem:[%s2625 + $0x38] sm:$0xff]
    %v2794 = vld [vmem:[%s2625 + $0x40] sm:$0xff]
    %v2795 = vld [vmem:[%s2625 + $0x48] sm:$0xff]
    %v2796 = vld [vmem:[%s2625 + $0x50] sm:$0xff]
    %v2797 = vld [vmem:[%s2625 + $0x58] sm:$0xff]
    %v2798 = vld [vmem:[%s2625 + $0x60] sm:$0xff]
    %v2799 = vld [vmem:[%s2625 + $0x68] sm:$0xff]
    %v2800 = vld [vmem:[%s2625 + $0x70] sm:$0xff]
    %v2801 = vld [vmem:[%s2625 + $0x78] sm:$0xff]
    %s2802 = scalar_lea.vmem [#allocation8], 1024
    %v2803 = vld [vmem:[%s2802] sm:$0xff]
    %v2804 = vld [vmem:[%s2802 + $0x8] sm:$0xff]
    %v2805 = vld [vmem:[%s2802 + $0x10] sm:$0xff]
    %v2806 = vld [vmem:[%s2802 + $0x18] sm:$0xff]
    %v2807 = vld [vmem:[%s2802 + $0x20] sm:$0xff]
    %v2808 = vld [vmem:[%s2802 + $0x28] sm:$0xff]
    %v2809 = vld [vmem:[%s2802 + $0x30] sm:$0xff]
    %v2810 = vld [vmem:[%s2802 + $0x38] sm:$0xff]
    %v2811 = vld [vmem:[%s2802 + $0x40] sm:$0xff]
    %v2812 = vld [vmem:[%s2802 + $0x48] sm:$0xff]
    %v2813 = vld [vmem:[%s2802 + $0x50] sm:$0xff]
    %v2814 = vld [vmem:[%s2802 + $0x58] sm:$0xff]
    %v2815 = vld [vmem:[%s2802 + $0x60] sm:$0xff]
    %v2816 = vld [vmem:[%s2802 + $0x68] sm:$0xff]
    %v2817 = vld [vmem:[%s2802 + $0x70] sm:$0xff]
    %v2818 = vld [vmem:[%s2802 + $0x78] sm:$0xff]
    %v2819 = vld [vmem:[%s2802 + $0x80] sm:$0xff]
    %v2820 = vld [vmem:[%s2802 + $0x88] sm:$0xff]
    %v2821 = vld [vmem:[%s2802 + $0x90] sm:$0xff]
    %v2822 = vld [vmem:[%s2802 + $0x98] sm:$0xff]
    %v2823 = vld [vmem:[%s2802 + $0xa0] sm:$0xff]
    %v2824 = vld [vmem:[%s2802 + $0xa8] sm:$0xff]
    %v2825 = vld [vmem:[%s2802 + $0xb0] sm:$0xff]
    %v2826 = vld [vmem:[%s2802 + $0xb8] sm:$0xff]
    %v2827 = vld [vmem:[%s2802 + $0xc0] sm:$0xff]
    %v2828 = vld [vmem:[%s2802 + $0xc8] sm:$0xff]
    %v2829 = vld [vmem:[%s2802 + $0xd0] sm:$0xff]
    %v2830 = vld [vmem:[%s2802 + $0xd8] sm:$0xff]
    %v2831 = vld [vmem:[%s2802 + $0xe0] sm:$0xff]
    %v2832 = vld [vmem:[%s2802 + $0xe8] sm:$0xff]
    %v2833 = vld [vmem:[%s2802 + $0xf0] sm:$0xff]
    %v2834 = vld [vmem:[%s2802 + $0xf8] sm:$0xff]
    %v2835 = vld [vmem:[%s2802 + $0x100] sm:$0xff]
    %v2836 = vld [vmem:[%s2802 + $0x108] sm:$0xff]
    %v2837 = vld [vmem:[%s2802 + $0x110] sm:$0xff]
    %v2838 = vld [vmem:[%s2802 + $0x118] sm:$0xff]
    %v2839 = vld [vmem:[%s2802 + $0x120] sm:$0xff]
    %v2840 = vld [vmem:[%s2802 + $0x128] sm:$0xff]
    %v2841 = vld [vmem:[%s2802 + $0x130] sm:$0xff]
    %v2842 = vld [vmem:[%s2802 + $0x138] sm:$0xff]
    %v2843 = vld [vmem:[%s2802 + $0x140] sm:$0xff]
    %v2844 = vld [vmem:[%s2802 + $0x148] sm:$0xff]
    %v2845 = vld [vmem:[%s2802 + $0x150] sm:$0xff]
    %v2846 = vld [vmem:[%s2802 + $0x158] sm:$0xff]
    %v2847 = vld [vmem:[%s2802 + $0x160] sm:$0xff]
    %v2848 = vld [vmem:[%s2802 + $0x168] sm:$0xff]
    %v2849 = vld [vmem:[%s2802 + $0x170] sm:$0xff]
    %v2850 = vld [vmem:[%s2802 + $0x178] sm:$0xff]
    %v2851 = vld [vmem:[%s2802 + $0x180] sm:$0xff]
    %v2852 = vld [vmem:[%s2802 + $0x188] sm:$0xff]
    %v2853 = vld [vmem:[%s2802 + $0x190] sm:$0xff]
    %v2854 = vld [vmem:[%s2802 + $0x198] sm:$0xff]
    %v2855 = vld [vmem:[%s2802 + $0x1a0] sm:$0xff]
    %v2856 = vld [vmem:[%s2802 + $0x1a8] sm:$0xff]
    %v2857 = vld [vmem:[%s2802 + $0x1b0] sm:$0xff]
    %v2858 = vld [vmem:[%s2802 + $0x1b8] sm:$0xff]
    %v2859 = vld [vmem:[%s2802 + $0x1c0] sm:$0xff]
    %v2860 = vld [vmem:[%s2802 + $0x1c8] sm:$0xff]
    %v2861 = vld [vmem:[%s2802 + $0x1d0] sm:$0xff]
    %v2862 = vld [vmem:[%s2802 + $0x1d8] sm:$0xff]
    %v2863 = vld [vmem:[%s2802 + $0x1e0] sm:$0xff]
    %v2864 = vld [vmem:[%s2802 + $0x1e8] sm:$0xff]
    %v2865 = vld [vmem:[%s2802 + $0x1f0] sm:$0xff]
    %v2866 = vld [vmem:[%s2802 + $0x1f8] sm:$0xff]
    %v2867 = vld [vmem:[%s2802 + $0x200] sm:$0xff]
    %v2868 = vld [vmem:[%s2802 + $0x208] sm:$0xff]
    %v2869 = vld [vmem:[%s2802 + $0x210] sm:$0xff]
    %v2870 = vld [vmem:[%s2802 + $0x218] sm:$0xff]
    %v2871 = vld [vmem:[%s2802 + $0x220] sm:$0xff]
    %v2872 = vld [vmem:[%s2802 + $0x228] sm:$0xff]
    %v2873 = vld [vmem:[%s2802 + $0x230] sm:$0xff]
    %v2874 = vld [vmem:[%s2802 + $0x238] sm:$0xff]
    %v2875 = vld [vmem:[%s2802 + $0x240] sm:$0xff]
    %v2876 = vld [vmem:[%s2802 + $0x248] sm:$0xff]
    %v2877 = vld [vmem:[%s2802 + $0x250] sm:$0xff]
    %v2878 = vld [vmem:[%s2802 + $0x258] sm:$0xff]
    %v2879 = vld [vmem:[%s2802 + $0x260] sm:$0xff]
    %v2880 = vld [vmem:[%s2802 + $0x268] sm:$0xff]
    %v2881 = vld [vmem:[%s2802 + $0x270] sm:$0xff]
    %v2882 = vld [vmem:[%s2802 + $0x278] sm:$0xff]
    %v2883 = vld [vmem:[%s2802 + $0x280] sm:$0xff]
    %v2884 = vld [vmem:[%s2802 + $0x288] sm:$0xff]
    %v2885 = vld [vmem:[%s2802 + $0x290] sm:$0xff]
    %v2886 = vld [vmem:[%s2802 + $0x298] sm:$0xff]
    %v2887 = vld [vmem:[%s2802 + $0x2a0] sm:$0xff]
    %v2888 = vld [vmem:[%s2802 + $0x2a8] sm:$0xff]
    %v2889 = vld [vmem:[%s2802 + $0x2b0] sm:$0xff]
    %v2890 = vld [vmem:[%s2802 + $0x2b8] sm:$0xff]
    %v2891 = vld [vmem:[%s2802 + $0x2c0] sm:$0xff]
    %v2892 = vld [vmem:[%s2802 + $0x2c8] sm:$0xff]
    %v2893 = vld [vmem:[%s2802 + $0x2d0] sm:$0xff]
    %v2894 = vld [vmem:[%s2802 + $0x2d8] sm:$0xff]
    %v2895 = vld [vmem:[%s2802 + $0x2e0] sm:$0xff]
    %v2896 = vld [vmem:[%s2802 + $0x2e8] sm:$0xff]
    %v2897 = vld [vmem:[%s2802 + $0x2f0] sm:$0xff]
    %v2898 = vld [vmem:[%s2802 + $0x2f8] sm:$0xff]
    %v2899 = vld [vmem:[%s2802 + $0x300] sm:$0xff]
    %v2900 = vld [vmem:[%s2802 + $0x308] sm:$0xff]
    %v2901 = vld [vmem:[%s2802 + $0x310] sm:$0xff]
    %v2902 = vld [vmem:[%s2802 + $0x318] sm:$0xff]
    %v2903 = vld [vmem:[%s2802 + $0x320] sm:$0xff]
    %v2904 = vld [vmem:[%s2802 + $0x328] sm:$0xff]
    %v2905 = vld [vmem:[%s2802 + $0x330] sm:$0xff]
    %v2906 = vld [vmem:[%s2802 + $0x338] sm:$0xff]
    %v2907 = vld [vmem:[%s2802 + $0x340] sm:$0xff]
    %v2908 = vld [vmem:[%s2802 + $0x348] sm:$0xff]
    %v2909 = vld [vmem:[%s2802 + $0x350] sm:$0xff]
    %v2910 = vld [vmem:[%s2802 + $0x358] sm:$0xff]
    %v2911 = vld [vmem:[%s2802 + $0x360] sm:$0xff]
    %v2912 = vld [vmem:[%s2802 + $0x368] sm:$0xff]
    %v2913 = vld [vmem:[%s2802 + $0x370] sm:$0xff]
    %v2914 = vld [vmem:[%s2802 + $0x378] sm:$0xff]
    %v2915 = vld [vmem:[%s2802 + $0x380] sm:$0xff]
    %v2916 = vld [vmem:[%s2802 + $0x388] sm:$0xff]
    %v2917 = vld [vmem:[%s2802 + $0x390] sm:$0xff]
    %v2918 = vld [vmem:[%s2802 + $0x398] sm:$0xff]
    %v2919 = vld [vmem:[%s2802 + $0x3a0] sm:$0xff]
    %v2920 = vld [vmem:[%s2802 + $0x3a8] sm:$0xff]
    %v2921 = vld [vmem:[%s2802 + $0x3b0] sm:$0xff]
    %v2922 = vld [vmem:[%s2802 + $0x3b8] sm:$0xff]
    %v2923 = vld [vmem:[%s2802 + $0x3c0] sm:$0xff]
    %v2924 = vld [vmem:[%s2802 + $0x3c8] sm:$0xff]
    %v2925 = vld [vmem:[%s2802 + $0x3d0] sm:$0xff]
    %v2926 = vld [vmem:[%s2802 + $0x3d8] sm:$0xff]
    %v2927 = vld [vmem:[%s2802 + $0x3e0] sm:$0xff]
    %v2928 = vld [vmem:[%s2802 + $0x3e8] sm:$0xff]
    %v2929 = vld [vmem:[%s2802 + $0x3f0] sm:$0xff]
    %v2930 = vld [vmem:[%s2802 + $0x3f8] sm:$0xff]
    %v2947 = vunpack.c.l.b16 %v2786
    %v2948 = vunpack.c.h.b16 %v2786
    %v2949 = vunpack.c.l.b16 %v2787
    %v2950 = vunpack.c.h.b16 %v2787
    %v2951 = vunpack.c.l.b16 %v2788
    %v2952 = vunpack.c.h.b16 %v2788
    %v2953 = vunpack.c.l.b16 %v2789
    %v2954 = vunpack.c.h.b16 %v2789
    %v2955 = vunpack.c.l.b16 %v2790
    %v2956 = vunpack.c.h.b16 %v2790
    %v2957 = vunpack.c.l.b16 %v2791
    %v2958 = vunpack.c.h.b16 %v2791
    %v2959 = vunpack.c.l.b16 %v2792
    %v2960 = vunpack.c.h.b16 %v2792
    %v2961 = vunpack.c.l.b16 %v2793
    %v2962 = vunpack.c.h.b16 %v2793
    %v2963 = vunpack.c.l.b16 %v2794
    %v2964 = vunpack.c.h.b16 %v2794
    %v2965 = vunpack.c.l.b16 %v2795
    %v2966 = vunpack.c.h.b16 %v2795
    %v2967 = vunpack.c.l.b16 %v2796
    %v2968 = vunpack.c.h.b16 %v2796
    %v2969 = vunpack.c.l.b16 %v2797
    %v2970 = vunpack.c.h.b16 %v2797
    %v2971 = vunpack.c.l.b16 %v2798
    %v2972 = vunpack.c.h.b16 %v2798
    %v2973 = vunpack.c.l.b16 %v2799
    %v2974 = vunpack.c.h.b16 %v2799
    %v2975 = vunpack.c.l.b16 %v2800
    %v2976 = vunpack.c.h.b16 %v2800
    %v2977 = vunpack.c.l.b16 %v2801
    %v2978 = vunpack.c.h.b16 %v2801
    %v2979 = vpack.c.b16 %v2951, %v2947
    %v2980 = vpack.c.b16 %v2952, %v2948
    %v2981 = vpack.c.b16 %v2953, %v2949
    %v2982 = vpack.c.b16 %v2954, %v2950
    %v2983 = vpack.c.b16 %v2959, %v2955
    %v2984 = vpack.c.b16 %v2960, %v2956
    %v2985 = vpack.c.b16 %v2961, %v2957
    %v2986 = vpack.c.b16 %v2962, %v2958
    %v2987 = vpack.c.b16 %v2967, %v2963
    %v2988 = vpack.c.b16 %v2968, %v2964
    %v2989 = vpack.c.b16 %v2969, %v2965
    %v2990 = vpack.c.b16 %v2970, %v2966
    %v2991 = vpack.c.b16 %v2975, %v2971
    %v2992 = vpack.c.b16 %v2976, %v2972
    %v2993 = vpack.c.b16 %v2977, %v2973
    %v2994 = vpack.c.b16 %v2978, %v2974
    %v3139 = vunpack.c.l.b16 %v2803
    %v3140 = vunpack.c.h.b16 %v2803
    %v3141 = vunpack.c.l.b16 %v2804
    %v3142 = vunpack.c.h.b16 %v2804
    %v3143 = vunpack.c.l.b16 %v2805
    %v3144 = vunpack.c.h.b16 %v2805
    %v3145 = vunpack.c.l.b16 %v2806
    %v3146 = vunpack.c.h.b16 %v2806
    %v3147 = vunpack.c.l.b16 %v2807
    %v3148 = vunpack.c.h.b16 %v2807
    %v3149 = vunpack.c.l.b16 %v2808
    %v3150 = vunpack.c.h.b16 %v2808
    %v3151 = vunpack.c.l.b16 %v2809
    %v3152 = vunpack.c.h.b16 %v2809
    %v3153 = vunpack.c.l.b16 %v2810
    %v3154 = vunpack.c.h.b16 %v2810
    %v3155 = vunpack.c.l.b16 %v2811
    %v3156 = vunpack.c.h.b16 %v2811
    %v3157 = vunpack.c.l.b16 %v2812
    %v3158 = vunpack.c.h.b16 %v2812
    %v3159 = vunpack.c.l.b16 %v2813
    %v3160 = vunpack.c.h.b16 %v2813
    %v3161 = vunpack.c.l.b16 %v2814
    %v3162 = vunpack.c.h.b16 %v2814
    %v3163 = vunpack.c.l.b16 %v2815
    %v3164 = vunpack.c.h.b16 %v2815
    %v3165 = vunpack.c.l.b16 %v2816
    %v3166 = vunpack.c.h.b16 %v2816
    %v3167 = vunpack.c.l.b16 %v2817
    %v3168 = vunpack.c.h.b16 %v2817
    %v3169 = vunpack.c.l.b16 %v2818
    %v3170 = vunpack.c.h.b16 %v2818
    %v3171 = vunpack.c.l.b16 %v2819
    %v3172 = vunpack.c.h.b16 %v2819
    %v3173 = vunpack.c.l.b16 %v2820
    %v3174 = vunpack.c.h.b16 %v2820
    %v3175 = vunpack.c.l.b16 %v2821
    %v3176 = vunpack.c.h.b16 %v2821
    %v3177 = vunpack.c.l.b16 %v2822
    %v3178 = vunpack.c.h.b16 %v2822
    %v3179 = vunpack.c.l.b16 %v2823
    %v3180 = vunpack.c.h.b16 %v2823
    %v3181 = vunpack.c.l.b16 %v2824
    %v3182 = vunpack.c.h.b16 %v2824
    %v3183 = vunpack.c.l.b16 %v2825
    %v3184 = vunpack.c.h.b16 %v2825
    %v3185 = vunpack.c.l.b16 %v2826
    %v3186 = vunpack.c.h.b16 %v2826
    %v3187 = vunpack.c.l.b16 %v2827
    %v3188 = vunpack.c.h.b16 %v2827
    %v3189 = vunpack.c.l.b16 %v2828
    %v3190 = vunpack.c.h.b16 %v2828
    %v3191 = vunpack.c.l.b16 %v2829
    %v3192 = vunpack.c.h.b16 %v2829
    %v3193 = vunpack.c.l.b16 %v2830
    %v3194 = vunpack.c.h.b16 %v2830
    %v3195 = vunpack.c.l.b16 %v2831
    %v3196 = vunpack.c.h.b16 %v2831
    %v3197 = vunpack.c.l.b16 %v2832
    %v3198 = vunpack.c.h.b16 %v2832
    %v3199 = vunpack.c.l.b16 %v2833
    %v3200 = vunpack.c.h.b16 %v2833
    %v3201 = vunpack.c.l.b16 %v2834
    %v3202 = vunpack.c.h.b16 %v2834
    %v3203 = vunpack.c.l.b16 %v2835
    %v3204 = vunpack.c.h.b16 %v2835
    %v3205 = vunpack.c.l.b16 %v2836
    %v3206 = vunpack.c.h.b16 %v2836
    %v3207 = vunpack.c.l.b16 %v2837
    %v3208 = vunpack.c.h.b16 %v2837
    %v3209 = vunpack.c.l.b16 %v2838
    %v3210 = vunpack.c.h.b16 %v2838
    %v3211 = vunpack.c.l.b16 %v2839
    %v3212 = vunpack.c.h.b16 %v2839
    %v3213 = vunpack.c.l.b16 %v2840
    %v3214 = vunpack.c.h.b16 %v2840
    %v3215 = vunpack.c.l.b16 %v2841
    %v3216 = vunpack.c.h.b16 %v2841
    %v3217 = vunpack.c.l.b16 %v2842
    %v3218 = vunpack.c.h.b16 %v2842
    %v3219 = vunpack.c.l.b16 %v2843
    %v3220 = vunpack.c.h.b16 %v2843
    %v3221 = vunpack.c.l.b16 %v2844
    %v3222 = vunpack.c.h.b16 %v2844
    %v3223 = vunpack.c.l.b16 %v2845
    %v3224 = vunpack.c.h.b16 %v2845
    %v3225 = vunpack.c.l.b16 %v2846
    %v3226 = vunpack.c.h.b16 %v2846
    %v3227 = vunpack.c.l.b16 %v2847
    %v3228 = vunpack.c.h.b16 %v2847
    %v3229 = vunpack.c.l.b16 %v2848
    %v3230 = vunpack.c.h.b16 %v2848
    %v3231 = vunpack.c.l.b16 %v2849
    %v3232 = vunpack.c.h.b16 %v2849
    %v3233 = vunpack.c.l.b16 %v2850
    %v3234 = vunpack.c.h.b16 %v2850
    %v3235 = vunpack.c.l.b16 %v2851
    %v3236 = vunpack.c.h.b16 %v2851
    %v3237 = vunpack.c.l.b16 %v2852
    %v3238 = vunpack.c.h.b16 %v2852
    %v3239 = vunpack.c.l.b16 %v2853
    %v3240 = vunpack.c.h.b16 %v2853
    %v3241 = vunpack.c.l.b16 %v2854
    %v3242 = vunpack.c.h.b16 %v2854
    %v3243 = vunpack.c.l.b16 %v2855
    %v3244 = vunpack.c.h.b16 %v2855
    %v3245 = vunpack.c.l.b16 %v2856
    %v3246 = vunpack.c.h.b16 %v2856
    %v3247 = vunpack.c.l.b16 %v2857
    %v3248 = vunpack.c.h.b16 %v2857
    %v3249 = vunpack.c.l.b16 %v2858
    %v3250 = vunpack.c.h.b16 %v2858
    %v3251 = vunpack.c.l.b16 %v2859
    %v3252 = vunpack.c.h.b16 %v2859
    %v3253 = vunpack.c.l.b16 %v2860
    %v3254 = vunpack.c.h.b16 %v2860
    %v3255 = vunpack.c.l.b16 %v2861
    %v3256 = vunpack.c.h.b16 %v2861
    %v3257 = vunpack.c.l.b16 %v2862
    %v3258 = vunpack.c.h.b16 %v2862
    %v3259 = vunpack.c.l.b16 %v2863
    %v3260 = vunpack.c.h.b16 %v2863
    %v3261 = vunpack.c.l.b16 %v2864
    %v3262 = vunpack.c.h.b16 %v2864
    %v3263 = vunpack.c.l.b16 %v2865
    %v3264 = vunpack.c.h.b16 %v2865
    %v3265 = vunpack.c.l.b16 %v2866
    %v3266 = vunpack.c.h.b16 %v2866
    %v3267 = vunpack.c.l.b16 %v2867
    %v3268 = vunpack.c.h.b16 %v2867
    %v3269 = vunpack.c.l.b16 %v2868
    %v3270 = vunpack.c.h.b16 %v2868
    %v3271 = vunpack.c.l.b16 %v2869
    %v3272 = vunpack.c.h.b16 %v2869
    %v3273 = vunpack.c.l.b16 %v2870
    %v3274 = vunpack.c.h.b16 %v2870
    %v3275 = vunpack.c.l.b16 %v2871
    %v3276 = vunpack.c.h.b16 %v2871
    %v3277 = vunpack.c.l.b16 %v2872
    %v3278 = vunpack.c.h.b16 %v2872
    %v3279 = vunpack.c.l.b16 %v2873
    %v3280 = vunpack.c.h.b16 %v2873
    %v3281 = vunpack.c.l.b16 %v2874
    %v3282 = vunpack.c.h.b16 %v2874
    %v3283 = vunpack.c.l.b16 %v2875
    %v3284 = vunpack.c.h.b16 %v2875
    %v3285 = vunpack.c.l.b16 %v2876
    %v3286 = vunpack.c.h.b16 %v2876
    %v3287 = vunpack.c.l.b16 %v2877
    %v3288 = vunpack.c.h.b16 %v2877
    %v3289 = vunpack.c.l.b16 %v2878
    %v3290 = vunpack.c.h.b16 %v2878
    %v3291 = vunpack.c.l.b16 %v2879
    %v3292 = vunpack.c.h.b16 %v2879
    %v3293 = vunpack.c.l.b16 %v2880
    %v3294 = vunpack.c.h.b16 %v2880
    %v3295 = vunpack.c.l.b16 %v2881
    %v3296 = vunpack.c.h.b16 %v2881
    %v3297 = vunpack.c.l.b16 %v2882
    %v3298 = vunpack.c.h.b16 %v2882
    %v3299 = vunpack.c.l.b16 %v2883
    %v3300 = vunpack.c.h.b16 %v2883
    %v3301 = vunpack.c.l.b16 %v2884
    %v3302 = vunpack.c.h.b16 %v2884
    %v3303 = vunpack.c.l.b16 %v2885
    %v3304 = vunpack.c.h.b16 %v2885
    %v3305 = vunpack.c.l.b16 %v2886
    %v3306 = vunpack.c.h.b16 %v2886
    %v3307 = vunpack.c.l.b16 %v2887
    %v3308 = vunpack.c.h.b16 %v2887
    %v3309 = vunpack.c.l.b16 %v2888
    %v3310 = vunpack.c.h.b16 %v2888
    %v3311 = vunpack.c.l.b16 %v2889
    %v3312 = vunpack.c.h.b16 %v2889
    %v3313 = vunpack.c.l.b16 %v2890
    %v3314 = vunpack.c.h.b16 %v2890
    %v3315 = vunpack.c.l.b16 %v2891
    %v3316 = vunpack.c.h.b16 %v2891
    %v3317 = vunpack.c.l.b16 %v2892
    %v3318 = vunpack.c.h.b16 %v2892
    %v3319 = vunpack.c.l.b16 %v2893
    %v3320 = vunpack.c.h.b16 %v2893
    %v3321 = vunpack.c.l.b16 %v2894
    %v3322 = vunpack.c.h.b16 %v2894
    %v3323 = vunpack.c.l.b16 %v2895
    %v3324 = vunpack.c.h.b16 %v2895
    %v3325 = vunpack.c.l.b16 %v2896
    %v3326 = vunpack.c.h.b16 %v2896
    %v3327 = vunpack.c.l.b16 %v2897
    %v3328 = vunpack.c.h.b16 %v2897
    %v3329 = vunpack.c.l.b16 %v2898
    %v3330 = vunpack.c.h.b16 %v2898
    %v3331 = vunpack.c.l.b16 %v2899
    %v3332 = vunpack.c.h.b16 %v2899
    %v3333 = vunpack.c.l.b16 %v2900
    %v3334 = vunpack.c.h.b16 %v2900
    %v3335 = vunpack.c.l.b16 %v2901
    %v3336 = vunpack.c.h.b16 %v2901
    %v3337 = vunpack.c.l.b16 %v2902
    %v3338 = vunpack.c.h.b16 %v2902
    %v3339 = vunpack.c.l.b16 %v2903
    %v3340 = vunpack.c.h.b16 %v2903
    %v3341 = vunpack.c.l.b16 %v2904
    %v3342 = vunpack.c.h.b16 %v2904
    %v3343 = vunpack.c.l.b16 %v2905
    %v3344 = vunpack.c.h.b16 %v2905
    %v3345 = vunpack.c.l.b16 %v2906
    %v3346 = vunpack.c.h.b16 %v2906
    %v3347 = vunpack.c.l.b16 %v2907
    %v3348 = vunpack.c.h.b16 %v2907
    %v3349 = vunpack.c.l.b16 %v2908
    %v3350 = vunpack.c.h.b16 %v2908
    %v3351 = vunpack.c.l.b16 %v2909
    %v3352 = vunpack.c.h.b16 %v2909
    %v3353 = vunpack.c.l.b16 %v2910
    %v3354 = vunpack.c.h.b16 %v2910
    %v3355 = vunpack.c.l.b16 %v2911
    %v3356 = vunpack.c.h.b16 %v2911
    %v3357 = vunpack.c.l.b16 %v2912
    %v3358 = vunpack.c.h.b16 %v2912
    %v3359 = vunpack.c.l.b16 %v2913
    %v3360 = vunpack.c.h.b16 %v2913
    %v3361 = vunpack.c.l.b16 %v2914
    %v3362 = vunpack.c.h.b16 %v2914
    %v3363 = vunpack.c.l.b16 %v2915
    %v3364 = vunpack.c.h.b16 %v2915
    %v3365 = vunpack.c.l.b16 %v2916
    %v3366 = vunpack.c.h.b16 %v2916
    %v3367 = vunpack.c.l.b16 %v2917
    %v3368 = vunpack.c.h.b16 %v2917
    %v3369 = vunpack.c.l.b16 %v2918
    %v3370 = vunpack.c.h.b16 %v2918
    %v3371 = vunpack.c.l.b16 %v2919
    %v3372 = vunpack.c.h.b16 %v2919
    %v3373 = vunpack.c.l.b16 %v2920
    %v3374 = vunpack.c.h.b16 %v2920
    %v3375 = vunpack.c.l.b16 %v2921
    %v3376 = vunpack.c.h.b16 %v2921
    %v3377 = vunpack.c.l.b16 %v2922
    %v3378 = vunpack.c.h.b16 %v2922
    %v3379 = vunpack.c.l.b16 %v2923
    %v3380 = vunpack.c.h.b16 %v2923
    %v3381 = vunpack.c.l.b16 %v2924
    %v3382 = vunpack.c.h.b16 %v2924
    %v3383 = vunpack.c.l.b16 %v2925
    %v3384 = vunpack.c.h.b16 %v2925
    %v3385 = vunpack.c.l.b16 %v2926
    %v3386 = vunpack.c.h.b16 %v2926
    %v3387 = vunpack.c.l.b16 %v2927
    %v3388 = vunpack.c.h.b16 %v2927
    %v3389 = vunpack.c.l.b16 %v2928
    %v3390 = vunpack.c.h.b16 %v2928
    %v3391 = vunpack.c.l.b16 %v2929
    %v3392 = vunpack.c.h.b16 %v2929
    %v3393 = vunpack.c.l.b16 %v2930
    %v3394 = vunpack.c.h.b16 %v2930
    %v3395 = vpack.c.b16 %v3143, %v3139
    %v3396 = vpack.c.b16 %v3144, %v3140
    %v3397 = vpack.c.b16 %v3145, %v3141
    %v3398 = vpack.c.b16 %v3146, %v3142
    %v3399 = vpack.c.b16 %v3151, %v3147
    %v3400 = vpack.c.b16 %v3152, %v3148
    %v3401 = vpack.c.b16 %v3153, %v3149
    %v3402 = vpack.c.b16 %v3154, %v3150
    %v3403 = vpack.c.b16 %v3159, %v3155
    %v3404 = vpack.c.b16 %v3160, %v3156
    %v3405 = vpack.c.b16 %v3161, %v3157
    %v3406 = vpack.c.b16 %v3162, %v3158
    %v3407 = vpack.c.b16 %v3167, %v3163
    %v3408 = vpack.c.b16 %v3168, %v3164
    %v3409 = vpack.c.b16 %v3169, %v3165
    %v3410 = vpack.c.b16 %v3170, %v3166
    %v3411 = vpack.c.b16 %v3175, %v3171
    %v3412 = vpack.c.b16 %v3176, %v3172
    %v3413 = vpack.c.b16 %v3177, %v3173
    %v3414 = vpack.c.b16 %v3178, %v3174
    %v3415 = vpack.c.b16 %v3183, %v3179
    %v3416 = vpack.c.b16 %v3184, %v3180
    %v3417 = vpack.c.b16 %v3185, %v3181
    %v3418 = vpack.c.b16 %v3186, %v3182
    %v3419 = vpack.c.b16 %v3191, %v3187
    %v3420 = vpack.c.b16 %v3192, %v3188
    %v3421 = vpack.c.b16 %v3193, %v3189
    %v3422 = vpack.c.b16 %v3194, %v3190
    %v3423 = vpack.c.b16 %v3199, %v3195
    %v3424 = vpack.c.b16 %v3200, %v3196
    %v3425 = vpack.c.b16 %v3201, %v3197
    %v3426 = vpack.c.b16 %v3202, %v3198
    %v3427 = vpack.c.b16 %v3207, %v3203
    %v3428 = vpack.c.b16 %v3208, %v3204
    %v3429 = vpack.c.b16 %v3209, %v3205
    %v3430 = vpack.c.b16 %v3210, %v3206
    %v3431 = vpack.c.b16 %v3215, %v3211
    %v3432 = vpack.c.b16 %v3216, %v3212
    %v3433 = vpack.c.b16 %v3217, %v3213
    %v3434 = vpack.c.b16 %v3218, %v3214
    %v3435 = vpack.c.b16 %v3223, %v3219
    %v3436 = vpack.c.b16 %v3224, %v3220
    %v3437 = vpack.c.b16 %v3225, %v3221
    %v3438 = vpack.c.b16 %v3226, %v3222
    %v3439 = vpack.c.b16 %v3231, %v3227
    %v3440 = vpack.c.b16 %v3232, %v3228
    %v3441 = vpack.c.b16 %v3233, %v3229
    %v3442 = vpack.c.b16 %v3234, %v3230
    %v3443 = vpack.c.b16 %v3239, %v3235
    %v3444 = vpack.c.b16 %v3240, %v3236
    %v3445 = vpack.c.b16 %v3241, %v3237
    %v3446 = vpack.c.b16 %v3242, %v3238
    %v3447 = vpack.c.b16 %v3247, %v3243
    %v3448 = vpack.c.b16 %v3248, %v3244
    %v3449 = vpack.c.b16 %v3249, %v3245
    %v3450 = vpack.c.b16 %v3250, %v3246
    %v3451 = vpack.c.b16 %v3255, %v3251
    %v3452 = vpack.c.b16 %v3256, %v3252
    %v3453 = vpack.c.b16 %v3257, %v3253
    %v3454 = vpack.c.b16 %v3258, %v3254
    %v3455 = vpack.c.b16 %v3263, %v3259
    %v3456 = vpack.c.b16 %v3264, %v3260
    %v3457 = vpack.c.b16 %v3265, %v3261
    %v3458 = vpack.c.b16 %v3266, %v3262
    %v3459 = vpack.c.b16 %v3271, %v3267
    %v3460 = vpack.c.b16 %v3272, %v3268
    %v3461 = vpack.c.b16 %v3273, %v3269
    %v3462 = vpack.c.b16 %v3274, %v3270
    %v3463 = vpack.c.b16 %v3279, %v3275
    %v3464 = vpack.c.b16 %v3280, %v3276
    %v3465 = vpack.c.b16 %v3281, %v3277
    %v3466 = vpack.c.b16 %v3282, %v3278
    %v3467 = vpack.c.b16 %v3287, %v3283
    %v3468 = vpack.c.b16 %v3288, %v3284
    %v3469 = vpack.c.b16 %v3289, %v3285
    %v3470 = vpack.c.b16 %v3290, %v3286
    %v3471 = vpack.c.b16 %v3295, %v3291
    %v3472 = vpack.c.b16 %v3296, %v3292
    %v3473 = vpack.c.b16 %v3297, %v3293
    %v3474 = vpack.c.b16 %v3298, %v3294
    %v3475 = vpack.c.b16 %v3303, %v3299
    %v3476 = vpack.c.b16 %v3304, %v3300
    %v3477 = vpack.c.b16 %v3305, %v3301
    %v3478 = vpack.c.b16 %v3306, %v3302
    %v3479 = vpack.c.b16 %v3311, %v3307
    %v3480 = vpack.c.b16 %v3312, %v3308
    %v3481 = vpack.c.b16 %v3313, %v3309
    %v3482 = vpack.c.b16 %v3314, %v3310
    %v3483 = vpack.c.b16 %v3319, %v3315
    %v3484 = vpack.c.b16 %v3320, %v3316
    %v3485 = vpack.c.b16 %v3321, %v3317
    %v3486 = vpack.c.b16 %v3322, %v3318
    %v3487 = vpack.c.b16 %v3327, %v3323
    %v3488 = vpack.c.b16 %v3328, %v3324
    %v3489 = vpack.c.b16 %v3329, %v3325
    %v3490 = vpack.c.b16 %v3330, %v3326
    %v3491 = vpack.c.b16 %v3335, %v3331
    %v3492 = vpack.c.b16 %v3336, %v3332
    %v3493 = vpack.c.b16 %v3337, %v3333
    %v3494 = vpack.c.b16 %v3338, %v3334
    %v3495 = vpack.c.b16 %v3343, %v3339
    %v3496 = vpack.c.b16 %v3344, %v3340
    %v3497 = vpack.c.b16 %v3345, %v3341
    %v3498 = vpack.c.b16 %v3346, %v3342
    %v3499 = vpack.c.b16 %v3351, %v3347
    %v3500 = vpack.c.b16 %v3352, %v3348
    %v3501 = vpack.c.b16 %v3353, %v3349
    %v3502 = vpack.c.b16 %v3354, %v3350
    %v3503 = vpack.c.b16 %v3359, %v3355
    %v3504 = vpack.c.b16 %v3360, %v3356
    %v3505 = vpack.c.b16 %v3361, %v3357
    %v3506 = vpack.c.b16 %v3362, %v3358
    %v3507 = vpack.c.b16 %v3367, %v3363
    %v3508 = vpack.c.b16 %v3368, %v3364
    %v3509 = vpack.c.b16 %v3369, %v3365
    %v3510 = vpack.c.b16 %v3370, %v3366
    %v3511 = vpack.c.b16 %v3375, %v3371
    %v3512 = vpack.c.b16 %v3376, %v3372
    %v3513 = vpack.c.b16 %v3377, %v3373
    %v3514 = vpack.c.b16 %v3378, %v3374
    %v3515 = vpack.c.b16 %v3383, %v3379
    %v3516 = vpack.c.b16 %v3384, %v3380
    %v3517 = vpack.c.b16 %v3385, %v3381
    %v3518 = vpack.c.b16 %v3386, %v3382
    %v3519 = vpack.c.b16 %v3391, %v3387
    %v3520 = vpack.c.b16 %v3392, %v3388
    %v3521 = vpack.c.b16 %v3393, %v3389
    %v3522 = vpack.c.b16 %v3394, %v3390
    %3651 = vmatpush.bf16.msra.mxu0 %v3423
    %3652 = vmatpush.bf16.msra.mxu0 %v3419
    %3653 = vmatpush.bf16.msra.mxu0 %v3415
    %3654 = vmatpush.bf16.msra.mxu0 %v3411
    %3655 = vmatpush.bf16.msra.mxu0 %v3407
    %3656 = vmatpush.bf16.msra.mxu0 %v3403
    %3657 = vmatpush.bf16.msra.mxu0 %v3399
    %3658 = vmatpush.bf16.msra.mxu0 %v3395
    %3659 = vmatmul.bf16.gmra.mxu0 %v2979
    %v3660 = vpop.f32.mrf.mxu0
    %v3661 = vadd.f32 0.0, %v3660
    %v3662 = vpop.f32.mrf.mxu0
    %v3663 = vadd.f32 0.0, %v3662
    %3664 = vmatmul.bf16.gmra.mxu0 %v2983
    %v3665 = vpop.f32.mrf.mxu0
    %v3666 = vadd.f32 0.0, %v3665
    %v3667 = vpop.f32.mrf.mxu0
    %v3668 = vadd.f32 0.0, %v3667
    %3669 = vmatmul.bf16.gmra.mxu0 %v2987
    %v3670 = vpop.f32.mrf.mxu0
    %v3671 = vadd.f32 0.0, %v3670
    %v3672 = vpop.f32.mrf.mxu0
    %v3673 = vadd.f32 0.0, %v3672
    %3674 = vmatmul.bf16.gmra.mxu0 %v2991
    %v3675 = vpop.f32.mrf.mxu0
    %v3676 = vadd.f32 0.0, %v3675
    %v3677 = vpop.f32.mrf.mxu0
    %v3678 = vadd.f32 0.0, %v3677
    %3679 = vdwg.mxu0
    %3680 = vmatpush.bf16.msra.mxu0 %v3455
    %3681 = vmatpush.bf16.msra.mxu0 %v3451
    %3682 = vmatpush.bf16.msra.mxu0 %v3447
    %3683 = vmatpush.bf16.msra.mxu0 %v3443
    %3684 = vmatpush.bf16.msra.mxu0 %v3439
    %3685 = vmatpush.bf16.msra.mxu0 %v3435
    %3686 = vmatpush.bf16.msra.mxu0 %v3431
    %3687 = vmatpush.bf16.msra.mxu0 %v3427
    %3688 = vmatmul.bf16.gmra.mxu0 %v2980
    %v3689 = vpop.f32.mrf.mxu0
    %v3690 = vadd.f32 %v3661, %v3689
    %v3691 = vpop.f32.mrf.mxu0
    %v3692 = vadd.f32 %v3663, %v3691
    %3693 = vmatmul.bf16.gmra.mxu0 %v2984
    %v3694 = vpop.f32.mrf.mxu0
    %v3695 = vadd.f32 %v3666, %v3694
    %v3696 = vpop.f32.mrf.mxu0
    %v3697 = vadd.f32 %v3668, %v3696
    %3698 = vmatmul.bf16.gmra.mxu0 %v2988
    %v3699 = vpop.f32.mrf.mxu0
    %v3700 = vadd.f32 %v3671, %v3699
    %v3701 = vpop.f32.mrf.mxu0
    %v3702 = vadd.f32 %v3673, %v3701
    %3703 = vmatmul.bf16.gmra.mxu0 %v2992
    %v3704 = vpop.f32.mrf.mxu0
    %v3705 = vadd.f32 %v3676, %v3704
    %v3706 = vpop.f32.mrf.mxu0
    %v3707 = vadd.f32 %v3678, %v3706
    %3708 = vdwg.mxu0
    %3709 = vmatpush.bf16.msra.mxu0 %v3487
    %3710 = vmatpush.bf16.msra.mxu0 %v3483
    %3711 = vmatpush.bf16.msra.mxu0 %v3479
    %3712 = vmatpush.bf16.msra.mxu0 %v3475
    %3713 = vmatpush.bf16.msra.mxu0 %v3471
    %3714 = vmatpush.bf16.msra.mxu0 %v3467
    %3715 = vmatpush.bf16.msra.mxu0 %v3463
    %3716 = vmatpush.bf16.msra.mxu0 %v3459
    %3717 = vmatmul.bf16.gmra.mxu0 %v2981
    %v3718 = vpop.f32.mrf.mxu0
    %v3719 = vadd.f32 %v3690, %v3718
    %v3720 = vpop.f32.mrf.mxu0
    %v3721 = vadd.f32 %v3692, %v3720
    %3722 = vmatmul.bf16.gmra.mxu0 %v2985
    %v3723 = vpop.f32.mrf.mxu0
    %v3724 = vadd.f32 %v3695, %v3723
    %v3725 = vpop.f32.mrf.mxu0
    %v3726 = vadd.f32 %v3697, %v3725
    %3727 = vmatmul.bf16.gmra.mxu0 %v2989
    %v3728 = vpop.f32.mrf.mxu0
    %v3729 = vadd.f32 %v3700, %v3728
    %v3730 = vpop.f32.mrf.mxu0
    %v3731 = vadd.f32 %v3702, %v3730
    %3732 = vmatmul.bf16.gmra.mxu0 %v2993
    %v3733 = vpop.f32.mrf.mxu0
    %v3734 = vadd.f32 %v3705, %v3733
    %v3735 = vpop.f32.mrf.mxu0
    %v3736 = vadd.f32 %v3707, %v3735
    %3737 = vdwg.mxu0
    %3738 = vmatpush.bf16.msra.mxu0 %v3519
    %3739 = vmatpush.bf16.msra.mxu0 %v3515
    %3740 = vmatpush.bf16.msra.mxu0 %v3511
    %3741 = vmatpush.bf16.msra.mxu0 %v3507
    %3742 = vmatpush.bf16.msra.mxu0 %v3503
    %3743 = vmatpush.bf16.msra.mxu0 %v3499
    %3744 = vmatpush.bf16.msra.mxu0 %v3495
    %3745 = vmatpush.bf16.msra.mxu0 %v3491
    %3746 = vmatmul.bf16.gmra.mxu0 %v2982
    %v3747 = vpop.f32.mrf.mxu0
    %v3748 = vadd.f32 %v3719, %v3747
    %v3749 = vpop.f32.mrf.mxu0
    %v3750 = vadd.f32 %v3721, %v3749
    %3751 = vmatmul.bf16.gmra.mxu0 %v2986
    %v3752 = vpop.f32.mrf.mxu0
    %v3753 = vadd.f32 %v3724, %v3752
    %v3754 = vpop.f32.mrf.mxu0
    %v3755 = vadd.f32 %v3726, %v3754
    %3756 = vmatmul.bf16.gmra.mxu0 %v2990
    %v3757 = vpop.f32.mrf.mxu0
    %v3758 = vadd.f32 %v3729, %v3757
    %v3759 = vpop.f32.mrf.mxu0
    %v3760 = vadd.f32 %v3731, %v3759
    %3761 = vmatmul.bf16.gmra.mxu0 %v2994
    %v3762 = vpop.f32.mrf.mxu0
    %v3763 = vadd.f32 %v3734, %v3762
    %v3764 = vpop.f32.mrf.mxu0
    %v3765 = vadd.f32 %v3736, %v3764
    %3766 = vdwg.mxu0
    %3767 = vmatpush.bf16.msra.mxu0 %v3424
    %3768 = vmatpush.bf16.msra.mxu0 %v3420
    %3769 = vmatpush.bf16.msra.mxu0 %v3416
    %3770 = vmatpush.bf16.msra.mxu0 %v3412
    %3771 = vmatpush.bf16.msra.mxu0 %v3408
    %3772 = vmatpush.bf16.msra.mxu0 %v3404
    %3773 = vmatpush.bf16.msra.mxu0 %v3400
    %3774 = vmatpush.bf16.msra.mxu0 %v3396
    %3775 = vmatmul.bf16.gmra.mxu0 %v2979
    %v3776 = vpop.f32.mrf.mxu0
    %v3777 = vadd.f32 0.0, %v3776
    %v3778 = vpop.f32.mrf.mxu0
    %v3779 = vadd.f32 0.0, %v3778
    %3780 = vmatmul.bf16.gmra.mxu0 %v2983
    %v3781 = vpop.f32.mrf.mxu0
    %v3782 = vadd.f32 0.0, %v3781
    %v3783 = vpop.f32.mrf.mxu0
    %v3784 = vadd.f32 0.0, %v3783
    %3785 = vmatmul.bf16.gmra.mxu0 %v2987
    %v3786 = vpop.f32.mrf.mxu0
    %v3787 = vadd.f32 0.0, %v3786
    %v3788 = vpop.f32.mrf.mxu0
    %v3789 = vadd.f32 0.0, %v3788
    %3790 = vmatmul.bf16.gmra.mxu0 %v2991
    %v3791 = vpop.f32.mrf.mxu0
    %v3792 = vadd.f32 0.0, %v3791
    %v3793 = vpop.f32.mrf.mxu0
    %v3794 = vadd.f32 0.0, %v3793
    %3795 = vdwg.mxu0
    %3796 = vmatpush.bf16.msra.mxu0 %v3456
    %3797 = vmatpush.bf16.msra.mxu0 %v3452
    %3798 = vmatpush.bf16.msra.mxu0 %v3448
    %3799 = vmatpush.bf16.msra.mxu0 %v3444
    %3800 = vmatpush.bf16.msra.mxu0 %v3440
    %3801 = vmatpush.bf16.msra.mxu0 %v3436
    %3802 = vmatpush.bf16.msra.mxu0 %v3432
    %3803 = vmatpush.bf16.msra.mxu0 %v3428
    %3804 = vmatmul.bf16.gmra.mxu0 %v2980
    %v3805 = vpop.f32.mrf.mxu0
    %v3806 = vadd.f32 %v3777, %v3805
    %v3807 = vpop.f32.mrf.mxu0
    %v3808 = vadd.f32 %v3779, %v3807
    %3809 = vmatmul.bf16.gmra.mxu0 %v2984
    %v3810 = vpop.f32.mrf.mxu0
    %v3811 = vadd.f32 %v3782, %v3810
    %v3812 = vpop.f32.mrf.mxu0
    %v3813 = vadd.f32 %v3784, %v3812
    %3814 = vmatmul.bf16.gmra.mxu0 %v2988
    %v3815 = vpop.f32.mrf.mxu0
    %v3816 = vadd.f32 %v3787, %v3815
    %v3817 = vpop.f32.mrf.mxu0
    %v3818 = vadd.f32 %v3789, %v3817
    %3819 = vmatmul.bf16.gmra.mxu0 %v2992
    %v3820 = vpop.f32.mrf.mxu0
    %v3821 = vadd.f32 %v3792, %v3820
    %v3822 = vpop.f32.mrf.mxu0
    %v3823 = vadd.f32 %v3794, %v3822
    %3824 = vdwg.mxu0
    %3825 = vmatpush.bf16.msra.mxu0 %v3488
    %3826 = vmatpush.bf16.msra.mxu0 %v3484
    %3827 = vmatpush.bf16.msra.mxu0 %v3480
    %3828 = vmatpush.bf16.msra.mxu0 %v3476
    %3829 = vmatpush.bf16.msra.mxu0 %v3472
    %3830 = vmatpush.bf16.msra.mxu0 %v3468
    %3831 = vmatpush.bf16.msra.mxu0 %v3464
    %3832 = vmatpush.bf16.msra.mxu0 %v3460
    %3833 = vmatmul.bf16.gmra.mxu0 %v2981
    %v3834 = vpop.f32.mrf.mxu0
    %v3835 = vadd.f32 %v3806, %v3834
    %v3836 = vpop.f32.mrf.mxu0
    %v3837 = vadd.f32 %v3808, %v3836
    %3838 = vmatmul.bf16.gmra.mxu0 %v2985
    %v3839 = vpop.f32.mrf.mxu0
    %v3840 = vadd.f32 %v3811, %v3839
    %v3841 = vpop.f32.mrf.mxu0
    %v3842 = vadd.f32 %v3813, %v3841
    %3843 = vmatmul.bf16.gmra.mxu0 %v2989
    %v3844 = vpop.f32.mrf.mxu0
    %v3845 = vadd.f32 %v3816, %v3844
    %v3846 = vpop.f32.mrf.mxu0
    %v3847 = vadd.f32 %v3818, %v3846
    %3848 = vmatmul.bf16.gmra.mxu0 %v2993
    %v3849 = vpop.f32.mrf.mxu0
    %v3850 = vadd.f32 %v3821, %v3849
    %v3851 = vpop.f32.mrf.mxu0
    %v3852 = vadd.f32 %v3823, %v3851
    %3853 = vdwg.mxu0
    %3854 = vmatpush.bf16.msra.mxu0 %v3520
    %3855 = vmatpush.bf16.msra.mxu0 %v3516
    %3856 = vmatpush.bf16.msra.mxu0 %v3512
    %3857 = vmatpush.bf16.msra.mxu0 %v3508
    %3858 = vmatpush.bf16.msra.mxu0 %v3504
    %3859 = vmatpush.bf16.msra.mxu0 %v3500
    %3860 = vmatpush.bf16.msra.mxu0 %v3496
    %3861 = vmatpush.bf16.msra.mxu0 %v3492
    %3862 = vmatmul.bf16.gmra.mxu0 %v2982
    %v3863 = vpop.f32.mrf.mxu0
    %v3864 = vadd.f32 %v3835, %v3863
    %v3865 = vpop.f32.mrf.mxu0
    %v3866 = vadd.f32 %v3837, %v3865
    %3867 = vmatmul.bf16.gmra.mxu0 %v2986
    %v3868 = vpop.f32.mrf.mxu0
    %v3869 = vadd.f32 %v3840, %v3868
    %v3870 = vpop.f32.mrf.mxu0
    %v3871 = vadd.f32 %v3842, %v3870
    %3872 = vmatmul.bf16.gmra.mxu0 %v2990
    %v3873 = vpop.f32.mrf.mxu0
    %v3874 = vadd.f32 %v3845, %v3873
    %v3875 = vpop.f32.mrf.mxu0
    %v3876 = vadd.f32 %v3847, %v3875
    %3877 = vmatmul.bf16.gmra.mxu0 %v2994
    %v3878 = vpop.f32.mrf.mxu0
    %v3879 = vadd.f32 %v3850, %v3878
    %v3880 = vpop.f32.mrf.mxu0
    %v3881 = vadd.f32 %v3852, %v3880
    %3882 = vdwg.mxu0
    %3883 = vmatpush.bf16.msra.mxu0 %v3425
    %3884 = vmatpush.bf16.msra.mxu0 %v3421
    %3885 = vmatpush.bf16.msra.mxu0 %v3417
    %3886 = vmatpush.bf16.msra.mxu0 %v3413
    %3887 = vmatpush.bf16.msra.mxu0 %v3409
    %3888 = vmatpush.bf16.msra.mxu0 %v3405
    %3889 = vmatpush.bf16.msra.mxu0 %v3401
    %3890 = vmatpush.bf16.msra.mxu0 %v3397
    %3891 = vmatmul.bf16.gmra.mxu0 %v2979
    %v3892 = vpop.f32.mrf.mxu0
    %v3893 = vadd.f32 0.0, %v3892
    %v3894 = vpop.f32.mrf.mxu0
    %v3895 = vadd.f32 0.0, %v3894
    %3896 = vmatmul.bf16.gmra.mxu0 %v2983
    %v3897 = vpop.f32.mrf.mxu0
    %v3898 = vadd.f32 0.0, %v3897
    %v3899 = vpop.f32.mrf.mxu0
    %v3900 = vadd.f32 0.0, %v3899
    %3901 = vmatmul.bf16.gmra.mxu0 %v2987
    %v3902 = vpop.f32.mrf.mxu0
    %v3903 = vadd.f32 0.0, %v3902
    %v3904 = vpop.f32.mrf.mxu0
    %v3905 = vadd.f32 0.0, %v3904
    %3906 = vmatmul.bf16.gmra.mxu0 %v2991
    %v3907 = vpop.f32.mrf.mxu0
    %v3908 = vadd.f32 0.0, %v3907
    %v3909 = vpop.f32.mrf.mxu0
    %v3910 = vadd.f32 0.0, %v3909
    %3911 = vdwg.mxu0
    %3912 = vmatpush.bf16.msra.mxu0 %v3457
    %3913 = vmatpush.bf16.msra.mxu0 %v3453
    %3914 = vmatpush.bf16.msra.mxu0 %v3449
    %3915 = vmatpush.bf16.msra.mxu0 %v3445
    %3916 = vmatpush.bf16.msra.mxu0 %v3441
    %3917 = vmatpush.bf16.msra.mxu0 %v3437
    %3918 = vmatpush.bf16.msra.mxu0 %v3433
    %3919 = vmatpush.bf16.msra.mxu0 %v3429
    %3920 = vmatmul.bf16.gmra.mxu0 %v2980
    %v3921 = vpop.f32.mrf.mxu0
    %v3922 = vadd.f32 %v3893, %v3921
    %v3923 = vpop.f32.mrf.mxu0
    %v3924 = vadd.f32 %v3895, %v3923
    %3925 = vmatmul.bf16.gmra.mxu0 %v2984
    %v3926 = vpop.f32.mrf.mxu0
    %v3927 = vadd.f32 %v3898, %v3926
    %v3928 = vpop.f32.mrf.mxu0
    %v3929 = vadd.f32 %v3900, %v3928
    %3930 = vmatmul.bf16.gmra.mxu0 %v2988
    %v3931 = vpop.f32.mrf.mxu0
    %v3932 = vadd.f32 %v3903, %v3931
    %v3933 = vpop.f32.mrf.mxu0
    %v3934 = vadd.f32 %v3905, %v3933
    %3935 = vmatmul.bf16.gmra.mxu0 %v2992
    %v3936 = vpop.f32.mrf.mxu0
    %v3937 = vadd.f32 %v3908, %v3936
    %v3938 = vpop.f32.mrf.mxu0
    %v3939 = vadd.f32 %v3910, %v3938
    %3940 = vdwg.mxu0
    %3941 = vmatpush.bf16.msra.mxu0 %v3489
    %3942 = vmatpush.bf16.msra.mxu0 %v3485
    %3943 = vmatpush.bf16.msra.mxu0 %v3481
    %3944 = vmatpush.bf16.msra.mxu0 %v3477
    %3945 = vmatpush.bf16.msra.mxu0 %v3473
    %3946 = vmatpush.bf16.msra.mxu0 %v3469
    %3947 = vmatpush.bf16.msra.mxu0 %v3465
    %3948 = vmatpush.bf16.msra.mxu0 %v3461
    %3949 = vmatmul.bf16.gmra.mxu0 %v2981
    %v3950 = vpop.f32.mrf.mxu0
    %v3951 = vadd.f32 %v3922, %v3950
    %v3952 = vpop.f32.mrf.mxu0
    %v3953 = vadd.f32 %v3924, %v3952
    %3954 = vmatmul.bf16.gmra.mxu0 %v2985
    %v3955 = vpop.f32.mrf.mxu0
    %v3956 = vadd.f32 %v3927, %v3955
    %v3957 = vpop.f32.mrf.mxu0
    %v3958 = vadd.f32 %v3929, %v3957
    %3959 = vmatmul.bf16.gmra.mxu0 %v2989
    %v3960 = vpop.f32.mrf.mxu0
    %v3961 = vadd.f32 %v3932, %v3960
    %v3962 = vpop.f32.mrf.mxu0
    %v3963 = vadd.f32 %v3934, %v3962
    %3964 = vmatmul.bf16.gmra.mxu0 %v2993
    %v3965 = vpop.f32.mrf.mxu0
    %v3966 = vadd.f32 %v3937, %v3965
    %v3967 = vpop.f32.mrf.mxu0
    %v3968 = vadd.f32 %v3939, %v3967
    %3969 = vdwg.mxu0
    %3970 = vmatpush.bf16.msra.mxu0 %v3521
    %3971 = vmatpush.bf16.msra.mxu0 %v3517
    %3972 = vmatpush.bf16.msra.mxu0 %v3513
    %3973 = vmatpush.bf16.msra.mxu0 %v3509
    %3974 = vmatpush.bf16.msra.mxu0 %v3505
    %3975 = vmatpush.bf16.msra.mxu0 %v3501
    %3976 = vmatpush.bf16.msra.mxu0 %v3497
    %3977 = vmatpush.bf16.msra.mxu0 %v3493
    %3978 = vmatmul.bf16.gmra.mxu0 %v2982
    %v3979 = vpop.f32.mrf.mxu0
    %v3980 = vadd.f32 %v3951, %v3979
    %v3981 = vpop.f32.mrf.mxu0
    %v3982 = vadd.f32 %v3953, %v3981
    %3983 = vmatmul.bf16.gmra.mxu0 %v2986
    %v3984 = vpop.f32.mrf.mxu0
    %v3985 = vadd.f32 %v3956, %v3984
    %v3986 = vpop.f32.mrf.mxu0
    %v3987 = vadd.f32 %v3958, %v3986
    %3988 = vmatmul.bf16.gmra.mxu0 %v2990
    %v3989 = vpop.f32.mrf.mxu0
    %v3990 = vadd.f32 %v3961, %v3989
    %v3991 = vpop.f32.mrf.mxu0
    %v3992 = vadd.f32 %v3963, %v3991
    %3993 = vmatmul.bf16.gmra.mxu0 %v2994
    %v3994 = vpop.f32.mrf.mxu0
    %v3995 = vadd.f32 %v3966, %v3994
    %v3996 = vpop.f32.mrf.mxu0
    %v3997 = vadd.f32 %v3968, %v3996
    %3998 = vdwg.mxu0
    %3999 = vmatpush.bf16.msra.mxu0 %v3426
    %4000 = vmatpush.bf16.msra.mxu0 %v3422
    %4001 = vmatpush.bf16.msra.mxu0 %v3418
    %4002 = vmatpush.bf16.msra.mxu0 %v3414
    %4003 = vmatpush.bf16.msra.mxu0 %v3410
    %4004 = vmatpush.bf16.msra.mxu0 %v3406
    %4005 = vmatpush.bf16.msra.mxu0 %v3402
    %4006 = vmatpush.bf16.msra.mxu0 %v3398
    %4007 = vmatmul.bf16.gmra.mxu0 %v2979
    %v4008 = vpop.f32.mrf.mxu0
    %v4009 = vadd.f32 0.0, %v4008
    %v4010 = vpop.f32.mrf.mxu0
    %v4011 = vadd.f32 0.0, %v4010
    %4012 = vmatmul.bf16.gmra.mxu0 %v2983
    %v4013 = vpop.f32.mrf.mxu0
    %v4014 = vadd.f32 0.0, %v4013
    %v4015 = vpop.f32.mrf.mxu0
    %v4016 = vadd.f32 0.0, %v4015
    %4017 = vmatmul.bf16.gmra.mxu0 %v2987
    %v4018 = vpop.f32.mrf.mxu0
    %v4019 = vadd.f32 0.0, %v4018
    %v4020 = vpop.f32.mrf.mxu0
    %v4021 = vadd.f32 0.0, %v4020
    %4022 = vmatmul.bf16.gmra.mxu0 %v2991
    %v4023 = vpop.f32.mrf.mxu0
    %v4024 = vadd.f32 0.0, %v4023
    %v4025 = vpop.f32.mrf.mxu0
    %v4026 = vadd.f32 0.0, %v4025
    %4027 = vdwg.mxu0
    %4028 = vmatpush.bf16.msra.mxu0 %v3458
    %4029 = vmatpush.bf16.msra.mxu0 %v3454
    %4030 = vmatpush.bf16.msra.mxu0 %v3450
    %4031 = vmatpush.bf16.msra.mxu0 %v3446
    %4032 = vmatpush.bf16.msra.mxu0 %v3442
    %4033 = vmatpush.bf16.msra.mxu0 %v3438
    %4034 = vmatpush.bf16.msra.mxu0 %v3434
    %4035 = vmatpush.bf16.msra.mxu0 %v3430
    %4036 = vmatmul.bf16.gmra.mxu0 %v2980
    %v4037 = vpop.f32.mrf.mxu0
    %v4038 = vadd.f32 %v4009, %v4037
    %v4039 = vpop.f32.mrf.mxu0
    %v4040 = vadd.f32 %v4011, %v4039
    %4041 = vmatmul.bf16.gmra.mxu0 %v2984
    %v4042 = vpop.f32.mrf.mxu0
    %v4043 = vadd.f32 %v4014, %v4042
    %v4044 = vpop.f32.mrf.mxu0
    %v4045 = vadd.f32 %v4016, %v4044
    %4046 = vmatmul.bf16.gmra.mxu0 %v2988
    %v4047 = vpop.f32.mrf.mxu0
    %v4048 = vadd.f32 %v4019, %v4047
    %v4049 = vpop.f32.mrf.mxu0
    %v4050 = vadd.f32 %v4021, %v4049
    %4051 = vmatmul.bf16.gmra.mxu0 %v2992
    %v4052 = vpop.f32.mrf.mxu0
    %v4053 = vadd.f32 %v4024, %v4052
    %v4054 = vpop.f32.mrf.mxu0
    %v4055 = vadd.f32 %v4026, %v4054
    %4056 = vdwg.mxu0
    %4057 = vmatpush.bf16.msra.mxu0 %v3490
    %4058 = vmatpush.bf16.msra.mxu0 %v3486
    %4059 = vmatpush.bf16.msra.mxu0 %v3482
    %4060 = vmatpush.bf16.msra.mxu0 %v3478
    %4061 = vmatpush.bf16.msra.mxu0 %v3474
    %4062 = vmatpush.bf16.msra.mxu0 %v3470
    %4063 = vmatpush.bf16.msra.mxu0 %v3466
    %4064 = vmatpush.bf16.msra.mxu0 %v3462
    %4065 = vmatmul.bf16.gmra.mxu0 %v2981
    %v4066 = vpop.f32.mrf.mxu0
    %v4067 = vadd.f32 %v4038, %v4066
    %v4068 = vpop.f32.mrf.mxu0
    %v4069 = vadd.f32 %v4040, %v4068
    %4070 = vmatmul.bf16.gmra.mxu0 %v2985
    %v4071 = vpop.f32.mrf.mxu0
    %v4072 = vadd.f32 %v4043, %v4071
    %v4073 = vpop.f32.mrf.mxu0
    %v4074 = vadd.f32 %v4045, %v4073
    %4075 = vmatmul.bf16.gmra.mxu0 %v2989
    %v4076 = vpop.f32.mrf.mxu0
    %v4077 = vadd.f32 %v4048, %v4076
    %v4078 = vpop.f32.mrf.mxu0
    %v4079 = vadd.f32 %v4050, %v4078
    %4080 = vmatmul.bf16.gmra.mxu0 %v2993
    %v4081 = vpop.f32.mrf.mxu0
    %v4082 = vadd.f32 %v4053, %v4081
    %v4083 = vpop.f32.mrf.mxu0
    %v4084 = vadd.f32 %v4055, %v4083
    %4085 = vdwg.mxu0
    %4086 = vmatpush.bf16.msra.mxu0 %v3522
    %4087 = vmatpush.bf16.msra.mxu0 %v3518
    %4088 = vmatpush.bf16.msra.mxu0 %v3514
    %4089 = vmatpush.bf16.msra.mxu0 %v3510
    %4090 = vmatpush.bf16.msra.mxu0 %v3506
    %4091 = vmatpush.bf16.msra.mxu0 %v3502
    %4092 = vmatpush.bf16.msra.mxu0 %v3498
    %4093 = vmatpush.bf16.msra.mxu0 %v3494
    %4094 = vmatmul.bf16.gmra.mxu0 %v2982
    %v4095 = vpop.f32.mrf.mxu0
    %v4096 = vadd.f32 %v4067, %v4095
    %v4097 = vpop.f32.mrf.mxu0
    %v4098 = vadd.f32 %v4069, %v4097
    %4099 = vmatmul.bf16.gmra.mxu0 %v2986
    %v4100 = vpop.f32.mrf.mxu0
    %v4101 = vadd.f32 %v4072, %v4100
    %v4102 = vpop.f32.mrf.mxu0
    %v4103 = vadd.f32 %v4074, %v4102
    %4104 = vmatmul.bf16.gmra.mxu0 %v2990
    %v4105 = vpop.f32.mrf.mxu0
    %v4106 = vadd.f32 %v4077, %v4105
    %v4107 = vpop.f32.mrf.mxu0
    %v4108 = vadd.f32 %v4079, %v4107
    %4109 = vmatmul.bf16.gmra.mxu0 %v2994
    %v4110 = vpop.f32.mrf.mxu0
    %v4111 = vadd.f32 %v4082, %v4110
    %v4112 = vpop.f32.mrf.mxu0
    %v4113 = vadd.f32 %v4084, %v4112
    %4114 = vdwg.mxu0
    %v4131 = vunpack.c.l.b16 %v2642
    %v4132 = vunpack.c.h.b16 %v2642
    %v4133 = vunpack.c.l.b16 %v2643
    %v4134 = vunpack.c.h.b16 %v2643
    %v4135 = vunpack.c.l.b16 %v2644
    %v4136 = vunpack.c.h.b16 %v2644
    %v4137 = vunpack.c.l.b16 %v2645
    %v4138 = vunpack.c.h.b16 %v2645
    %v4139 = vunpack.c.l.b16 %v2646
    %v4140 = vunpack.c.h.b16 %v2646
    %v4141 = vunpack.c.l.b16 %v2647
    %v4142 = vunpack.c.h.b16 %v2647
    %v4143 = vunpack.c.l.b16 %v2648
    %v4144 = vunpack.c.h.b16 %v2648
    %v4145 = vunpack.c.l.b16 %v2649
    %v4146 = vunpack.c.h.b16 %v2649
    %v4147 = vunpack.c.l.b16 %v2650
    %v4148 = vunpack.c.h.b16 %v2650
    %v4149 = vunpack.c.l.b16 %v2651
    %v4150 = vunpack.c.h.b16 %v2651
    %v4151 = vunpack.c.l.b16 %v2652
    %v4152 = vunpack.c.h.b16 %v2652
    %v4153 = vunpack.c.l.b16 %v2653
    %v4154 = vunpack.c.h.b16 %v2653
    %v4155 = vunpack.c.l.b16 %v2654
    %v4156 = vunpack.c.h.b16 %v2654
    %v4157 = vunpack.c.l.b16 %v2655
    %v4158 = vunpack.c.h.b16 %v2655
    %v4159 = vunpack.c.l.b16 %v2656
    %v4160 = vunpack.c.h.b16 %v2656
    %v4161 = vunpack.c.l.b16 %v2657
    %v4162 = vunpack.c.h.b16 %v2657
    %v4163 = vpack.c.b16 %v4135, %v4131
    %v4164 = vpack.c.b16 %v4136, %v4132
    %v4165 = vpack.c.b16 %v4137, %v4133
    %v4166 = vpack.c.b16 %v4138, %v4134
    %v4167 = vpack.c.b16 %v4143, %v4139
    %v4168 = vpack.c.b16 %v4144, %v4140
    %v4169 = vpack.c.b16 %v4145, %v4141
    %v4170 = vpack.c.b16 %v4146, %v4142
    %v4171 = vpack.c.b16 %v4151, %v4147
    %v4172 = vpack.c.b16 %v4152, %v4148
    %v4173 = vpack.c.b16 %v4153, %v4149
    %v4174 = vpack.c.b16 %v4154, %v4150
    %v4175 = vpack.c.b16 %v4159, %v4155
    %v4176 = vpack.c.b16 %v4160, %v4156
    %v4177 = vpack.c.b16 %v4161, %v4157
    %v4178 = vpack.c.b16 %v4162, %v4158
    %v4323 = vunpack.c.l.b16 %v2658
    %v4324 = vunpack.c.h.b16 %v2658
    %v4325 = vunpack.c.l.b16 %v2659
    %v4326 = vunpack.c.h.b16 %v2659
    %v4327 = vunpack.c.l.b16 %v2660
    %v4328 = vunpack.c.h.b16 %v2660
    %v4329 = vunpack.c.l.b16 %v2661
    %v4330 = vunpack.c.h.b16 %v2661
    %v4331 = vunpack.c.l.b16 %v2662
    %v4332 = vunpack.c.h.b16 %v2662
    %v4333 = vunpack.c.l.b16 %v2663
    %v4334 = vunpack.c.h.b16 %v2663
    %v4335 = vunpack.c.l.b16 %v2664
    %v4336 = vunpack.c.h.b16 %v2664
    %v4337 = vunpack.c.l.b16 %v2665
    %v4338 = vunpack.c.h.b16 %v2665
    %v4339 = vunpack.c.l.b16 %v2666
    %v4340 = vunpack.c.h.b16 %v2666
    %v4341 = vunpack.c.l.b16 %v2667
    %v4342 = vunpack.c.h.b16 %v2667
    %v4343 = vunpack.c.l.b16 %v2668
    %v4344 = vunpack.c.h.b16 %v2668
    %v4345 = vunpack.c.l.b16 %v2669
    %v4346 = vunpack.c.h.b16 %v2669
    %v4347 = vunpack.c.l.b16 %v2670
    %v4348 = vunpack.c.h.b16 %v2670
    %v4349 = vunpack.c.l.b16 %v2671
    %v4350 = vunpack.c.h.b16 %v2671
    %v4351 = vunpack.c.l.b16 %v2672
    %v4352 = vunpack.c.h.b16 %v2672
    %v4353 = vunpack.c.l.b16 %v2673
    %v4354 = vunpack.c.h.b16 %v2673
    %v4355 = vunpack.c.l.b16 %v2674
    %v4356 = vunpack.c.h.b16 %v2674
    %v4357 = vunpack.c.l.b16 %v2675
    %v4358 = vunpack.c.h.b16 %v2675
    %v4359 = vunpack.c.l.b16 %v2676
    %v4360 = vunpack.c.h.b16 %v2676
    %v4361 = vunpack.c.l.b16 %v2677
    %v4362 = vunpack.c.h.b16 %v2677
    %v4363 = vunpack.c.l.b16 %v2678
    %v4364 = vunpack.c.h.b16 %v2678
    %v4365 = vunpack.c.l.b16 %v2679
    %v4366 = vunpack.c.h.b16 %v2679
    %v4367 = vunpack.c.l.b16 %v2680
    %v4368 = vunpack.c.h.b16 %v2680
    %v4369 = vunpack.c.l.b16 %v2681
    %v4370 = vunpack.c.h.b16 %v2681
    %v4371 = vunpack.c.l.b16 %v2682
    %v4372 = vunpack.c.h.b16 %v2682
    %v4373 = vunpack.c.l.b16 %v2683
    %v4374 = vunpack.c.h.b16 %v2683
    %v4375 = vunpack.c.l.b16 %v2684
    %v4376 = vunpack.c.h.b16 %v2684
    %v4377 = vunpack.c.l.b16 %v2685
    %v4378 = vunpack.c.h.b16 %v2685
    %v4379 = vunpack.c.l.b16 %v2686
    %v4380 = vunpack.c.h.b16 %v2686
    %v4381 = vunpack.c.l.b16 %v2687
    %v4382 = vunpack.c.h.b16 %v2687
    %v4383 = vunpack.c.l.b16 %v2688
    %v4384 = vunpack.c.h.b16 %v2688
    %v4385 = vunpack.c.l.b16 %v2689
    %v4386 = vunpack.c.h.b16 %v2689
    %v4387 = vunpack.c.l.b16 %v2690
    %v4388 = vunpack.c.h.b16 %v2690
    %v4389 = vunpack.c.l.b16 %v2691
    %v4390 = vunpack.c.h.b16 %v2691
    %v4391 = vunpack.c.l.b16 %v2692
    %v4392 = vunpack.c.h.b16 %v2692
    %v4393 = vunpack.c.l.b16 %v2693
    %v4394 = vunpack.c.h.b16 %v2693
    %v4395 = vunpack.c.l.b16 %v2694
    %v4396 = vunpack.c.h.b16 %v2694
    %v4397 = vunpack.c.l.b16 %v2695
    %v4398 = vunpack.c.h.b16 %v2695
    %v4399 = vunpack.c.l.b16 %v2696
    %v4400 = vunpack.c.h.b16 %v2696
    %v4401 = vunpack.c.l.b16 %v2697
    %v4402 = vunpack.c.h.b16 %v2697
    %v4403 = vunpack.c.l.b16 %v2698
    %v4404 = vunpack.c.h.b16 %v2698
    %v4405 = vunpack.c.l.b16 %v2699
    %v4406 = vunpack.c.h.b16 %v2699
    %v4407 = vunpack.c.l.b16 %v2700
    %v4408 = vunpack.c.h.b16 %v2700
    %v4409 = vunpack.c.l.b16 %v2701
    %v4410 = vunpack.c.h.b16 %v2701
    %v4411 = vunpack.c.l.b16 %v2702
    %v4412 = vunpack.c.h.b16 %v2702
    %v4413 = vunpack.c.l.b16 %v2703
    %v4414 = vunpack.c.h.b16 %v2703
    %v4415 = vunpack.c.l.b16 %v2704
    %v4416 = vunpack.c.h.b16 %v2704
    %v4417 = vunpack.c.l.b16 %v2705
    %v4418 = vunpack.c.h.b16 %v2705
    %v4419 = vunpack.c.l.b16 %v2706
    %v4420 = vunpack.c.h.b16 %v2706
    %v4421 = vunpack.c.l.b16 %v2707
    %v4422 = vunpack.c.h.b16 %v2707
    %v4423 = vunpack.c.l.b16 %v2708
    %v4424 = vunpack.c.h.b16 %v2708
    %v4425 = vunpack.c.l.b16 %v2709
    %v4426 = vunpack.c.h.b16 %v2709
    %v4427 = vunpack.c.l.b16 %v2710
    %v4428 = vunpack.c.h.b16 %v2710
    %v4429 = vunpack.c.l.b16 %v2711
    %v4430 = vunpack.c.h.b16 %v2711
    %v4431 = vunpack.c.l.b16 %v2712
    %v4432 = vunpack.c.h.b16 %v2712
    %v4433 = vunpack.c.l.b16 %v2713
    %v4434 = vunpack.c.h.b16 %v2713
    %v4435 = vunpack.c.l.b16 %v2714
    %v4436 = vunpack.c.h.b16 %v2714
    %v4437 = vunpack.c.l.b16 %v2715
    %v4438 = vunpack.c.h.b16 %v2715
    %v4439 = vunpack.c.l.b16 %v2716
    %v4440 = vunpack.c.h.b16 %v2716
    %v4441 = vunpack.c.l.b16 %v2717
    %v4442 = vunpack.c.h.b16 %v2717
    %v4443 = vunpack.c.l.b16 %v2718
    %v4444 = vunpack.c.h.b16 %v2718
    %v4445 = vunpack.c.l.b16 %v2719
    %v4446 = vunpack.c.h.b16 %v2719
    %v4447 = vunpack.c.l.b16 %v2720
    %v4448 = vunpack.c.h.b16 %v2720
    %v4449 = vunpack.c.l.b16 %v2721
    %v4450 = vunpack.c.h.b16 %v2721
    %v4451 = vunpack.c.l.b16 %v2722
    %v4452 = vunpack.c.h.b16 %v2722
    %v4453 = vunpack.c.l.b16 %v2723
    %v4454 = vunpack.c.h.b16 %v2723
    %v4455 = vunpack.c.l.b16 %v2724
    %v4456 = vunpack.c.h.b16 %v2724
    %v4457 = vunpack.c.l.b16 %v2725
    %v4458 = vunpack.c.h.b16 %v2725
    %v4459 = vunpack.c.l.b16 %v2726
    %v4460 = vunpack.c.h.b16 %v2726
    %v4461 = vunpack.c.l.b16 %v2727
    %v4462 = vunpack.c.h.b16 %v2727
    %v4463 = vunpack.c.l.b16 %v2728
    %v4464 = vunpack.c.h.b16 %v2728
    %v4465 = vunpack.c.l.b16 %v2729
    %v4466 = vunpack.c.h.b16 %v2729
    %v4467 = vunpack.c.l.b16 %v2730
    %v4468 = vunpack.c.h.b16 %v2730
    %v4469 = vunpack.c.l.b16 %v2731
    %v4470 = vunpack.c.h.b16 %v2731
    %v4471 = vunpack.c.l.b16 %v2732
    %v4472 = vunpack.c.h.b16 %v2732
    %v4473 = vunpack.c.l.b16 %v2733
    %v4474 = vunpack.c.h.b16 %v2733
    %v4475 = vunpack.c.l.b16 %v2734
    %v4476 = vunpack.c.h.b16 %v2734
    %v4477 = vunpack.c.l.b16 %v2735
    %v4478 = vunpack.c.h.b16 %v2735
    %v4479 = vunpack.c.l.b16 %v2736
    %v4480 = vunpack.c.h.b16 %v2736
    %v4481 = vunpack.c.l.b16 %v2737
    %v4482 = vunpack.c.h.b16 %v2737
    %v4483 = vunpack.c.l.b16 %v2738
    %v4484 = vunpack.c.h.b16 %v2738
    %v4485 = vunpack.c.l.b16 %v2739
    %v4486 = vunpack.c.h.b16 %v2739
    %v4487 = vunpack.c.l.b16 %v2740
    %v4488 = vunpack.c.h.b16 %v2740
    %v4489 = vunpack.c.l.b16 %v2741
    %v4490 = vunpack.c.h.b16 %v2741
    %v4491 = vunpack.c.l.b16 %v2742
    %v4492 = vunpack.c.h.b16 %v2742
    %v4493 = vunpack.c.l.b16 %v2743
    %v4494 = vunpack.c.h.b16 %v2743
    %v4495 = vunpack.c.l.b16 %v2744
    %v4496 = vunpack.c.h.b16 %v2744
    %v4497 = vunpack.c.l.b16 %v2745
    %v4498 = vunpack.c.h.b16 %v2745
    %v4499 = vunpack.c.l.b16 %v2746
    %v4500 = vunpack.c.h.b16 %v2746
    %v4501 = vunpack.c.l.b16 %v2747
    %v4502 = vunpack.c.h.b16 %v2747
    %v4503 = vunpack.c.l.b16 %v2748
    %v4504 = vunpack.c.h.b16 %v2748
    %v4505 = vunpack.c.l.b16 %v2749
    %v4506 = vunpack.c.h.b16 %v2749
    %v4507 = vunpack.c.l.b16 %v2750
    %v4508 = vunpack.c.h.b16 %v2750
    %v4509 = vunpack.c.l.b16 %v2751
    %v4510 = vunpack.c.h.b16 %v2751
    %v4511 = vunpack.c.l.b16 %v2752
    %v4512 = vunpack.c.h.b16 %v2752
    %v4513 = vunpack.c.l.b16 %v2753
    %v4514 = vunpack.c.h.b16 %v2753
    %v4515 = vunpack.c.l.b16 %v2754
    %v4516 = vunpack.c.h.b16 %v2754
    %v4517 = vunpack.c.l.b16 %v2755
    %v4518 = vunpack.c.h.b16 %v2755
    %v4519 = vunpack.c.l.b16 %v2756
    %v4520 = vunpack.c.h.b16 %v2756
    %v4521 = vunpack.c.l.b16 %v2757
    %v4522 = vunpack.c.h.b16 %v2757
    %v4523 = vunpack.c.l.b16 %v2758
    %v4524 = vunpack.c.h.b16 %v2758
    %v4525 = vunpack.c.l.b16 %v2759
    %v4526 = vunpack.c.h.b16 %v2759
    %v4527 = vunpack.c.l.b16 %v2760
    %v4528 = vunpack.c.h.b16 %v2760
    %v4529 = vunpack.c.l.b16 %v2761
    %v4530 = vunpack.c.h.b16 %v2761
    %v4531 = vunpack.c.l.b16 %v2762
    %v4532 = vunpack.c.h.b16 %v2762
    %v4533 = vunpack.c.l.b16 %v2763
    %v4534 = vunpack.c.h.b16 %v2763
    %v4535 = vunpack.c.l.b16 %v2764
    %v4536 = vunpack.c.h.b16 %v2764
    %v4537 = vunpack.c.l.b16 %v2765
    %v4538 = vunpack.c.h.b16 %v2765
    %v4539 = vunpack.c.l.b16 %v2766
    %v4540 = vunpack.c.h.b16 %v2766
    %v4541 = vunpack.c.l.b16 %v2767
    %v4542 = vunpack.c.h.b16 %v2767
    %v4543 = vunpack.c.l.b16 %v2768
    %v4544 = vunpack.c.h.b16 %v2768
    %v4545 = vunpack.c.l.b16 %v2769
    %v4546 = vunpack.c.h.b16 %v2769
    %v4547 = vunpack.c.l.b16 %v2770
    %v4548 = vunpack.c.h.b16 %v2770
    %v4549 = vunpack.c.l.b16 %v2771
    %v4550 = vunpack.c.h.b16 %v2771
    %v4551 = vunpack.c.l.b16 %v2772
    %v4552 = vunpack.c.h.b16 %v2772
    %v4553 = vunpack.c.l.b16 %v2773
    %v4554 = vunpack.c.h.b16 %v2773
    %v4555 = vunpack.c.l.b16 %v2774
    %v4556 = vunpack.c.h.b16 %v2774
    %v4557 = vunpack.c.l.b16 %v2775
    %v4558 = vunpack.c.h.b16 %v2775
    %v4559 = vunpack.c.l.b16 %v2776
    %v4560 = vunpack.c.h.b16 %v2776
    %v4561 = vunpack.c.l.b16 %v2777
    %v4562 = vunpack.c.h.b16 %v2777
    %v4563 = vunpack.c.l.b16 %v2778
    %v4564 = vunpack.c.h.b16 %v2778
    %v4565 = vunpack.c.l.b16 %v2779
    %v4566 = vunpack.c.h.b16 %v2779
    %v4567 = vunpack.c.l.b16 %v2780
    %v4568 = vunpack.c.h.b16 %v2780
    %v4569 = vunpack.c.l.b16 %v2781
    %v4570 = vunpack.c.h.b16 %v2781
    %v4571 = vunpack.c.l.b16 %v2782
    %v4572 = vunpack.c.h.b16 %v2782
    %v4573 = vunpack.c.l.b16 %v2783
    %v4574 = vunpack.c.h.b16 %v2783
    %v4575 = vunpack.c.l.b16 %v2784
    %v4576 = vunpack.c.h.b16 %v2784
    %v4577 = vunpack.c.l.b16 %v2785
    %v4578 = vunpack.c.h.b16 %v2785
    %v4579 = vpack.c.b16 %v4327, %v4323
    %v4580 = vpack.c.b16 %v4328, %v4324
    %v4581 = vpack.c.b16 %v4329, %v4325
    %v4582 = vpack.c.b16 %v4330, %v4326
    %v4583 = vpack.c.b16 %v4335, %v4331
    %v4584 = vpack.c.b16 %v4336, %v4332
    %v4585 = vpack.c.b16 %v4337, %v4333
    %v4586 = vpack.c.b16 %v4338, %v4334
    %v4587 = vpack.c.b16 %v4343, %v4339
    %v4588 = vpack.c.b16 %v4344, %v4340
    %v4589 = vpack.c.b16 %v4345, %v4341
    %v4590 = vpack.c.b16 %v4346, %v4342
    %v4591 = vpack.c.b16 %v4351, %v4347
    %v4592 = vpack.c.b16 %v4352, %v4348
    %v4593 = vpack.c.b16 %v4353, %v4349
    %v4594 = vpack.c.b16 %v4354, %v4350
    %v4595 = vpack.c.b16 %v4359, %v4355
    %v4596 = vpack.c.b16 %v4360, %v4356
    %v4597 = vpack.c.b16 %v4361, %v4357
    %v4598 = vpack.c.b16 %v4362, %v4358
    %v4599 = vpack.c.b16 %v4367, %v4363
    %v4600 = vpack.c.b16 %v4368, %v4364
    %v4601 = vpack.c.b16 %v4369, %v4365
    %v4602 = vpack.c.b16 %v4370, %v4366
    %v4603 = vpack.c.b16 %v4375, %v4371
    %v4604 = vpack.c.b16 %v4376, %v4372
    %v4605 = vpack.c.b16 %v4377, %v4373
    %v4606 = vpack.c.b16 %v4378, %v4374
    %v4607 = vpack.c.b16 %v4383, %v4379
    %v4608 = vpack.c.b16 %v4384, %v4380
    %v4609 = vpack.c.b16 %v4385, %v4381
    %v4610 = vpack.c.b16 %v4386, %v4382
    %v4611 = vpack.c.b16 %v4391, %v4387
    %v4612 = vpack.c.b16 %v4392, %v4388
    %v4613 = vpack.c.b16 %v4393, %v4389
    %v4614 = vpack.c.b16 %v4394, %v4390
    %v4615 = vpack.c.b16 %v4399, %v4395
    %v4616 = vpack.c.b16 %v4400, %v4396
    %v4617 = vpack.c.b16 %v4401, %v4397
    %v4618 = vpack.c.b16 %v4402, %v4398
    %v4619 = vpack.c.b16 %v4407, %v4403
    %v4620 = vpack.c.b16 %v4408, %v4404
    %v4621 = vpack.c.b16 %v4409, %v4405
    %v4622 = vpack.c.b16 %v4410, %v4406
    %v4623 = vpack.c.b16 %v4415, %v4411
    %v4624 = vpack.c.b16 %v4416, %v4412
    %v4625 = vpack.c.b16 %v4417, %v4413
    %v4626 = vpack.c.b16 %v4418, %v4414
    %v4627 = vpack.c.b16 %v4423, %v4419
    %v4628 = vpack.c.b16 %v4424, %v4420
    %v4629 = vpack.c.b16 %v4425, %v4421
    %v4630 = vpack.c.b16 %v4426, %v4422
    %v4631 = vpack.c.b16 %v4431, %v4427
    %v4632 = vpack.c.b16 %v4432, %v4428
    %v4633 = vpack.c.b16 %v4433, %v4429
    %v4634 = vpack.c.b16 %v4434, %v4430
    %v4635 = vpack.c.b16 %v4439, %v4435
    %v4636 = vpack.c.b16 %v4440, %v4436
    %v4637 = vpack.c.b16 %v4441, %v4437
    %v4638 = vpack.c.b16 %v4442, %v4438
    %v4639 = vpack.c.b16 %v4447, %v4443
    %v4640 = vpack.c.b16 %v4448, %v4444
    %v4641 = vpack.c.b16 %v4449, %v4445
    %v4642 = vpack.c.b16 %v4450, %v4446
    %v4643 = vpack.c.b16 %v4455, %v4451
    %v4644 = vpack.c.b16 %v4456, %v4452
    %v4645 = vpack.c.b16 %v4457, %v4453
    %v4646 = vpack.c.b16 %v4458, %v4454
    %v4647 = vpack.c.b16 %v4463, %v4459
    %v4648 = vpack.c.b16 %v4464, %v4460
    %v4649 = vpack.c.b16 %v4465, %v4461
    %v4650 = vpack.c.b16 %v4466, %v4462
    %v4651 = vpack.c.b16 %v4471, %v4467
    %v4652 = vpack.c.b16 %v4472, %v4468
    %v4653 = vpack.c.b16 %v4473, %v4469
    %v4654 = vpack.c.b16 %v4474, %v4470
    %v4655 = vpack.c.b16 %v4479, %v4475
    %v4656 = vpack.c.b16 %v4480, %v4476
    %v4657 = vpack.c.b16 %v4481, %v4477
    %v4658 = vpack.c.b16 %v4482, %v4478
    %v4659 = vpack.c.b16 %v4487, %v4483
    %v4660 = vpack.c.b16 %v4488, %v4484
    %v4661 = vpack.c.b16 %v4489, %v4485
    %v4662 = vpack.c.b16 %v4490, %v4486
    %v4663 = vpack.c.b16 %v4495, %v4491
    %v4664 = vpack.c.b16 %v4496, %v4492
    %v4665 = vpack.c.b16 %v4497, %v4493
    %v4666 = vpack.c.b16 %v4498, %v4494
    %v4667 = vpack.c.b16 %v4503, %v4499
    %v4668 = vpack.c.b16 %v4504, %v4500
    %v4669 = vpack.c.b16 %v4505, %v4501
    %v4670 = vpack.c.b16 %v4506, %v4502
    %v4671 = vpack.c.b16 %v4511, %v4507
    %v4672 = vpack.c.b16 %v4512, %v4508
    %v4673 = vpack.c.b16 %v4513, %v4509
    %v4674 = vpack.c.b16 %v4514, %v4510
    %v4675 = vpack.c.b16 %v4519, %v4515
    %v4676 = vpack.c.b16 %v4520, %v4516
    %v4677 = vpack.c.b16 %v4521, %v4517
    %v4678 = vpack.c.b16 %v4522, %v4518
    %v4679 = vpack.c.b16 %v4527, %v4523
    %v4680 = vpack.c.b16 %v4528, %v4524
    %v4681 = vpack.c.b16 %v4529, %v4525
    %v4682 = vpack.c.b16 %v4530, %v4526
    %v4683 = vpack.c.b16 %v4535, %v4531
    %v4684 = vpack.c.b16 %v4536, %v4532
    %v4685 = vpack.c.b16 %v4537, %v4533
    %v4686 = vpack.c.b16 %v4538, %v4534
    %v4687 = vpack.c.b16 %v4543, %v4539
    %v4688 = vpack.c.b16 %v4544, %v4540
    %v4689 = vpack.c.b16 %v4545, %v4541
    %v4690 = vpack.c.b16 %v4546, %v4542
    %v4691 = vpack.c.b16 %v4551, %v4547
    %v4692 = vpack.c.b16 %v4552, %v4548
    %v4693 = vpack.c.b16 %v4553, %v4549
    %v4694 = vpack.c.b16 %v4554, %v4550
    %v4695 = vpack.c.b16 %v4559, %v4555
    %v4696 = vpack.c.b16 %v4560, %v4556
    %v4697 = vpack.c.b16 %v4561, %v4557
    %v4698 = vpack.c.b16 %v4562, %v4558
    %v4699 = vpack.c.b16 %v4567, %v4563
    %v4700 = vpack.c.b16 %v4568, %v4564
    %v4701 = vpack.c.b16 %v4569, %v4565
    %v4702 = vpack.c.b16 %v4570, %v4566
    %v4703 = vpack.c.b16 %v4575, %v4571
    %v4704 = vpack.c.b16 %v4576, %v4572
    %v4705 = vpack.c.b16 %v4577, %v4573
    %v4706 = vpack.c.b16 %v4578, %v4574
    %4835 = vmatpush.bf16.msra.mxu0 %v4607
    %4836 = vmatpush.bf16.msra.mxu0 %v4603
    %4837 = vmatpush.bf16.msra.mxu0 %v4599
    %4838 = vmatpush.bf16.msra.mxu0 %v4595
    %4839 = vmatpush.bf16.msra.mxu0 %v4591
    %4840 = vmatpush.bf16.msra.mxu0 %v4587
    %4841 = vmatpush.bf16.msra.mxu0 %v4583
    %4842 = vmatpush.bf16.msra.mxu0 %v4579
    %4843 = vmatmul.bf16.gmra.mxu0 %v4163
    %v4844 = vpop.f32.mrf.mxu0
    %v4845 = vadd.f32 %v3748, %v4844
    %v4846 = vpop.f32.mrf.mxu0
    %v4847 = vadd.f32 %v3750, %v4846
    %4848 = vmatmul.bf16.gmra.mxu0 %v4167
    %v4849 = vpop.f32.mrf.mxu0
    %v4850 = vadd.f32 %v3753, %v4849
    %v4851 = vpop.f32.mrf.mxu0
    %v4852 = vadd.f32 %v3755, %v4851
    %4853 = vmatmul.bf16.gmra.mxu0 %v4171
    %v4854 = vpop.f32.mrf.mxu0
    %v4855 = vadd.f32 %v3758, %v4854
    %v4856 = vpop.f32.mrf.mxu0
    %v4857 = vadd.f32 %v3760, %v4856
    %4858 = vmatmul.bf16.gmra.mxu0 %v4175
    %v4859 = vpop.f32.mrf.mxu0
    %v4860 = vadd.f32 %v3763, %v4859
    %v4861 = vpop.f32.mrf.mxu0
    %v4862 = vadd.f32 %v3765, %v4861
    %4863 = vdwg.mxu0
    %4864 = vmatpush.bf16.msra.mxu0 %v4639
    %4865 = vmatpush.bf16.msra.mxu0 %v4635
    %4866 = vmatpush.bf16.msra.mxu0 %v4631
    %4867 = vmatpush.bf16.msra.mxu0 %v4627
    %4868 = vmatpush.bf16.msra.mxu0 %v4623
    %4869 = vmatpush.bf16.msra.mxu0 %v4619
    %4870 = vmatpush.bf16.msra.mxu0 %v4615
    %4871 = vmatpush.bf16.msra.mxu0 %v4611
    %4872 = vmatmul.bf16.gmra.mxu0 %v4164
    %v4873 = vpop.f32.mrf.mxu0
    %v4874 = vadd.f32 %v4845, %v4873
    %v4875 = vpop.f32.mrf.mxu0
    %v4876 = vadd.f32 %v4847, %v4875
    %4877 = vmatmul.bf16.gmra.mxu0 %v4168
    %v4878 = vpop.f32.mrf.mxu0
    %v4879 = vadd.f32 %v4850, %v4878
    %v4880 = vpop.f32.mrf.mxu0
    %v4881 = vadd.f32 %v4852, %v4880
    %4882 = vmatmul.bf16.gmra.mxu0 %v4172
    %v4883 = vpop.f32.mrf.mxu0
    %v4884 = vadd.f32 %v4855, %v4883
    %v4885 = vpop.f32.mrf.mxu0
    %v4886 = vadd.f32 %v4857, %v4885
    %4887 = vmatmul.bf16.gmra.mxu0 %v4176
    %v4888 = vpop.f32.mrf.mxu0
    %v4889 = vadd.f32 %v4860, %v4888
    %v4890 = vpop.f32.mrf.mxu0
    %v4891 = vadd.f32 %v4862, %v4890
    %4892 = vdwg.mxu0
    %4893 = vmatpush.bf16.msra.mxu0 %v4671
    %4894 = vmatpush.bf16.msra.mxu0 %v4667
    %4895 = vmatpush.bf16.msra.mxu0 %v4663
    %4896 = vmatpush.bf16.msra.mxu0 %v4659
    %4897 = vmatpush.bf16.msra.mxu0 %v4655
    %4898 = vmatpush.bf16.msra.mxu0 %v4651
    %4899 = vmatpush.bf16.msra.mxu0 %v4647
    %4900 = vmatpush.bf16.msra.mxu0 %v4643
    %4901 = vmatmul.bf16.gmra.mxu0 %v4165
    %v4902 = vpop.f32.mrf.mxu0
    %v4903 = vadd.f32 %v4874, %v4902
    %v4904 = vpop.f32.mrf.mxu0
    %v4905 = vadd.f32 %v4876, %v4904
    %4906 = vmatmul.bf16.gmra.mxu0 %v4169
    %v4907 = vpop.f32.mrf.mxu0
    %v4908 = vadd.f32 %v4879, %v4907
    %v4909 = vpop.f32.mrf.mxu0
    %v4910 = vadd.f32 %v4881, %v4909
    %4911 = vmatmul.bf16.gmra.mxu0 %v4173
    %v4912 = vpop.f32.mrf.mxu0
    %v4913 = vadd.f32 %v4884, %v4912
    %v4914 = vpop.f32.mrf.mxu0
    %v4915 = vadd.f32 %v4886, %v4914
    %4916 = vmatmul.bf16.gmra.mxu0 %v4177
    %v4917 = vpop.f32.mrf.mxu0
    %v4918 = vadd.f32 %v4889, %v4917
    %v4919 = vpop.f32.mrf.mxu0
    %v4920 = vadd.f32 %v4891, %v4919
    %4921 = vdwg.mxu0
    %4922 = vmatpush.bf16.msra.mxu0 %v4703
    %4923 = vmatpush.bf16.msra.mxu0 %v4699
    %4924 = vmatpush.bf16.msra.mxu0 %v4695
    %4925 = vmatpush.bf16.msra.mxu0 %v4691
    %4926 = vmatpush.bf16.msra.mxu0 %v4687
    %4927 = vmatpush.bf16.msra.mxu0 %v4683
    %4928 = vmatpush.bf16.msra.mxu0 %v4679
    %4929 = vmatpush.bf16.msra.mxu0 %v4675
    %4930 = vmatmul.bf16.gmra.mxu0 %v4166
    %v4931 = vpop.f32.mrf.mxu0
    %v4932 = vadd.f32 %v4903, %v4931
    %v4933 = vpop.f32.mrf.mxu0
    %v4934 = vadd.f32 %v4905, %v4933
    %4935 = vmatmul.bf16.gmra.mxu0 %v4170
    %v4936 = vpop.f32.mrf.mxu0
    %v4937 = vadd.f32 %v4908, %v4936
    %v4938 = vpop.f32.mrf.mxu0
    %v4939 = vadd.f32 %v4910, %v4938
    %4940 = vmatmul.bf16.gmra.mxu0 %v4174
    %v4941 = vpop.f32.mrf.mxu0
    %v4942 = vadd.f32 %v4913, %v4941
    %v4943 = vpop.f32.mrf.mxu0
    %v4944 = vadd.f32 %v4915, %v4943
    %4945 = vmatmul.bf16.gmra.mxu0 %v4178
    %v4946 = vpop.f32.mrf.mxu0
    %v4947 = vadd.f32 %v4918, %v4946
    %v4948 = vpop.f32.mrf.mxu0
    %v4949 = vadd.f32 %v4920, %v4948
    %4950 = vdwg.mxu0
    %4951 = vmatpush.bf16.msra.mxu0 %v4608
    %4952 = vmatpush.bf16.msra.mxu0 %v4604
    %4953 = vmatpush.bf16.msra.mxu0 %v4600
    %4954 = vmatpush.bf16.msra.mxu0 %v4596
    %4955 = vmatpush.bf16.msra.mxu0 %v4592
    %4956 = vmatpush.bf16.msra.mxu0 %v4588
    %4957 = vmatpush.bf16.msra.mxu0 %v4584
    %4958 = vmatpush.bf16.msra.mxu0 %v4580
    %4959 = vmatmul.bf16.gmra.mxu0 %v4163
    %v4960 = vpop.f32.mrf.mxu0
    %v4961 = vadd.f32 %v3864, %v4960
    %v4962 = vpop.f32.mrf.mxu0
    %v4963 = vadd.f32 %v3866, %v4962
    %4964 = vmatmul.bf16.gmra.mxu0 %v4167
    %v4965 = vpop.f32.mrf.mxu0
    %v4966 = vadd.f32 %v3869, %v4965
    %v4967 = vpop.f32.mrf.mxu0
    %v4968 = vadd.f32 %v3871, %v4967
    %4969 = vmatmul.bf16.gmra.mxu0 %v4171
    %v4970 = vpop.f32.mrf.mxu0
    %v4971 = vadd.f32 %v3874, %v4970
    %v4972 = vpop.f32.mrf.mxu0
    %v4973 = vadd.f32 %v3876, %v4972
    %4974 = vmatmul.bf16.gmra.mxu0 %v4175
    %v4975 = vpop.f32.mrf.mxu0
    %v4976 = vadd.f32 %v3879, %v4975
    %v4977 = vpop.f32.mrf.mxu0
    %v4978 = vadd.f32 %v3881, %v4977
    %4979 = vdwg.mxu0
    %4980 = vmatpush.bf16.msra.mxu0 %v4640
    %4981 = vmatpush.bf16.msra.mxu0 %v4636
    %4982 = vmatpush.bf16.msra.mxu0 %v4632
    %4983 = vmatpush.bf16.msra.mxu0 %v4628
    %4984 = vmatpush.bf16.msra.mxu0 %v4624
    %4985 = vmatpush.bf16.msra.mxu0 %v4620
    %4986 = vmatpush.bf16.msra.mxu0 %v4616
    %4987 = vmatpush.bf16.msra.mxu0 %v4612
    %4988 = vmatmul.bf16.gmra.mxu0 %v4164
    %v4989 = vpop.f32.mrf.mxu0
    %v4990 = vadd.f32 %v4961, %v4989
    %v4991 = vpop.f32.mrf.mxu0
    %v4992 = vadd.f32 %v4963, %v4991
    %4993 = vmatmul.bf16.gmra.mxu0 %v4168
    %v4994 = vpop.f32.mrf.mxu0
    %v4995 = vadd.f32 %v4966, %v4994
    %v4996 = vpop.f32.mrf.mxu0
    %v4997 = vadd.f32 %v4968, %v4996
    %4998 = vmatmul.bf16.gmra.mxu0 %v4172
    %v4999 = vpop.f32.mrf.mxu0
    %v5000 = vadd.f32 %v4971, %v4999
    %v5001 = vpop.f32.mrf.mxu0
    %v5002 = vadd.f32 %v4973, %v5001
    %5003 = vmatmul.bf16.gmra.mxu0 %v4176
    %v5004 = vpop.f32.mrf.mxu0
    %v5005 = vadd.f32 %v4976, %v5004
    %v5006 = vpop.f32.mrf.mxu0
    %v5007 = vadd.f32 %v4978, %v5006
    %5008 = vdwg.mxu0
    %5009 = vmatpush.bf16.msra.mxu0 %v4672
    %5010 = vmatpush.bf16.msra.mxu0 %v4668
    %5011 = vmatpush.bf16.msra.mxu0 %v4664
    %5012 = vmatpush.bf16.msra.mxu0 %v4660
    %5013 = vmatpush.bf16.msra.mxu0 %v4656
    %5014 = vmatpush.bf16.msra.mxu0 %v4652
    %5015 = vmatpush.bf16.msra.mxu0 %v4648
    %5016 = vmatpush.bf16.msra.mxu0 %v4644
    %5017 = vmatmul.bf16.gmra.mxu0 %v4165
    %v5018 = vpop.f32.mrf.mxu0
    %v5019 = vadd.f32 %v4990, %v5018
    %v5020 = vpop.f32.mrf.mxu0
    %v5021 = vadd.f32 %v4992, %v5020
    %5022 = vmatmul.bf16.gmra.mxu0 %v4169
    %v5023 = vpop.f32.mrf.mxu0
    %v5024 = vadd.f32 %v4995, %v5023
    %v5025 = vpop.f32.mrf.mxu0
    %v5026 = vadd.f32 %v4997, %v5025
    %5027 = vmatmul.bf16.gmra.mxu0 %v4173
    %v5028 = vpop.f32.mrf.mxu0
    %v5029 = vadd.f32 %v5000, %v5028
    %v5030 = vpop.f32.mrf.mxu0
    %v5031 = vadd.f32 %v5002, %v5030
    %5032 = vmatmul.bf16.gmra.mxu0 %v4177
    %v5033 = vpop.f32.mrf.mxu0
    %v5034 = vadd.f32 %v5005, %v5033
    %v5035 = vpop.f32.mrf.mxu0
    %v5036 = vadd.f32 %v5007, %v5035
    %5037 = vdwg.mxu0
    %5038 = vmatpush.bf16.msra.mxu0 %v4704
    %5039 = vmatpush.bf16.msra.mxu0 %v4700
    %5040 = vmatpush.bf16.msra.mxu0 %v4696
    %5041 = vmatpush.bf16.msra.mxu0 %v4692
    %5042 = vmatpush.bf16.msra.mxu0 %v4688
    %5043 = vmatpush.bf16.msra.mxu0 %v4684
    %5044 = vmatpush.bf16.msra.mxu0 %v4680
    %5045 = vmatpush.bf16.msra.mxu0 %v4676
    %5046 = vmatmul.bf16.gmra.mxu0 %v4166
    %v5047 = vpop.f32.mrf.mxu0
    %v5048 = vadd.f32 %v5019, %v5047
    %v5049 = vpop.f32.mrf.mxu0
    %v5050 = vadd.f32 %v5021, %v5049
    %5051 = vmatmul.bf16.gmra.mxu0 %v4170
    %v5052 = vpop.f32.mrf.mxu0
    %v5053 = vadd.f32 %v5024, %v5052
    %v5054 = vpop.f32.mrf.mxu0
    %v5055 = vadd.f32 %v5026, %v5054
    %5056 = vmatmul.bf16.gmra.mxu0 %v4174
    %v5057 = vpop.f32.mrf.mxu0
    %v5058 = vadd.f32 %v5029, %v5057
    %v5059 = vpop.f32.mrf.mxu0
    %v5060 = vadd.f32 %v5031, %v5059
    %5061 = vmatmul.bf16.gmra.mxu0 %v4178
    %v5062 = vpop.f32.mrf.mxu0
    %v5063 = vadd.f32 %v5034, %v5062
    %v5064 = vpop.f32.mrf.mxu0
    %v5065 = vadd.f32 %v5036, %v5064
    %5066 = vdwg.mxu0
    %5067 = vmatpush.bf16.msra.mxu0 %v4609
    %5068 = vmatpush.bf16.msra.mxu0 %v4605
    %5069 = vmatpush.bf16.msra.mxu0 %v4601
    %5070 = vmatpush.bf16.msra.mxu0 %v4597
    %5071 = vmatpush.bf16.msra.mxu0 %v4593
    %5072 = vmatpush.bf16.msra.mxu0 %v4589
    %5073 = vmatpush.bf16.msra.mxu0 %v4585
    %5074 = vmatpush.bf16.msra.mxu0 %v4581
    %5075 = vmatmul.bf16.gmra.mxu0 %v4163
    %v5076 = vpop.f32.mrf.mxu0
    %v5077 = vadd.f32 %v3980, %v5076
    %v5078 = vpop.f32.mrf.mxu0
    %v5079 = vadd.f32 %v3982, %v5078
    %5080 = vmatmul.bf16.gmra.mxu0 %v4167
    %v5081 = vpop.f32.mrf.mxu0
    %v5082 = vadd.f32 %v3985, %v5081
    %v5083 = vpop.f32.mrf.mxu0
    %v5084 = vadd.f32 %v3987, %v5083
    %5085 = vmatmul.bf16.gmra.mxu0 %v4171
    %v5086 = vpop.f32.mrf.mxu0
    %v5087 = vadd.f32 %v3990, %v5086
    %v5088 = vpop.f32.mrf.mxu0
    %v5089 = vadd.f32 %v3992, %v5088
    %5090 = vmatmul.bf16.gmra.mxu0 %v4175
    %v5091 = vpop.f32.mrf.mxu0
    %v5092 = vadd.f32 %v3995, %v5091
    %v5093 = vpop.f32.mrf.mxu0
    %v5094 = vadd.f32 %v3997, %v5093
    %5095 = vdwg.mxu0
    %5096 = vmatpush.bf16.msra.mxu0 %v4641
    %5097 = vmatpush.bf16.msra.mxu0 %v4637
    %5098 = vmatpush.bf16.msra.mxu0 %v4633
    %5099 = vmatpush.bf16.msra.mxu0 %v4629
    %5100 = vmatpush.bf16.msra.mxu0 %v4625
    %5101 = vmatpush.bf16.msra.mxu0 %v4621
    %5102 = vmatpush.bf16.msra.mxu0 %v4617
    %5103 = vmatpush.bf16.msra.mxu0 %v4613
    %5104 = vmatmul.bf16.gmra.mxu0 %v4164
    %v5105 = vpop.f32.mrf.mxu0
    %v5106 = vadd.f32 %v5077, %v5105
    %v5107 = vpop.f32.mrf.mxu0
    %v5108 = vadd.f32 %v5079, %v5107
    %5109 = vmatmul.bf16.gmra.mxu0 %v4168
    %v5110 = vpop.f32.mrf.mxu0
    %v5111 = vadd.f32 %v5082, %v5110
    %v5112 = vpop.f32.mrf.mxu0
    %v5113 = vadd.f32 %v5084, %v5112
    %5114 = vmatmul.bf16.gmra.mxu0 %v4172
    %v5115 = vpop.f32.mrf.mxu0
    %v5116 = vadd.f32 %v5087, %v5115
    %v5117 = vpop.f32.mrf.mxu0
    %v5118 = vadd.f32 %v5089, %v5117
    %5119 = vmatmul.bf16.gmra.mxu0 %v4176
    %v5120 = vpop.f32.mrf.mxu0
    %v5121 = vadd.f32 %v5092, %v5120
    %v5122 = vpop.f32.mrf.mxu0
    %v5123 = vadd.f32 %v5094, %v5122
    %5124 = vdwg.mxu0
    %5125 = vmatpush.bf16.msra.mxu0 %v4673
    %5126 = vmatpush.bf16.msra.mxu0 %v4669
    %5127 = vmatpush.bf16.msra.mxu0 %v4665
    %5128 = vmatpush.bf16.msra.mxu0 %v4661
    %5129 = vmatpush.bf16.msra.mxu0 %v4657
    %5130 = vmatpush.bf16.msra.mxu0 %v4653
    %5131 = vmatpush.bf16.msra.mxu0 %v4649
    %5132 = vmatpush.bf16.msra.mxu0 %v4645
    %5133 = vmatmul.bf16.gmra.mxu0 %v4165
    %v5134 = vpop.f32.mrf.mxu0
    %v5135 = vadd.f32 %v5106, %v5134
    %v5136 = vpop.f32.mrf.mxu0
    %v5137 = vadd.f32 %v5108, %v5136
    %5138 = vmatmul.bf16.gmra.mxu0 %v4169
    %v5139 = vpop.f32.mrf.mxu0
    %v5140 = vadd.f32 %v5111, %v5139
    %v5141 = vpop.f32.mrf.mxu0
    %v5142 = vadd.f32 %v5113, %v5141
    %5143 = vmatmul.bf16.gmra.mxu0 %v4173
    %v5144 = vpop.f32.mrf.mxu0
    %v5145 = vadd.f32 %v5116, %v5144
    %v5146 = vpop.f32.mrf.mxu0
    %v5147 = vadd.f32 %v5118, %v5146
    %5148 = vmatmul.bf16.gmra.mxu0 %v4177
    %v5149 = vpop.f32.mrf.mxu0
    %v5150 = vadd.f32 %v5121, %v5149
    %v5151 = vpop.f32.mrf.mxu0
    %v5152 = vadd.f32 %v5123, %v5151
    %5153 = vdwg.mxu0
    %5154 = vmatpush.bf16.msra.mxu0 %v4705
    %5155 = vmatpush.bf16.msra.mxu0 %v4701
    %5156 = vmatpush.bf16.msra.mxu0 %v4697
    %5157 = vmatpush.bf16.msra.mxu0 %v4693
    %5158 = vmatpush.bf16.msra.mxu0 %v4689
    %5159 = vmatpush.bf16.msra.mxu0 %v4685
    %5160 = vmatpush.bf16.msra.mxu0 %v4681
    %5161 = vmatpush.bf16.msra.mxu0 %v4677
    %5162 = vmatmul.bf16.gmra.mxu0 %v4166
    %v5163 = vpop.f32.mrf.mxu0
    %v5164 = vadd.f32 %v5135, %v5163
    %v5165 = vpop.f32.mrf.mxu0
    %v5166 = vadd.f32 %v5137, %v5165
    %5167 = vmatmul.bf16.gmra.mxu0 %v4170
    %v5168 = vpop.f32.mrf.mxu0
    %v5169 = vadd.f32 %v5140, %v5168
    %v5170 = vpop.f32.mrf.mxu0
    %v5171 = vadd.f32 %v5142, %v5170
    %5172 = vmatmul.bf16.gmra.mxu0 %v4174
    %v5173 = vpop.f32.mrf.mxu0
    %v5174 = vadd.f32 %v5145, %v5173
    %v5175 = vpop.f32.mrf.mxu0
    %v5176 = vadd.f32 %v5147, %v5175
    %5177 = vmatmul.bf16.gmra.mxu0 %v4178
    %v5178 = vpop.f32.mrf.mxu0
    %v5179 = vadd.f32 %v5150, %v5178
    %v5180 = vpop.f32.mrf.mxu0
    %v5181 = vadd.f32 %v5152, %v5180
    %5182 = vdwg.mxu0
    %5183 = vmatpush.bf16.msra.mxu0 %v4610
    %5184 = vmatpush.bf16.msra.mxu0 %v4606
    %5185 = vmatpush.bf16.msra.mxu0 %v4602
    %5186 = vmatpush.bf16.msra.mxu0 %v4598
    %5187 = vmatpush.bf16.msra.mxu0 %v4594
    %5188 = vmatpush.bf16.msra.mxu0 %v4590
    %5189 = vmatpush.bf16.msra.mxu0 %v4586
    %5190 = vmatpush.bf16.msra.mxu0 %v4582
    %5191 = vmatmul.bf16.gmra.mxu0 %v4163
    %v5192 = vpop.f32.mrf.mxu0
    %v5193 = vadd.f32 %v4096, %v5192
    %v5194 = vpop.f32.mrf.mxu0
    %v5195 = vadd.f32 %v4098, %v5194
    %5196 = vmatmul.bf16.gmra.mxu0 %v4167
    %v5197 = vpop.f32.mrf.mxu0
    %v5198 = vadd.f32 %v4101, %v5197
    %v5199 = vpop.f32.mrf.mxu0
    %v5200 = vadd.f32 %v4103, %v5199
    %5201 = vmatmul.bf16.gmra.mxu0 %v4171
    %v5202 = vpop.f32.mrf.mxu0
    %v5203 = vadd.f32 %v4106, %v5202
    %v5204 = vpop.f32.mrf.mxu0
    %v5205 = vadd.f32 %v4108, %v5204
    %5206 = vmatmul.bf16.gmra.mxu0 %v4175
    %v5207 = vpop.f32.mrf.mxu0
    %v5208 = vadd.f32 %v4111, %v5207
    %v5209 = vpop.f32.mrf.mxu0
    %v5210 = vadd.f32 %v4113, %v5209
    %5211 = vdwg.mxu0
    %5212 = vmatpush.bf16.msra.mxu0 %v4642
    %5213 = vmatpush.bf16.msra.mxu0 %v4638
    %5214 = vmatpush.bf16.msra.mxu0 %v4634
    %5215 = vmatpush.bf16.msra.mxu0 %v4630
    %5216 = vmatpush.bf16.msra.mxu0 %v4626
    %5217 = vmatpush.bf16.msra.mxu0 %v4622
    %5218 = vmatpush.bf16.msra.mxu0 %v4618
    %5219 = vmatpush.bf16.msra.mxu0 %v4614
    %5220 = vmatmul.bf16.gmra.mxu0 %v4164
    %v5221 = vpop.f32.mrf.mxu0
    %v5222 = vadd.f32 %v5193, %v5221
    %v5223 = vpop.f32.mrf.mxu0
    %v5224 = vadd.f32 %v5195, %v5223
    %5225 = vmatmul.bf16.gmra.mxu0 %v4168
    %v5226 = vpop.f32.mrf.mxu0
    %v5227 = vadd.f32 %v5198, %v5226
    %v5228 = vpop.f32.mrf.mxu0
    %v5229 = vadd.f32 %v5200, %v5228
    %5230 = vmatmul.bf16.gmra.mxu0 %v4172
    %v5231 = vpop.f32.mrf.mxu0
    %v5232 = vadd.f32 %v5203, %v5231
    %v5233 = vpop.f32.mrf.mxu0
    %v5234 = vadd.f32 %v5205, %v5233
    %5235 = vmatmul.bf16.gmra.mxu0 %v4176
    %v5236 = vpop.f32.mrf.mxu0
    %v5237 = vadd.f32 %v5208, %v5236
    %v5238 = vpop.f32.mrf.mxu0
    %v5239 = vadd.f32 %v5210, %v5238
    %5240 = vdwg.mxu0
    %5241 = vmatpush.bf16.msra.mxu0 %v4674
    %5242 = vmatpush.bf16.msra.mxu0 %v4670
    %5243 = vmatpush.bf16.msra.mxu0 %v4666
    %5244 = vmatpush.bf16.msra.mxu0 %v4662
    %5245 = vmatpush.bf16.msra.mxu0 %v4658
    %5246 = vmatpush.bf16.msra.mxu0 %v4654
    %5247 = vmatpush.bf16.msra.mxu0 %v4650
    %5248 = vmatpush.bf16.msra.mxu0 %v4646
    %5249 = vmatmul.bf16.gmra.mxu0 %v4165
    %v5250 = vpop.f32.mrf.mxu0
    %v5251 = vadd.f32 %v5222, %v5250
    %v5252 = vpop.f32.mrf.mxu0
    %v5253 = vadd.f32 %v5224, %v5252
    %5254 = vmatmul.bf16.gmra.mxu0 %v4169
    %v5255 = vpop.f32.mrf.mxu0
    %v5256 = vadd.f32 %v5227, %v5255
    %v5257 = vpop.f32.mrf.mxu0
    %v5258 = vadd.f32 %v5229, %v5257
    %5259 = vmatmul.bf16.gmra.mxu0 %v4173
    %v5260 = vpop.f32.mrf.mxu0
    %v5261 = vadd.f32 %v5232, %v5260
    %v5262 = vpop.f32.mrf.mxu0
    %v5263 = vadd.f32 %v5234, %v5262
    %5264 = vmatmul.bf16.gmra.mxu0 %v4177
    %v5265 = vpop.f32.mrf.mxu0
    %v5266 = vadd.f32 %v5237, %v5265
    %v5267 = vpop.f32.mrf.mxu0
    %v5268 = vadd.f32 %v5239, %v5267
    %5269 = vdwg.mxu0
    %5270 = vmatpush.bf16.msra.mxu0 %v4706
    %5271 = vmatpush.bf16.msra.mxu0 %v4702
    %5272 = vmatpush.bf16.msra.mxu0 %v4698
    %5273 = vmatpush.bf16.msra.mxu0 %v4694
    %5274 = vmatpush.bf16.msra.mxu0 %v4690
    %5275 = vmatpush.bf16.msra.mxu0 %v4686
    %5276 = vmatpush.bf16.msra.mxu0 %v4682
    %5277 = vmatpush.bf16.msra.mxu0 %v4678
    %5278 = vmatmul.bf16.gmra.mxu0 %v4166
    %v5279 = vpop.f32.mrf.mxu0
    %v5280 = vadd.f32 %v5251, %v5279
    %v5281 = vpop.f32.mrf.mxu0
    %v5282 = vadd.f32 %v5253, %v5281
    %5283 = vmatmul.bf16.gmra.mxu0 %v4170
    %v5284 = vpop.f32.mrf.mxu0
    %v5285 = vadd.f32 %v5256, %v5284
    %v5286 = vpop.f32.mrf.mxu0
    %v5287 = vadd.f32 %v5258, %v5286
    %5288 = vmatmul.bf16.gmra.mxu0 %v4174
    %v5289 = vpop.f32.mrf.mxu0
    %v5290 = vadd.f32 %v5261, %v5289
    %v5291 = vpop.f32.mrf.mxu0
    %v5292 = vadd.f32 %v5263, %v5291
    %5293 = vmatmul.bf16.gmra.mxu0 %v4178
    %v5294 = vpop.f32.mrf.mxu0
    %v5295 = vadd.f32 %v5266, %v5294
    %v5296 = vpop.f32.mrf.mxu0
    %v5297 = vadd.f32 %v5268, %v5296
    %5298 = vdwg.mxu0
    %s5299 = scalar_lea.vmem [#allocation3], 32
    %v5300 = vld [vmem:[%s5299] sm:$0xff]
    %v5301 = vld [vmem:[%s5299 + $0x8] sm:$0xff]
    %v5302 = vld [vmem:[%s5299 + $0x10] sm:$0xff]
    %v5303 = vld [vmem:[%s5299 + $0x18] sm:$0xff]
    %v5304 = vld [vmem:[%s5299 + $0x20] sm:$0xff]
    %v5305 = vld [vmem:[%s5299 + $0x28] sm:$0xff]
    %v5306 = vld [vmem:[%s5299 + $0x30] sm:$0xff]
    %v5307 = vld [vmem:[%s5299 + $0x38] sm:$0xff]
    %v5308 = vld [vmem:[%s5299 + $0x40] sm:$0xff]
    %v5309 = vld [vmem:[%s5299 + $0x48] sm:$0xff]
    %v5310 = vld [vmem:[%s5299 + $0x50] sm:$0xff]
    %v5311 = vld [vmem:[%s5299 + $0x58] sm:$0xff]
    %v5312 = vld [vmem:[%s5299 + $0x60] sm:$0xff]
    %v5313 = vld [vmem:[%s5299 + $0x68] sm:$0xff]
    %v5314 = vld [vmem:[%s5299 + $0x70] sm:$0xff]
    %v5315 = vld [vmem:[%s5299 + $0x78] sm:$0xff]
    %s5316 = scalar_lea.vmem [#allocation8], 2048
    %v5317 = vld [vmem:[%s5316] sm:$0xff]
    %v5318 = vld [vmem:[%s5316 + $0x8] sm:$0xff]
    %v5319 = vld [vmem:[%s5316 + $0x10] sm:$0xff]
    %v5320 = vld [vmem:[%s5316 + $0x18] sm:$0xff]
    %v5321 = vld [vmem:[%s5316 + $0x20] sm:$0xff]
    %v5322 = vld [vmem:[%s5316 + $0x28] sm:$0xff]
    %v5323 = vld [vmem:[%s5316 + $0x30] sm:$0xff]
    %v5324 = vld [vmem:[%s5316 + $0x38] sm:$0xff]
    %v5325 = vld [vmem:[%s5316 + $0x40] sm:$0xff]
    %v5326 = vld [vmem:[%s5316 + $0x48] sm:$0xff]
    %v5327 = vld [vmem:[%s5316 + $0x50] sm:$0xff]
    %v5328 = vld [vmem:[%s5316 + $0x58] sm:$0xff]
    %v5329 = vld [vmem:[%s5316 + $0x60] sm:$0xff]
    %v5330 = vld [vmem:[%s5316 + $0x68] sm:$0xff]
    %v5331 = vld [vmem:[%s5316 + $0x70] sm:$0xff]
    %v5332 = vld [vmem:[%s5316 + $0x78] sm:$0xff]
    %v5333 = vld [vmem:[%s5316 + $0x80] sm:$0xff]
    %v5334 = vld [vmem:[%s5316 + $0x88] sm:$0xff]
    %v5335 = vld [vmem:[%s5316 + $0x90] sm:$0xff]
    %v5336 = vld [vmem:[%s5316 + $0x98] sm:$0xff]
    %v5337 = vld [vmem:[%s5316 + $0xa0] sm:$0xff]
    %v5338 = vld [vmem:[%s5316 + $0xa8] sm:$0xff]
    %v5339 = vld [vmem:[%s5316 + $0xb0] sm:$0xff]
    %v5340 = vld [vmem:[%s5316 + $0xb8] sm:$0xff]
    %v5341 = vld [vmem:[%s5316 + $0xc0] sm:$0xff]
    %v5342 = vld [vmem:[%s5316 + $0xc8] sm:$0xff]
    %v5343 = vld [vmem:[%s5316 + $0xd0] sm:$0xff]
    %v5344 = vld [vmem:[%s5316 + $0xd8] sm:$0xff]
    %v5345 = vld [vmem:[%s5316 + $0xe0] sm:$0xff]
    %v5346 = vld [vmem:[%s5316 + $0xe8] sm:$0xff]
    %v5347 = vld [vmem:[%s5316 + $0xf0] sm:$0xff]
    %v5348 = vld [vmem:[%s5316 + $0xf8] sm:$0xff]
    %v5349 = vld [vmem:[%s5316 + $0x100] sm:$0xff]
    %v5350 = vld [vmem:[%s5316 + $0x108] sm:$0xff]
    %v5351 = vld [vmem:[%s5316 + $0x110] sm:$0xff]
    %v5352 = vld [vmem:[%s5316 + $0x118] sm:$0xff]
    %v5353 = vld [vmem:[%s5316 + $0x120] sm:$0xff]
    %v5354 = vld [vmem:[%s5316 + $0x128] sm:$0xff]
    %v5355 = vld [vmem:[%s5316 + $0x130] sm:$0xff]
    %v5356 = vld [vmem:[%s5316 + $0x138] sm:$0xff]
    %v5357 = vld [vmem:[%s5316 + $0x140] sm:$0xff]
    %v5358 = vld [vmem:[%s5316 + $0x148] sm:$0xff]
    %v5359 = vld [vmem:[%s5316 + $0x150] sm:$0xff]
    %v5360 = vld [vmem:[%s5316 + $0x158] sm:$0xff]
    %v5361 = vld [vmem:[%s5316 + $0x160] sm:$0xff]
    %v5362 = vld [vmem:[%s5316 + $0x168] sm:$0xff]
    %v5363 = vld [vmem:[%s5316 + $0x170] sm:$0xff]
    %v5364 = vld [vmem:[%s5316 + $0x178] sm:$0xff]
    %v5365 = vld [vmem:[%s5316 + $0x180] sm:$0xff]
    %v5366 = vld [vmem:[%s5316 + $0x188] sm:$0xff]
    %v5367 = vld [vmem:[%s5316 + $0x190] sm:$0xff]
    %v5368 = vld [vmem:[%s5316 + $0x198] sm:$0xff]
    %v5369 = vld [vmem:[%s5316 + $0x1a0] sm:$0xff]
    %v5370 = vld [vmem:[%s5316 + $0x1a8] sm:$0xff]
    %v5371 = vld [vmem:[%s5316 + $0x1b0] sm:$0xff]
    %v5372 = vld [vmem:[%s5316 + $0x1b8] sm:$0xff]
    %v5373 = vld [vmem:[%s5316 + $0x1c0] sm:$0xff]
    %v5374 = vld [vmem:[%s5316 + $0x1c8] sm:$0xff]
    %v5375 = vld [vmem:[%s5316 + $0x1d0] sm:$0xff]
    %v5376 = vld [vmem:[%s5316 + $0x1d8] sm:$0xff]
    %v5377 = vld [vmem:[%s5316 + $0x1e0] sm:$0xff]
    %v5378 = vld [vmem:[%s5316 + $0x1e8] sm:$0xff]
    %v5379 = vld [vmem:[%s5316 + $0x1f0] sm:$0xff]
    %v5380 = vld [vmem:[%s5316 + $0x1f8] sm:$0xff]
    %v5381 = vld [vmem:[%s5316 + $0x200] sm:$0xff]
    %v5382 = vld [vmem:[%s5316 + $0x208] sm:$0xff]
    %v5383 = vld [vmem:[%s5316 + $0x210] sm:$0xff]
    %v5384 = vld [vmem:[%s5316 + $0x218] sm:$0xff]
    %v5385 = vld [vmem:[%s5316 + $0x220] sm:$0xff]
    %v5386 = vld [vmem:[%s5316 + $0x228] sm:$0xff]
    %v5387 = vld [vmem:[%s5316 + $0x230] sm:$0xff]
    %v5388 = vld [vmem:[%s5316 + $0x238] sm:$0xff]
    %v5389 = vld [vmem:[%s5316 + $0x240] sm:$0xff]
    %v5390 = vld [vmem:[%s5316 + $0x248] sm:$0xff]
    %v5391 = vld [vmem:[%s5316 + $0x250] sm:$0xff]
    %v5392 = vld [vmem:[%s5316 + $0x258] sm:$0xff]
    %v5393 = vld [vmem:[%s5316 + $0x260] sm:$0xff]
    %v5394 = vld [vmem:[%s5316 + $0x268] sm:$0xff]
    %v5395 = vld [vmem:[%s5316 + $0x270] sm:$0xff]
    %v5396 = vld [vmem:[%s5316 + $0x278] sm:$0xff]
    %v5397 = vld [vmem:[%s5316 + $0x280] sm:$0xff]
    %v5398 = vld [vmem:[%s5316 + $0x288] sm:$0xff]
    %v5399 = vld [vmem:[%s5316 + $0x290] sm:$0xff]
    %v5400 = vld [vmem:[%s5316 + $0x298] sm:$0xff]
    %v5401 = vld [vmem:[%s5316 + $0x2a0] sm:$0xff]
    %v5402 = vld [vmem:[%s5316 + $0x2a8] sm:$0xff]
    %v5403 = vld [vmem:[%s5316 + $0x2b0] sm:$0xff]
    %v5404 = vld [vmem:[%s5316 + $0x2b8] sm:$0xff]
    %v5405 = vld [vmem:[%s5316 + $0x2c0] sm:$0xff]
    %v5406 = vld [vmem:[%s5316 + $0x2c8] sm:$0xff]
    %v5407 = vld [vmem:[%s5316 + $0x2d0] sm:$0xff]
    %v5408 = vld [vmem:[%s5316 + $0x2d8] sm:$0xff]
    %v5409 = vld [vmem:[%s5316 + $0x2e0] sm:$0xff]
    %v5410 = vld [vmem:[%s5316 + $0x2e8] sm:$0xff]
    %v5411 = vld [vmem:[%s5316 + $0x2f0] sm:$0xff]
    %v5412 = vld [vmem:[%s5316 + $0x2f8] sm:$0xff]
    %v5413 = vld [vmem:[%s5316 + $0x300] sm:$0xff]
    %v5414 = vld [vmem:[%s5316 + $0x308] sm:$0xff]
    %v5415 = vld [vmem:[%s5316 + $0x310] sm:$0xff]
    %v5416 = vld [vmem:[%s5316 + $0x318] sm:$0xff]
    %v5417 = vld [vmem:[%s5316 + $0x320] sm:$0xff]
    %v5418 = vld [vmem:[%s5316 + $0x328] sm:$0xff]
    %v5419 = vld [vmem:[%s5316 + $0x330] sm:$0xff]
    %v5420 = vld [vmem:[%s5316 + $0x338] sm:$0xff]
    %v5421 = vld [vmem:[%s5316 + $0x340] sm:$0xff]
    %v5422 = vld [vmem:[%s5316 + $0x348] sm:$0xff]
    %v5423 = vld [vmem:[%s5316 + $0x350] sm:$0xff]
    %v5424 = vld [vmem:[%s5316 + $0x358] sm:$0xff]
    %v5425 = vld [vmem:[%s5316 + $0x360] sm:$0xff]
    %v5426 = vld [vmem:[%s5316 + $0x368] sm:$0xff]
    %v5427 = vld [vmem:[%s5316 + $0x370] sm:$0xff]
    %v5428 = vld [vmem:[%s5316 + $0x378] sm:$0xff]
    %v5429 = vld [vmem:[%s5316 + $0x380] sm:$0xff]
    %v5430 = vld [vmem:[%s5316 + $0x388] sm:$0xff]
    %v5431 = vld [vmem:[%s5316 + $0x390] sm:$0xff]
    %v5432 = vld [vmem:[%s5316 + $0x398] sm:$0xff]
    %v5433 = vld [vmem:[%s5316 + $0x3a0] sm:$0xff]
    %v5434 = vld [vmem:[%s5316 + $0x3a8] sm:$0xff]
    %v5435 = vld [vmem:[%s5316 + $0x3b0] sm:$0xff]
    %v5436 = vld [vmem:[%s5316 + $0x3b8] sm:$0xff]
    %v5437 = vld [vmem:[%s5316 + $0x3c0] sm:$0xff]
    %v5438 = vld [vmem:[%s5316 + $0x3c8] sm:$0xff]
    %v5439 = vld [vmem:[%s5316 + $0x3d0] sm:$0xff]
    %v5440 = vld [vmem:[%s5316 + $0x3d8] sm:$0xff]
    %v5441 = vld [vmem:[%s5316 + $0x3e0] sm:$0xff]
    %v5442 = vld [vmem:[%s5316 + $0x3e8] sm:$0xff]
    %v5443 = vld [vmem:[%s5316 + $0x3f0] sm:$0xff]
    %v5444 = vld [vmem:[%s5316 + $0x3f8] sm:$0xff]
    %v5461 = vunpack.c.l.b16 %v5300
    %v5462 = vunpack.c.h.b16 %v5300
    %v5463 = vunpack.c.l.b16 %v5301
    %v5464 = vunpack.c.h.b16 %v5301
    %v5465 = vunpack.c.l.b16 %v5302
    %v5466 = vunpack.c.h.b16 %v5302
    %v5467 = vunpack.c.l.b16 %v5303
    %v5468 = vunpack.c.h.b16 %v5303
    %v5469 = vunpack.c.l.b16 %v5304
    %v5470 = vunpack.c.h.b16 %v5304
    %v5471 = vunpack.c.l.b16 %v5305
    %v5472 = vunpack.c.h.b16 %v5305
    %v5473 = vunpack.c.l.b16 %v5306
    %v5474 = vunpack.c.h.b16 %v5306
    %v5475 = vunpack.c.l.b16 %v5307
    %v5476 = vunpack.c.h.b16 %v5307
    %v5477 = vunpack.c.l.b16 %v5308
    %v5478 = vunpack.c.h.b16 %v5308
    %v5479 = vunpack.c.l.b16 %v5309
    %v5480 = vunpack.c.h.b16 %v5309
    %v5481 = vunpack.c.l.b16 %v5310
    %v5482 = vunpack.c.h.b16 %v5310
    %v5483 = vunpack.c.l.b16 %v5311
    %v5484 = vunpack.c.h.b16 %v5311
    %v5485 = vunpack.c.l.b16 %v5312
    %v5486 = vunpack.c.h.b16 %v5312
    %v5487 = vunpack.c.l.b16 %v5313
    %v5488 = vunpack.c.h.b16 %v5313
    %v5489 = vunpack.c.l.b16 %v5314
    %v5490 = vunpack.c.h.b16 %v5314
    %v5491 = vunpack.c.l.b16 %v5315
    %v5492 = vunpack.c.h.b16 %v5315
    %v5493 = vpack.c.b16 %v5465, %v5461
    %v5494 = vpack.c.b16 %v5466, %v5462
    %v5495 = vpack.c.b16 %v5467, %v5463
    %v5496 = vpack.c.b16 %v5468, %v5464
    %v5497 = vpack.c.b16 %v5473, %v5469
    %v5498 = vpack.c.b16 %v5474, %v5470
    %v5499 = vpack.c.b16 %v5475, %v5471
    %v5500 = vpack.c.b16 %v5476, %v5472
    %v5501 = vpack.c.b16 %v5481, %v5477
    %v5502 = vpack.c.b16 %v5482, %v5478
    %v5503 = vpack.c.b16 %v5483, %v5479
    %v5504 = vpack.c.b16 %v5484, %v5480
    %v5505 = vpack.c.b16 %v5489, %v5485
    %v5506 = vpack.c.b16 %v5490, %v5486
    %v5507 = vpack.c.b16 %v5491, %v5487
    %v5508 = vpack.c.b16 %v5492, %v5488
    %v5653 = vunpack.c.l.b16 %v5317
    %v5654 = vunpack.c.h.b16 %v5317
    %v5655 = vunpack.c.l.b16 %v5318
    %v5656 = vunpack.c.h.b16 %v5318
    %v5657 = vunpack.c.l.b16 %v5319
    %v5658 = vunpack.c.h.b16 %v5319
    %v5659 = vunpack.c.l.b16 %v5320
    %v5660 = vunpack.c.h.b16 %v5320
    %v5661 = vunpack.c.l.b16 %v5321
    %v5662 = vunpack.c.h.b16 %v5321
    %v5663 = vunpack.c.l.b16 %v5322
    %v5664 = vunpack.c.h.b16 %v5322
    %v5665 = vunpack.c.l.b16 %v5323
    %v5666 = vunpack.c.h.b16 %v5323
    %v5667 = vunpack.c.l.b16 %v5324
    %v5668 = vunpack.c.h.b16 %v5324
    %v5669 = vunpack.c.l.b16 %v5325
    %v5670 = vunpack.c.h.b16 %v5325
    %v5671 = vunpack.c.l.b16 %v5326
    %v5672 = vunpack.c.h.b16 %v5326
    %v5673 = vunpack.c.l.b16 %v5327
    %v5674 = vunpack.c.h.b16 %v5327
    %v5675 = vunpack.c.l.b16 %v5328
    %v5676 = vunpack.c.h.b16 %v5328
    %v5677 = vunpack.c.l.b16 %v5329
    %v5678 = vunpack.c.h.b16 %v5329
    %v5679 = vunpack.c.l.b16 %v5330
    %v5680 = vunpack.c.h.b16 %v5330
    %v5681 = vunpack.c.l.b16 %v5331
    %v5682 = vunpack.c.h.b16 %v5331
    %v5683 = vunpack.c.l.b16 %v5332
    %v5684 = vunpack.c.h.b16 %v5332
    %v5685 = vunpack.c.l.b16 %v5333
    %v5686 = vunpack.c.h.b16 %v5333
    %v5687 = vunpack.c.l.b16 %v5334
    %v5688 = vunpack.c.h.b16 %v5334
    %v5689 = vunpack.c.l.b16 %v5335
    %v5690 = vunpack.c.h.b16 %v5335
    %v5691 = vunpack.c.l.b16 %v5336
    %v5692 = vunpack.c.h.b16 %v5336
    %v5693 = vunpack.c.l.b16 %v5337
    %v5694 = vunpack.c.h.b16 %v5337
    %v5695 = vunpack.c.l.b16 %v5338
    %v5696 = vunpack.c.h.b16 %v5338
    %v5697 = vunpack.c.l.b16 %v5339
    %v5698 = vunpack.c.h.b16 %v5339
    %v5699 = vunpack.c.l.b16 %v5340
    %v5700 = vunpack.c.h.b16 %v5340
    %v5701 = vunpack.c.l.b16 %v5341
    %v5702 = vunpack.c.h.b16 %v5341
    %v5703 = vunpack.c.l.b16 %v5342
    %v5704 = vunpack.c.h.b16 %v5342
    %v5705 = vunpack.c.l.b16 %v5343
    %v5706 = vunpack.c.h.b16 %v5343
    %v5707 = vunpack.c.l.b16 %v5344
    %v5708 = vunpack.c.h.b16 %v5344
    %v5709 = vunpack.c.l.b16 %v5345
    %v5710 = vunpack.c.h.b16 %v5345
    %v5711 = vunpack.c.l.b16 %v5346
    %v5712 = vunpack.c.h.b16 %v5346
    %v5713 = vunpack.c.l.b16 %v5347
    %v5714 = vunpack.c.h.b16 %v5347
    %v5715 = vunpack.c.l.b16 %v5348
    %v5716 = vunpack.c.h.b16 %v5348
    %v5717 = vunpack.c.l.b16 %v5349
    %v5718 = vunpack.c.h.b16 %v5349
    %v5719 = vunpack.c.l.b16 %v5350
    %v5720 = vunpack.c.h.b16 %v5350
    %v5721 = vunpack.c.l.b16 %v5351
    %v5722 = vunpack.c.h.b16 %v5351
    %v5723 = vunpack.c.l.b16 %v5352
    %v5724 = vunpack.c.h.b16 %v5352
    %v5725 = vunpack.c.l.b16 %v5353
    %v5726 = vunpack.c.h.b16 %v5353
    %v5727 = vunpack.c.l.b16 %v5354
    %v5728 = vunpack.c.h.b16 %v5354
    %v5729 = vunpack.c.l.b16 %v5355
    %v5730 = vunpack.c.h.b16 %v5355
    %v5731 = vunpack.c.l.b16 %v5356
    %v5732 = vunpack.c.h.b16 %v5356
    %v5733 = vunpack.c.l.b16 %v5357
    %v5734 = vunpack.c.h.b16 %v5357
    %v5735 = vunpack.c.l.b16 %v5358
    %v5736 = vunpack.c.h.b16 %v5358
    %v5737 = vunpack.c.l.b16 %v5359
    %v5738 = vunpack.c.h.b16 %v5359
    %v5739 = vunpack.c.l.b16 %v5360
    %v5740 = vunpack.c.h.b16 %v5360
    %v5741 = vunpack.c.l.b16 %v5361
    %v5742 = vunpack.c.h.b16 %v5361
    %v5743 = vunpack.c.l.b16 %v5362
    %v5744 = vunpack.c.h.b16 %v5362
    %v5745 = vunpack.c.l.b16 %v5363
    %v5746 = vunpack.c.h.b16 %v5363
    %v5747 = vunpack.c.l.b16 %v5364
    %v5748 = vunpack.c.h.b16 %v5364
    %v5749 = vunpack.c.l.b16 %v5365
    %v5750 = vunpack.c.h.b16 %v5365
    %v5751 = vunpack.c.l.b16 %v5366
    %v5752 = vunpack.c.h.b16 %v5366
    %v5753 = vunpack.c.l.b16 %v5367
    %v5754 = vunpack.c.h.b16 %v5367
    %v5755 = vunpack.c.l.b16 %v5368
    %v5756 = vunpack.c.h.b16 %v5368
    %v5757 = vunpack.c.l.b16 %v5369
    %v5758 = vunpack.c.h.b16 %v5369
    %v5759 = vunpack.c.l.b16 %v5370
    %v5760 = vunpack.c.h.b16 %v5370
    %v5761 = vunpack.c.l.b16 %v5371
    %v5762 = vunpack.c.h.b16 %v5371
    %v5763 = vunpack.c.l.b16 %v5372
    %v5764 = vunpack.c.h.b16 %v5372
    %v5765 = vunpack.c.l.b16 %v5373
    %v5766 = vunpack.c.h.b16 %v5373
    %v5767 = vunpack.c.l.b16 %v5374
    %v5768 = vunpack.c.h.b16 %v5374
    %v5769 = vunpack.c.l.b16 %v5375
    %v5770 = vunpack.c.h.b16 %v5375
    %v5771 = vunpack.c.l.b16 %v5376
    %v5772 = vunpack.c.h.b16 %v5376
    %v5773 = vunpack.c.l.b16 %v5377
    %v5774 = vunpack.c.h.b16 %v5377
    %v5775 = vunpack.c.l.b16 %v5378
    %v5776 = vunpack.c.h.b16 %v5378
    %v5777 = vunpack.c.l.b16 %v5379
    %v5778 = vunpack.c.h.b16 %v5379
    %v5779 = vunpack.c.l.b16 %v5380
    %v5780 = vunpack.c.h.b16 %v5380
    %v5781 = vunpack.c.l.b16 %v5381
    %v5782 = vunpack.c.h.b16 %v5381
    %v5783 = vunpack.c.l.b16 %v5382
    %v5784 = vunpack.c.h.b16 %v5382
    %v5785 = vunpack.c.l.b16 %v5383
    %v5786 = vunpack.c.h.b16 %v5383
    %v5787 = vunpack.c.l.b16 %v5384
    %v5788 = vunpack.c.h.b16 %v5384
    %v5789 = vunpack.c.l.b16 %v5385
    %v5790 = vunpack.c.h.b16 %v5385
    %v5791 = vunpack.c.l.b16 %v5386
    %v5792 = vunpack.c.h.b16 %v5386
    %v5793 = vunpack.c.l.b16 %v5387
    %v5794 = vunpack.c.h.b16 %v5387
    %v5795 = vunpack.c.l.b16 %v5388
    %v5796 = vunpack.c.h.b16 %v5388
    %v5797 = vunpack.c.l.b16 %v5389
    %v5798 = vunpack.c.h.b16 %v5389
    %v5799 = vunpack.c.l.b16 %v5390
    %v5800 = vunpack.c.h.b16 %v5390
    %v5801 = vunpack.c.l.b16 %v5391
    %v5802 = vunpack.c.h.b16 %v5391
    %v5803 = vunpack.c.l.b16 %v5392
    %v5804 = vunpack.c.h.b16 %v5392
    %v5805 = vunpack.c.l.b16 %v5393
    %v5806 = vunpack.c.h.b16 %v5393
    %v5807 = vunpack.c.l.b16 %v5394
    %v5808 = vunpack.c.h.b16 %v5394
    %v5809 = vunpack.c.l.b16 %v5395
    %v5810 = vunpack.c.h.b16 %v5395
    %v5811 = vunpack.c.l.b16 %v5396
    %v5812 = vunpack.c.h.b16 %v5396
    %v5813 = vunpack.c.l.b16 %v5397
    %v5814 = vunpack.c.h.b16 %v5397
    %v5815 = vunpack.c.l.b16 %v5398
    %v5816 = vunpack.c.h.b16 %v5398
    %v5817 = vunpack.c.l.b16 %v5399
    %v5818 = vunpack.c.h.b16 %v5399
    %v5819 = vunpack.c.l.b16 %v5400
    %v5820 = vunpack.c.h.b16 %v5400
    %v5821 = vunpack.c.l.b16 %v5401
    %v5822 = vunpack.c.h.b16 %v5401
    %v5823 = vunpack.c.l.b16 %v5402
    %v5824 = vunpack.c.h.b16 %v5402
    %v5825 = vunpack.c.l.b16 %v5403
    %v5826 = vunpack.c.h.b16 %v5403
    %v5827 = vunpack.c.l.b16 %v5404
    %v5828 = vunpack.c.h.b16 %v5404
    %v5829 = vunpack.c.l.b16 %v5405
    %v5830 = vunpack.c.h.b16 %v5405
    %v5831 = vunpack.c.l.b16 %v5406
    %v5832 = vunpack.c.h.b16 %v5406
    %v5833 = vunpack.c.l.b16 %v5407
    %v5834 = vunpack.c.h.b16 %v5407
    %v5835 = vunpack.c.l.b16 %v5408
    %v5836 = vunpack.c.h.b16 %v5408
    %v5837 = vunpack.c.l.b16 %v5409
    %v5838 = vunpack.c.h.b16 %v5409
    %v5839 = vunpack.c.l.b16 %v5410
    %v5840 = vunpack.c.h.b16 %v5410
    %v5841 = vunpack.c.l.b16 %v5411
    %v5842 = vunpack.c.h.b16 %v5411
    %v5843 = vunpack.c.l.b16 %v5412
    %v5844 = vunpack.c.h.b16 %v5412
    %v5845 = vunpack.c.l.b16 %v5413
    %v5846 = vunpack.c.h.b16 %v5413
    %v5847 = vunpack.c.l.b16 %v5414
    %v5848 = vunpack.c.h.b16 %v5414
    %v5849 = vunpack.c.l.b16 %v5415
    %v5850 = vunpack.c.h.b16 %v5415
    %v5851 = vunpack.c.l.b16 %v5416
    %v5852 = vunpack.c.h.b16 %v5416
    %v5853 = vunpack.c.l.b16 %v5417
    %v5854 = vunpack.c.h.b16 %v5417
    %v5855 = vunpack.c.l.b16 %v5418
    %v5856 = vunpack.c.h.b16 %v5418
    %v5857 = vunpack.c.l.b16 %v5419
    %v5858 = vunpack.c.h.b16 %v5419
    %v5859 = vunpack.c.l.b16 %v5420
    %v5860 = vunpack.c.h.b16 %v5420
    %v5861 = vunpack.c.l.b16 %v5421
    %v5862 = vunpack.c.h.b16 %v5421
    %v5863 = vunpack.c.l.b16 %v5422
    %v5864 = vunpack.c.h.b16 %v5422
    %v5865 = vunpack.c.l.b16 %v5423
    %v5866 = vunpack.c.h.b16 %v5423
    %v5867 = vunpack.c.l.b16 %v5424
    %v5868 = vunpack.c.h.b16 %v5424
    %v5869 = vunpack.c.l.b16 %v5425
    %v5870 = vunpack.c.h.b16 %v5425
    %v5871 = vunpack.c.l.b16 %v5426
    %v5872 = vunpack.c.h.b16 %v5426
    %v5873 = vunpack.c.l.b16 %v5427
    %v5874 = vunpack.c.h.b16 %v5427
    %v5875 = vunpack.c.l.b16 %v5428
    %v5876 = vunpack.c.h.b16 %v5428
    %v5877 = vunpack.c.l.b16 %v5429
    %v5878 = vunpack.c.h.b16 %v5429
    %v5879 = vunpack.c.l.b16 %v5430
    %v5880 = vunpack.c.h.b16 %v5430
    %v5881 = vunpack.c.l.b16 %v5431
    %v5882 = vunpack.c.h.b16 %v5431
    %v5883 = vunpack.c.l.b16 %v5432
    %v5884 = vunpack.c.h.b16 %v5432
    %v5885 = vunpack.c.l.b16 %v5433
    %v5886 = vunpack.c.h.b16 %v5433
    %v5887 = vunpack.c.l.b16 %v5434
    %v5888 = vunpack.c.h.b16 %v5434
    %v5889 = vunpack.c.l.b16 %v5435
    %v5890 = vunpack.c.h.b16 %v5435
    %v5891 = vunpack.c.l.b16 %v5436
    %v5892 = vunpack.c.h.b16 %v5436
    %v5893 = vunpack.c.l.b16 %v5437
    %v5894 = vunpack.c.h.b16 %v5437
    %v5895 = vunpack.c.l.b16 %v5438
    %v5896 = vunpack.c.h.b16 %v5438
    %v5897 = vunpack.c.l.b16 %v5439
    %v5898 = vunpack.c.h.b16 %v5439
    %v5899 = vunpack.c.l.b16 %v5440
    %v5900 = vunpack.c.h.b16 %v5440
    %v5901 = vunpack.c.l.b16 %v5441
    %v5902 = vunpack.c.h.b16 %v5441
    %v5903 = vunpack.c.l.b16 %v5442
    %v5904 = vunpack.c.h.b16 %v5442
    %v5905 = vunpack.c.l.b16 %v5443
    %v5906 = vunpack.c.h.b16 %v5443
    %v5907 = vunpack.c.l.b16 %v5444
    %v5908 = vunpack.c.h.b16 %v5444
    %v5909 = vpack.c.b16 %v5657, %v5653
    %v5910 = vpack.c.b16 %v5658, %v5654
    %v5911 = vpack.c.b16 %v5659, %v5655
    %v5912 = vpack.c.b16 %v5660, %v5656
    %v5913 = vpack.c.b16 %v5665, %v5661
    %v5914 = vpack.c.b16 %v5666, %v5662
    %v5915 = vpack.c.b16 %v5667, %v5663
    %v5916 = vpack.c.b16 %v5668, %v5664
    %v5917 = vpack.c.b16 %v5673, %v5669
    %v5918 = vpack.c.b16 %v5674, %v5670
    %v5919 = vpack.c.b16 %v5675, %v5671
    %v5920 = vpack.c.b16 %v5676, %v5672
    %v5921 = vpack.c.b16 %v5681, %v5677
    %v5922 = vpack.c.b16 %v5682, %v5678
    %v5923 = vpack.c.b16 %v5683, %v5679
    %v5924 = vpack.c.b16 %v5684, %v5680
    %v5925 = vpack.c.b16 %v5689, %v5685
    %v5926 = vpack.c.b16 %v5690, %v5686
    %v5927 = vpack.c.b16 %v5691, %v5687
    %v5928 = vpack.c.b16 %v5692, %v5688
    %v5929 = vpack.c.b16 %v5697, %v5693
    %v5930 = vpack.c.b16 %v5698, %v5694
    %v5931 = vpack.c.b16 %v5699, %v5695
    %v5932 = vpack.c.b16 %v5700, %v5696
    %v5933 = vpack.c.b16 %v5705, %v5701
    %v5934 = vpack.c.b16 %v5706, %v5702
    %v5935 = vpack.c.b16 %v5707, %v5703
    %v5936 = vpack.c.b16 %v5708, %v5704
    %v5937 = vpack.c.b16 %v5713, %v5709
    %v5938 = vpack.c.b16 %v5714, %v5710
    %v5939 = vpack.c.b16 %v5715, %v5711
    %v5940 = vpack.c.b16 %v5716, %v5712
    %v5941 = vpack.c.b16 %v5721, %v5717
    %v5942 = vpack.c.b16 %v5722, %v5718
    %v5943 = vpack.c.b16 %v5723, %v5719
    %v5944 = vpack.c.b16 %v5724, %v5720
    %v5945 = vpack.c.b16 %v5729, %v5725
    %v5946 = vpack.c.b16 %v5730, %v5726
    %v5947 = vpack.c.b16 %v5731, %v5727
    %v5948 = vpack.c.b16 %v5732, %v5728
    %v5949 = vpack.c.b16 %v5737, %v5733
    %v5950 = vpack.c.b16 %v5738, %v5734
    %v5951 = vpack.c.b16 %v5739, %v5735
    %v5952 = vpack.c.b16 %v5740, %v5736
    %v5953 = vpack.c.b16 %v5745, %v5741
    %v5954 = vpack.c.b16 %v5746, %v5742
    %v5955 = vpack.c.b16 %v5747, %v5743
    %v5956 = vpack.c.b16 %v5748, %v5744
    %v5957 = vpack.c.b16 %v5753, %v5749
    %v5958 = vpack.c.b16 %v5754, %v5750
    %v5959 = vpack.c.b16 %v5755, %v5751
    %v5960 = vpack.c.b16 %v5756, %v5752
    %v5961 = vpack.c.b16 %v5761, %v5757
    %v5962 = vpack.c.b16 %v5762, %v5758
    %v5963 = vpack.c.b16 %v5763, %v5759
    %v5964 = vpack.c.b16 %v5764, %v5760
    %v5965 = vpack.c.b16 %v5769, %v5765
    %v5966 = vpack.c.b16 %v5770, %v5766
    %v5967 = vpack.c.b16 %v5771, %v5767
    %v5968 = vpack.c.b16 %v5772, %v5768
    %v5969 = vpack.c.b16 %v5777, %v5773
    %v5970 = vpack.c.b16 %v5778, %v5774
    %v5971 = vpack.c.b16 %v5779, %v5775
    %v5972 = vpack.c.b16 %v5780, %v5776
    %v5973 = vpack.c.b16 %v5785, %v5781
    %v5974 = vpack.c.b16 %v5786, %v5782
    %v5975 = vpack.c.b16 %v5787, %v5783
    %v5976 = vpack.c.b16 %v5788, %v5784
    %v5977 = vpack.c.b16 %v5793, %v5789
    %v5978 = vpack.c.b16 %v5794, %v5790
    %v5979 = vpack.c.b16 %v5795, %v5791
    %v5980 = vpack.c.b16 %v5796, %v5792
    %v5981 = vpack.c.b16 %v5801, %v5797
    %v5982 = vpack.c.b16 %v5802, %v5798
    %v5983 = vpack.c.b16 %v5803, %v5799
    %v5984 = vpack.c.b16 %v5804, %v5800
    %v5985 = vpack.c.b16 %v5809, %v5805
    %v5986 = vpack.c.b16 %v5810, %v5806
    %v5987 = vpack.c.b16 %v5811, %v5807
    %v5988 = vpack.c.b16 %v5812, %v5808
    %v5989 = vpack.c.b16 %v5817, %v5813
    %v5990 = vpack.c.b16 %v5818, %v5814
    %v5991 = vpack.c.b16 %v5819, %v5815
    %v5992 = vpack.c.b16 %v5820, %v5816
    %v5993 = vpack.c.b16 %v5825, %v5821
    %v5994 = vpack.c.b16 %v5826, %v5822
    %v5995 = vpack.c.b16 %v5827, %v5823
    %v5996 = vpack.c.b16 %v5828, %v5824
    %v5997 = vpack.c.b16 %v5833, %v5829
    %v5998 = vpack.c.b16 %v5834, %v5830
    %v5999 = vpack.c.b16 %v5835, %v5831
    %v6000 = vpack.c.b16 %v5836, %v5832
    %v6001 = vpack.c.b16 %v5841, %v5837
    %v6002 = vpack.c.b16 %v5842, %v5838
    %v6003 = vpack.c.b16 %v5843, %v5839
    %v6004 = vpack.c.b16 %v5844, %v5840
    %v6005 = vpack.c.b16 %v5849, %v5845
    %v6006 = vpack.c.b16 %v5850, %v5846
    %v6007 = vpack.c.b16 %v5851, %v5847
    %v6008 = vpack.c.b16 %v5852, %v5848
    %v6009 = vpack.c.b16 %v5857, %v5853
    %v6010 = vpack.c.b16 %v5858, %v5854
    %v6011 = vpack.c.b16 %v5859, %v5855
    %v6012 = vpack.c.b16 %v5860, %v5856
    %v6013 = vpack.c.b16 %v5865, %v5861
    %v6014 = vpack.c.b16 %v5866, %v5862
    %v6015 = vpack.c.b16 %v5867, %v5863
    %v6016 = vpack.c.b16 %v5868, %v5864
    %v6017 = vpack.c.b16 %v5873, %v5869
    %v6018 = vpack.c.b16 %v5874, %v5870
    %v6019 = vpack.c.b16 %v5875, %v5871
    %v6020 = vpack.c.b16 %v5876, %v5872
    %v6021 = vpack.c.b16 %v5881, %v5877
    %v6022 = vpack.c.b16 %v5882, %v5878
    %v6023 = vpack.c.b16 %v5883, %v5879
    %v6024 = vpack.c.b16 %v5884, %v5880
    %v6025 = vpack.c.b16 %v5889, %v5885
    %v6026 = vpack.c.b16 %v5890, %v5886
    %v6027 = vpack.c.b16 %v5891, %v5887
    %v6028 = vpack.c.b16 %v5892, %v5888
    %v6029 = vpack.c.b16 %v5897, %v5893
    %v6030 = vpack.c.b16 %v5898, %v5894
    %v6031 = vpack.c.b16 %v5899, %v5895
    %v6032 = vpack.c.b16 %v5900, %v5896
    %v6033 = vpack.c.b16 %v5905, %v5901
    %v6034 = vpack.c.b16 %v5906, %v5902
    %v6035 = vpack.c.b16 %v5907, %v5903
    %v6036 = vpack.c.b16 %v5908, %v5904
    %6165 = vmatpush.bf16.msra.mxu0 %v5937
    %6166 = vmatpush.bf16.msra.mxu0 %v5933
    %6167 = vmatpush.bf16.msra.mxu0 %v5929
    %6168 = vmatpush.bf16.msra.mxu0 %v5925
    %6169 = vmatpush.bf16.msra.mxu0 %v5921
    %6170 = vmatpush.bf16.msra.mxu0 %v5917
    %6171 = vmatpush.bf16.msra.mxu0 %v5913
    %6172 = vmatpush.bf16.msra.mxu0 %v5909
    %6173 = vmatmul.bf16.gmra.mxu0 %v5493
    %v6174 = vpop.f32.mrf.mxu0
    %v6175 = vadd.f32 0.0, %v6174
    %v6176 = vpop.f32.mrf.mxu0
    %v6177 = vadd.f32 0.0, %v6176
    %6178 = vmatmul.bf16.gmra.mxu0 %v5497
    %v6179 = vpop.f32.mrf.mxu0
    %v6180 = vadd.f32 0.0, %v6179
    %v6181 = vpop.f32.mrf.mxu0
    %v6182 = vadd.f32 0.0, %v6181
    %6183 = vmatmul.bf16.gmra.mxu0 %v5501
    %v6184 = vpop.f32.mrf.mxu0
    %v6185 = vadd.f32 0.0, %v6184
    %v6186 = vpop.f32.mrf.mxu0
    %v6187 = vadd.f32 0.0, %v6186
    %6188 = vmatmul.bf16.gmra.mxu0 %v5505
    %v6189 = vpop.f32.mrf.mxu0
    %v6190 = vadd.f32 0.0, %v6189
    %v6191 = vpop.f32.mrf.mxu0
    %v6192 = vadd.f32 0.0, %v6191
    %6193 = vdwg.mxu0
    %6194 = vmatpush.bf16.msra.mxu0 %v5969
    %6195 = vmatpush.bf16.msra.mxu0 %v5965
    %6196 = vmatpush.bf16.msra.mxu0 %v5961
    %6197 = vmatpush.bf16.msra.mxu0 %v5957
    %6198 = vmatpush.bf16.msra.mxu0 %v5953
    %6199 = vmatpush.bf16.msra.mxu0 %v5949
    %6200 = vmatpush.bf16.msra.mxu0 %v5945
    %6201 = vmatpush.bf16.msra.mxu0 %v5941
    %6202 = vmatmul.bf16.gmra.mxu0 %v5494
    %v6203 = vpop.f32.mrf.mxu0
    %v6204 = vadd.f32 %v6175, %v6203
    %v6205 = vpop.f32.mrf.mxu0
    %v6206 = vadd.f32 %v6177, %v6205
    %6207 = vmatmul.bf16.gmra.mxu0 %v5498
    %v6208 = vpop.f32.mrf.mxu0
    %v6209 = vadd.f32 %v6180, %v6208
    %v6210 = vpop.f32.mrf.mxu0
    %v6211 = vadd.f32 %v6182, %v6210
    %6212 = vmatmul.bf16.gmra.mxu0 %v5502
    %v6213 = vpop.f32.mrf.mxu0
    %v6214 = vadd.f32 %v6185, %v6213
    %v6215 = vpop.f32.mrf.mxu0
    %v6216 = vadd.f32 %v6187, %v6215
    %6217 = vmatmul.bf16.gmra.mxu0 %v5506
    %v6218 = vpop.f32.mrf.mxu0
    %v6219 = vadd.f32 %v6190, %v6218
    %v6220 = vpop.f32.mrf.mxu0
    %v6221 = vadd.f32 %v6192, %v6220
    %6222 = vdwg.mxu0
    %6223 = vmatpush.bf16.msra.mxu0 %v6001
    %6224 = vmatpush.bf16.msra.mxu0 %v5997
    %6225 = vmatpush.bf16.msra.mxu0 %v5993
    %6226 = vmatpush.bf16.msra.mxu0 %v5989
    %6227 = vmatpush.bf16.msra.mxu0 %v5985
    %6228 = vmatpush.bf16.msra.mxu0 %v5981
    %6229 = vmatpush.bf16.msra.mxu0 %v5977
    %6230 = vmatpush.bf16.msra.mxu0 %v5973
    %6231 = vmatmul.bf16.gmra.mxu0 %v5495
    %v6232 = vpop.f32.mrf.mxu0
    %v6233 = vadd.f32 %v6204, %v6232
    %v6234 = vpop.f32.mrf.mxu0
    %v6235 = vadd.f32 %v6206, %v6234
    %6236 = vmatmul.bf16.gmra.mxu0 %v5499
    %v6237 = vpop.f32.mrf.mxu0
    %v6238 = vadd.f32 %v6209, %v6237
    %v6239 = vpop.f32.mrf.mxu0
    %v6240 = vadd.f32 %v6211, %v6239
    %6241 = vmatmul.bf16.gmra.mxu0 %v5503
    %v6242 = vpop.f32.mrf.mxu0
    %v6243 = vadd.f32 %v6214, %v6242
    %v6244 = vpop.f32.mrf.mxu0
    %v6245 = vadd.f32 %v6216, %v6244
    %6246 = vmatmul.bf16.gmra.mxu0 %v5507
    %v6247 = vpop.f32.mrf.mxu0
    %v6248 = vadd.f32 %v6219, %v6247
    %v6249 = vpop.f32.mrf.mxu0
    %v6250 = vadd.f32 %v6221, %v6249
    %6251 = vdwg.mxu0
    %6252 = vmatpush.bf16.msra.mxu0 %v6033
    %6253 = vmatpush.bf16.msra.mxu0 %v6029
    %6254 = vmatpush.bf16.msra.mxu0 %v6025
    %6255 = vmatpush.bf16.msra.mxu0 %v6021
    %6256 = vmatpush.bf16.msra.mxu0 %v6017
    %6257 = vmatpush.bf16.msra.mxu0 %v6013
    %6258 = vmatpush.bf16.msra.mxu0 %v6009
    %6259 = vmatpush.bf16.msra.mxu0 %v6005
    %6260 = vmatmul.bf16.gmra.mxu0 %v5496
    %v6261 = vpop.f32.mrf.mxu0
    %v6262 = vadd.f32 %v6233, %v6261
    %v6263 = vpop.f32.mrf.mxu0
    %v6264 = vadd.f32 %v6235, %v6263
    %6265 = vmatmul.bf16.gmra.mxu0 %v5500
    %v6266 = vpop.f32.mrf.mxu0
    %v6267 = vadd.f32 %v6238, %v6266
    %v6268 = vpop.f32.mrf.mxu0
    %v6269 = vadd.f32 %v6240, %v6268
    %6270 = vmatmul.bf16.gmra.mxu0 %v5504
    %v6271 = vpop.f32.mrf.mxu0
    %v6272 = vadd.f32 %v6243, %v6271
    %v6273 = vpop.f32.mrf.mxu0
    %v6274 = vadd.f32 %v6245, %v6273
    %6275 = vmatmul.bf16.gmra.mxu0 %v5508
    %v6276 = vpop.f32.mrf.mxu0
    %v6277 = vadd.f32 %v6248, %v6276
    %v6278 = vpop.f32.mrf.mxu0
    %v6279 = vadd.f32 %v6250, %v6278
    %6280 = vdwg.mxu0
    %6281 = vmatpush.bf16.msra.mxu0 %v5938
    %6282 = vmatpush.bf16.msra.mxu0 %v5934
    %6283 = vmatpush.bf16.msra.mxu0 %v5930
    %6284 = vmatpush.bf16.msra.mxu0 %v5926
    %6285 = vmatpush.bf16.msra.mxu0 %v5922
    %6286 = vmatpush.bf16.msra.mxu0 %v5918
    %6287 = vmatpush.bf16.msra.mxu0 %v5914
    %6288 = vmatpush.bf16.msra.mxu0 %v5910
    %6289 = vmatmul.bf16.gmra.mxu0 %v5493
    %v6290 = vpop.f32.mrf.mxu0
    %v6291 = vadd.f32 0.0, %v6290
    %v6292 = vpop.f32.mrf.mxu0
    %v6293 = vadd.f32 0.0, %v6292
    %6294 = vmatmul.bf16.gmra.mxu0 %v5497
    %v6295 = vpop.f32.mrf.mxu0
    %v6296 = vadd.f32 0.0, %v6295
    %v6297 = vpop.f32.mrf.mxu0
    %v6298 = vadd.f32 0.0, %v6297
    %6299 = vmatmul.bf16.gmra.mxu0 %v5501
    %v6300 = vpop.f32.mrf.mxu0
    %v6301 = vadd.f32 0.0, %v6300
    %v6302 = vpop.f32.mrf.mxu0
    %v6303 = vadd.f32 0.0, %v6302
    %6304 = vmatmul.bf16.gmra.mxu0 %v5505
    %v6305 = vpop.f32.mrf.mxu0
    %v6306 = vadd.f32 0.0, %v6305
    %v6307 = vpop.f32.mrf.mxu0
    %v6308 = vadd.f32 0.0, %v6307
    %6309 = vdwg.mxu0
    %6310 = vmatpush.bf16.msra.mxu0 %v5970
    %6311 = vmatpush.bf16.msra.mxu0 %v5966
    %6312 = vmatpush.bf16.msra.mxu0 %v5962
    %6313 = vmatpush.bf16.msra.mxu0 %v5958
    %6314 = vmatpush.bf16.msra.mxu0 %v5954
    %6315 = vmatpush.bf16.msra.mxu0 %v5950
    %6316 = vmatpush.bf16.msra.mxu0 %v5946
    %6317 = vmatpush.bf16.msra.mxu0 %v5942
    %6318 = vmatmul.bf16.gmra.mxu0 %v5494
    %v6319 = vpop.f32.mrf.mxu0
    %v6320 = vadd.f32 %v6291, %v6319
    %v6321 = vpop.f32.mrf.mxu0
    %v6322 = vadd.f32 %v6293, %v6321
    %6323 = vmatmul.bf16.gmra.mxu0 %v5498
    %v6324 = vpop.f32.mrf.mxu0
    %v6325 = vadd.f32 %v6296, %v6324
    %v6326 = vpop.f32.mrf.mxu0
    %v6327 = vadd.f32 %v6298, %v6326
    %6328 = vmatmul.bf16.gmra.mxu0 %v5502
    %v6329 = vpop.f32.mrf.mxu0
    %v6330 = vadd.f32 %v6301, %v6329
    %v6331 = vpop.f32.mrf.mxu0
    %v6332 = vadd.f32 %v6303, %v6331
    %6333 = vmatmul.bf16.gmra.mxu0 %v5506
    %v6334 = vpop.f32.mrf.mxu0
    %v6335 = vadd.f32 %v6306, %v6334
    %v6336 = vpop.f32.mrf.mxu0
    %v6337 = vadd.f32 %v6308, %v6336
    %6338 = vdwg.mxu0
    %6339 = vmatpush.bf16.msra.mxu0 %v6002
    %6340 = vmatpush.bf16.msra.mxu0 %v5998
    %6341 = vmatpush.bf16.msra.mxu0 %v5994
    %6342 = vmatpush.bf16.msra.mxu0 %v5990
    %6343 = vmatpush.bf16.msra.mxu0 %v5986
    %6344 = vmatpush.bf16.msra.mxu0 %v5982
    %6345 = vmatpush.bf16.msra.mxu0 %v5978
    %6346 = vmatpush.bf16.msra.mxu0 %v5974
    %6347 = vmatmul.bf16.gmra.mxu0 %v5495
    %v6348 = vpop.f32.mrf.mxu0
    %v6349 = vadd.f32 %v6320, %v6348
    %v6350 = vpop.f32.mrf.mxu0
    %v6351 = vadd.f32 %v6322, %v6350
    %6352 = vmatmul.bf16.gmra.mxu0 %v5499
    %v6353 = vpop.f32.mrf.mxu0
    %v6354 = vadd.f32 %v6325, %v6353
    %v6355 = vpop.f32.mrf.mxu0
    %v6356 = vadd.f32 %v6327, %v6355
    %6357 = vmatmul.bf16.gmra.mxu0 %v5503
    %v6358 = vpop.f32.mrf.mxu0
    %v6359 = vadd.f32 %v6330, %v6358
    %v6360 = vpop.f32.mrf.mxu0
    %v6361 = vadd.f32 %v6332, %v6360
    %6362 = vmatmul.bf16.gmra.mxu0 %v5507
    %v6363 = vpop.f32.mrf.mxu0
    %v6364 = vadd.f32 %v6335, %v6363
    %v6365 = vpop.f32.mrf.mxu0
    %v6366 = vadd.f32 %v6337, %v6365
    %6367 = vdwg.mxu0
    %6368 = vmatpush.bf16.msra.mxu0 %v6034
    %6369 = vmatpush.bf16.msra.mxu0 %v6030
    %6370 = vmatpush.bf16.msra.mxu0 %v6026
    %6371 = vmatpush.bf16.msra.mxu0 %v6022
    %6372 = vmatpush.bf16.msra.mxu0 %v6018
    %6373 = vmatpush.bf16.msra.mxu0 %v6014
    %6374 = vmatpush.bf16.msra.mxu0 %v6010
    %6375 = vmatpush.bf16.msra.mxu0 %v6006
    %6376 = vmatmul.bf16.gmra.mxu0 %v5496
    %v6377 = vpop.f32.mrf.mxu0
    %v6378 = vadd.f32 %v6349, %v6377
    %v6379 = vpop.f32.mrf.mxu0
    %v6380 = vadd.f32 %v6351, %v6379
    %6381 = vmatmul.bf16.gmra.mxu0 %v5500
    %v6382 = vpop.f32.mrf.mxu0
    %v6383 = vadd.f32 %v6354, %v6382
    %v6384 = vpop.f32.mrf.mxu0
    %v6385 = vadd.f32 %v6356, %v6384
    %6386 = vmatmul.bf16.gmra.mxu0 %v5504
    %v6387 = vpop.f32.mrf.mxu0
    %v6388 = vadd.f32 %v6359, %v6387
    %v6389 = vpop.f32.mrf.mxu0
    %v6390 = vadd.f32 %v6361, %v6389
    %6391 = vmatmul.bf16.gmra.mxu0 %v5508
    %v6392 = vpop.f32.mrf.mxu0
    %v6393 = vadd.f32 %v6364, %v6392
    %v6394 = vpop.f32.mrf.mxu0
    %v6395 = vadd.f32 %v6366, %v6394
    %6396 = vdwg.mxu0
    %6397 = vmatpush.bf16.msra.mxu0 %v5939
    %6398 = vmatpush.bf16.msra.mxu0 %v5935
    %6399 = vmatpush.bf16.msra.mxu0 %v5931
    %6400 = vmatpush.bf16.msra.mxu0 %v5927
    %6401 = vmatpush.bf16.msra.mxu0 %v5923
    %6402 = vmatpush.bf16.msra.mxu0 %v5919
    %6403 = vmatpush.bf16.msra.mxu0 %v5915
    %6404 = vmatpush.bf16.msra.mxu0 %v5911
    %6405 = vmatmul.bf16.gmra.mxu0 %v5493
    %v6406 = vpop.f32.mrf.mxu0
    %v6407 = vadd.f32 0.0, %v6406
    %v6408 = vpop.f32.mrf.mxu0
    %v6409 = vadd.f32 0.0, %v6408
    %6410 = vmatmul.bf16.gmra.mxu0 %v5497
    %v6411 = vpop.f32.mrf.mxu0
    %v6412 = vadd.f32 0.0, %v6411
    %v6413 = vpop.f32.mrf.mxu0
    %v6414 = vadd.f32 0.0, %v6413
    %6415 = vmatmul.bf16.gmra.mxu0 %v5501
    %v6416 = vpop.f32.mrf.mxu0
    %v6417 = vadd.f32 0.0, %v6416
    %v6418 = vpop.f32.mrf.mxu0
    %v6419 = vadd.f32 0.0, %v6418
    %6420 = vmatmul.bf16.gmra.mxu0 %v5505
    %v6421 = vpop.f32.mrf.mxu0
    %v6422 = vadd.f32 0.0, %v6421
    %v6423 = vpop.f32.mrf.mxu0
    %v6424 = vadd.f32 0.0, %v6423
    %6425 = vdwg.mxu0
    %6426 = vmatpush.bf16.msra.mxu0 %v5971
    %6427 = vmatpush.bf16.msra.mxu0 %v5967
    %6428 = vmatpush.bf16.msra.mxu0 %v5963
    %6429 = vmatpush.bf16.msra.mxu0 %v5959
    %6430 = vmatpush.bf16.msra.mxu0 %v5955
    %6431 = vmatpush.bf16.msra.mxu0 %v5951
    %6432 = vmatpush.bf16.msra.mxu0 %v5947
    %6433 = vmatpush.bf16.msra.mxu0 %v5943
    %6434 = vmatmul.bf16.gmra.mxu0 %v5494
    %v6435 = vpop.f32.mrf.mxu0
    %v6436 = vadd.f32 %v6407, %v6435
    %v6437 = vpop.f32.mrf.mxu0
    %v6438 = vadd.f32 %v6409, %v6437
    %6439 = vmatmul.bf16.gmra.mxu0 %v5498
    %v6440 = vpop.f32.mrf.mxu0
    %v6441 = vadd.f32 %v6412, %v6440
    %v6442 = vpop.f32.mrf.mxu0
    %v6443 = vadd.f32 %v6414, %v6442
    %6444 = vmatmul.bf16.gmra.mxu0 %v5502
    %v6445 = vpop.f32.mrf.mxu0
    %v6446 = vadd.f32 %v6417, %v6445
    %v6447 = vpop.f32.mrf.mxu0
    %v6448 = vadd.f32 %v6419, %v6447
    %6449 = vmatmul.bf16.gmra.mxu0 %v5506
    %v6450 = vpop.f32.mrf.mxu0
    %v6451 = vadd.f32 %v6422, %v6450
    %v6452 = vpop.f32.mrf.mxu0
    %v6453 = vadd.f32 %v6424, %v6452
    %6454 = vdwg.mxu0
    %6455 = vmatpush.bf16.msra.mxu0 %v6003
    %6456 = vmatpush.bf16.msra.mxu0 %v5999
    %6457 = vmatpush.bf16.msra.mxu0 %v5995
    %6458 = vmatpush.bf16.msra.mxu0 %v5991
    %6459 = vmatpush.bf16.msra.mxu0 %v5987
    %6460 = vmatpush.bf16.msra.mxu0 %v5983
    %6461 = vmatpush.bf16.msra.mxu0 %v5979
    %6462 = vmatpush.bf16.msra.mxu0 %v5975
    %6463 = vmatmul.bf16.gmra.mxu0 %v5495
    %v6464 = vpop.f32.mrf.mxu0
    %v6465 = vadd.f32 %v6436, %v6464
    %v6466 = vpop.f32.mrf.mxu0
    %v6467 = vadd.f32 %v6438, %v6466
    %6468 = vmatmul.bf16.gmra.mxu0 %v5499
    %v6469 = vpop.f32.mrf.mxu0
    %v6470 = vadd.f32 %v6441, %v6469
    %v6471 = vpop.f32.mrf.mxu0
    %v6472 = vadd.f32 %v6443, %v6471
    %6473 = vmatmul.bf16.gmra.mxu0 %v5503
    %v6474 = vpop.f32.mrf.mxu0
    %v6475 = vadd.f32 %v6446, %v6474
    %v6476 = vpop.f32.mrf.mxu0
    %v6477 = vadd.f32 %v6448, %v6476
    %6478 = vmatmul.bf16.gmra.mxu0 %v5507
    %v6479 = vpop.f32.mrf.mxu0
    %v6480 = vadd.f32 %v6451, %v6479
    %v6481 = vpop.f32.mrf.mxu0
    %v6482 = vadd.f32 %v6453, %v6481
    %6483 = vdwg.mxu0
    %6484 = vmatpush.bf16.msra.mxu0 %v6035
    %6485 = vmatpush.bf16.msra.mxu0 %v6031
    %6486 = vmatpush.bf16.msra.mxu0 %v6027
    %6487 = vmatpush.bf16.msra.mxu0 %v6023
    %6488 = vmatpush.bf16.msra.mxu0 %v6019
    %6489 = vmatpush.bf16.msra.mxu0 %v6015
    %6490 = vmatpush.bf16.msra.mxu0 %v6011
    %6491 = vmatpush.bf16.msra.mxu0 %v6007
    %6492 = vmatmul.bf16.gmra.mxu0 %v5496
    %v6493 = vpop.f32.mrf.mxu0
    %v6494 = vadd.f32 %v6465, %v6493
    %v6495 = vpop.f32.mrf.mxu0
    %v6496 = vadd.f32 %v6467, %v6495
    %6497 = vmatmul.bf16.gmra.mxu0 %v5500
    %v6498 = vpop.f32.mrf.mxu0
    %v6499 = vadd.f32 %v6470, %v6498
    %v6500 = vpop.f32.mrf.mxu0
    %v6501 = vadd.f32 %v6472, %v6500
    %6502 = vmatmul.bf16.gmra.mxu0 %v5504
    %v6503 = vpop.f32.mrf.mxu0
    %v6504 = vadd.f32 %v6475, %v6503
    %v6505 = vpop.f32.mrf.mxu0
    %v6506 = vadd.f32 %v6477, %v6505
    %6507 = vmatmul.bf16.gmra.mxu0 %v5508
    %v6508 = vpop.f32.mrf.mxu0
    %v6509 = vadd.f32 %v6480, %v6508
    %v6510 = vpop.f32.mrf.mxu0
    %v6511 = vadd.f32 %v6482, %v6510
    %6512 = vdwg.mxu0
    %6513 = vmatpush.bf16.msra.mxu0 %v5940
    %6514 = vmatpush.bf16.msra.mxu0 %v5936
    %6515 = vmatpush.bf16.msra.mxu0 %v5932
    %6516 = vmatpush.bf16.msra.mxu0 %v5928
    %6517 = vmatpush.bf16.msra.mxu0 %v5924
    %6518 = vmatpush.bf16.msra.mxu0 %v5920
    %6519 = vmatpush.bf16.msra.mxu0 %v5916
    %6520 = vmatpush.bf16.msra.mxu0 %v5912
    %6521 = vmatmul.bf16.gmra.mxu0 %v5493
    %v6522 = vpop.f32.mrf.mxu0
    %v6523 = vadd.f32 0.0, %v6522
    %v6524 = vpop.f32.mrf.mxu0
    %v6525 = vadd.f32 0.0, %v6524
    %6526 = vmatmul.bf16.gmra.mxu0 %v5497
    %v6527 = vpop.f32.mrf.mxu0
    %v6528 = vadd.f32 0.0, %v6527
    %v6529 = vpop.f32.mrf.mxu0
    %v6530 = vadd.f32 0.0, %v6529
    %6531 = vmatmul.bf16.gmra.mxu0 %v5501
    %v6532 = vpop.f32.mrf.mxu0
    %v6533 = vadd.f32 0.0, %v6532
    %v6534 = vpop.f32.mrf.mxu0
    %v6535 = vadd.f32 0.0, %v6534
    %6536 = vmatmul.bf16.gmra.mxu0 %v5505
    %v6537 = vpop.f32.mrf.mxu0
    %v6538 = vadd.f32 0.0, %v6537
    %v6539 = vpop.f32.mrf.mxu0
    %v6540 = vadd.f32 0.0, %v6539
    %6541 = vdwg.mxu0
    %6542 = vmatpush.bf16.msra.mxu0 %v5972
    %6543 = vmatpush.bf16.msra.mxu0 %v5968
    %6544 = vmatpush.bf16.msra.mxu0 %v5964
    %6545 = vmatpush.bf16.msra.mxu0 %v5960
    %6546 = vmatpush.bf16.msra.mxu0 %v5956
    %6547 = vmatpush.bf16.msra.mxu0 %v5952
    %6548 = vmatpush.bf16.msra.mxu0 %v5948
    %6549 = vmatpush.bf16.msra.mxu0 %v5944
    %6550 = vmatmul.bf16.gmra.mxu0 %v5494
    %v6551 = vpop.f32.mrf.mxu0
    %v6552 = vadd.f32 %v6523, %v6551
    %v6553 = vpop.f32.mrf.mxu0
    %v6554 = vadd.f32 %v6525, %v6553
    %6555 = vmatmul.bf16.gmra.mxu0 %v5498
    %v6556 = vpop.f32.mrf.mxu0
    %v6557 = vadd.f32 %v6528, %v6556
    %v6558 = vpop.f32.mrf.mxu0
    %v6559 = vadd.f32 %v6530, %v6558
    %6560 = vmatmul.bf16.gmra.mxu0 %v5502
    %v6561 = vpop.f32.mrf.mxu0
    %v6562 = vadd.f32 %v6533, %v6561
    %v6563 = vpop.f32.mrf.mxu0
    %v6564 = vadd.f32 %v6535, %v6563
    %6565 = vmatmul.bf16.gmra.mxu0 %v5506
    %v6566 = vpop.f32.mrf.mxu0
    %v6567 = vadd.f32 %v6538, %v6566
    %v6568 = vpop.f32.mrf.mxu0
    %v6569 = vadd.f32 %v6540, %v6568
    %6570 = vdwg.mxu0
    %6571 = vmatpush.bf16.msra.mxu0 %v6004
    %6572 = vmatpush.bf16.msra.mxu0 %v6000
    %6573 = vmatpush.bf16.msra.mxu0 %v5996
    %6574 = vmatpush.bf16.msra.mxu0 %v5992
    %6575 = vmatpush.bf16.msra.mxu0 %v5988
    %6576 = vmatpush.bf16.msra.mxu0 %v5984
    %6577 = vmatpush.bf16.msra.mxu0 %v5980
    %6578 = vmatpush.bf16.msra.mxu0 %v5976
    %6579 = vmatmul.bf16.gmra.mxu0 %v5495
    %v6580 = vpop.f32.mrf.mxu0
    %v6581 = vadd.f32 %v6552, %v6580
    %v6582 = vpop.f32.mrf.mxu0
    %v6583 = vadd.f32 %v6554, %v6582
    %6584 = vmatmul.bf16.gmra.mxu0 %v5499
    %v6585 = vpop.f32.mrf.mxu0
    %v6586 = vadd.f32 %v6557, %v6585
    %v6587 = vpop.f32.mrf.mxu0
    %v6588 = vadd.f32 %v6559, %v6587
    %6589 = vmatmul.bf16.gmra.mxu0 %v5503
    %v6590 = vpop.f32.mrf.mxu0
    %v6591 = vadd.f32 %v6562, %v6590
    %v6592 = vpop.f32.mrf.mxu0
    %v6593 = vadd.f32 %v6564, %v6592
    %6594 = vmatmul.bf16.gmra.mxu0 %v5507
    %v6595 = vpop.f32.mrf.mxu0
    %v6596 = vadd.f32 %v6567, %v6595
    %v6597 = vpop.f32.mrf.mxu0
    %v6598 = vadd.f32 %v6569, %v6597
    %6599 = vdwg.mxu0
    %6600 = vmatpush.bf16.msra.mxu0 %v6036
    %6601 = vmatpush.bf16.msra.mxu0 %v6032
    %6602 = vmatpush.bf16.msra.mxu0 %v6028
    %6603 = vmatpush.bf16.msra.mxu0 %v6024
    %6604 = vmatpush.bf16.msra.mxu0 %v6020
    %6605 = vmatpush.bf16.msra.mxu0 %v6016
    %6606 = vmatpush.bf16.msra.mxu0 %v6012
    %6607 = vmatpush.bf16.msra.mxu0 %v6008
    %6608 = vmatmul.bf16.gmra.mxu0 %v5496
    %v6609 = vpop.f32.mrf.mxu0
    %v6610 = vadd.f32 %v6581, %v6609
    %v6611 = vpop.f32.mrf.mxu0
    %v6612 = vadd.f32 %v6583, %v6611
    %6613 = vmatmul.bf16.gmra.mxu0 %v5500
    %v6614 = vpop.f32.mrf.mxu0
    %v6615 = vadd.f32 %v6586, %v6614
    %v6616 = vpop.f32.mrf.mxu0
    %v6617 = vadd.f32 %v6588, %v6616
    %6618 = vmatmul.bf16.gmra.mxu0 %v5504
    %v6619 = vpop.f32.mrf.mxu0
    %v6620 = vadd.f32 %v6591, %v6619
    %v6621 = vpop.f32.mrf.mxu0
    %v6622 = vadd.f32 %v6593, %v6621
    %6623 = vmatmul.bf16.gmra.mxu0 %v5508
    %v6624 = vpop.f32.mrf.mxu0
    %v6625 = vadd.f32 %v6596, %v6624
    %v6626 = vpop.f32.mrf.mxu0
    %v6627 = vadd.f32 %v6598, %v6626
    %6628 = vdwg.mxu0
    %v6629 = vadd.f32 %v4932, %v6262
    %v6630 = vadd.f32 %v5048, %v6378
    %v6631 = vadd.f32 %v5164, %v6494
    %v6632 = vadd.f32 %v5280, %v6610
    %v6633 = vadd.f32 %v4934, %v6264
    %v6634 = vadd.f32 %v5050, %v6380
    %v6635 = vadd.f32 %v5166, %v6496
    %v6636 = vadd.f32 %v5282, %v6612
    %v6637 = vadd.f32 %v4937, %v6267
    %v6638 = vadd.f32 %v5053, %v6383
    %v6639 = vadd.f32 %v5169, %v6499
    %v6640 = vadd.f32 %v5285, %v6615
    %v6641 = vadd.f32 %v4939, %v6269
    %v6642 = vadd.f32 %v5055, %v6385
    %v6643 = vadd.f32 %v5171, %v6501
    %v6644 = vadd.f32 %v5287, %v6617
    %v6645 = vadd.f32 %v4942, %v6272
    %v6646 = vadd.f32 %v5058, %v6388
    %v6647 = vadd.f32 %v5174, %v6504
    %v6648 = vadd.f32 %v5290, %v6620
    %v6649 = vadd.f32 %v4944, %v6274
    %v6650 = vadd.f32 %v5060, %v6390
    %v6651 = vadd.f32 %v5176, %v6506
    %v6652 = vadd.f32 %v5292, %v6622
    %v6653 = vadd.f32 %v4947, %v6277
    %v6654 = vadd.f32 %v5063, %v6393
    %v6655 = vadd.f32 %v5179, %v6509
    %v6656 = vadd.f32 %v5295, %v6625
    %v6657 = vadd.f32 %v4949, %v6279
    %v6658 = vadd.f32 %v5065, %v6395
    %v6659 = vadd.f32 %v5181, %v6511
    %v6660 = vadd.f32 %v5297, %v6627
    %v6661 = vld [vmem:[%s6] sm:$0xf]
    %v6663 = vperm.slane %v6661, 0
    %v6664 = vperm.slane %v6661, 1
    %v6665 = vperm.slane %v6661, 2
    %v6666 = vperm.slane %v6661, 3
    %v6671 = vadd.f32 %v6629, %v6663
    %v6672 = vadd.f32 %v6630, %v6664
    %v6673 = vadd.f32 %v6631, %v6665
    %v6674 = vadd.f32 %v6632, %v6666
    %v6675 = vadd.f32 %v6633, %v6663
    %v6676 = vadd.f32 %v6634, %v6664
    %v6677 = vadd.f32 %v6635, %v6665
    %v6678 = vadd.f32 %v6636, %v6666
    %v6679 = vadd.f32 %v6637, %v6663
    %v6680 = vadd.f32 %v6638, %v6664
    %v6681 = vadd.f32 %v6639, %v6665
    %v6682 = vadd.f32 %v6640, %v6666
    %v6683 = vadd.f32 %v6641, %v6663
    %v6684 = vadd.f32 %v6642, %v6664
    %v6685 = vadd.f32 %v6643, %v6665
    %v6686 = vadd.f32 %v6644, %v6666
    %v6687 = vadd.f32 %v6645, %v6663
    %v6688 = vadd.f32 %v6646, %v6664
    %v6689 = vadd.f32 %v6647, %v6665
    %v6690 = vadd.f32 %v6648, %v6666
    %v6691 = vadd.f32 %v6649, %v6663
    %v6692 = vadd.f32 %v6650, %v6664
    %v6693 = vadd.f32 %v6651, %v6665
    %v6694 = vadd.f32 %v6652, %v6666
    %v6695 = vadd.f32 %v6653, %v6663
    %v6696 = vadd.f32 %v6654, %v6664
    %v6697 = vadd.f32 %v6655, %v6665
    %v6698 = vadd.f32 %v6656, %v6666
    %v6699 = vadd.f32 %v6657, %v6663
    %v6700 = vadd.f32 %v6658, %v6664
    %v6701 = vadd.f32 %v6659, %v6665
    %v6702 = vadd.f32 %v6660, %v6666
    %v6703 = vmax.f32 %v6671, 0.0
    %v6704 = vmax.f32 %v6672, 0.0
    %v6705 = vmax.f32 %v6673, 0.0
    %v6706 = vmax.f32 %v6674, 0.0
    %v6707 = vmax.f32 %v6675, 0.0
    %v6708 = vmax.f32 %v6676, 0.0
    %v6709 = vmax.f32 %v6677, 0.0
    %v6710 = vmax.f32 %v6678, 0.0
    %v6711 = vmax.f32 %v6679, 0.0
    %v6712 = vmax.f32 %v6680, 0.0
    %v6713 = vmax.f32 %v6681, 0.0
    %v6714 = vmax.f32 %v6682, 0.0
    %v6715 = vmax.f32 %v6683, 0.0
    %v6716 = vmax.f32 %v6684, 0.0
    %v6717 = vmax.f32 %v6685, 0.0
    %v6718 = vmax.f32 %v6686, 0.0
    %v6719 = vmax.f32 %v6687, 0.0
    %v6720 = vmax.f32 %v6688, 0.0
    %v6721 = vmax.f32 %v6689, 0.0
    %v6722 = vmax.f32 %v6690, 0.0
    %v6723 = vmax.f32 %v6691, 0.0
    %v6724 = vmax.f32 %v6692, 0.0
    %v6725 = vmax.f32 %v6693, 0.0
    %v6726 = vmax.f32 %v6694, 0.0
    %v6727 = vmax.f32 %v6695, 0.0
    %v6728 = vmax.f32 %v6696, 0.0
    %v6729 = vmax.f32 %v6697, 0.0
    %v6730 = vmax.f32 %v6698, 0.0
    %v6731 = vmax.f32 %v6699, 0.0
    %v6732 = vmax.f32 %v6700, 0.0
    %v6733 = vmax.f32 %v6701, 0.0
    %v6734 = vmax.f32 %v6702, 0.0
    %v6735 = vpack.c.bf16 %v6704, %v6703
    %v6736 = vpack.c.bf16 %v6706, %v6705
    %v6737 = vpack.c.bf16 %v6708, %v6707
    %v6738 = vpack.c.bf16 %v6710, %v6709
    %v6739 = vpack.c.bf16 %v6712, %v6711
    %v6740 = vpack.c.bf16 %v6714, %v6713
    %v6741 = vpack.c.bf16 %v6716, %v6715
    %v6742 = vpack.c.bf16 %v6718, %v6717
    %v6743 = vpack.c.bf16 %v6720, %v6719
    %v6744 = vpack.c.bf16 %v6722, %v6721
    %v6745 = vpack.c.bf16 %v6724, %v6723
    %v6746 = vpack.c.bf16 %v6726, %v6725
    %v6747 = vpack.c.bf16 %v6728, %v6727
    %v6748 = vpack.c.bf16 %v6730, %v6729
    %v6749 = vpack.c.bf16 %v6732, %v6731
    %v6750 = vpack.c.bf16 %v6734, %v6733
    %v6751 = vld [vmem:[#allocation9] sm:$0xf]
    %v6752 = vld [vmem:[#allocation9 + $0x4] sm:$0xf]
    %v6753 = vld [vmem:[#allocation9 + $0x8] sm:$0xf]
    %v6754 = vld [vmem:[#allocation9 + $0xc] sm:$0xf]
    %v6755 = vld [vmem:[#allocation9 + $0x10] sm:$0xf]
    %v6756 = vld [vmem:[#allocation9 + $0x14] sm:$0xf]
    %v6757 = vld [vmem:[#allocation9 + $0x18] sm:$0xf]
    %v6758 = vld [vmem:[#allocation9 + $0x1c] sm:$0xf]
    %v6759 = vld [vmem:[#allocation9 + $0x20] sm:$0xf]
    %v6760 = vld [vmem:[#allocation9 + $0x24] sm:$0xf]
    %v6761 = vld [vmem:[#allocation9 + $0x28] sm:$0xf]
    %v6762 = vld [vmem:[#allocation9 + $0x2c] sm:$0xf]
    %v6763 = vld [vmem:[#allocation9 + $0x30] sm:$0xf]
    %v6764 = vld [vmem:[#allocation9 + $0x34] sm:$0xf]
    %v6765 = vld [vmem:[#allocation9 + $0x38] sm:$0xf]
    %v6766 = vld [vmem:[#allocation9 + $0x3c] sm:$0xf]
    %v6767 = vld [vmem:[#allocation9 + $0x40] sm:$0xf]
    %v6768 = vld [vmem:[#allocation9 + $0x44] sm:$0xf]
    %v6769 = vld [vmem:[#allocation9 + $0x48] sm:$0xf]
    %v6770 = vld [vmem:[#allocation9 + $0x4c] sm:$0xf]
    %v6771 = vld [vmem:[#allocation9 + $0x50] sm:$0xf]
    %v6772 = vld [vmem:[#allocation9 + $0x54] sm:$0xf]
    %v6773 = vld [vmem:[#allocation9 + $0x58] sm:$0xf]
    %v6774 = vld [vmem:[#allocation9 + $0x5c] sm:$0xf]
    %v6775 = vld [vmem:[#allocation9 + $0x60] sm:$0xf]
    %v6776 = vld [vmem:[#allocation9 + $0x64] sm:$0xf]
    %v6777 = vld [vmem:[#allocation9 + $0x68] sm:$0xf]
    %v6778 = vld [vmem:[#allocation9 + $0x6c] sm:$0xf]
    %v6779 = vld [vmem:[#allocation9 + $0x70] sm:$0xf]
    %v6780 = vld [vmem:[#allocation9 + $0x74] sm:$0xf]
    %v6781 = vld [vmem:[#allocation9 + $0x78] sm:$0xf]
    %v6782 = vld [vmem:[#allocation9 + $0x7c] sm:$0xf]
    %v6783 = vld [vmem:[#allocation9 + $0x80] sm:$0xf]
    %v6784 = vld [vmem:[#allocation9 + $0x84] sm:$0xf]
    %v6785 = vld [vmem:[#allocation9 + $0x88] sm:$0xf]
    %v6786 = vld [vmem:[#allocation9 + $0x8c] sm:$0xf]
    %v6787 = vld [vmem:[#allocation9 + $0x90] sm:$0xf]
    %v6788 = vld [vmem:[#allocation9 + $0x94] sm:$0xf]
    %v6789 = vld [vmem:[#allocation9 + $0x98] sm:$0xf]
    %v6790 = vld [vmem:[#allocation9 + $0x9c] sm:$0xf]
    %v6791 = vld [vmem:[#allocation9 + $0xa0] sm:$0xf]
    %v6792 = vld [vmem:[#allocation9 + $0xa4] sm:$0xf]
    %v6793 = vld [vmem:[#allocation9 + $0xa8] sm:$0xf]
    %v6794 = vld [vmem:[#allocation9 + $0xac] sm:$0xf]
    %v6795 = vld [vmem:[#allocation9 + $0xb0] sm:$0xf]
    %v6796 = vld [vmem:[#allocation9 + $0xb4] sm:$0xf]
    %v6797 = vld [vmem:[#allocation9 + $0xb8] sm:$0xf]
    %v6798 = vld [vmem:[#allocation9 + $0xbc] sm:$0xf]
    %v6799 = vld [vmem:[#allocation9 + $0xc0] sm:$0xf]
    %v6800 = vld [vmem:[#allocation9 + $0xc4] sm:$0xf]
    %v6801 = vld [vmem:[#allocation9 + $0xc8] sm:$0xf]
    %v6802 = vld [vmem:[#allocation9 + $0xcc] sm:$0xf]
    %v6803 = vld [vmem:[#allocation9 + $0xd0] sm:$0xf]
    %v6804 = vld [vmem:[#allocation9 + $0xd4] sm:$0xf]
    %v6805 = vld [vmem:[#allocation9 + $0xd8] sm:$0xf]
    %v6806 = vld [vmem:[#allocation9 + $0xdc] sm:$0xf]
    %v6807 = vld [vmem:[#allocation9 + $0xe0] sm:$0xf]
    %v6808 = vld [vmem:[#allocation9 + $0xe4] sm:$0xf]
    %v6809 = vld [vmem:[#allocation9 + $0xe8] sm:$0xf]
    %v6810 = vld [vmem:[#allocation9 + $0xec] sm:$0xf]
    %v6811 = vld [vmem:[#allocation9 + $0xf0] sm:$0xf]
    %v6812 = vld [vmem:[#allocation9 + $0xf4] sm:$0xf]
    %v6813 = vld [vmem:[#allocation9 + $0xf8] sm:$0xf]
    %v6814 = vld [vmem:[#allocation9 + $0xfc] sm:$0xf]
    %s6815 = scalar_lea.vmem [#allocation9], 256
    %v6816 = vld [vmem:[%s6815] sm:$0xf]
    %v6817 = vld [vmem:[%s6815 + $0x4] sm:$0xf]
    %v6818 = vld [vmem:[%s6815 + $0x8] sm:$0xf]
    %v6819 = vld [vmem:[%s6815 + $0xc] sm:$0xf]
    %v6820 = vld [vmem:[%s6815 + $0x10] sm:$0xf]
    %v6821 = vld [vmem:[%s6815 + $0x14] sm:$0xf]
    %v6822 = vld [vmem:[%s6815 + $0x18] sm:$0xf]
    %v6823 = vld [vmem:[%s6815 + $0x1c] sm:$0xf]
    %v6824 = vld [vmem:[%s6815 + $0x20] sm:$0xf]
    %v6825 = vld [vmem:[%s6815 + $0x24] sm:$0xf]
    %v6826 = vld [vmem:[%s6815 + $0x28] sm:$0xf]
    %v6827 = vld [vmem:[%s6815 + $0x2c] sm:$0xf]
    %v6828 = vld [vmem:[%s6815 + $0x30] sm:$0xf]
    %v6829 = vld [vmem:[%s6815 + $0x34] sm:$0xf]
    %v6830 = vld [vmem:[%s6815 + $0x38] sm:$0xf]
    %v6831 = vld [vmem:[%s6815 + $0x3c] sm:$0xf]
    %v6832 = vld [vmem:[%s6815 + $0x40] sm:$0xf]
    %v6833 = vld [vmem:[%s6815 + $0x44] sm:$0xf]
    %v6834 = vld [vmem:[%s6815 + $0x48] sm:$0xf]
    %v6835 = vld [vmem:[%s6815 + $0x4c] sm:$0xf]
    %v6836 = vld [vmem:[%s6815 + $0x50] sm:$0xf]
    %v6837 = vld [vmem:[%s6815 + $0x54] sm:$0xf]
    %v6838 = vld [vmem:[%s6815 + $0x58] sm:$0xf]
    %v6839 = vld [vmem:[%s6815 + $0x5c] sm:$0xf]
    %v6840 = vld [vmem:[%s6815 + $0x60] sm:$0xf]
    %v6841 = vld [vmem:[%s6815 + $0x64] sm:$0xf]
    %v6842 = vld [vmem:[%s6815 + $0x68] sm:$0xf]
    %v6843 = vld [vmem:[%s6815 + $0x6c] sm:$0xf]
    %v6844 = vld [vmem:[%s6815 + $0x70] sm:$0xf]
    %v6845 = vld [vmem:[%s6815 + $0x74] sm:$0xf]
    %v6846 = vld [vmem:[%s6815 + $0x78] sm:$0xf]
    %v6847 = vld [vmem:[%s6815 + $0x7c] sm:$0xf]
    %v6848 = vld [vmem:[%s6815 + $0x80] sm:$0xf]
    %v6849 = vld [vmem:[%s6815 + $0x84] sm:$0xf]
    %v6850 = vld [vmem:[%s6815 + $0x88] sm:$0xf]
    %v6851 = vld [vmem:[%s6815 + $0x8c] sm:$0xf]
    %v6852 = vld [vmem:[%s6815 + $0x90] sm:$0xf]
    %v6853 = vld [vmem:[%s6815 + $0x94] sm:$0xf]
    %v6854 = vld [vmem:[%s6815 + $0x98] sm:$0xf]
    %v6855 = vld [vmem:[%s6815 + $0x9c] sm:$0xf]
    %v6856 = vld [vmem:[%s6815 + $0xa0] sm:$0xf]
    %v6857 = vld [vmem:[%s6815 + $0xa4] sm:$0xf]
    %v6858 = vld [vmem:[%s6815 + $0xa8] sm:$0xf]
    %v6859 = vld [vmem:[%s6815 + $0xac] sm:$0xf]
    %v6860 = vld [vmem:[%s6815 + $0xb0] sm:$0xf]
    %v6861 = vld [vmem:[%s6815 + $0xb4] sm:$0xf]
    %v6862 = vld [vmem:[%s6815 + $0xb8] sm:$0xf]
    %v6863 = vld [vmem:[%s6815 + $0xbc] sm:$0xf]
    %v6864 = vld [vmem:[%s6815 + $0xc0] sm:$0xf]
    %v6865 = vld [vmem:[%s6815 + $0xc4] sm:$0xf]
    %v6866 = vld [vmem:[%s6815 + $0xc8] sm:$0xf]
    %v6867 = vld [vmem:[%s6815 + $0xcc] sm:$0xf]
    %v6868 = vld [vmem:[%s6815 + $0xd0] sm:$0xf]
    %v6869 = vld [vmem:[%s6815 + $0xd4] sm:$0xf]
    %v6870 = vld [vmem:[%s6815 + $0xd8] sm:$0xf]
    %v6871 = vld [vmem:[%s6815 + $0xdc] sm:$0xf]
    %v6872 = vld [vmem:[%s6815 + $0xe0] sm:$0xf]
    %v6873 = vld [vmem:[%s6815 + $0xe4] sm:$0xf]
    %v6874 = vld [vmem:[%s6815 + $0xe8] sm:$0xf]
    %v6875 = vld [vmem:[%s6815 + $0xec] sm:$0xf]
    %v6876 = vld [vmem:[%s6815 + $0xf0] sm:$0xf]
    %v6877 = vld [vmem:[%s6815 + $0xf4] sm:$0xf]
    %v6878 = vld [vmem:[%s6815 + $0xf8] sm:$0xf]
    %v6879 = vld [vmem:[%s6815 + $0xfc] sm:$0xf]
    %v6882 = vunpack.c.l.b16 %v6737
    %v6883 = vunpack.c.h.b16 %v6737
    %v6884 = vunpack.c.l.b16 %v6738
    %v6885 = vunpack.c.h.b16 %v6738
    %v6886 = vpack.c.b16 %v6882, %v6882
    %v6887 = vpack.c.b16 %v6883, %v6883
    %v6888 = vpack.c.b16 %v6884, %v6884
    %v6889 = vpack.c.b16 %v6885, %v6885
    %v6958 = vunpack.c.l.b16 %v6816
    %v6959 = vunpack.c.l.b16 %v6817
    %v6960 = vunpack.c.l.b16 %v6818
    %v6961 = vunpack.c.l.b16 %v6819
    %v6962 = vunpack.c.l.b16 %v6820
    %v6963 = vunpack.c.l.b16 %v6821
    %v6964 = vunpack.c.l.b16 %v6822
    %v6965 = vunpack.c.l.b16 %v6823
    %v6966 = vunpack.c.l.b16 %v6824
    %v6967 = vunpack.c.l.b16 %v6825
    %v6968 = vunpack.c.l.b16 %v6826
    %v6969 = vunpack.c.l.b16 %v6827
    %v6970 = vunpack.c.l.b16 %v6828
    %v6971 = vunpack.c.l.b16 %v6829
    %v6972 = vunpack.c.l.b16 %v6830
    %v6973 = vunpack.c.l.b16 %v6831
    %v6974 = vunpack.c.l.b16 %v6832
    %v6975 = vunpack.c.l.b16 %v6833
    %v6976 = vunpack.c.l.b16 %v6834
    %v6977 = vunpack.c.l.b16 %v6835
    %v6978 = vunpack.c.l.b16 %v6836
    %v6979 = vunpack.c.l.b16 %v6837
    %v6980 = vunpack.c.l.b16 %v6838
    %v6981 = vunpack.c.l.b16 %v6839
    %v6982 = vunpack.c.l.b16 %v6840
    %v6983 = vunpack.c.l.b16 %v6841
    %v6984 = vunpack.c.l.b16 %v6842
    %v6985 = vunpack.c.l.b16 %v6843
    %v6986 = vunpack.c.l.b16 %v6844
    %v6987 = vunpack.c.l.b16 %v6845
    %v6988 = vunpack.c.l.b16 %v6846
    %v6989 = vunpack.c.l.b16 %v6847
    %v6990 = vunpack.c.l.b16 %v6848
    %v6991 = vunpack.c.l.b16 %v6849
    %v6992 = vunpack.c.l.b16 %v6850
    %v6993 = vunpack.c.l.b16 %v6851
    %v6994 = vunpack.c.l.b16 %v6852
    %v6995 = vunpack.c.l.b16 %v6853
    %v6996 = vunpack.c.l.b16 %v6854
    %v6997 = vunpack.c.l.b16 %v6855
    %v6998 = vunpack.c.l.b16 %v6856
    %v6999 = vunpack.c.l.b16 %v6857
    %v7000 = vunpack.c.l.b16 %v6858
    %v7001 = vunpack.c.l.b16 %v6859
    %v7002 = vunpack.c.l.b16 %v6860
    %v7003 = vunpack.c.l.b16 %v6861
    %v7004 = vunpack.c.l.b16 %v6862
    %v7005 = vunpack.c.l.b16 %v6863
    %v7006 = vunpack.c.l.b16 %v6864
    %v7007 = vunpack.c.l.b16 %v6865
    %v7008 = vunpack.c.l.b16 %v6866
    %v7009 = vunpack.c.l.b16 %v6867
    %v7010 = vunpack.c.l.b16 %v6868
    %v7011 = vunpack.c.l.b16 %v6869
    %v7012 = vunpack.c.l.b16 %v6870
    %v7013 = vunpack.c.l.b16 %v6871
    %v7014 = vunpack.c.l.b16 %v6872
    %v7015 = vunpack.c.l.b16 %v6873
    %v7016 = vunpack.c.l.b16 %v6874
    %v7017 = vunpack.c.l.b16 %v6875
    %v7018 = vunpack.c.l.b16 %v6876
    %v7019 = vunpack.c.l.b16 %v6877
    %v7020 = vunpack.c.l.b16 %v6878
    %v7021 = vunpack.c.l.b16 %v6879
    %v7022 = vpack.c.b16 %v6959, %v6958
    %v7023 = vpack.c.b16 %v6961, %v6960
    %v7024 = vpack.c.b16 %v6963, %v6962
    %v7025 = vpack.c.b16 %v6965, %v6964
    %v7026 = vpack.c.b16 %v6967, %v6966
    %v7027 = vpack.c.b16 %v6969, %v6968
    %v7028 = vpack.c.b16 %v6971, %v6970
    %v7029 = vpack.c.b16 %v6973, %v6972
    %v7030 = vpack.c.b16 %v6975, %v6974
    %v7031 = vpack.c.b16 %v6977, %v6976
    %v7032 = vpack.c.b16 %v6979, %v6978
    %v7033 = vpack.c.b16 %v6981, %v6980
    %v7034 = vpack.c.b16 %v6983, %v6982
    %v7035 = vpack.c.b16 %v6985, %v6984
    %v7036 = vpack.c.b16 %v6987, %v6986
    %v7037 = vpack.c.b16 %v6989, %v6988
    %v7038 = vpack.c.b16 %v6991, %v6990
    %v7039 = vpack.c.b16 %v6993, %v6992
    %v7040 = vpack.c.b16 %v6995, %v6994
    %v7041 = vpack.c.b16 %v6997, %v6996
    %v7042 = vpack.c.b16 %v6999, %v6998
    %v7043 = vpack.c.b16 %v7001, %v7000
    %v7044 = vpack.c.b16 %v7003, %v7002
    %v7045 = vpack.c.b16 %v7005, %v7004
    %v7046 = vpack.c.b16 %v7007, %v7006
    %v7047 = vpack.c.b16 %v7009, %v7008
    %v7048 = vpack.c.b16 %v7011, %v7010
    %v7049 = vpack.c.b16 %v7013, %v7012
    %v7050 = vpack.c.b16 %v7015, %v7014
    %v7051 = vpack.c.b16 %v7017, %v7016
    %v7052 = vpack.c.b16 %v7019, %v7018
    %v7053 = vpack.c.b16 %v7021, %v7020
    %7086 = vmatpush.bf16.msra.mxu0 %v7029
    %7087 = vmatpush.bf16.msra.mxu0 %v7028
    %7088 = vmatpush.bf16.msra.mxu0 %v7027
    %7089 = vmatpush.bf16.msra.mxu0 %v7026
    %7090 = vmatpush.bf16.msra.mxu0 %v7025
    %7091 = vmatpush.bf16.msra.mxu0 %v7024
    %7092 = vmatpush.bf16.msra.mxu0 %v7023
    %7093 = vmatpush.bf16.msra.mxu0 %v7022
    %7094 = vmatmul.bf16.gmra.mxu0 %v6886
    %v7095 = vpop.f32.mrf.mxu0
    %v7096 = vadd.f32 0.0, %v7095
    %v7097 = vpop.f32.mrf.mxu0
    %7098 = vdwg.mxu0
    %7099 = vmatpush.bf16.msra.mxu0 %v7037
    %7100 = vmatpush.bf16.msra.mxu0 %v7036
    %7101 = vmatpush.bf16.msra.mxu0 %v7035
    %7102 = vmatpush.bf16.msra.mxu0 %v7034
    %7103 = vmatpush.bf16.msra.mxu0 %v7033
    %7104 = vmatpush.bf16.msra.mxu0 %v7032
    %7105 = vmatpush.bf16.msra.mxu0 %v7031
    %7106 = vmatpush.bf16.msra.mxu0 %v7030
    %7107 = vmatmul.bf16.gmra.mxu0 %v6887
    %v7108 = vpop.f32.mrf.mxu0
    %v7109 = vadd.f32 %v7096, %v7108
    %v7110 = vpop.f32.mrf.mxu0
    %7111 = vdwg.mxu0
    %7112 = vmatpush.bf16.msra.mxu0 %v7045
    %7113 = vmatpush.bf16.msra.mxu0 %v7044
    %7114 = vmatpush.bf16.msra.mxu0 %v7043
    %7115 = vmatpush.bf16.msra.mxu0 %v7042
    %7116 = vmatpush.bf16.msra.mxu0 %v7041
    %7117 = vmatpush.bf16.msra.mxu0 %v7040
    %7118 = vmatpush.bf16.msra.mxu0 %v7039
    %7119 = vmatpush.bf16.msra.mxu0 %v7038
    %7120 = vmatmul.bf16.gmra.mxu0 %v6888
    %v7121 = vpop.f32.mrf.mxu0
    %v7122 = vadd.f32 %v7109, %v7121
    %v7123 = vpop.f32.mrf.mxu0
    %7124 = vdwg.mxu0
    %7125 = vmatpush.bf16.msra.mxu0 %v7053
    %7126 = vmatpush.bf16.msra.mxu0 %v7052
    %7127 = vmatpush.bf16.msra.mxu0 %v7051
    %7128 = vmatpush.bf16.msra.mxu0 %v7050
    %7129 = vmatpush.bf16.msra.mxu0 %v7049
    %7130 = vmatpush.bf16.msra.mxu0 %v7048
    %7131 = vmatpush.bf16.msra.mxu0 %v7047
    %7132 = vmatpush.bf16.msra.mxu0 %v7046
    %7133 = vmatmul.bf16.gmra.mxu0 %v6889
    %v7134 = vpop.f32.mrf.mxu0
    %v7135 = vadd.f32 %v7122, %v7134
    %v7136 = vpop.f32.mrf.mxu0
    %7137 = vdwg.mxu0
    %v7140 = vunpack.c.l.b16 %v6735
    %v7141 = vunpack.c.h.b16 %v6735
    %v7142 = vunpack.c.l.b16 %v6736
    %v7143 = vunpack.c.h.b16 %v6736
    %v7144 = vpack.c.b16 %v7140, %v7140
    %v7145 = vpack.c.b16 %v7141, %v7141
    %v7146 = vpack.c.b16 %v7142, %v7142
    %v7147 = vpack.c.b16 %v7143, %v7143
    %v7216 = vunpack.c.l.b16 %v6751
    %v7217 = vunpack.c.l.b16 %v6752
    %v7218 = vunpack.c.l.b16 %v6753
    %v7219 = vunpack.c.l.b16 %v6754
    %v7220 = vunpack.c.l.b16 %v6755
    %v7221 = vunpack.c.l.b16 %v6756
    %v7222 = vunpack.c.l.b16 %v6757
    %v7223 = vunpack.c.l.b16 %v6758
    %v7224 = vunpack.c.l.b16 %v6759
    %v7225 = vunpack.c.l.b16 %v6760
    %v7226 = vunpack.c.l.b16 %v6761
    %v7227 = vunpack.c.l.b16 %v6762
    %v7228 = vunpack.c.l.b16 %v6763
    %v7229 = vunpack.c.l.b16 %v6764
    %v7230 = vunpack.c.l.b16 %v6765
    %v7231 = vunpack.c.l.b16 %v6766
    %v7232 = vunpack.c.l.b16 %v6767
    %v7233 = vunpack.c.l.b16 %v6768
    %v7234 = vunpack.c.l.b16 %v6769
    %v7235 = vunpack.c.l.b16 %v6770
    %v7236 = vunpack.c.l.b16 %v6771
    %v7237 = vunpack.c.l.b16 %v6772
    %v7238 = vunpack.c.l.b16 %v6773
    %v7239 = vunpack.c.l.b16 %v6774
    %v7240 = vunpack.c.l.b16 %v6775
    %v7241 = vunpack.c.l.b16 %v6776
    %v7242 = vunpack.c.l.b16 %v6777
    %v7243 = vunpack.c.l.b16 %v6778
    %v7244 = vunpack.c.l.b16 %v6779
    %v7245 = vunpack.c.l.b16 %v6780
    %v7246 = vunpack.c.l.b16 %v6781
    %v7247 = vunpack.c.l.b16 %v6782
    %v7248 = vunpack.c.l.b16 %v6783
    %v7249 = vunpack.c.l.b16 %v6784
    %v7250 = vunpack.c.l.b16 %v6785
    %v7251 = vunpack.c.l.b16 %v6786
    %v7252 = vunpack.c.l.b16 %v6787
    %v7253 = vunpack.c.l.b16 %v6788
    %v7254 = vunpack.c.l.b16 %v6789
    %v7255 = vunpack.c.l.b16 %v6790
    %v7256 = vunpack.c.l.b16 %v6791
    %v7257 = vunpack.c.l.b16 %v6792
    %v7258 = vunpack.c.l.b16 %v6793
    %v7259 = vunpack.c.l.b16 %v6794
    %v7260 = vunpack.c.l.b16 %v6795
    %v7261 = vunpack.c.l.b16 %v6796
    %v7262 = vunpack.c.l.b16 %v6797
    %v7263 = vunpack.c.l.b16 %v6798
    %v7264 = vunpack.c.l.b16 %v6799
    %v7265 = vunpack.c.l.b16 %v6800
    %v7266 = vunpack.c.l.b16 %v6801
    %v7267 = vunpack.c.l.b16 %v6802
    %v7268 = vunpack.c.l.b16 %v6803
    %v7269 = vunpack.c.l.b16 %v6804
    %v7270 = vunpack.c.l.b16 %v6805
    %v7271 = vunpack.c.l.b16 %v6806
    %v7272 = vunpack.c.l.b16 %v6807
    %v7273 = vunpack.c.l.b16 %v6808
    %v7274 = vunpack.c.l.b16 %v6809
    %v7275 = vunpack.c.l.b16 %v6810
    %v7276 = vunpack.c.l.b16 %v6811
    %v7277 = vunpack.c.l.b16 %v6812
    %v7278 = vunpack.c.l.b16 %v6813
    %v7279 = vunpack.c.l.b16 %v6814
    %v7280 = vpack.c.b16 %v7217, %v7216
    %v7281 = vpack.c.b16 %v7219, %v7218
    %v7282 = vpack.c.b16 %v7221, %v7220
    %v7283 = vpack.c.b16 %v7223, %v7222
    %v7284 = vpack.c.b16 %v7225, %v7224
    %v7285 = vpack.c.b16 %v7227, %v7226
    %v7286 = vpack.c.b16 %v7229, %v7228
    %v7287 = vpack.c.b16 %v7231, %v7230
    %v7288 = vpack.c.b16 %v7233, %v7232
    %v7289 = vpack.c.b16 %v7235, %v7234
    %v7290 = vpack.c.b16 %v7237, %v7236
    %v7291 = vpack.c.b16 %v7239, %v7238
    %v7292 = vpack.c.b16 %v7241, %v7240
    %v7293 = vpack.c.b16 %v7243, %v7242
    %v7294 = vpack.c.b16 %v7245, %v7244
    %v7295 = vpack.c.b16 %v7247, %v7246
    %v7296 = vpack.c.b16 %v7249, %v7248
    %v7297 = vpack.c.b16 %v7251, %v7250
    %v7298 = vpack.c.b16 %v7253, %v7252
    %v7299 = vpack.c.b16 %v7255, %v7254
    %v7300 = vpack.c.b16 %v7257, %v7256
    %v7301 = vpack.c.b16 %v7259, %v7258
    %v7302 = vpack.c.b16 %v7261, %v7260
    %v7303 = vpack.c.b16 %v7263, %v7262
    %v7304 = vpack.c.b16 %v7265, %v7264
    %v7305 = vpack.c.b16 %v7267, %v7266
    %v7306 = vpack.c.b16 %v7269, %v7268
    %v7307 = vpack.c.b16 %v7271, %v7270
    %v7308 = vpack.c.b16 %v7273, %v7272
    %v7309 = vpack.c.b16 %v7275, %v7274
    %v7310 = vpack.c.b16 %v7277, %v7276
    %v7311 = vpack.c.b16 %v7279, %v7278
    %7344 = vmatpush.bf16.msra.mxu0 %v7287
    %7345 = vmatpush.bf16.msra.mxu0 %v7286
    %7346 = vmatpush.bf16.msra.mxu0 %v7285
    %7347 = vmatpush.bf16.msra.mxu0 %v7284
    %7348 = vmatpush.bf16.msra.mxu0 %v7283
    %7349 = vmatpush.bf16.msra.mxu0 %v7282
    %7350 = vmatpush.bf16.msra.mxu0 %v7281
    %7351 = vmatpush.bf16.msra.mxu0 %v7280
    %7352 = vmatmul.bf16.gmra.mxu0 %v7144
    %v7353 = vpop.f32.mrf.mxu0
    %v7354 = vadd.f32 %v7135, %v7353
    %v7355 = vpop.f32.mrf.mxu0
    %7356 = vdwg.mxu0
    %7357 = vmatpush.bf16.msra.mxu0 %v7295
    %7358 = vmatpush.bf16.msra.mxu0 %v7294
    %7359 = vmatpush.bf16.msra.mxu0 %v7293
    %7360 = vmatpush.bf16.msra.mxu0 %v7292
    %7361 = vmatpush.bf16.msra.mxu0 %v7291
    %7362 = vmatpush.bf16.msra.mxu0 %v7290
    %7363 = vmatpush.bf16.msra.mxu0 %v7289
    %7364 = vmatpush.bf16.msra.mxu0 %v7288
    %7365 = vmatmul.bf16.gmra.mxu0 %v7145
    %v7366 = vpop.f32.mrf.mxu0
    %v7367 = vadd.f32 %v7354, %v7366
    %v7368 = vpop.f32.mrf.mxu0
    %7369 = vdwg.mxu0
    %7370 = vmatpush.bf16.msra.mxu0 %v7303
    %7371 = vmatpush.bf16.msra.mxu0 %v7302
    %7372 = vmatpush.bf16.msra.mxu0 %v7301
    %7373 = vmatpush.bf16.msra.mxu0 %v7300
    %7374 = vmatpush.bf16.msra.mxu0 %v7299
    %7375 = vmatpush.bf16.msra.mxu0 %v7298
    %7376 = vmatpush.bf16.msra.mxu0 %v7297
    %7377 = vmatpush.bf16.msra.mxu0 %v7296
    %7378 = vmatmul.bf16.gmra.mxu0 %v7146
    %v7379 = vpop.f32.mrf.mxu0
    %v7380 = vadd.f32 %v7367, %v7379
    %v7381 = vpop.f32.mrf.mxu0
    %7382 = vdwg.mxu0
    %7383 = vmatpush.bf16.msra.mxu0 %v7311
    %7384 = vmatpush.bf16.msra.mxu0 %v7310
    %7385 = vmatpush.bf16.msra.mxu0 %v7309
    %7386 = vmatpush.bf16.msra.mxu0 %v7308
    %7387 = vmatpush.bf16.msra.mxu0 %v7307
    %7388 = vmatpush.bf16.msra.mxu0 %v7306
    %7389 = vmatpush.bf16.msra.mxu0 %v7305
    %7390 = vmatpush.bf16.msra.mxu0 %v7304
    %7391 = vmatmul.bf16.gmra.mxu0 %v7147
    %v7392 = vpop.f32.mrf.mxu0
    %v7393 = vadd.f32 %v7380, %v7392
    %v7394 = vpop.f32.mrf.mxu0
    %7395 = vdwg.mxu0
    %s7396 = scalar_lea.vmem [#allocation9], 512
    %v7397 = vld [vmem:[%s7396] sm:$0xf]
    %v7398 = vld [vmem:[%s7396 + $0x4] sm:$0xf]
    %v7399 = vld [vmem:[%s7396 + $0x8] sm:$0xf]
    %v7400 = vld [vmem:[%s7396 + $0xc] sm:$0xf]
    %v7401 = vld [vmem:[%s7396 + $0x10] sm:$0xf]
    %v7402 = vld [vmem:[%s7396 + $0x14] sm:$0xf]
    %v7403 = vld [vmem:[%s7396 + $0x18] sm:$0xf]
    %v7404 = vld [vmem:[%s7396 + $0x1c] sm:$0xf]
    %v7405 = vld [vmem:[%s7396 + $0x20] sm:$0xf]
    %v7406 = vld [vmem:[%s7396 + $0x24] sm:$0xf]
    %v7407 = vld [vmem:[%s7396 + $0x28] sm:$0xf]
    %v7408 = vld [vmem:[%s7396 + $0x2c] sm:$0xf]
    %v7409 = vld [vmem:[%s7396 + $0x30] sm:$0xf]
    %v7410 = vld [vmem:[%s7396 + $0x34] sm:$0xf]
    %v7411 = vld [vmem:[%s7396 + $0x38] sm:$0xf]
    %v7412 = vld [vmem:[%s7396 + $0x3c] sm:$0xf]
    %v7413 = vld [vmem:[%s7396 + $0x40] sm:$0xf]
    %v7414 = vld [vmem:[%s7396 + $0x44] sm:$0xf]
    %v7415 = vld [vmem:[%s7396 + $0x48] sm:$0xf]
    %v7416 = vld [vmem:[%s7396 + $0x4c] sm:$0xf]
    %v7417 = vld [vmem:[%s7396 + $0x50] sm:$0xf]
    %v7418 = vld [vmem:[%s7396 + $0x54] sm:$0xf]
    %v7419 = vld [vmem:[%s7396 + $0x58] sm:$0xf]
    %v7420 = vld [vmem:[%s7396 + $0x5c] sm:$0xf]
    %v7421 = vld [vmem:[%s7396 + $0x60] sm:$0xf]
    %v7422 = vld [vmem:[%s7396 + $0x64] sm:$0xf]
    %v7423 = vld [vmem:[%s7396 + $0x68] sm:$0xf]
    %v7424 = vld [vmem:[%s7396 + $0x6c] sm:$0xf]
    %v7425 = vld [vmem:[%s7396 + $0x70] sm:$0xf]
    %v7426 = vld [vmem:[%s7396 + $0x74] sm:$0xf]
    %v7427 = vld [vmem:[%s7396 + $0x78] sm:$0xf]
    %v7428 = vld [vmem:[%s7396 + $0x7c] sm:$0xf]
    %v7429 = vld [vmem:[%s7396 + $0x80] sm:$0xf]
    %v7430 = vld [vmem:[%s7396 + $0x84] sm:$0xf]
    %v7431 = vld [vmem:[%s7396 + $0x88] sm:$0xf]
    %v7432 = vld [vmem:[%s7396 + $0x8c] sm:$0xf]
    %v7433 = vld [vmem:[%s7396 + $0x90] sm:$0xf]
    %v7434 = vld [vmem:[%s7396 + $0x94] sm:$0xf]
    %v7435 = vld [vmem:[%s7396 + $0x98] sm:$0xf]
    %v7436 = vld [vmem:[%s7396 + $0x9c] sm:$0xf]
    %v7437 = vld [vmem:[%s7396 + $0xa0] sm:$0xf]
    %v7438 = vld [vmem:[%s7396 + $0xa4] sm:$0xf]
    %v7439 = vld [vmem:[%s7396 + $0xa8] sm:$0xf]
    %v7440 = vld [vmem:[%s7396 + $0xac] sm:$0xf]
    %v7441 = vld [vmem:[%s7396 + $0xb0] sm:$0xf]
    %v7442 = vld [vmem:[%s7396 + $0xb4] sm:$0xf]
    %v7443 = vld [vmem:[%s7396 + $0xb8] sm:$0xf]
    %v7444 = vld [vmem:[%s7396 + $0xbc] sm:$0xf]
    %v7445 = vld [vmem:[%s7396 + $0xc0] sm:$0xf]
    %v7446 = vld [vmem:[%s7396 + $0xc4] sm:$0xf]
    %v7447 = vld [vmem:[%s7396 + $0xc8] sm:$0xf]
    %v7448 = vld [vmem:[%s7396 + $0xcc] sm:$0xf]
    %v7449 = vld [vmem:[%s7396 + $0xd0] sm:$0xf]
    %v7450 = vld [vmem:[%s7396 + $0xd4] sm:$0xf]
    %v7451 = vld [vmem:[%s7396 + $0xd8] sm:$0xf]
    %v7452 = vld [vmem:[%s7396 + $0xdc] sm:$0xf]
    %v7453 = vld [vmem:[%s7396 + $0xe0] sm:$0xf]
    %v7454 = vld [vmem:[%s7396 + $0xe4] sm:$0xf]
    %v7455 = vld [vmem:[%s7396 + $0xe8] sm:$0xf]
    %v7456 = vld [vmem:[%s7396 + $0xec] sm:$0xf]
    %v7457 = vld [vmem:[%s7396 + $0xf0] sm:$0xf]
    %v7458 = vld [vmem:[%s7396 + $0xf4] sm:$0xf]
    %v7459 = vld [vmem:[%s7396 + $0xf8] sm:$0xf]
    %v7460 = vld [vmem:[%s7396 + $0xfc] sm:$0xf]
    %v7463 = vunpack.c.l.b16 %v6739
    %v7464 = vunpack.c.h.b16 %v6739
    %v7465 = vunpack.c.l.b16 %v6740
    %v7466 = vunpack.c.h.b16 %v6740
    %v7467 = vpack.c.b16 %v7463, %v7463
    %v7468 = vpack.c.b16 %v7464, %v7464
    %v7469 = vpack.c.b16 %v7465, %v7465
    %v7470 = vpack.c.b16 %v7466, %v7466
    %v7539 = vunpack.c.l.b16 %v7397
    %v7540 = vunpack.c.l.b16 %v7398
    %v7541 = vunpack.c.l.b16 %v7399
    %v7542 = vunpack.c.l.b16 %v7400
    %v7543 = vunpack.c.l.b16 %v7401
    %v7544 = vunpack.c.l.b16 %v7402
    %v7545 = vunpack.c.l.b16 %v7403
    %v7546 = vunpack.c.l.b16 %v7404
    %v7547 = vunpack.c.l.b16 %v7405
    %v7548 = vunpack.c.l.b16 %v7406
    %v7549 = vunpack.c.l.b16 %v7407
    %v7550 = vunpack.c.l.b16 %v7408
    %v7551 = vunpack.c.l.b16 %v7409
    %v7552 = vunpack.c.l.b16 %v7410
    %v7553 = vunpack.c.l.b16 %v7411
    %v7554 = vunpack.c.l.b16 %v7412
    %v7555 = vunpack.c.l.b16 %v7413
    %v7556 = vunpack.c.l.b16 %v7414
    %v7557 = vunpack.c.l.b16 %v7415
    %v7558 = vunpack.c.l.b16 %v7416
    %v7559 = vunpack.c.l.b16 %v7417
    %v7560 = vunpack.c.l.b16 %v7418
    %v7561 = vunpack.c.l.b16 %v7419
    %v7562 = vunpack.c.l.b16 %v7420
    %v7563 = vunpack.c.l.b16 %v7421
    %v7564 = vunpack.c.l.b16 %v7422
    %v7565 = vunpack.c.l.b16 %v7423
    %v7566 = vunpack.c.l.b16 %v7424
    %v7567 = vunpack.c.l.b16 %v7425
    %v7568 = vunpack.c.l.b16 %v7426
    %v7569 = vunpack.c.l.b16 %v7427
    %v7570 = vunpack.c.l.b16 %v7428
    %v7571 = vunpack.c.l.b16 %v7429
    %v7572 = vunpack.c.l.b16 %v7430
    %v7573 = vunpack.c.l.b16 %v7431
    %v7574 = vunpack.c.l.b16 %v7432
    %v7575 = vunpack.c.l.b16 %v7433
    %v7576 = vunpack.c.l.b16 %v7434
    %v7577 = vunpack.c.l.b16 %v7435
    %v7578 = vunpack.c.l.b16 %v7436
    %v7579 = vunpack.c.l.b16 %v7437
    %v7580 = vunpack.c.l.b16 %v7438
    %v7581 = vunpack.c.l.b16 %v7439
    %v7582 = vunpack.c.l.b16 %v7440
    %v7583 = vunpack.c.l.b16 %v7441
    %v7584 = vunpack.c.l.b16 %v7442
    %v7585 = vunpack.c.l.b16 %v7443
    %v7586 = vunpack.c.l.b16 %v7444
    %v7587 = vunpack.c.l.b16 %v7445
    %v7588 = vunpack.c.l.b16 %v7446
    %v7589 = vunpack.c.l.b16 %v7447
    %v7590 = vunpack.c.l.b16 %v7448
    %v7591 = vunpack.c.l.b16 %v7449
    %v7592 = vunpack.c.l.b16 %v7450
    %v7593 = vunpack.c.l.b16 %v7451
    %v7594 = vunpack.c.l.b16 %v7452
    %v7595 = vunpack.c.l.b16 %v7453
    %v7596 = vunpack.c.l.b16 %v7454
    %v7597 = vunpack.c.l.b16 %v7455
    %v7598 = vunpack.c.l.b16 %v7456
    %v7599 = vunpack.c.l.b16 %v7457
    %v7600 = vunpack.c.l.b16 %v7458
    %v7601 = vunpack.c.l.b16 %v7459
    %v7602 = vunpack.c.l.b16 %v7460
    %v7603 = vpack.c.b16 %v7540, %v7539
    %v7604 = vpack.c.b16 %v7542, %v7541
    %v7605 = vpack.c.b16 %v7544, %v7543
    %v7606 = vpack.c.b16 %v7546, %v7545
    %v7607 = vpack.c.b16 %v7548, %v7547
    %v7608 = vpack.c.b16 %v7550, %v7549
    %v7609 = vpack.c.b16 %v7552, %v7551
    %v7610 = vpack.c.b16 %v7554, %v7553
    %v7611 = vpack.c.b16 %v7556, %v7555
    %v7612 = vpack.c.b16 %v7558, %v7557
    %v7613 = vpack.c.b16 %v7560, %v7559
    %v7614 = vpack.c.b16 %v7562, %v7561
    %v7615 = vpack.c.b16 %v7564, %v7563
    %v7616 = vpack.c.b16 %v7566, %v7565
    %v7617 = vpack.c.b16 %v7568, %v7567
    %v7618 = vpack.c.b16 %v7570, %v7569
    %v7619 = vpack.c.b16 %v7572, %v7571
    %v7620 = vpack.c.b16 %v7574, %v7573
    %v7621 = vpack.c.b16 %v7576, %v7575
    %v7622 = vpack.c.b16 %v7578, %v7577
    %v7623 = vpack.c.b16 %v7580, %v7579
    %v7624 = vpack.c.b16 %v7582, %v7581
    %v7625 = vpack.c.b16 %v7584, %v7583
    %v7626 = vpack.c.b16 %v7586, %v7585
    %v7627 = vpack.c.b16 %v7588, %v7587
    %v7628 = vpack.c.b16 %v7590, %v7589
    %v7629 = vpack.c.b16 %v7592, %v7591
    %v7630 = vpack.c.b16 %v7594, %v7593
    %v7631 = vpack.c.b16 %v7596, %v7595
    %v7632 = vpack.c.b16 %v7598, %v7597
    %v7633 = vpack.c.b16 %v7600, %v7599
    %v7634 = vpack.c.b16 %v7602, %v7601
    %7667 = vmatpush.bf16.msra.mxu0 %v7610
    %7668 = vmatpush.bf16.msra.mxu0 %v7609
    %7669 = vmatpush.bf16.msra.mxu0 %v7608
    %7670 = vmatpush.bf16.msra.mxu0 %v7607
    %7671 = vmatpush.bf16.msra.mxu0 %v7606
    %7672 = vmatpush.bf16.msra.mxu0 %v7605
    %7673 = vmatpush.bf16.msra.mxu0 %v7604
    %7674 = vmatpush.bf16.msra.mxu0 %v7603
    %7675 = vmatmul.bf16.gmra.mxu0 %v7467
    %v7676 = vpop.f32.mrf.mxu0
    %v7677 = vadd.f32 0.0, %v7676
    %v7678 = vpop.f32.mrf.mxu0
    %7679 = vdwg.mxu0
    %7680 = vmatpush.bf16.msra.mxu0 %v7618
    %7681 = vmatpush.bf16.msra.mxu0 %v7617
    %7682 = vmatpush.bf16.msra.mxu0 %v7616
    %7683 = vmatpush.bf16.msra.mxu0 %v7615
    %7684 = vmatpush.bf16.msra.mxu0 %v7614
    %7685 = vmatpush.bf16.msra.mxu0 %v7613
    %7686 = vmatpush.bf16.msra.mxu0 %v7612
    %7687 = vmatpush.bf16.msra.mxu0 %v7611
    %7688 = vmatmul.bf16.gmra.mxu0 %v7468
    %v7689 = vpop.f32.mrf.mxu0
    %v7690 = vadd.f32 %v7677, %v7689
    %v7691 = vpop.f32.mrf.mxu0
    %7692 = vdwg.mxu0
    %7693 = vmatpush.bf16.msra.mxu0 %v7626
    %7694 = vmatpush.bf16.msra.mxu0 %v7625
    %7695 = vmatpush.bf16.msra.mxu0 %v7624
    %7696 = vmatpush.bf16.msra.mxu0 %v7623
    %7697 = vmatpush.bf16.msra.mxu0 %v7622
    %7698 = vmatpush.bf16.msra.mxu0 %v7621
    %7699 = vmatpush.bf16.msra.mxu0 %v7620
    %7700 = vmatpush.bf16.msra.mxu0 %v7619
    %7701 = vmatmul.bf16.gmra.mxu0 %v7469
    %v7702 = vpop.f32.mrf.mxu0
    %v7703 = vadd.f32 %v7690, %v7702
    %v7704 = vpop.f32.mrf.mxu0
    %7705 = vdwg.mxu0
    %7706 = vmatpush.bf16.msra.mxu0 %v7634
    %7707 = vmatpush.bf16.msra.mxu0 %v7633
    %7708 = vmatpush.bf16.msra.mxu0 %v7632
    %7709 = vmatpush.bf16.msra.mxu0 %v7631
    %7710 = vmatpush.bf16.msra.mxu0 %v7630
    %7711 = vmatpush.bf16.msra.mxu0 %v7629
    %7712 = vmatpush.bf16.msra.mxu0 %v7628
    %7713 = vmatpush.bf16.msra.mxu0 %v7627
    %7714 = vmatmul.bf16.gmra.mxu0 %v7470
    %v7715 = vpop.f32.mrf.mxu0
    %v7716 = vadd.f32 %v7703, %v7715
    %v7717 = vpop.f32.mrf.mxu0
    %7718 = vdwg.mxu0
    %v7719 = vadd.f32 %v7393, %v7716
    %s7720 = scalar_lea.vmem [#allocation9], 768
    %v7721 = vld [vmem:[%s7720] sm:$0xf]
    %v7722 = vld [vmem:[%s7720 + $0x4] sm:$0xf]
    %v7723 = vld [vmem:[%s7720 + $0x8] sm:$0xf]
    %v7724 = vld [vmem:[%s7720 + $0xc] sm:$0xf]
    %v7725 = vld [vmem:[%s7720 + $0x10] sm:$0xf]
    %v7726 = vld [vmem:[%s7720 + $0x14] sm:$0xf]
    %v7727 = vld [vmem:[%s7720 + $0x18] sm:$0xf]
    %v7728 = vld [vmem:[%s7720 + $0x1c] sm:$0xf]
    %v7729 = vld [vmem:[%s7720 + $0x20] sm:$0xf]
    %v7730 = vld [vmem:[%s7720 + $0x24] sm:$0xf]
    %v7731 = vld [vmem:[%s7720 + $0x28] sm:$0xf]
    %v7732 = vld [vmem:[%s7720 + $0x2c] sm:$0xf]
    %v7733 = vld [vmem:[%s7720 + $0x30] sm:$0xf]
    %v7734 = vld [vmem:[%s7720 + $0x34] sm:$0xf]
    %v7735 = vld [vmem:[%s7720 + $0x38] sm:$0xf]
    %v7736 = vld [vmem:[%s7720 + $0x3c] sm:$0xf]
    %v7737 = vld [vmem:[%s7720 + $0x40] sm:$0xf]
    %v7738 = vld [vmem:[%s7720 + $0x44] sm:$0xf]
    %v7739 = vld [vmem:[%s7720 + $0x48] sm:$0xf]
    %v7740 = vld [vmem:[%s7720 + $0x4c] sm:$0xf]
    %v7741 = vld [vmem:[%s7720 + $0x50] sm:$0xf]
    %v7742 = vld [vmem:[%s7720 + $0x54] sm:$0xf]
    %v7743 = vld [vmem:[%s7720 + $0x58] sm:$0xf]
    %v7744 = vld [vmem:[%s7720 + $0x5c] sm:$0xf]
    %v7745 = vld [vmem:[%s7720 + $0x60] sm:$0xf]
    %v7746 = vld [vmem:[%s7720 + $0x64] sm:$0xf]
    %v7747 = vld [vmem:[%s7720 + $0x68] sm:$0xf]
    %v7748 = vld [vmem:[%s7720 + $0x6c] sm:$0xf]
    %v7749 = vld [vmem:[%s7720 + $0x70] sm:$0xf]
    %v7750 = vld [vmem:[%s7720 + $0x74] sm:$0xf]
    %v7751 = vld [vmem:[%s7720 + $0x78] sm:$0xf]
    %v7752 = vld [vmem:[%s7720 + $0x7c] sm:$0xf]
    %v7753 = vld [vmem:[%s7720 + $0x80] sm:$0xf]
    %v7754 = vld [vmem:[%s7720 + $0x84] sm:$0xf]
    %v7755 = vld [vmem:[%s7720 + $0x88] sm:$0xf]
    %v7756 = vld [vmem:[%s7720 + $0x8c] sm:$0xf]
    %v7757 = vld [vmem:[%s7720 + $0x90] sm:$0xf]
    %v7758 = vld [vmem:[%s7720 + $0x94] sm:$0xf]
    %v7759 = vld [vmem:[%s7720 + $0x98] sm:$0xf]
    %v7760 = vld [vmem:[%s7720 + $0x9c] sm:$0xf]
    %v7761 = vld [vmem:[%s7720 + $0xa0] sm:$0xf]
    %v7762 = vld [vmem:[%s7720 + $0xa4] sm:$0xf]
    %v7763 = vld [vmem:[%s7720 + $0xa8] sm:$0xf]
    %v7764 = vld [vmem:[%s7720 + $0xac] sm:$0xf]
    %v7765 = vld [vmem:[%s7720 + $0xb0] sm:$0xf]
    %v7766 = vld [vmem:[%s7720 + $0xb4] sm:$0xf]
    %v7767 = vld [vmem:[%s7720 + $0xb8] sm:$0xf]
    %v7768 = vld [vmem:[%s7720 + $0xbc] sm:$0xf]
    %v7769 = vld [vmem:[%s7720 + $0xc0] sm:$0xf]
    %v7770 = vld [vmem:[%s7720 + $0xc4] sm:$0xf]
    %v7771 = vld [vmem:[%s7720 + $0xc8] sm:$0xf]
    %v7772 = vld [vmem:[%s7720 + $0xcc] sm:$0xf]
    %v7773 = vld [vmem:[%s7720 + $0xd0] sm:$0xf]
    %v7774 = vld [vmem:[%s7720 + $0xd4] sm:$0xf]
    %v7775 = vld [vmem:[%s7720 + $0xd8] sm:$0xf]
    %v7776 = vld [vmem:[%s7720 + $0xdc] sm:$0xf]
    %v7777 = vld [vmem:[%s7720 + $0xe0] sm:$0xf]
    %v7778 = vld [vmem:[%s7720 + $0xe4] sm:$0xf]
    %v7779 = vld [vmem:[%s7720 + $0xe8] sm:$0xf]
    %v7780 = vld [vmem:[%s7720 + $0xec] sm:$0xf]
    %v7781 = vld [vmem:[%s7720 + $0xf0] sm:$0xf]
    %v7782 = vld [vmem:[%s7720 + $0xf4] sm:$0xf]
    %v7783 = vld [vmem:[%s7720 + $0xf8] sm:$0xf]
    %v7784 = vld [vmem:[%s7720 + $0xfc] sm:$0xf]
    %v7787 = vunpack.c.l.b16 %v6741
    %v7788 = vunpack.c.h.b16 %v6741
    %v7789 = vunpack.c.l.b16 %v6742
    %v7790 = vunpack.c.h.b16 %v6742
    %v7791 = vpack.c.b16 %v7787, %v7787
    %v7792 = vpack.c.b16 %v7788, %v7788
    %v7793 = vpack.c.b16 %v7789, %v7789
    %v7794 = vpack.c.b16 %v7790, %v7790
    %v7863 = vunpack.c.l.b16 %v7721
    %v7864 = vunpack.c.l.b16 %v7722
    %v7865 = vunpack.c.l.b16 %v7723
    %v7866 = vunpack.c.l.b16 %v7724
    %v7867 = vunpack.c.l.b16 %v7725
    %v7868 = vunpack.c.l.b16 %v7726
    %v7869 = vunpack.c.l.b16 %v7727
    %v7870 = vunpack.c.l.b16 %v7728
    %v7871 = vunpack.c.l.b16 %v7729
    %v7872 = vunpack.c.l.b16 %v7730
    %v7873 = vunpack.c.l.b16 %v7731
    %v7874 = vunpack.c.l.b16 %v7732
    %v7875 = vunpack.c.l.b16 %v7733
    %v7876 = vunpack.c.l.b16 %v7734
    %v7877 = vunpack.c.l.b16 %v7735
    %v7878 = vunpack.c.l.b16 %v7736
    %v7879 = vunpack.c.l.b16 %v7737
    %v7880 = vunpack.c.l.b16 %v7738
    %v7881 = vunpack.c.l.b16 %v7739
    %v7882 = vunpack.c.l.b16 %v7740
    %v7883 = vunpack.c.l.b16 %v7741
    %v7884 = vunpack.c.l.b16 %v7742
    %v7885 = vunpack.c.l.b16 %v7743
    %v7886 = vunpack.c.l.b16 %v7744
    %v7887 = vunpack.c.l.b16 %v7745
    %v7888 = vunpack.c.l.b16 %v7746
    %v7889 = vunpack.c.l.b16 %v7747
    %v7890 = vunpack.c.l.b16 %v7748
    %v7891 = vunpack.c.l.b16 %v7749
    %v7892 = vunpack.c.l.b16 %v7750
    %v7893 = vunpack.c.l.b16 %v7751
    %v7894 = vunpack.c.l.b16 %v7752
    %v7895 = vunpack.c.l.b16 %v7753
    %v7896 = vunpack.c.l.b16 %v7754
    %v7897 = vunpack.c.l.b16 %v7755
    %v7898 = vunpack.c.l.b16 %v7756
    %v7899 = vunpack.c.l.b16 %v7757
    %v7900 = vunpack.c.l.b16 %v7758
    %v7901 = vunpack.c.l.b16 %v7759
    %v7902 = vunpack.c.l.b16 %v7760
    %v7903 = vunpack.c.l.b16 %v7761
    %v7904 = vunpack.c.l.b16 %v7762
    %v7905 = vunpack.c.l.b16 %v7763
    %v7906 = vunpack.c.l.b16 %v7764
    %v7907 = vunpack.c.l.b16 %v7765
    %v7908 = vunpack.c.l.b16 %v7766
    %v7909 = vunpack.c.l.b16 %v7767
    %v7910 = vunpack.c.l.b16 %v7768
    %v7911 = vunpack.c.l.b16 %v7769
    %v7912 = vunpack.c.l.b16 %v7770
    %v7913 = vunpack.c.l.b16 %v7771
    %v7914 = vunpack.c.l.b16 %v7772
    %v7915 = vunpack.c.l.b16 %v7773
    %v7916 = vunpack.c.l.b16 %v7774
    %v7917 = vunpack.c.l.b16 %v7775
    %v7918 = vunpack.c.l.b16 %v7776
    %v7919 = vunpack.c.l.b16 %v7777
    %v7920 = vunpack.c.l.b16 %v7778
    %v7921 = vunpack.c.l.b16 %v7779
    %v7922 = vunpack.c.l.b16 %v7780
    %v7923 = vunpack.c.l.b16 %v7781
    %v7924 = vunpack.c.l.b16 %v7782
    %v7925 = vunpack.c.l.b16 %v7783
    %v7926 = vunpack.c.l.b16 %v7784
    %v7927 = vpack.c.b16 %v7864, %v7863
    %v7928 = vpack.c.b16 %v7866, %v7865
    %v7929 = vpack.c.b16 %v7868, %v7867
    %v7930 = vpack.c.b16 %v7870, %v7869
    %v7931 = vpack.c.b16 %v7872, %v7871
    %v7932 = vpack.c.b16 %v7874, %v7873
    %v7933 = vpack.c.b16 %v7876, %v7875
    %v7934 = vpack.c.b16 %v7878, %v7877
    %v7935 = vpack.c.b16 %v7880, %v7879
    %v7936 = vpack.c.b16 %v7882, %v7881
    %v7937 = vpack.c.b16 %v7884, %v7883
    %v7938 = vpack.c.b16 %v7886, %v7885
    %v7939 = vpack.c.b16 %v7888, %v7887
    %v7940 = vpack.c.b16 %v7890, %v7889
    %v7941 = vpack.c.b16 %v7892, %v7891
    %v7942 = vpack.c.b16 %v7894, %v7893
    %v7943 = vpack.c.b16 %v7896, %v7895
    %v7944 = vpack.c.b16 %v7898, %v7897
    %v7945 = vpack.c.b16 %v7900, %v7899
    %v7946 = vpack.c.b16 %v7902, %v7901
    %v7947 = vpack.c.b16 %v7904, %v7903
    %v7948 = vpack.c.b16 %v7906, %v7905
    %v7949 = vpack.c.b16 %v7908, %v7907
    %v7950 = vpack.c.b16 %v7910, %v7909
    %v7951 = vpack.c.b16 %v7912, %v7911
    %v7952 = vpack.c.b16 %v7914, %v7913
    %v7953 = vpack.c.b16 %v7916, %v7915
    %v7954 = vpack.c.b16 %v7918, %v7917
    %v7955 = vpack.c.b16 %v7920, %v7919
    %v7956 = vpack.c.b16 %v7922, %v7921
    %v7957 = vpack.c.b16 %v7924, %v7923
    %v7958 = vpack.c.b16 %v7926, %v7925
    %7991 = vmatpush.bf16.msra.mxu0 %v7934
    %7992 = vmatpush.bf16.msra.mxu0 %v7933
    %7993 = vmatpush.bf16.msra.mxu0 %v7932
    %7994 = vmatpush.bf16.msra.mxu0 %v7931
    %7995 = vmatpush.bf16.msra.mxu0 %v7930
    %7996 = vmatpush.bf16.msra.mxu0 %v7929
    %7997 = vmatpush.bf16.msra.mxu0 %v7928
    %7998 = vmatpush.bf16.msra.mxu0 %v7927
    %7999 = vmatmul.bf16.gmra.mxu0 %v7791
    %v8000 = vpop.f32.mrf.mxu0
    %v8001 = vadd.f32 0.0, %v8000
    %v8002 = vpop.f32.mrf.mxu0
    %8003 = vdwg.mxu0
    %8004 = vmatpush.bf16.msra.mxu0 %v7942
    %8005 = vmatpush.bf16.msra.mxu0 %v7941
    %8006 = vmatpush.bf16.msra.mxu0 %v7940
    %8007 = vmatpush.bf16.msra.mxu0 %v7939
    %8008 = vmatpush.bf16.msra.mxu0 %v7938
    %8009 = vmatpush.bf16.msra.mxu0 %v7937
    %8010 = vmatpush.bf16.msra.mxu0 %v7936
    %8011 = vmatpush.bf16.msra.mxu0 %v7935
    %8012 = vmatmul.bf16.gmra.mxu0 %v7792
    %v8013 = vpop.f32.mrf.mxu0
    %v8014 = vadd.f32 %v8001, %v8013
    %v8015 = vpop.f32.mrf.mxu0
    %8016 = vdwg.mxu0
    %8017 = vmatpush.bf16.msra.mxu0 %v7950
    %8018 = vmatpush.bf16.msra.mxu0 %v7949
    %8019 = vmatpush.bf16.msra.mxu0 %v7948
    %8020 = vmatpush.bf16.msra.mxu0 %v7947
    %8021 = vmatpush.bf16.msra.mxu0 %v7946
    %8022 = vmatpush.bf16.msra.mxu0 %v7945
    %8023 = vmatpush.bf16.msra.mxu0 %v7944
    %8024 = vmatpush.bf16.msra.mxu0 %v7943
    %8025 = vmatmul.bf16.gmra.mxu0 %v7793
    %v8026 = vpop.f32.mrf.mxu0
    %v8027 = vadd.f32 %v8014, %v8026
    %v8028 = vpop.f32.mrf.mxu0
    %8029 = vdwg.mxu0
    %8030 = vmatpush.bf16.msra.mxu0 %v7958
    %8031 = vmatpush.bf16.msra.mxu0 %v7957
    %8032 = vmatpush.bf16.msra.mxu0 %v7956
    %8033 = vmatpush.bf16.msra.mxu0 %v7955
    %8034 = vmatpush.bf16.msra.mxu0 %v7954
    %8035 = vmatpush.bf16.msra.mxu0 %v7953
    %8036 = vmatpush.bf16.msra.mxu0 %v7952
    %8037 = vmatpush.bf16.msra.mxu0 %v7951
    %8038 = vmatmul.bf16.gmra.mxu0 %v7794
    %v8039 = vpop.f32.mrf.mxu0
    %v8040 = vadd.f32 %v8027, %v8039
    %v8041 = vpop.f32.mrf.mxu0
    %8042 = vdwg.mxu0
    %v8043 = vadd.f32 %v7719, %v8040
    %s8044 = scalar_lea.vmem [#allocation9], 1024
    %v8045 = vld [vmem:[%s8044] sm:$0xf]
    %v8046 = vld [vmem:[%s8044 + $0x4] sm:$0xf]
    %v8047 = vld [vmem:[%s8044 + $0x8] sm:$0xf]
    %v8048 = vld [vmem:[%s8044 + $0xc] sm:$0xf]
    %v8049 = vld [vmem:[%s8044 + $0x10] sm:$0xf]
    %v8050 = vld [vmem:[%s8044 + $0x14] sm:$0xf]
    %v8051 = vld [vmem:[%s8044 + $0x18] sm:$0xf]
    %v8052 = vld [vmem:[%s8044 + $0x1c] sm:$0xf]
    %v8053 = vld [vmem:[%s8044 + $0x20] sm:$0xf]
    %v8054 = vld [vmem:[%s8044 + $0x24] sm:$0xf]
    %v8055 = vld [vmem:[%s8044 + $0x28] sm:$0xf]
    %v8056 = vld [vmem:[%s8044 + $0x2c] sm:$0xf]
    %v8057 = vld [vmem:[%s8044 + $0x30] sm:$0xf]
    %v8058 = vld [vmem:[%s8044 + $0x34] sm:$0xf]
    %v8059 = vld [vmem:[%s8044 + $0x38] sm:$0xf]
    %v8060 = vld [vmem:[%s8044 + $0x3c] sm:$0xf]
    %v8061 = vld [vmem:[%s8044 + $0x40] sm:$0xf]
    %v8062 = vld [vmem:[%s8044 + $0x44] sm:$0xf]
    %v8063 = vld [vmem:[%s8044 + $0x48] sm:$0xf]
    %v8064 = vld [vmem:[%s8044 + $0x4c] sm:$0xf]
    %v8065 = vld [vmem:[%s8044 + $0x50] sm:$0xf]
    %v8066 = vld [vmem:[%s8044 + $0x54] sm:$0xf]
    %v8067 = vld [vmem:[%s8044 + $0x58] sm:$0xf]
    %v8068 = vld [vmem:[%s8044 + $0x5c] sm:$0xf]
    %v8069 = vld [vmem:[%s8044 + $0x60] sm:$0xf]
    %v8070 = vld [vmem:[%s8044 + $0x64] sm:$0xf]
    %v8071 = vld [vmem:[%s8044 + $0x68] sm:$0xf]
    %v8072 = vld [vmem:[%s8044 + $0x6c] sm:$0xf]
    %v8073 = vld [vmem:[%s8044 + $0x70] sm:$0xf]
    %v8074 = vld [vmem:[%s8044 + $0x74] sm:$0xf]
    %v8075 = vld [vmem:[%s8044 + $0x78] sm:$0xf]
    %v8076 = vld [vmem:[%s8044 + $0x7c] sm:$0xf]
    %v8077 = vld [vmem:[%s8044 + $0x80] sm:$0xf]
    %v8078 = vld [vmem:[%s8044 + $0x84] sm:$0xf]
    %v8079 = vld [vmem:[%s8044 + $0x88] sm:$0xf]
    %v8080 = vld [vmem:[%s8044 + $0x8c] sm:$0xf]
    %v8081 = vld [vmem:[%s8044 + $0x90] sm:$0xf]
    %v8082 = vld [vmem:[%s8044 + $0x94] sm:$0xf]
    %v8083 = vld [vmem:[%s8044 + $0x98] sm:$0xf]
    %v8084 = vld [vmem:[%s8044 + $0x9c] sm:$0xf]
    %v8085 = vld [vmem:[%s8044 + $0xa0] sm:$0xf]
    %v8086 = vld [vmem:[%s8044 + $0xa4] sm:$0xf]
    %v8087 = vld [vmem:[%s8044 + $0xa8] sm:$0xf]
    %v8088 = vld [vmem:[%s8044 + $0xac] sm:$0xf]
    %v8089 = vld [vmem:[%s8044 + $0xb0] sm:$0xf]
    %v8090 = vld [vmem:[%s8044 + $0xb4] sm:$0xf]
    %v8091 = vld [vmem:[%s8044 + $0xb8] sm:$0xf]
    %v8092 = vld [vmem:[%s8044 + $0xbc] sm:$0xf]
    %v8093 = vld [vmem:[%s8044 + $0xc0] sm:$0xf]
    %v8094 = vld [vmem:[%s8044 + $0xc4] sm:$0xf]
    %v8095 = vld [vmem:[%s8044 + $0xc8] sm:$0xf]
    %v8096 = vld [vmem:[%s8044 + $0xcc] sm:$0xf]
    %v8097 = vld [vmem:[%s8044 + $0xd0] sm:$0xf]
    %v8098 = vld [vmem:[%s8044 + $0xd4] sm:$0xf]
    %v8099 = vld [vmem:[%s8044 + $0xd8] sm:$0xf]
    %v8100 = vld [vmem:[%s8044 + $0xdc] sm:$0xf]
    %v8101 = vld [vmem:[%s8044 + $0xe0] sm:$0xf]
    %v8102 = vld [vmem:[%s8044 + $0xe4] sm:$0xf]
    %v8103 = vld [vmem:[%s8044 + $0xe8] sm:$0xf]
    %v8104 = vld [vmem:[%s8044 + $0xec] sm:$0xf]
    %v8105 = vld [vmem:[%s8044 + $0xf0] sm:$0xf]
    %v8106 = vld [vmem:[%s8044 + $0xf4] sm:$0xf]
    %v8107 = vld [vmem:[%s8044 + $0xf8] sm:$0xf]
    %v8108 = vld [vmem:[%s8044 + $0xfc] sm:$0xf]
    %v8111 = vunpack.c.l.b16 %v6743
    %v8112 = vunpack.c.h.b16 %v6743
    %v8113 = vunpack.c.l.b16 %v6744
    %v8114 = vunpack.c.h.b16 %v6744
    %v8115 = vpack.c.b16 %v8111, %v8111
    %v8116 = vpack.c.b16 %v8112, %v8112
    %v8117 = vpack.c.b16 %v8113, %v8113
    %v8118 = vpack.c.b16 %v8114, %v8114
    %v8187 = vunpack.c.l.b16 %v8045
    %v8188 = vunpack.c.l.b16 %v8046
    %v8189 = vunpack.c.l.b16 %v8047
    %v8190 = vunpack.c.l.b16 %v8048
    %v8191 = vunpack.c.l.b16 %v8049
    %v8192 = vunpack.c.l.b16 %v8050
    %v8193 = vunpack.c.l.b16 %v8051
    %v8194 = vunpack.c.l.b16 %v8052
    %v8195 = vunpack.c.l.b16 %v8053
    %v8196 = vunpack.c.l.b16 %v8054
    %v8197 = vunpack.c.l.b16 %v8055
    %v8198 = vunpack.c.l.b16 %v8056
    %v8199 = vunpack.c.l.b16 %v8057
    %v8200 = vunpack.c.l.b16 %v8058
    %v8201 = vunpack.c.l.b16 %v8059
    %v8202 = vunpack.c.l.b16 %v8060
    %v8203 = vunpack.c.l.b16 %v8061
    %v8204 = vunpack.c.l.b16 %v8062
    %v8205 = vunpack.c.l.b16 %v8063
    %v8206 = vunpack.c.l.b16 %v8064
    %v8207 = vunpack.c.l.b16 %v8065
    %v8208 = vunpack.c.l.b16 %v8066
    %v8209 = vunpack.c.l.b16 %v8067
    %v8210 = vunpack.c.l.b16 %v8068
    %v8211 = vunpack.c.l.b16 %v8069
    %v8212 = vunpack.c.l.b16 %v8070
    %v8213 = vunpack.c.l.b16 %v8071
    %v8214 = vunpack.c.l.b16 %v8072
    %v8215 = vunpack.c.l.b16 %v8073
    %v8216 = vunpack.c.l.b16 %v8074
    %v8217 = vunpack.c.l.b16 %v8075
    %v8218 = vunpack.c.l.b16 %v8076
    %v8219 = vunpack.c.l.b16 %v8077
    %v8220 = vunpack.c.l.b16 %v8078
    %v8221 = vunpack.c.l.b16 %v8079
    %v8222 = vunpack.c.l.b16 %v8080
    %v8223 = vunpack.c.l.b16 %v8081
    %v8224 = vunpack.c.l.b16 %v8082
    %v8225 = vunpack.c.l.b16 %v8083
    %v8226 = vunpack.c.l.b16 %v8084
    %v8227 = vunpack.c.l.b16 %v8085
    %v8228 = vunpack.c.l.b16 %v8086
    %v8229 = vunpack.c.l.b16 %v8087
    %v8230 = vunpack.c.l.b16 %v8088
    %v8231 = vunpack.c.l.b16 %v8089
    %v8232 = vunpack.c.l.b16 %v8090
    %v8233 = vunpack.c.l.b16 %v8091
    %v8234 = vunpack.c.l.b16 %v8092
    %v8235 = vunpack.c.l.b16 %v8093
    %v8236 = vunpack.c.l.b16 %v8094
    %v8237 = vunpack.c.l.b16 %v8095
    %v8238 = vunpack.c.l.b16 %v8096
    %v8239 = vunpack.c.l.b16 %v8097
    %v8240 = vunpack.c.l.b16 %v8098
    %v8241 = vunpack.c.l.b16 %v8099
    %v8242 = vunpack.c.l.b16 %v8100
    %v8243 = vunpack.c.l.b16 %v8101
    %v8244 = vunpack.c.l.b16 %v8102
    %v8245 = vunpack.c.l.b16 %v8103
    %v8246 = vunpack.c.l.b16 %v8104
    %v8247 = vunpack.c.l.b16 %v8105
    %v8248 = vunpack.c.l.b16 %v8106
    %v8249 = vunpack.c.l.b16 %v8107
    %v8250 = vunpack.c.l.b16 %v8108
    %v8251 = vpack.c.b16 %v8188, %v8187
    %v8252 = vpack.c.b16 %v8190, %v8189
    %v8253 = vpack.c.b16 %v8192, %v8191
    %v8254 = vpack.c.b16 %v8194, %v8193
    %v8255 = vpack.c.b16 %v8196, %v8195
    %v8256 = vpack.c.b16 %v8198, %v8197
    %v8257 = vpack.c.b16 %v8200, %v8199
    %v8258 = vpack.c.b16 %v8202, %v8201
    %v8259 = vpack.c.b16 %v8204, %v8203
    %v8260 = vpack.c.b16 %v8206, %v8205
    %v8261 = vpack.c.b16 %v8208, %v8207
    %v8262 = vpack.c.b16 %v8210, %v8209
    %v8263 = vpack.c.b16 %v8212, %v8211
    %v8264 = vpack.c.b16 %v8214, %v8213
    %v8265 = vpack.c.b16 %v8216, %v8215
    %v8266 = vpack.c.b16 %v8218, %v8217
    %v8267 = vpack.c.b16 %v8220, %v8219
    %v8268 = vpack.c.b16 %v8222, %v8221
    %v8269 = vpack.c.b16 %v8224, %v8223
    %v8270 = vpack.c.b16 %v8226, %v8225
    %v8271 = vpack.c.b16 %v8228, %v8227
    %v8272 = vpack.c.b16 %v8230, %v8229
    %v8273 = vpack.c.b16 %v8232, %v8231
    %v8274 = vpack.c.b16 %v8234, %v8233
    %v8275 = vpack.c.b16 %v8236, %v8235
    %v8276 = vpack.c.b16 %v8238, %v8237
    %v8277 = vpack.c.b16 %v8240, %v8239
    %v8278 = vpack.c.b16 %v8242, %v8241
    %v8279 = vpack.c.b16 %v8244, %v8243
    %v8280 = vpack.c.b16 %v8246, %v8245
    %v8281 = vpack.c.b16 %v8248, %v8247
    %v8282 = vpack.c.b16 %v8250, %v8249
    %8315 = vmatpush.bf16.msra.mxu0 %v8258
    %8316 = vmatpush.bf16.msra.mxu0 %v8257
    %8317 = vmatpush.bf16.msra.mxu0 %v8256
    %8318 = vmatpush.bf16.msra.mxu0 %v8255
    %8319 = vmatpush.bf16.msra.mxu0 %v8254
    %8320 = vmatpush.bf16.msra.mxu0 %v8253
    %8321 = vmatpush.bf16.msra.mxu0 %v8252
    %8322 = vmatpush.bf16.msra.mxu0 %v8251
    %8323 = vmatmul.bf16.gmra.mxu0 %v8115
    %v8324 = vpop.f32.mrf.mxu0
    %v8325 = vadd.f32 0.0, %v8324
    %v8326 = vpop.f32.mrf.mxu0
    %8327 = vdwg.mxu0
    %8328 = vmatpush.bf16.msra.mxu0 %v8266
    %8329 = vmatpush.bf16.msra.mxu0 %v8265
    %8330 = vmatpush.bf16.msra.mxu0 %v8264
    %8331 = vmatpush.bf16.msra.mxu0 %v8263
    %8332 = vmatpush.bf16.msra.mxu0 %v8262
    %8333 = vmatpush.bf16.msra.mxu0 %v8261
    %8334 = vmatpush.bf16.msra.mxu0 %v8260
    %8335 = vmatpush.bf16.msra.mxu0 %v8259
    %8336 = vmatmul.bf16.gmra.mxu0 %v8116
    %v8337 = vpop.f32.mrf.mxu0
    %v8338 = vadd.f32 %v8325, %v8337
    %v8339 = vpop.f32.mrf.mxu0
    %8340 = vdwg.mxu0
    %8341 = vmatpush.bf16.msra.mxu0 %v8274
    %8342 = vmatpush.bf16.msra.mxu0 %v8273
    %8343 = vmatpush.bf16.msra.mxu0 %v8272
    %8344 = vmatpush.bf16.msra.mxu0 %v8271
    %8345 = vmatpush.bf16.msra.mxu0 %v8270
    %8346 = vmatpush.bf16.msra.mxu0 %v8269
    %8347 = vmatpush.bf16.msra.mxu0 %v8268
    %8348 = vmatpush.bf16.msra.mxu0 %v8267
    %8349 = vmatmul.bf16.gmra.mxu0 %v8117
    %v8350 = vpop.f32.mrf.mxu0
    %v8351 = vadd.f32 %v8338, %v8350
    %v8352 = vpop.f32.mrf.mxu0
    %8353 = vdwg.mxu0
    %8354 = vmatpush.bf16.msra.mxu0 %v8282
    %8355 = vmatpush.bf16.msra.mxu0 %v8281
    %8356 = vmatpush.bf16.msra.mxu0 %v8280
    %8357 = vmatpush.bf16.msra.mxu0 %v8279
    %8358 = vmatpush.bf16.msra.mxu0 %v8278
    %8359 = vmatpush.bf16.msra.mxu0 %v8277
    %8360 = vmatpush.bf16.msra.mxu0 %v8276
    %8361 = vmatpush.bf16.msra.mxu0 %v8275
    %8362 = vmatmul.bf16.gmra.mxu0 %v8118
    %v8363 = vpop.f32.mrf.mxu0
    %v8364 = vadd.f32 %v8351, %v8363
    %v8365 = vpop.f32.mrf.mxu0
    %8366 = vdwg.mxu0
    %v8367 = vadd.f32 %v8043, %v8364
    %s8368 = scalar_lea.vmem [#allocation9], 1280
    %v8369 = vld [vmem:[%s8368] sm:$0xf]
    %v8370 = vld [vmem:[%s8368 + $0x4] sm:$0xf]
    %v8371 = vld [vmem:[%s8368 + $0x8] sm:$0xf]
    %v8372 = vld [vmem:[%s8368 + $0xc] sm:$0xf]
    %v8373 = vld [vmem:[%s8368 + $0x10] sm:$0xf]
    %v8374 = vld [vmem:[%s8368 + $0x14] sm:$0xf]
    %v8375 = vld [vmem:[%s8368 + $0x18] sm:$0xf]
    %v8376 = vld [vmem:[%s8368 + $0x1c] sm:$0xf]
    %v8377 = vld [vmem:[%s8368 + $0x20] sm:$0xf]
    %v8378 = vld [vmem:[%s8368 + $0x24] sm:$0xf]
    %v8379 = vld [vmem:[%s8368 + $0x28] sm:$0xf]
    %v8380 = vld [vmem:[%s8368 + $0x2c] sm:$0xf]
    %v8381 = vld [vmem:[%s8368 + $0x30] sm:$0xf]
    %v8382 = vld [vmem:[%s8368 + $0x34] sm:$0xf]
    %v8383 = vld [vmem:[%s8368 + $0x38] sm:$0xf]
    %v8384 = vld [vmem:[%s8368 + $0x3c] sm:$0xf]
    %v8385 = vld [vmem:[%s8368 + $0x40] sm:$0xf]
    %v8386 = vld [vmem:[%s8368 + $0x44] sm:$0xf]
    %v8387 = vld [vmem:[%s8368 + $0x48] sm:$0xf]
    %v8388 = vld [vmem:[%s8368 + $0x4c] sm:$0xf]
    %v8389 = vld [vmem:[%s8368 + $0x50] sm:$0xf]
    %v8390 = vld [vmem:[%s8368 + $0x54] sm:$0xf]
    %v8391 = vld [vmem:[%s8368 + $0x58] sm:$0xf]
    %v8392 = vld [vmem:[%s8368 + $0x5c] sm:$0xf]
    %v8393 = vld [vmem:[%s8368 + $0x60] sm:$0xf]
    %v8394 = vld [vmem:[%s8368 + $0x64] sm:$0xf]
    %v8395 = vld [vmem:[%s8368 + $0x68] sm:$0xf]
    %v8396 = vld [vmem:[%s8368 + $0x6c] sm:$0xf]
    %v8397 = vld [vmem:[%s8368 + $0x70] sm:$0xf]
    %v8398 = vld [vmem:[%s8368 + $0x74] sm:$0xf]
    %v8399 = vld [vmem:[%s8368 + $0x78] sm:$0xf]
    %v8400 = vld [vmem:[%s8368 + $0x7c] sm:$0xf]
    %v8401 = vld [vmem:[%s8368 + $0x80] sm:$0xf]
    %v8402 = vld [vmem:[%s8368 + $0x84] sm:$0xf]
    %v8403 = vld [vmem:[%s8368 + $0x88] sm:$0xf]
    %v8404 = vld [vmem:[%s8368 + $0x8c] sm:$0xf]
    %v8405 = vld [vmem:[%s8368 + $0x90] sm:$0xf]
    %v8406 = vld [vmem:[%s8368 + $0x94] sm:$0xf]
    %v8407 = vld [vmem:[%s8368 + $0x98] sm:$0xf]
    %v8408 = vld [vmem:[%s8368 + $0x9c] sm:$0xf]
    %v8409 = vld [vmem:[%s8368 + $0xa0] sm:$0xf]
    %v8410 = vld [vmem:[%s8368 + $0xa4] sm:$0xf]
    %v8411 = vld [vmem:[%s8368 + $0xa8] sm:$0xf]
    %v8412 = vld [vmem:[%s8368 + $0xac] sm:$0xf]
    %v8413 = vld [vmem:[%s8368 + $0xb0] sm:$0xf]
    %v8414 = vld [vmem:[%s8368 + $0xb4] sm:$0xf]
    %v8415 = vld [vmem:[%s8368 + $0xb8] sm:$0xf]
    %v8416 = vld [vmem:[%s8368 + $0xbc] sm:$0xf]
    %v8417 = vld [vmem:[%s8368 + $0xc0] sm:$0xf]
    %v8418 = vld [vmem:[%s8368 + $0xc4] sm:$0xf]
    %v8419 = vld [vmem:[%s8368 + $0xc8] sm:$0xf]
    %v8420 = vld [vmem:[%s8368 + $0xcc] sm:$0xf]
    %v8421 = vld [vmem:[%s8368 + $0xd0] sm:$0xf]
    %v8422 = vld [vmem:[%s8368 + $0xd4] sm:$0xf]
    %v8423 = vld [vmem:[%s8368 + $0xd8] sm:$0xf]
    %v8424 = vld [vmem:[%s8368 + $0xdc] sm:$0xf]
    %v8425 = vld [vmem:[%s8368 + $0xe0] sm:$0xf]
    %v8426 = vld [vmem:[%s8368 + $0xe4] sm:$0xf]
    %v8427 = vld [vmem:[%s8368 + $0xe8] sm:$0xf]
    %v8428 = vld [vmem:[%s8368 + $0xec] sm:$0xf]
    %v8429 = vld [vmem:[%s8368 + $0xf0] sm:$0xf]
    %v8430 = vld [vmem:[%s8368 + $0xf4] sm:$0xf]
    %v8431 = vld [vmem:[%s8368 + $0xf8] sm:$0xf]
    %v8432 = vld [vmem:[%s8368 + $0xfc] sm:$0xf]
    %v8435 = vunpack.c.l.b16 %v6745
    %v8436 = vunpack.c.h.b16 %v6745
    %v8437 = vunpack.c.l.b16 %v6746
    %v8438 = vunpack.c.h.b16 %v6746
    %v8439 = vpack.c.b16 %v8435, %v8435
    %v8440 = vpack.c.b16 %v8436, %v8436
    %v8441 = vpack.c.b16 %v8437, %v8437
    %v8442 = vpack.c.b16 %v8438, %v8438
    %v8511 = vunpack.c.l.b16 %v8369
    %v8512 = vunpack.c.l.b16 %v8370
    %v8513 = vunpack.c.l.b16 %v8371
    %v8514 = vunpack.c.l.b16 %v8372
    %v8515 = vunpack.c.l.b16 %v8373
    %v8516 = vunpack.c.l.b16 %v8374
    %v8517 = vunpack.c.l.b16 %v8375
    %v8518 = vunpack.c.l.b16 %v8376
    %v8519 = vunpack.c.l.b16 %v8377
    %v8520 = vunpack.c.l.b16 %v8378
    %v8521 = vunpack.c.l.b16 %v8379
    %v8522 = vunpack.c.l.b16 %v8380
    %v8523 = vunpack.c.l.b16 %v8381
    %v8524 = vunpack.c.l.b16 %v8382
    %v8525 = vunpack.c.l.b16 %v8383
    %v8526 = vunpack.c.l.b16 %v8384
    %v8527 = vunpack.c.l.b16 %v8385
    %v8528 = vunpack.c.l.b16 %v8386
    %v8529 = vunpack.c.l.b16 %v8387
    %v8530 = vunpack.c.l.b16 %v8388
    %v8531 = vunpack.c.l.b16 %v8389
    %v8532 = vunpack.c.l.b16 %v8390
    %v8533 = vunpack.c.l.b16 %v8391
    %v8534 = vunpack.c.l.b16 %v8392
    %v8535 = vunpack.c.l.b16 %v8393
    %v8536 = vunpack.c.l.b16 %v8394
    %v8537 = vunpack.c.l.b16 %v8395
    %v8538 = vunpack.c.l.b16 %v8396
    %v8539 = vunpack.c.l.b16 %v8397
    %v8540 = vunpack.c.l.b16 %v8398
    %v8541 = vunpack.c.l.b16 %v8399
    %v8542 = vunpack.c.l.b16 %v8400
    %v8543 = vunpack.c.l.b16 %v8401
    %v8544 = vunpack.c.l.b16 %v8402
    %v8545 = vunpack.c.l.b16 %v8403
    %v8546 = vunpack.c.l.b16 %v8404
    %v8547 = vunpack.c.l.b16 %v8405
    %v8548 = vunpack.c.l.b16 %v8406
    %v8549 = vunpack.c.l.b16 %v8407
    %v8550 = vunpack.c.l.b16 %v8408
    %v8551 = vunpack.c.l.b16 %v8409
    %v8552 = vunpack.c.l.b16 %v8410
    %v8553 = vunpack.c.l.b16 %v8411
    %v8554 = vunpack.c.l.b16 %v8412
    %v8555 = vunpack.c.l.b16 %v8413
    %v8556 = vunpack.c.l.b16 %v8414
    %v8557 = vunpack.c.l.b16 %v8415
    %v8558 = vunpack.c.l.b16 %v8416
    %v8559 = vunpack.c.l.b16 %v8417
    %v8560 = vunpack.c.l.b16 %v8418
    %v8561 = vunpack.c.l.b16 %v8419
    %v8562 = vunpack.c.l.b16 %v8420
    %v8563 = vunpack.c.l.b16 %v8421
    %v8564 = vunpack.c.l.b16 %v8422
    %v8565 = vunpack.c.l.b16 %v8423
    %v8566 = vunpack.c.l.b16 %v8424
    %v8567 = vunpack.c.l.b16 %v8425
    %v8568 = vunpack.c.l.b16 %v8426
    %v8569 = vunpack.c.l.b16 %v8427
    %v8570 = vunpack.c.l.b16 %v8428
    %v8571 = vunpack.c.l.b16 %v8429
    %v8572 = vunpack.c.l.b16 %v8430
    %v8573 = vunpack.c.l.b16 %v8431
    %v8574 = vunpack.c.l.b16 %v8432
    %v8575 = vpack.c.b16 %v8512, %v8511
    %v8576 = vpack.c.b16 %v8514, %v8513
    %v8577 = vpack.c.b16 %v8516, %v8515
    %v8578 = vpack.c.b16 %v8518, %v8517
    %v8579 = vpack.c.b16 %v8520, %v8519
    %v8580 = vpack.c.b16 %v8522, %v8521
    %v8581 = vpack.c.b16 %v8524, %v8523
    %v8582 = vpack.c.b16 %v8526, %v8525
    %v8583 = vpack.c.b16 %v8528, %v8527
    %v8584 = vpack.c.b16 %v8530, %v8529
    %v8585 = vpack.c.b16 %v8532, %v8531
    %v8586 = vpack.c.b16 %v8534, %v8533
    %v8587 = vpack.c.b16 %v8536, %v8535
    %v8588 = vpack.c.b16 %v8538, %v8537
    %v8589 = vpack.c.b16 %v8540, %v8539
    %v8590 = vpack.c.b16 %v8542, %v8541
    %v8591 = vpack.c.b16 %v8544, %v8543
    %v8592 = vpack.c.b16 %v8546, %v8545
    %v8593 = vpack.c.b16 %v8548, %v8547
    %v8594 = vpack.c.b16 %v8550, %v8549
    %v8595 = vpack.c.b16 %v8552, %v8551
    %v8596 = vpack.c.b16 %v8554, %v8553
    %v8597 = vpack.c.b16 %v8556, %v8555
    %v8598 = vpack.c.b16 %v8558, %v8557
    %v8599 = vpack.c.b16 %v8560, %v8559
    %v8600 = vpack.c.b16 %v8562, %v8561
    %v8601 = vpack.c.b16 %v8564, %v8563
    %v8602 = vpack.c.b16 %v8566, %v8565
    %v8603 = vpack.c.b16 %v8568, %v8567
    %v8604 = vpack.c.b16 %v8570, %v8569
    %v8605 = vpack.c.b16 %v8572, %v8571
    %v8606 = vpack.c.b16 %v8574, %v8573
    %8639 = vmatpush.bf16.msra.mxu0 %v8582
    %8640 = vmatpush.bf16.msra.mxu0 %v8581
    %8641 = vmatpush.bf16.msra.mxu0 %v8580
    %8642 = vmatpush.bf16.msra.mxu0 %v8579
    %8643 = vmatpush.bf16.msra.mxu0 %v8578
    %8644 = vmatpush.bf16.msra.mxu0 %v8577
    %8645 = vmatpush.bf16.msra.mxu0 %v8576
    %8646 = vmatpush.bf16.msra.mxu0 %v8575
    %8647 = vmatmul.bf16.gmra.mxu0 %v8439
    %v8648 = vpop.f32.mrf.mxu0
    %v8649 = vadd.f32 0.0, %v8648
    %v8650 = vpop.f32.mrf.mxu0
    %8651 = vdwg.mxu0
    %8652 = vmatpush.bf16.msra.mxu0 %v8590
    %8653 = vmatpush.bf16.msra.mxu0 %v8589
    %8654 = vmatpush.bf16.msra.mxu0 %v8588
    %8655 = vmatpush.bf16.msra.mxu0 %v8587
    %8656 = vmatpush.bf16.msra.mxu0 %v8586
    %8657 = vmatpush.bf16.msra.mxu0 %v8585
    %8658 = vmatpush.bf16.msra.mxu0 %v8584
    %8659 = vmatpush.bf16.msra.mxu0 %v8583
    %8660 = vmatmul.bf16.gmra.mxu0 %v8440
    %v8661 = vpop.f32.mrf.mxu0
    %v8662 = vadd.f32 %v8649, %v8661
    %v8663 = vpop.f32.mrf.mxu0
    %8664 = vdwg.mxu0
    %8665 = vmatpush.bf16.msra.mxu0 %v8598
    %8666 = vmatpush.bf16.msra.mxu0 %v8597
    %8667 = vmatpush.bf16.msra.mxu0 %v8596
    %8668 = vmatpush.bf16.msra.mxu0 %v8595
    %8669 = vmatpush.bf16.msra.mxu0 %v8594
    %8670 = vmatpush.bf16.msra.mxu0 %v8593
    %8671 = vmatpush.bf16.msra.mxu0 %v8592
    %8672 = vmatpush.bf16.msra.mxu0 %v8591
    %8673 = vmatmul.bf16.gmra.mxu0 %v8441
    %v8674 = vpop.f32.mrf.mxu0
    %v8675 = vadd.f32 %v8662, %v8674
    %v8676 = vpop.f32.mrf.mxu0
    %8677 = vdwg.mxu0
    %8678 = vmatpush.bf16.msra.mxu0 %v8606
    %8679 = vmatpush.bf16.msra.mxu0 %v8605
    %8680 = vmatpush.bf16.msra.mxu0 %v8604
    %8681 = vmatpush.bf16.msra.mxu0 %v8603
    %8682 = vmatpush.bf16.msra.mxu0 %v8602
    %8683 = vmatpush.bf16.msra.mxu0 %v8601
    %8684 = vmatpush.bf16.msra.mxu0 %v8600
    %8685 = vmatpush.bf16.msra.mxu0 %v8599
    %8686 = vmatmul.bf16.gmra.mxu0 %v8442
    %v8687 = vpop.f32.mrf.mxu0
    %v8688 = vadd.f32 %v8675, %v8687
    %v8689 = vpop.f32.mrf.mxu0
    %8690 = vdwg.mxu0
    %v8691 = vadd.f32 %v8367, %v8688
    %s8692 = scalar_lea.vmem [#allocation9], 1536
    %v8693 = vld [vmem:[%s8692] sm:$0xf]
    %v8694 = vld [vmem:[%s8692 + $0x4] sm:$0xf]
    %v8695 = vld [vmem:[%s8692 + $0x8] sm:$0xf]
    %v8696 = vld [vmem:[%s8692 + $0xc] sm:$0xf]
    %v8697 = vld [vmem:[%s8692 + $0x10] sm:$0xf]
    %v8698 = vld [vmem:[%s8692 + $0x14] sm:$0xf]
    %v8699 = vld [vmem:[%s8692 + $0x18] sm:$0xf]
    %v8700 = vld [vmem:[%s8692 + $0x1c] sm:$0xf]
    %v8701 = vld [vmem:[%s8692 + $0x20] sm:$0xf]
    %v8702 = vld [vmem:[%s8692 + $0x24] sm:$0xf]
    %v8703 = vld [vmem:[%s8692 + $0x28] sm:$0xf]
    %v8704 = vld [vmem:[%s8692 + $0x2c] sm:$0xf]
    %v8705 = vld [vmem:[%s8692 + $0x30] sm:$0xf]
    %v8706 = vld [vmem:[%s8692 + $0x34] sm:$0xf]
    %v8707 = vld [vmem:[%s8692 + $0x38] sm:$0xf]
    %v8708 = vld [vmem:[%s8692 + $0x3c] sm:$0xf]
    %v8709 = vld [vmem:[%s8692 + $0x40] sm:$0xf]
    %v8710 = vld [vmem:[%s8692 + $0x44] sm:$0xf]
    %v8711 = vld [vmem:[%s8692 + $0x48] sm:$0xf]
    %v8712 = vld [vmem:[%s8692 + $0x4c] sm:$0xf]
    %v8713 = vld [vmem:[%s8692 + $0x50] sm:$0xf]
    %v8714 = vld [vmem:[%s8692 + $0x54] sm:$0xf]
    %v8715 = vld [vmem:[%s8692 + $0x58] sm:$0xf]
    %v8716 = vld [vmem:[%s8692 + $0x5c] sm:$0xf]
    %v8717 = vld [vmem:[%s8692 + $0x60] sm:$0xf]
    %v8718 = vld [vmem:[%s8692 + $0x64] sm:$0xf]
    %v8719 = vld [vmem:[%s8692 + $0x68] sm:$0xf]
    %v8720 = vld [vmem:[%s8692 + $0x6c] sm:$0xf]
    %v8721 = vld [vmem:[%s8692 + $0x70] sm:$0xf]
    %v8722 = vld [vmem:[%s8692 + $0x74] sm:$0xf]
    %v8723 = vld [vmem:[%s8692 + $0x78] sm:$0xf]
    %v8724 = vld [vmem:[%s8692 + $0x7c] sm:$0xf]
    %v8725 = vld [vmem:[%s8692 + $0x80] sm:$0xf]
    %v8726 = vld [vmem:[%s8692 + $0x84] sm:$0xf]
    %v8727 = vld [vmem:[%s8692 + $0x88] sm:$0xf]
    %v8728 = vld [vmem:[%s8692 + $0x8c] sm:$0xf]
    %v8729 = vld [vmem:[%s8692 + $0x90] sm:$0xf]
    %v8730 = vld [vmem:[%s8692 + $0x94] sm:$0xf]
    %v8731 = vld [vmem:[%s8692 + $0x98] sm:$0xf]
    %v8732 = vld [vmem:[%s8692 + $0x9c] sm:$0xf]
    %v8733 = vld [vmem:[%s8692 + $0xa0] sm:$0xf]
    %v8734 = vld [vmem:[%s8692 + $0xa4] sm:$0xf]
    %v8735 = vld [vmem:[%s8692 + $0xa8] sm:$0xf]
    %v8736 = vld [vmem:[%s8692 + $0xac] sm:$0xf]
    %v8737 = vld [vmem:[%s8692 + $0xb0] sm:$0xf]
    %v8738 = vld [vmem:[%s8692 + $0xb4] sm:$0xf]
    %v8739 = vld [vmem:[%s8692 + $0xb8] sm:$0xf]
    %v8740 = vld [vmem:[%s8692 + $0xbc] sm:$0xf]
    %v8741 = vld [vmem:[%s8692 + $0xc0] sm:$0xf]
    %v8742 = vld [vmem:[%s8692 + $0xc4] sm:$0xf]
    %v8743 = vld [vmem:[%s8692 + $0xc8] sm:$0xf]
    %v8744 = vld [vmem:[%s8692 + $0xcc] sm:$0xf]
    %v8745 = vld [vmem:[%s8692 + $0xd0] sm:$0xf]
    %v8746 = vld [vmem:[%s8692 + $0xd4] sm:$0xf]
    %v8747 = vld [vmem:[%s8692 + $0xd8] sm:$0xf]
    %v8748 = vld [vmem:[%s8692 + $0xdc] sm:$0xf]
    %v8749 = vld [vmem:[%s8692 + $0xe0] sm:$0xf]
    %v8750 = vld [vmem:[%s8692 + $0xe4] sm:$0xf]
    %v8751 = vld [vmem:[%s8692 + $0xe8] sm:$0xf]
    %v8752 = vld [vmem:[%s8692 + $0xec] sm:$0xf]
    %v8753 = vld [vmem:[%s8692 + $0xf0] sm:$0xf]
    %v8754 = vld [vmem:[%s8692 + $0xf4] sm:$0xf]
    %v8755 = vld [vmem:[%s8692 + $0xf8] sm:$0xf]
    %v8756 = vld [vmem:[%s8692 + $0xfc] sm:$0xf]
    %v8759 = vunpack.c.l.b16 %v6747
    %v8760 = vunpack.c.h.b16 %v6747
    %v8761 = vunpack.c.l.b16 %v6748
    %v8762 = vunpack.c.h.b16 %v6748
    %v8763 = vpack.c.b16 %v8759, %v8759
    %v8764 = vpack.c.b16 %v8760, %v8760
    %v8765 = vpack.c.b16 %v8761, %v8761
    %v8766 = vpack.c.b16 %v8762, %v8762
    %v8835 = vunpack.c.l.b16 %v8693
    %v8836 = vunpack.c.l.b16 %v8694
    %v8837 = vunpack.c.l.b16 %v8695
    %v8838 = vunpack.c.l.b16 %v8696
    %v8839 = vunpack.c.l.b16 %v8697
    %v8840 = vunpack.c.l.b16 %v8698
    %v8841 = vunpack.c.l.b16 %v8699
    %v8842 = vunpack.c.l.b16 %v8700
    %v8843 = vunpack.c.l.b16 %v8701
    %v8844 = vunpack.c.l.b16 %v8702
    %v8845 = vunpack.c.l.b16 %v8703
    %v8846 = vunpack.c.l.b16 %v8704
    %v8847 = vunpack.c.l.b16 %v8705
    %v8848 = vunpack.c.l.b16 %v8706
    %v8849 = vunpack.c.l.b16 %v8707
    %v8850 = vunpack.c.l.b16 %v8708
    %v8851 = vunpack.c.l.b16 %v8709
    %v8852 = vunpack.c.l.b16 %v8710
    %v8853 = vunpack.c.l.b16 %v8711
    %v8854 = vunpack.c.l.b16 %v8712
    %v8855 = vunpack.c.l.b16 %v8713
    %v8856 = vunpack.c.l.b16 %v8714
    %v8857 = vunpack.c.l.b16 %v8715
    %v8858 = vunpack.c.l.b16 %v8716
    %v8859 = vunpack.c.l.b16 %v8717
    %v8860 = vunpack.c.l.b16 %v8718
    %v8861 = vunpack.c.l.b16 %v8719
    %v8862 = vunpack.c.l.b16 %v8720
    %v8863 = vunpack.c.l.b16 %v8721
    %v8864 = vunpack.c.l.b16 %v8722
    %v8865 = vunpack.c.l.b16 %v8723
    %v8866 = vunpack.c.l.b16 %v8724
    %v8867 = vunpack.c.l.b16 %v8725
    %v8868 = vunpack.c.l.b16 %v8726
    %v8869 = vunpack.c.l.b16 %v8727
    %v8870 = vunpack.c.l.b16 %v8728
    %v8871 = vunpack.c.l.b16 %v8729
    %v8872 = vunpack.c.l.b16 %v8730
    %v8873 = vunpack.c.l.b16 %v8731
    %v8874 = vunpack.c.l.b16 %v8732
    %v8875 = vunpack.c.l.b16 %v8733
    %v8876 = vunpack.c.l.b16 %v8734
    %v8877 = vunpack.c.l.b16 %v8735
    %v8878 = vunpack.c.l.b16 %v8736
    %v8879 = vunpack.c.l.b16 %v8737
    %v8880 = vunpack.c.l.b16 %v8738
    %v8881 = vunpack.c.l.b16 %v8739
    %v8882 = vunpack.c.l.b16 %v8740
    %v8883 = vunpack.c.l.b16 %v8741
    %v8884 = vunpack.c.l.b16 %v8742
    %v8885 = vunpack.c.l.b16 %v8743
    %v8886 = vunpack.c.l.b16 %v8744
    %v8887 = vunpack.c.l.b16 %v8745
    %v8888 = vunpack.c.l.b16 %v8746
    %v8889 = vunpack.c.l.b16 %v8747
    %v8890 = vunpack.c.l.b16 %v8748
    %v8891 = vunpack.c.l.b16 %v8749
    %v8892 = vunpack.c.l.b16 %v8750
    %v8893 = vunpack.c.l.b16 %v8751
    %v8894 = vunpack.c.l.b16 %v8752
    %v8895 = vunpack.c.l.b16 %v8753
    %v8896 = vunpack.c.l.b16 %v8754
    %v8897 = vunpack.c.l.b16 %v8755
    %v8898 = vunpack.c.l.b16 %v8756
    %v8899 = vpack.c.b16 %v8836, %v8835
    %v8900 = vpack.c.b16 %v8838, %v8837
    %v8901 = vpack.c.b16 %v8840, %v8839
    %v8902 = vpack.c.b16 %v8842, %v8841
    %v8903 = vpack.c.b16 %v8844, %v8843
    %v8904 = vpack.c.b16 %v8846, %v8845
    %v8905 = vpack.c.b16 %v8848, %v8847
    %v8906 = vpack.c.b16 %v8850, %v8849
    %v8907 = vpack.c.b16 %v8852, %v8851
    %v8908 = vpack.c.b16 %v8854, %v8853
    %v8909 = vpack.c.b16 %v8856, %v8855
    %v8910 = vpack.c.b16 %v8858, %v8857
    %v8911 = vpack.c.b16 %v8860, %v8859
    %v8912 = vpack.c.b16 %v8862, %v8861
    %v8913 = vpack.c.b16 %v8864, %v8863
    %v8914 = vpack.c.b16 %v8866, %v8865
    %v8915 = vpack.c.b16 %v8868, %v8867
    %v8916 = vpack.c.b16 %v8870, %v8869
    %v8917 = vpack.c.b16 %v8872, %v8871
    %v8918 = vpack.c.b16 %v8874, %v8873
    %v8919 = vpack.c.b16 %v8876, %v8875
    %v8920 = vpack.c.b16 %v8878, %v8877
    %v8921 = vpack.c.b16 %v8880, %v8879
    %v8922 = vpack.c.b16 %v8882, %v8881
    %v8923 = vpack.c.b16 %v8884, %v8883
    %v8924 = vpack.c.b16 %v8886, %v8885
    %v8925 = vpack.c.b16 %v8888, %v8887
    %v8926 = vpack.c.b16 %v8890, %v8889
    %v8927 = vpack.c.b16 %v8892, %v8891
    %v8928 = vpack.c.b16 %v8894, %v8893
    %v8929 = vpack.c.b16 %v8896, %v8895
    %v8930 = vpack.c.b16 %v8898, %v8897
    %8963 = vmatpush.bf16.msra.mxu0 %v8906
    %8964 = vmatpush.bf16.msra.mxu0 %v8905
    %8965 = vmatpush.bf16.msra.mxu0 %v8904
    %8966 = vmatpush.bf16.msra.mxu0 %v8903
    %8967 = vmatpush.bf16.msra.mxu0 %v8902
    %8968 = vmatpush.bf16.msra.mxu0 %v8901
    %8969 = vmatpush.bf16.msra.mxu0 %v8900
    %8970 = vmatpush.bf16.msra.mxu0 %v8899
    %8971 = vmatmul.bf16.gmra.mxu0 %v8763
    %v8972 = vpop.f32.mrf.mxu0
    %v8973 = vadd.f32 0.0, %v8972
    %v8974 = vpop.f32.mrf.mxu0
    %8975 = vdwg.mxu0
    %8976 = vmatpush.bf16.msra.mxu0 %v8914
    %8977 = vmatpush.bf16.msra.mxu0 %v8913
    %8978 = vmatpush.bf16.msra.mxu0 %v8912
    %8979 = vmatpush.bf16.msra.mxu0 %v8911
    %8980 = vmatpush.bf16.msra.mxu0 %v8910
    %8981 = vmatpush.bf16.msra.mxu0 %v8909
    %8982 = vmatpush.bf16.msra.mxu0 %v8908
    %8983 = vmatpush.bf16.msra.mxu0 %v8907
    %8984 = vmatmul.bf16.gmra.mxu0 %v8764
    %v8985 = vpop.f32.mrf.mxu0
    %v8986 = vadd.f32 %v8973, %v8985
    %v8987 = vpop.f32.mrf.mxu0
    %8988 = vdwg.mxu0
    %8989 = vmatpush.bf16.msra.mxu0 %v8922
    %8990 = vmatpush.bf16.msra.mxu0 %v8921
    %8991 = vmatpush.bf16.msra.mxu0 %v8920
    %8992 = vmatpush.bf16.msra.mxu0 %v8919
    %8993 = vmatpush.bf16.msra.mxu0 %v8918
    %8994 = vmatpush.bf16.msra.mxu0 %v8917
    %8995 = vmatpush.bf16.msra.mxu0 %v8916
    %8996 = vmatpush.bf16.msra.mxu0 %v8915
    %8997 = vmatmul.bf16.gmra.mxu0 %v8765
    %v8998 = vpop.f32.mrf.mxu0
    %v8999 = vadd.f32 %v8986, %v8998
    %v9000 = vpop.f32.mrf.mxu0
    %9001 = vdwg.mxu0
    %9002 = vmatpush.bf16.msra.mxu0 %v8930
    %9003 = vmatpush.bf16.msra.mxu0 %v8929
    %9004 = vmatpush.bf16.msra.mxu0 %v8928
    %9005 = vmatpush.bf16.msra.mxu0 %v8927
    %9006 = vmatpush.bf16.msra.mxu0 %v8926
    %9007 = vmatpush.bf16.msra.mxu0 %v8925
    %9008 = vmatpush.bf16.msra.mxu0 %v8924
    %9009 = vmatpush.bf16.msra.mxu0 %v8923
    %9010 = vmatmul.bf16.gmra.mxu0 %v8766
    %v9011 = vpop.f32.mrf.mxu0
    %v9012 = vadd.f32 %v8999, %v9011
    %v9013 = vpop.f32.mrf.mxu0
    %9014 = vdwg.mxu0
    %v9015 = vadd.f32 %v8691, %v9012
    %s9016 = scalar_lea.vmem [#allocation9], 1792
    %v9017 = vld [vmem:[%s9016] sm:$0xf]
    %v9018 = vld [vmem:[%s9016 + $0x4] sm:$0xf]
    %v9019 = vld [vmem:[%s9016 + $0x8] sm:$0xf]
    %v9020 = vld [vmem:[%s9016 + $0xc] sm:$0xf]
    %v9021 = vld [vmem:[%s9016 + $0x10] sm:$0xf]
    %v9022 = vld [vmem:[%s9016 + $0x14] sm:$0xf]
    %v9023 = vld [vmem:[%s9016 + $0x18] sm:$0xf]
    %v9024 = vld [vmem:[%s9016 + $0x1c] sm:$0xf]
    %v9025 = vld [vmem:[%s9016 + $0x20] sm:$0xf]
    %v9026 = vld [vmem:[%s9016 + $0x24] sm:$0xf]
    %v9027 = vld [vmem:[%s9016 + $0x28] sm:$0xf]
    %v9028 = vld [vmem:[%s9016 + $0x2c] sm:$0xf]
    %v9029 = vld [vmem:[%s9016 + $0x30] sm:$0xf]
    %v9030 = vld [vmem:[%s9016 + $0x34] sm:$0xf]
    %v9031 = vld [vmem:[%s9016 + $0x38] sm:$0xf]
    %v9032 = vld [vmem:[%s9016 + $0x3c] sm:$0xf]
    %v9033 = vld [vmem:[%s9016 + $0x40] sm:$0xf]
    %v9034 = vld [vmem:[%s9016 + $0x44] sm:$0xf]
    %v9035 = vld [vmem:[%s9016 + $0x48] sm:$0xf]
    %v9036 = vld [vmem:[%s9016 + $0x4c] sm:$0xf]
    %v9037 = vld [vmem:[%s9016 + $0x50] sm:$0xf]
    %v9038 = vld [vmem:[%s9016 + $0x54] sm:$0xf]
    %v9039 = vld [vmem:[%s9016 + $0x58] sm:$0xf]
    %v9040 = vld [vmem:[%s9016 + $0x5c] sm:$0xf]
    %v9041 = vld [vmem:[%s9016 + $0x60] sm:$0xf]
    %v9042 = vld [vmem:[%s9016 + $0x64] sm:$0xf]
    %v9043 = vld [vmem:[%s9016 + $0x68] sm:$0xf]
    %v9044 = vld [vmem:[%s9016 + $0x6c] sm:$0xf]
    %v9045 = vld [vmem:[%s9016 + $0x70] sm:$0xf]
    %v9046 = vld [vmem:[%s9016 + $0x74] sm:$0xf]
    %v9047 = vld [vmem:[%s9016 + $0x78] sm:$0xf]
    %v9048 = vld [vmem:[%s9016 + $0x7c] sm:$0xf]
    %v9049 = vld [vmem:[%s9016 + $0x80] sm:$0xf]
    %v9050 = vld [vmem:[%s9016 + $0x84] sm:$0xf]
    %v9051 = vld [vmem:[%s9016 + $0x88] sm:$0xf]
    %v9052 = vld [vmem:[%s9016 + $0x8c] sm:$0xf]
    %v9053 = vld [vmem:[%s9016 + $0x90] sm:$0xf]
    %v9054 = vld [vmem:[%s9016 + $0x94] sm:$0xf]
    %v9055 = vld [vmem:[%s9016 + $0x98] sm:$0xf]
    %v9056 = vld [vmem:[%s9016 + $0x9c] sm:$0xf]
    %v9057 = vld [vmem:[%s9016 + $0xa0] sm:$0xf]
    %v9058 = vld [vmem:[%s9016 + $0xa4] sm:$0xf]
    %v9059 = vld [vmem:[%s9016 + $0xa8] sm:$0xf]
    %v9060 = vld [vmem:[%s9016 + $0xac] sm:$0xf]
    %v9061 = vld [vmem:[%s9016 + $0xb0] sm:$0xf]
    %v9062 = vld [vmem:[%s9016 + $0xb4] sm:$0xf]
    %v9063 = vld [vmem:[%s9016 + $0xb8] sm:$0xf]
    %v9064 = vld [vmem:[%s9016 + $0xbc] sm:$0xf]
    %v9065 = vld [vmem:[%s9016 + $0xc0] sm:$0xf]
    %v9066 = vld [vmem:[%s9016 + $0xc4] sm:$0xf]
    %v9067 = vld [vmem:[%s9016 + $0xc8] sm:$0xf]
    %v9068 = vld [vmem:[%s9016 + $0xcc] sm:$0xf]
    %v9069 = vld [vmem:[%s9016 + $0xd0] sm:$0xf]
    %v9070 = vld [vmem:[%s9016 + $0xd4] sm:$0xf]
    %v9071 = vld [vmem:[%s9016 + $0xd8] sm:$0xf]
    %v9072 = vld [vmem:[%s9016 + $0xdc] sm:$0xf]
    %v9073 = vld [vmem:[%s9016 + $0xe0] sm:$0xf]
    %v9074 = vld [vmem:[%s9016 + $0xe4] sm:$0xf]
    %v9075 = vld [vmem:[%s9016 + $0xe8] sm:$0xf]
    %v9076 = vld [vmem:[%s9016 + $0xec] sm:$0xf]
    %v9077 = vld [vmem:[%s9016 + $0xf0] sm:$0xf]
    %v9078 = vld [vmem:[%s9016 + $0xf4] sm:$0xf]
    %v9079 = vld [vmem:[%s9016 + $0xf8] sm:$0xf]
    %v9080 = vld [vmem:[%s9016 + $0xfc] sm:$0xf]
    %v9083 = vunpack.c.l.b16 %v6749
    %v9084 = vunpack.c.h.b16 %v6749
    %v9085 = vunpack.c.l.b16 %v6750
    %v9086 = vunpack.c.h.b16 %v6750
    %v9087 = vpack.c.b16 %v9083, %v9083
    %v9088 = vpack.c.b16 %v9084, %v9084
    %v9089 = vpack.c.b16 %v9085, %v9085
    %v9090 = vpack.c.b16 %v9086, %v9086
    %v9159 = vunpack.c.l.b16 %v9017
    %v9160 = vunpack.c.l.b16 %v9018
    %v9161 = vunpack.c.l.b16 %v9019
    %v9162 = vunpack.c.l.b16 %v9020
    %v9163 = vunpack.c.l.b16 %v9021
    %v9164 = vunpack.c.l.b16 %v9022
    %v9165 = vunpack.c.l.b16 %v9023
    %v9166 = vunpack.c.l.b16 %v9024
    %v9167 = vunpack.c.l.b16 %v9025
    %v9168 = vunpack.c.l.b16 %v9026
    %v9169 = vunpack.c.l.b16 %v9027
    %v9170 = vunpack.c.l.b16 %v9028
    %v9171 = vunpack.c.l.b16 %v9029
    %v9172 = vunpack.c.l.b16 %v9030
    %v9173 = vunpack.c.l.b16 %v9031
    %v9174 = vunpack.c.l.b16 %v9032
    %v9175 = vunpack.c.l.b16 %v9033
    %v9176 = vunpack.c.l.b16 %v9034
    %v9177 = vunpack.c.l.b16 %v9035
    %v9178 = vunpack.c.l.b16 %v9036
    %v9179 = vunpack.c.l.b16 %v9037
    %v9180 = vunpack.c.l.b16 %v9038
    %v9181 = vunpack.c.l.b16 %v9039
    %v9182 = vunpack.c.l.b16 %v9040
    %v9183 = vunpack.c.l.b16 %v9041
    %v9184 = vunpack.c.l.b16 %v9042
    %v9185 = vunpack.c.l.b16 %v9043
    %v9186 = vunpack.c.l.b16 %v9044
    %v9187 = vunpack.c.l.b16 %v9045
    %v9188 = vunpack.c.l.b16 %v9046
    %v9189 = vunpack.c.l.b16 %v9047
    %v9190 = vunpack.c.l.b16 %v9048
    %v9191 = vunpack.c.l.b16 %v9049
    %v9192 = vunpack.c.l.b16 %v9050
    %v9193 = vunpack.c.l.b16 %v9051
    %v9194 = vunpack.c.l.b16 %v9052
    %v9195 = vunpack.c.l.b16 %v9053
    %v9196 = vunpack.c.l.b16 %v9054
    %v9197 = vunpack.c.l.b16 %v9055
    %v9198 = vunpack.c.l.b16 %v9056
    %v9199 = vunpack.c.l.b16 %v9057
    %v9200 = vunpack.c.l.b16 %v9058
    %v9201 = vunpack.c.l.b16 %v9059
    %v9202 = vunpack.c.l.b16 %v9060
    %v9203 = vunpack.c.l.b16 %v9061
    %v9204 = vunpack.c.l.b16 %v9062
    %v9205 = vunpack.c.l.b16 %v9063
    %v9206 = vunpack.c.l.b16 %v9064
    %v9207 = vunpack.c.l.b16 %v9065
    %v9208 = vunpack.c.l.b16 %v9066
    %v9209 = vunpack.c.l.b16 %v9067
    %v9210 = vunpack.c.l.b16 %v9068
    %v9211 = vunpack.c.l.b16 %v9069
    %v9212 = vunpack.c.l.b16 %v9070
    %v9213 = vunpack.c.l.b16 %v9071
    %v9214 = vunpack.c.l.b16 %v9072
    %v9215 = vunpack.c.l.b16 %v9073
    %v9216 = vunpack.c.l.b16 %v9074
    %v9217 = vunpack.c.l.b16 %v9075
    %v9218 = vunpack.c.l.b16 %v9076
    %v9219 = vunpack.c.l.b16 %v9077
    %v9220 = vunpack.c.l.b16 %v9078
    %v9221 = vunpack.c.l.b16 %v9079
    %v9222 = vunpack.c.l.b16 %v9080
    %v9223 = vpack.c.b16 %v9160, %v9159
    %v9224 = vpack.c.b16 %v9162, %v9161
    %v9225 = vpack.c.b16 %v9164, %v9163
    %v9226 = vpack.c.b16 %v9166, %v9165
    %v9227 = vpack.c.b16 %v9168, %v9167
    %v9228 = vpack.c.b16 %v9170, %v9169
    %v9229 = vpack.c.b16 %v9172, %v9171
    %v9230 = vpack.c.b16 %v9174, %v9173
    %v9231 = vpack.c.b16 %v9176, %v9175
    %v9232 = vpack.c.b16 %v9178, %v9177
    %v9233 = vpack.c.b16 %v9180, %v9179
    %v9234 = vpack.c.b16 %v9182, %v9181
    %v9235 = vpack.c.b16 %v9184, %v9183
    %v9236 = vpack.c.b16 %v9186, %v9185
    %v9237 = vpack.c.b16 %v9188, %v9187
    %v9238 = vpack.c.b16 %v9190, %v9189
    %v9239 = vpack.c.b16 %v9192, %v9191
    %v9240 = vpack.c.b16 %v9194, %v9193
    %v9241 = vpack.c.b16 %v9196, %v9195
    %v9242 = vpack.c.b16 %v9198, %v9197
    %v9243 = vpack.c.b16 %v9200, %v9199
    %v9244 = vpack.c.b16 %v9202, %v9201
    %v9245 = vpack.c.b16 %v9204, %v9203
    %v9246 = vpack.c.b16 %v9206, %v9205
    %v9247 = vpack.c.b16 %v9208, %v9207
    %v9248 = vpack.c.b16 %v9210, %v9209
    %v9249 = vpack.c.b16 %v9212, %v9211
    %v9250 = vpack.c.b16 %v9214, %v9213
    %v9251 = vpack.c.b16 %v9216, %v9215
    %v9252 = vpack.c.b16 %v9218, %v9217
    %v9253 = vpack.c.b16 %v9220, %v9219
    %v9254 = vpack.c.b16 %v9222, %v9221
    %9287 = vmatpush.bf16.msra.mxu0 %v9230
    %9288 = vmatpush.bf16.msra.mxu0 %v9229
    %9289 = vmatpush.bf16.msra.mxu0 %v9228
    %9290 = vmatpush.bf16.msra.mxu0 %v9227
    %9291 = vmatpush.bf16.msra.mxu0 %v9226
    %9292 = vmatpush.bf16.msra.mxu0 %v9225
    %9293 = vmatpush.bf16.msra.mxu0 %v9224
    %9294 = vmatpush.bf16.msra.mxu0 %v9223
    %9295 = vmatmul.bf16.gmra.mxu0 %v9087
    %v9296 = vpop.f32.mrf.mxu0
    %v9297 = vadd.f32 0.0, %v9296
    %v9298 = vpop.f32.mrf.mxu0
    %9299 = vdwg.mxu0
    %9300 = vmatpush.bf16.msra.mxu0 %v9238
    %9301 = vmatpush.bf16.msra.mxu0 %v9237
    %9302 = vmatpush.bf16.msra.mxu0 %v9236
    %9303 = vmatpush.bf16.msra.mxu0 %v9235
    %9304 = vmatpush.bf16.msra.mxu0 %v9234
    %9305 = vmatpush.bf16.msra.mxu0 %v9233
    %9306 = vmatpush.bf16.msra.mxu0 %v9232
    %9307 = vmatpush.bf16.msra.mxu0 %v9231
    %9308 = vmatmul.bf16.gmra.mxu0 %v9088
    %v9309 = vpop.f32.mrf.mxu0
    %v9310 = vadd.f32 %v9297, %v9309
    %v9311 = vpop.f32.mrf.mxu0
    %9312 = vdwg.mxu0
    %9313 = vmatpush.bf16.msra.mxu0 %v9246
    %9314 = vmatpush.bf16.msra.mxu0 %v9245
    %9315 = vmatpush.bf16.msra.mxu0 %v9244
    %9316 = vmatpush.bf16.msra.mxu0 %v9243
    %9317 = vmatpush.bf16.msra.mxu0 %v9242
    %9318 = vmatpush.bf16.msra.mxu0 %v9241
    %9319 = vmatpush.bf16.msra.mxu0 %v9240
    %9320 = vmatpush.bf16.msra.mxu0 %v9239
    %9321 = vmatmul.bf16.gmra.mxu0 %v9089
    %v9322 = vpop.f32.mrf.mxu0
    %v9323 = vadd.f32 %v9310, %v9322
    %v9324 = vpop.f32.mrf.mxu0
    %9325 = vdwg.mxu0
    %9326 = vmatpush.bf16.msra.mxu0 %v9254
    %9327 = vmatpush.bf16.msra.mxu0 %v9253
    %9328 = vmatpush.bf16.msra.mxu0 %v9252
    %9329 = vmatpush.bf16.msra.mxu0 %v9251
    %9330 = vmatpush.bf16.msra.mxu0 %v9250
    %9331 = vmatpush.bf16.msra.mxu0 %v9249
    %9332 = vmatpush.bf16.msra.mxu0 %v9248
    %9333 = vmatpush.bf16.msra.mxu0 %v9247
    %9334 = vmatmul.bf16.gmra.mxu0 %v9090
    %v9335 = vpop.f32.mrf.mxu0
    %v9336 = vadd.f32 %v9323, %v9335
    %v9337 = vpop.f32.mrf.mxu0
    %9338 = vdwg.mxu0
    %v9339 = vadd.f32 %v9015, %v9336
    %v9340 = vld [vmem:[%s8] sm:$0x1]
    %v9342 = vperm.slane %v9340, 0
    %v9344 = vadd.f32 %v9339, %v9342
    %v9345 = vmax.f32 %v9344, 0.0
    %v9346 = vld [vmem:[#allocation11] sm:$0xff]
    %v9347 = vld [vmem:[#allocation11 + $0x8] sm:$0xff]
    %v9348 = vld [vmem:[#allocation11 + $0x10] sm:$0xff]
    %v9349 = vld [vmem:[#allocation11 + $0x18] sm:$0xff]
    %v9350 = vld [vmem:[%s10] sm:$0x1]
    %v9352 = vperm.slane %v9350, 0
    %vm9354 = vcmask 261120
    %v9356 = vsel %vm9354, %v9345, 0
    %9358 = vmatpush.msra.mxu0 0.0
    %9359 = vmatpush.msra.mxu0 0.0
    %9360 = vmatpush.msra.mxu0 0.0
    %9361 = vmatpush.msra.mxu0 0.0
    %9362 = vmatpush.msra.mxu0 0.0
    %9363 = vmatpush.msra.mxu0 0.0
    %9364 = vmatpush.msra.mxu0 0.0
    %9365 = vmatpush.msra.mxu0 0.0
    %9366 = vmatpush.msra.mxu0 0.0
    %9367 = vmatpush.msra.mxu0 0.0
    %9368 = vmatpush.msra.mxu0 0.0
    %9369 = vmatpush.msra.mxu0 0.0
    %9370 = vmatpush.msra.mxu0 %v9349
    %9371 = vmatpush.msra.mxu0 %v9348
    %9372 = vmatpush.msra.mxu0 %v9347
    %9373 = vmatpush.msra.mxu0 %v9346
    %9374 = vmatmul.f32.gmra.mxu0 %v9356
    %v9375 = vpop.f32.mrf.mxu0
    %v9376 = vadd.f32 %v9352, %v9375
    %9377 = vdwg.mxu0
    %v9378 = vmax.f32 %v9376, 0.0
    %v9379 = vld [vmem:[#allocation12] sm:$0xff]
    %v9380 = vld [vmem:[#allocation12 + $0x8] sm:$0xff]
    %v9381 = vld [vmem:[#allocation12 + $0x10] sm:$0xff]
    %v9382 = vld [vmem:[#allocation12 + $0x18] sm:$0xff]
    %v9383 = vld [vmem:[%s12] sm:$0x1]
    %v9385 = vperm.slane %v9383, 0
    %v9388 = vsel %vm9354, %v9378, 0
    %9390 = vmatpush.msra.mxu0 0.0
    %9391 = vmatpush.msra.mxu0 0.0
    %9392 = vmatpush.msra.mxu0 0.0
    %9393 = vmatpush.msra.mxu0 0.0
    %9394 = vmatpush.msra.mxu0 0.0
    %9395 = vmatpush.msra.mxu0 0.0
    %9396 = vmatpush.msra.mxu0 0.0
    %9397 = vmatpush.msra.mxu0 0.0
    %9398 = vmatpush.msra.mxu0 0.0
    %9399 = vmatpush.msra.mxu0 0.0
    %9400 = vmatpush.msra.mxu0 0.0
    %9401 = vmatpush.msra.mxu0 0.0
    %9402 = vmatpush.msra.mxu0 %v9382
    %9403 = vmatpush.msra.mxu0 %v9381
    %9404 = vmatpush.msra.mxu0 %v9380
    %9405 = vmatpush.msra.mxu0 %v9379
    %9406 = vmatmul.f32.gmra.mxu0 %v9388
    %v9407 = vpop.f32.mrf.mxu0
    %v9408 = vadd.f32 %v9385, %v9407
    %9409 = vdwg.mxu0
    %vm9410 = vcmask 31744
    %v9411 = vsel %vm9410, %v9408, -inf
    %9412 = vmax.xlane.f32.xlu0 %v9411
    %v9413 = vpop.xlane.xlu0 %9412
    %v9414 = vsub.f32 %v9408, %v9413
    %v9415 = vmul.f32 %v9414, 1.442695
    %v9416 = vpow.pop %v9415
    %v9417 = vsel %vm9410, %v9416, 0.0
    %9418 = vadd.xlane.f32.xlu0 %v9417
    %v9419 = vpop.xlane.xlu0 %9418
    %v9420 = vrcp.pop %v9419
    %v9421 = vmul.f32 %v9419, %v9420
    %v9422 = vsub.f32 1.0, %v9421
    %v9423 = vmul.f32 %v9420, %v9422
    %v9424 = vadd.f32 %v9420, %v9423
    %vm9425 = vweird.f32 %v9419
    %vm9426 = vweird.f32 %v9420
    %vm9427 = vmor %vm9425, %vm9426
    %v9428 = vsel %vm9427, %v9420, %v9424
    %v9429 = vand.u32 2147483647, %v9419
    %vm9430 = vcmp.eq.f32.partialorder %v9429, 8.507059e+37
    %v9431 = vand.u32 %v9419, 2147483648
    %v9432 = vor.u32 1.1754944e-38, %v9431
    %v9433 = vsel %vm9430, %v9432, %v9428
    %v9434 = vmul.f32 %v9416, %v9433
    %9435 = vst.msk [vmem:[%s13] sm:$0xff] %vm9410, %v9434
    %vm9436 = vcmask 39968
    %9437 = vst.msk [vmem:[%s13] sm:$0xff] %vm9436, %v9408
    // Predicated region
    $region78: #{cnn_policy_forward.1} parent=1 // pred_check
      _
    $region79: #{cnn_policy_forward.1} parent=1 // pred_check_branch
      %9439 = sbr.rel (0) target = $region81
    $region80: #{cnn_policy_forward.1} parent=1 // pred_region
      _
    $region81: #{cnn_policy_forward.1} parent=1 // pred_fallthru
      _
    // Predicated region
    $region82: #{cnn_policy_forward.1} parent=1 // pred_check
      _
    $region83: #{cnn_policy_forward.1} parent=1 // pred_check_branch
      %9441 = sbr.rel (0) target = $region85
    $region84: #{cnn_policy_forward.1} parent=1 // pred_region
      _
    $region85: #{cnn_policy_forward.1} parent=1 // pred_fallthru
      _
    %9442 = vsyncpa [#allocation5], 1
    %9443 = vsyncpa [#allocation7], 1
    %9444 = vsyncpa [#allocation10], 1
    %9445 = vsyncpa [#allocation13], 1

</llo_original>
